<compile_context>
chip_gen: v7x
topology: tpu7x:2x2x1
jax: 0.10.0
libtpu: 0.0.40
codegen_flags: <defaults>
</compile_context>

<pallas_src>
import jax
import jax.numpy as jnp
from jax.experimental import pallas as pl
from jax.experimental.pallas import tpu as pltpu


_LANE = 128
_OUT_PAD = 128      # lane-dense output width; real out_features sliced back in JAX
_H1 = 1024          # per-eye hidden width
_H2 = 512           # concat hidden width
_H3 = 256           # fc hidden width


def _round_up(x, m):
    return ((x + m - 1) // m) * m


def _vmem_budget_bytes():
    """Generation-aware scoped-VMEM limit (leave headroom for the compiler)."""
    try:
        cap = pltpu.get_tpu_info().vmem_capacity_bytes
    except Exception:
        cap = 64 * 1024 * 1024          # conservative fallback (v7x-sized)
    budget = min(cap - 16 * 1024 * 1024, 96 * 1024 * 1024)
    return int(max(budget, 32 * 1024 * 1024))


def _choose_tiling(in_features, batch_hint=2, hp_dim=2):
    """Pick the K tile from explicit VMEM arithmetic (not a per-gen heuristic).

    Streamed bytes = 2 pipeline buffers x (tk, 2048) bf16 = tk * 8 KiB.
    Everything else is resident; the largest 128-multiple tk that fits wins.
    """
    budget = _vmem_budget_bytes()
    F128 = _round_up(in_features, _LANE)
    Bp = _round_up(max(int(batch_hint), 1), 8)     # sublane padding of (B, .) tiles
    resident_once = (
        2 * Bp * F128 * 2                          # left/right bf16 activations
        + Bp * hp_dim * 4                          # head pose (f32)
        + 2 * _H1 * 4                              # fused bias b12 (f32)
        + 2 * _H1 * _H2 * 2 + _H2 * 4              # wc (bf16) + bc
        + _H2 * _H3 * 2 + hp_dim * _H3 * 4 + _H3 * 4  # wf1e, wf1h, bf1
        + _H3 * _OUT_PAD * 2 + _OUT_PAD * 4        # wf2, bf2
        + Bp * _OUT_PAD * 4)                       # output slab
    # The pipeline still allocates 2 buffers even for constant-index operands.
    resident = 2 * resident_once + Bp * 2 * _H1 * 4    # + f32 accumulator scratch
    margin = 4 * 1024 * 1024                           # compiler-internal scratch
    per_k_row = 2 * (2 * _H1) * 2                      # 2 buffers x 2048 lanes x bf16
    tk_max = max(_LANE, (budget - resident - margin) // per_k_row)
    tk = min(int(tk_max), 8192, F128)
    tk = max(_LANE, (tk // _LANE) * _LANE)
    F_pad = _round_up(in_features, tk)
    return int(tk), int(F_pad)


def _gaze_fc_kernel(
    left_ref, right_ref, hp_ref,          # (num_k, B, tk) x2 resident, (B, 2)
    w12_ref, b12_ref,                     # streamed (tk, 2048) bf16 / fused bias
    wc_ref, bc_ref,                       # concat: Linear(2048, 512) [BN folded]
    wf1e_ref, wf1h_ref, bf1_ref,          # fc[0]: Linear(514, 256) eyes/head split
    wf2_ref, bf2_ref,                     # fc[2]: Linear(256, out), lane-padded
    out_ref,                              # (B, 128) f32
    acc_ref,                              # (B, 2048) f32 scratch, persists across K
):
    f32 = jnp.float32
    bf16 = jnp.bfloat16
    k = pl.program_id(0)

    @pl.when(k == 0)
    def _init():
        acc_ref[...] = jnp.zeros_like(acc_ref)

    # K-tiled first-layer matmuls.  Both eye branches share ONE streamed
    # (tk, 2048) bf16 weight block; activations are VMEM-resident and indexed
    # by the grid step, so the weight stream is the only per-step DMA.
    wblk = w12_ref[...]
    lblk = left_ref[k]
    rblk = right_ref[k]
    acc_ref[:, :_H1] += jnp.dot(lblk, wblk[:, :_H1], preferred_element_type=f32)
    acc_ref[:, _H1:] += jnp.dot(rblk, wblk[:, _H1:], preferred_element_type=f32)

    @pl.when(k == pl.num_programs(0) - 1)
    def _epilogue():
        # BatchNorm (eval mode) already folded into weights/biases at init.
        x = jnp.maximum(acc_ref[...] + b12_ref[...], 0.0).astype(bf16)   # (B, 2048)

        # cat([xl, xr], 1) @ Wc — xl/xr already sit contiguously in acc.
        xc = jnp.dot(x, wc_ref[...], preferred_element_type=f32) + bc_ref[...]
        xc = jnp.maximum(xc, 0.0).astype(bf16)

        # cat([xc, head_pose], 1) @ Wf1 == xc @ Wf1[:512] + hp @ Wf1[512:].
        # The 2-wide head-pose contraction is cheap VPU broadcast-FMAs.
        h = jnp.dot(xc, wf1e_ref[...], preferred_element_type=f32) + bf1_ref[...]
        hp = hp_ref[...]
        w_hp = wf1h_ref[...]
        for d in range(w_hp.shape[0]):             # static (= 2), unrolled
            h = h + hp[:, d:d + 1] * w_hp[d:d + 1, :]
        h = jnp.maximum(h, 0.0).astype(bf16)

        out = jnp.dot(h, wf2_ref[...], preferred_element_type=f32) + bf2_ref[...]
        out_ref[...] = out.astype(out_ref.dtype)


def gaze_fc_forward(left_eye, right_eye, head_pose, params, out_features=2):
    """left_eye/right_eye: (B, C, H, W) NCHW; head_pose: (B, 2)."""
    w12, b12 = params["w12"], params["b12"]
    wc, bc = params["wc"], params["bc"]
    wf1e, wf1h, bf1 = params["wf1e"], params["wf1h"], params["bf1"]
    wf2, bf2 = params["wf2"], params["bf2"]
    tk = int(params["tk"])
    F = int(params["in_features"])
    F_pad = int(w12.shape[0])            # padded once, at init time
    assert F_pad % tk == 0
    num_k = F_pad // tk

    B = left_eye.shape[0]
    bf16 = jnp.bfloat16

    # left_features / right_features are undefined in this module (abstract
    # base) — identity.  TODO(synk): plug in a conv backbone if specified.
    left_flat = left_eye.reshape(B, -1).astype(bf16)      # nn.Flatten(1)
    right_flat = right_eye.reshape(B, -1).astype(bf16)    # nn.Flatten(1)
    assert left_flat.shape[1] == F and right_flat.shape[1] == F

    # Only the tiny per-call activations get zero-padded here (a few KiB);
    # the big first-layer weights were padded once in init_params.
    if F_pad != F:
        left_flat = jnp.pad(left_flat, ((0, 0), (0, F_pad - F)))
        right_flat = jnp.pad(right_flat, ((0, 0), (0, F_pad - F)))

    # (num_k, B, tk) layout: whole activation stays VMEM-resident; the kernel
    # indexes the K chunk with the grid step (no per-step input DMAs).
    left3 = left_flat.reshape(B, num_k, tk).transpose(1, 0, 2)
    right3 = right_flat.reshape(B, num_k, tk).transpose(1, 0, 2)

    hp = head_pose.astype(jnp.float32)
    hp_dim = hp.shape[1]
    assert hp_dim == wf1h.shape[0]

    vmem_budget = _vmem_budget_bytes()

    # Advisory cost: matmul flops + bf16 weight / activation traffic.
    flops = 2 * B * (F_pad * 2 * _H1 + 2 * _H1 * _H2 + _H2 * _H3 + _H3 * _OUT_PAD)
    bytes_accessed = (
        2 * (F_pad * 2 * _H1 + 2 * _H1 * _H2 + _H2 * _H3 + _H3 * _OUT_PAD)   # bf16 weights
        + 2 * (2 * B * F_pad)                                                # bf16 inputs
        + 4 * (B * hp_dim + B * _OUT_PAD)                                    # f32 hp + out
        + 4 * (2 * _H1 + _H2 + _H3 + _OUT_PAD + hp_dim * _H3))               # f32 biases
    cost = pl.CostEstimate(flops=int(flops), transcendentals=0,
                           bytes_accessed=int(bytes_accessed))

    # TODO(synk): on v7x, add a leading size-2 "parallel" axis (or pl.core_map)
    # assigning the left / right weight streams to the two TensorCores.
    grid_spec = pltpu.PrefetchScalarGridSpec(
        num_scalar_prefetch=0,
        grid=(num_k,),
        in_specs=[
            pl.BlockSpec((num_k, B, tk), lambda k: (0, 0, 0)),    # left (resident)
            pl.BlockSpec((num_k, B, tk), lambda k: (0, 0, 0)),    # right (resident)
            pl.BlockSpec((B, hp_dim), lambda k: (0, 0)),          # head pose
            pl.BlockSpec((tk, 2 * _H1), lambda k: (k, 0)),        # w12 (streamed)
            pl.BlockSpec((1, 2 * _H1), lambda k: (0, 0)),         # b12
            pl.BlockSpec((2 * _H1, _H2), lambda k: (0, 0)),       # wc (resident)
            pl.BlockSpec((1, _H2), lambda k: (0, 0)),             # bc
            pl.BlockSpec((_H2, _H3), lambda k: (0, 0)),           # wf1 eyes part
            pl.BlockSpec((hp_dim, _H3), lambda k: (0, 0)),        # wf1 head-pose rows
            pl.BlockSpec((1, _H3), lambda k: (0, 0)),             # bf1
            pl.BlockSpec((_H3, _OUT_PAD), lambda k: (0, 0)),      # wf2 (lane-padded)
            pl.BlockSpec((1, _OUT_PAD), lambda k: (0, 0)),        # bf2 (lane-padded)
        ],
        out_specs=pl.BlockSpec((B, _OUT_PAD), lambda k: (0, 0)),
        scratch_shapes=[pltpu.VMEM((B, 2 * _H1), jnp.float32)],   # xl|xr accumulator
    )

    out_padded = pl.pallas_call(
        _gaze_fc_kernel,
        out_shape=jax.ShapeDtypeStruct((B, _OUT_PAD), jnp.float32),
        grid_spec=grid_spec,
        compiler_params=pltpu.CompilerParams(
            dimension_semantics=("arbitrary",),
            vmem_limit_bytes=vmem_budget,
        ),
        cost_estimate=cost,
    )(left3, right3, hp, w12, b12, wc, bc, wf1e, wf1h, bf1, wf2, bf2)

    return out_padded[:, :out_features]


# ----------------------------- parameter init ------------------------------

def _kaiming_uniform(key, fan_in, fan_out):
    # Matches the module's _init_weights: kaiming_uniform_(mode='fan_in',
    # nonlinearity='relu') -> bound = sqrt(6 / fan_in); Linear biases zeroed.
    bound = (6.0 / fan_in) ** 0.5
    return jax.random.uniform(key, (fan_in, fan_out), jnp.float32, -bound, bound)


def _bn_affine(num_features, eps=0.001):
    # Inference-mode BatchNorm1d with default running stats / affine params.
    gamma = jnp.ones((num_features,), jnp.float32)
    beta = jnp.zeros((num_features,), jnp.float32)
    running_mean = jnp.zeros((num_features,), jnp.float32)
    running_var = jnp.ones((num_features,), jnp.float32)
    scale = gamma / jnp.sqrt(running_var + eps)
    shift = beta - running_mean * scale
    return scale, shift


def init_params(key, in_features, out_features=2, batch_hint=2):
    assert out_features <= _OUT_PAD
    tk, F_pad = _choose_tiling(in_features, batch_hint=batch_hint)
    ks = jax.random.split(key, 5)
    bf16 = jnp.bfloat16

    # xl / xr: Linear(F, 1024) with BN(1024) folded:  W' = W*s, b' = b*s + t.
    sl, tl = _bn_affine(_H1)
    wl = _kaiming_uniform(ks[0], in_features, _H1) * sl[None, :]
    bl = jnp.zeros((_H1,), jnp.float32) * sl + tl
    sr, tr = _bn_affine(_H1)
    wr = _kaiming_uniform(ks[1], in_features, _H1) * sr[None, :]
    br = jnp.zeros((_H1,), jnp.float32) * sr + tr

    # One (F_pad, 2048) bf16 weight stream, zero-row-padded ONCE here (no
    # per-call jnp.pad of the big weights in the forward pass).
    w12 = jnp.concatenate([wl, wr], axis=1)
    w12 = jnp.pad(w12, ((0, F_pad - in_features), (0, 0))).astype(bf16)
    b12 = jnp.concatenate([bl, br])[None, :].astype(jnp.float32)

    # concat: Linear(2048, 512) with BN(512) folded.
    sc, tc = _bn_affine(_H2)
    wc = (_kaiming_uniform(ks[2], 2 * _H1, _H2) * sc[None, :]).astype(bf16)
    bc = (jnp.zeros((_H2,), jnp.float32) * sc + tc)[None, :]

    # fc[0]: Linear(514, 256); split eyes part (512, 256) / head-pose rows (2, 256).
    wf1 = _kaiming_uniform(ks[3], _H2 + 2, _H3)
    wf1e = wf1[:_H2].astype(bf16)
    wf1h = wf1[_H2:].astype(jnp.float32)
    bf1 = jnp.zeros((1, _H3), jnp.float32)

    # fc[2]: Linear(256, out); zero-pad to a lane-dense 128-wide output.
    wf2 = jnp.pad(_kaiming_uniform(ks[4], _H3, out_features),
                  ((0, 0), (0, _OUT_PAD - out_features))).astype(bf16)
    bf2 = jnp.zeros((1, _OUT_PAD), jnp.float32)

    return dict(w12=w12, b12=b12, wc=wc, bc=bc, wf1e=wf1e, wf1h=wf1h, bf1=bf1,
                wf2=wf2, bf2=bf2, tk=tk, in_features=int(in_features))


if __name__ == "__main__":
    key = jax.random.PRNGKey(0)
    k_l, k_r, k_h, k_p = jax.random.split(key, 4)

    B, C, H, W = 2, 4, 16, 16                 # flatten -> in_features = 1024
    OUT_FEATURES = 2                          # gaze pitch / yaw

    left_eye = jax.random.normal(k_l, (B, C, H, W), jnp.float32)
    right_eye = jax.random.normal(k_r, (B, C, H, W), jnp.float32)
    head_pose = jax.random.normal(k_h, (B, 2), jnp.float32)

    params = init_params(k_p, C * H * W, out_features=OUT_FEATURES, batch_hint=B)

    out = gaze_fc_forward(left_eye, right_eye, head_pose, params,
                          out_features=OUT_FEATURES)
    out = jax.block_until_ready(out)
    assert out.shape == (B, OUT_FEATURES) and out.dtype == jnp.float32
    print("KERNEL_OK")
</pallas_src>

<mosaic_0001>
module attributes {stable_mosaic.version = 11 : i64} {
  func.func @_gaze_fc_kernel(%arg0: i32, %arg1: memref<1x2x1024xbf16, #tpu.memory_space<vmem>>, %arg2: memref<1x2x1024xbf16, #tpu.memory_space<vmem>>, %arg3: memref<2x2xf32, #tpu.memory_space<vmem>>, %arg4: memref<1024x2048xbf16, #tpu.memory_space<vmem>>, %arg5: memref<1x2048xf32, #tpu.memory_space<vmem>>, %arg6: memref<2048x512xbf16, #tpu.memory_space<vmem>>, %arg7: memref<1x512xf32, #tpu.memory_space<vmem>>, %arg8: memref<512x256xbf16, #tpu.memory_space<vmem>>, %arg9: memref<2x256xf32, #tpu.memory_space<vmem>>, %arg10: memref<1x256xf32, #tpu.memory_space<vmem>>, %arg11: memref<256x128xbf16, #tpu.memory_space<vmem>>, %arg12: memref<1x128xf32, #tpu.memory_space<vmem>>, %arg13: memref<2x128xf32, #tpu.memory_space<vmem>>, %arg14: memref<2x2048xf32, #tpu.memory_space<vmem>>) attributes {dimension_semantics = [#tpu.dimension_semantics<arbitrary>], iteration_bounds = array<i64: 1>, scalar_prefetch = 0 : i64, scratch_operands = 1 : i64, tpu.core_type = #tpu.core_type<tc>, window_params = [{pipeline_mode = #tpu.pipeline_mode<synchronous>, transform_indices = @transform_0, window_bounds = array<i64: 1, 2, 1024>}, {pipeline_mode = #tpu.pipeline_mode<synchronous>, transform_indices = @transform_1, window_bounds = array<i64: 1, 2, 1024>}, {pipeline_mode = #tpu.pipeline_mode<synchronous>, transform_indices = @transform_2, window_bounds = array<i64: 2, 2>}, {transform_indices = @transform_3, window_bounds = array<i64: 1024, 2048>}, {pipeline_mode = #tpu.pipeline_mode<synchronous>, transform_indices = @transform_4, window_bounds = array<i64: 1, 2048>}, {pipeline_mode = #tpu.pipeline_mode<synchronous>, transform_indices = @transform_5, window_bounds = array<i64: 2048, 512>}, {pipeline_mode = #tpu.pipeline_mode<synchronous>, transform_indices = @transform_6, window_bounds = array<i64: 1, 512>}, {pipeline_mode = #tpu.pipeline_mode<synchronous>, transform_indices = @transform_7, window_bounds = array<i64: 512, 256>}, {pipeline_mode = #tpu.pipeline_mode<synchronous>, transform_indices = @transform_8, window_bounds = array<i64: 2, 256>}, {pipeline_mode = #tpu.pipeline_mode<synchronous>, transform_indices = @transform_9, window_bounds = array<i64: 1, 256>}, {pipeline_mode = #tpu.pipeline_mode<synchronous>, transform_indices = @transform_10, window_bounds = array<i64: 256, 128>}, {pipeline_mode = #tpu.pipeline_mode<synchronous>, transform_indices = @transform_11, window_bounds = array<i64: 1, 128>}, {pipeline_mode = #tpu.pipeline_mode<synchronous>, transform_indices = @transform_12, window_bounds = array<i64: 2, 128>}]} {
    %c0_i32 = arith.constant 0 : i32
    %0 = arith.cmpi eq, %arg0, %c0_i32 : i32
    %1 = arith.extui %0 : i1 to i32
    %c0_i32_0 = arith.constant 0 : i32
    %2 = arith.cmpi ne, %1, %c0_i32_0 : i32
    scf.if %2 {
      %cst_16 = arith.constant 0.000000e+00 : f32
      %23 = vector.broadcast %cst_16 : f32 to vector<2x2048xf32>
      %c0_17 = arith.constant 0 : index
      %c0_18 = arith.constant 0 : index
      %24 = vector.load %arg14[%c0_17, %c0_18] : memref<2x2048xf32, #tpu.memory_space<vmem>>, vector<2x2048xf32>
      tpu.vector_store %arg14[%c0_17, %c0_18], %23 {strides = array<i32>} : memref<2x2048xf32, #tpu.memory_space<vmem>>, vector<2x2048xf32>,
    } else {
    }
    %c0 = arith.constant 0 : index
    %c0_1 = arith.constant 0 : index
    %3 = vector.load %arg4[%c0, %c0_1] : memref<1024x2048xbf16, #tpu.memory_space<vmem>>, vector<1024x2048xbf16>
    %4 = arith.index_cast %arg0 : i32 to index
    %c0_2 = arith.constant 0 : index
    %c0_3 = arith.constant 0 : index
    %5 = vector.load %arg1[%4, %c0_2, %c0_3] : memref<1x2x1024xbf16, #tpu.memory_space<vmem>>, vector<1x2x1024xbf16>
    %6 = vector.shape_cast %5 : vector<1x2x1024xbf16> to vector<2x1024xbf16>
    %7 = arith.index_cast %arg0 : i32 to index
    %c0_4 = arith.constant 0 : index
    %c0_5 = arith.constant 0 : index
    %8 = vector.load %arg2[%7, %c0_4, %c0_5] : memref<1x2x1024xbf16, #tpu.memory_space<vmem>>, vector<1x2x1024xbf16>
    %9 = vector.shape_cast %8 : vector<1x2x1024xbf16> to vector<2x1024xbf16>
    %c0_6 = arith.constant 0 : index
    %c0_7 = arith.constant 0 : index
    %10 = vector.load %arg14[%c0_6, %c0_7] : memref<2x2048xf32, #tpu.memory_space<vmem>>, vector<2x1024xf32>
    %11 = vector.extract_strided_slice %3 {offsets = [0, 0], sizes = [1024, 1024], strides = [1, 1]} : vector<1024x2048xbf16> to vector<1024x1024xbf16>
    %cst = arith.constant dense<0.000000e+00> : vector<2x1024xf32>
    %12 = tpu.matmul %6, %11, %cst {dimension_numbers = #tpu.dot_dimension_numbers<[1], [0], [0], [1], [0, 0, 1, 1], [], []>} : vector<2x1024xbf16>, vector<1024x1024xbf16>, vector<2x1024xf32> -> vector<2x1024xf32>
    %13 = arith.addf %10, %12 : vector<2x1024xf32>
    %c0_8 = arith.constant 0 : index
    %c0_9 = arith.constant 0 : index
    %14 = vector.load %arg14[%c0_8, %c0_9] : memref<2x2048xf32, #tpu.memory_space<vmem>>, vector<2x1024xf32>
    tpu.vector_store %arg14[%c0_8, %c0_9], %13 {strides = array<i32>} : memref<2x2048xf32, #tpu.memory_space<vmem>>, vector<2x1024xf32>,
    %c0_10 = arith.constant 0 : index
    %c1024 = arith.constant 1024 : index
    %15 = vector.load %arg14[%c0_10, %c1024] : memref<2x2048xf32, #tpu.memory_space<vmem>>, vector<2x1024xf32>
    %16 = vector.extract_strided_slice %3 {offsets = [0, 1024], sizes = [1024, 1024], strides = [1, 1]} : vector<1024x2048xbf16> to vector<1024x1024xbf16>
    %cst_11 = arith.constant dense<0.000000e+00> : vector<2x1024xf32>
    %17 = tpu.matmul %9, %16, %cst_11 {dimension_numbers = #tpu.dot_dimension_numbers<[1], [0], [0], [1], [0, 0, 1, 1], [], []>} : vector<2x1024xbf16>, vector<1024x1024xbf16>, vector<2x1024xf32> -> vector<2x1024xf32>
    %18 = arith.addf %15, %17 : vector<2x1024xf32>
    %c0_12 = arith.constant 0 : index
    %c1024_13 = arith.constant 1024 : index
    %19 = vector.load %arg14[%c0_12, %c1024_13] : memref<2x2048xf32, #tpu.memory_space<vmem>>, vector<2x1024xf32>
    tpu.vector_store %arg14[%c0_12, %c1024_13], %18 {strides = array<i32>} : memref<2x2048xf32, #tpu.memory_space<vmem>>, vector<2x1024xf32>,
    %c0_i32_14 = arith.constant 0 : i32
    %20 = arith.cmpi eq, %arg0, %c0_i32_14 : i32
    %21 = arith.extui %20 : i1 to i32
    %c0_i32_15 = arith.constant 0 : i32
    %22 = arith.cmpi ne, %21, %c0_i32_15 : i32
    scf.if %22 {
      %c0_16 = arith.constant 0 : index
      %c0_17 = arith.constant 0 : index
      %23 = vector.load %arg14[%c0_16, %c0_17] : memref<2x2048xf32, #tpu.memory_space<vmem>>, vector<2x2048xf32>
      %c0_18 = arith.constant 0 : index
      %c0_19 = arith.constant 0 : index
      %24 = vector.load %arg5[%c0_18, %c0_19] : memref<1x2048xf32, #tpu.memory_space<vmem>>, vector<1x2048xf32>
      %25 = vector.broadcast %24 : vector<1x2048xf32> to vector<2x2048xf32>
      %26 = arith.addf %23, %25 : vector<2x2048xf32>
      %cst_20 = arith.constant 0.000000e+00 : f32
      %27 = vector.broadcast %cst_20 : f32 to vector<2x2048xf32>
      %28 = arith.maximumf %26, %27 : vector<2x2048xf32>
      %29 = arith.truncf %28 : vector<2x2048xf32> to vector<2x2048xbf16>
      %c0_21 = arith.constant 0 : index
      %c0_22 = arith.constant 0 : index
      %30 = vector.load %arg6[%c0_21, %c0_22] : memref<2048x512xbf16, #tpu.memory_space<vmem>>, vector<2048x512xbf16>
      %cst_23 = arith.constant dense<0.000000e+00> : vector<2x512xf32>
      %31 = tpu.matmul %29, %30, %cst_23 {dimension_numbers = #tpu.dot_dimension_numbers<[1], [0], [0], [1], [0, 0, 1, 1], [], []>} : vector<2x2048xbf16>, vector<2048x512xbf16>, vector<2x512xf32> -> vector<2x512xf32>
      %c0_24 = arith.constant 0 : index
      %c0_25 = arith.constant 0 : index
      %32 = vector.load %arg7[%c0_24, %c0_25] : memref<1x512xf32, #tpu.memory_space<vmem>>, vector<1x512xf32>
      %33 = vector.broadcast %32 : vector<1x512xf32> to vector<2x512xf32>
      %34 = arith.addf %31, %33 : vector<2x512xf32>
      %cst_26 = arith.constant 0.000000e+00 : f32
      %35 = vector.broadcast %cst_26 : f32 to vector<2x512xf32>
      %36 = arith.maximumf %34, %35 : vector<2x512xf32>
      %37 = arith.truncf %36 : vector<2x512xf32> to vector<2x512xbf16>
      %c0_27 = arith.constant 0 : index
      %c0_28 = arith.constant 0 : index
      %38 = vector.load %arg8[%c0_27, %c0_28] : memref<512x256xbf16, #tpu.memory_space<vmem>>, vector<512x256xbf16>
      %cst_29 = arith.constant dense<0.000000e+00> : vector<2x256xf32>
      %39 = tpu.matmul %37, %38, %cst_29 {dimension_numbers = #tpu.dot_dimension_numbers<[1], [0], [0], [1], [0, 0, 1, 1], [], []>} : vector<2x512xbf16>, vector<512x256xbf16>, vector<2x256xf32> -> vector<2x256xf32>
      %c0_30 = arith.constant 0 : index
      %c0_31 = arith.constant 0 : index
      %40 = vector.load %arg10[%c0_30, %c0_31] : memref<1x256xf32, #tpu.memory_space<vmem>>, vector<1x256xf32>
      %41 = vector.broadcast %40 : vector<1x256xf32> to vector<2x256xf32>
      %42 = arith.addf %39, %41 : vector<2x256xf32>
      %c0_32 = arith.constant 0 : index
      %c0_33 = arith.constant 0 : index
      %43 = vector.load %arg3[%c0_32, %c0_33] : memref<2x2xf32, #tpu.memory_space<vmem>>, vector<2x2xf32>
      %c0_34 = arith.constant 0 : index
      %c0_35 = arith.constant 0 : index
      %44 = vector.load %arg9[%c0_34, %c0_35] : memref<2x256xf32, #tpu.memory_space<vmem>>, vector<2x256xf32>
      %45 = vector.extract_strided_slice %43 {offsets = [0, 0], sizes = [2, 1], strides = [1, 1]} : vector<2x2xf32> to vector<2x1xf32>
      %46 = vector.extract_strided_slice %44 {offsets = [0, 0], sizes = [1, 256], strides = [1, 1]} : vector<2x256xf32> to vector<1x256xf32>
      %47 = vector.broadcast %45 : vector<2x1xf32> to vector<2x256xf32>
      %48 = vector.broadcast %46 : vector<1x256xf32> to vector<2x256xf32>
      %49 = arith.mulf %47, %48 : vector<2x256xf32>
      %50 = arith.addf %42, %49 : vector<2x256xf32>
      %51 = vector.extract_strided_slice %43 {offsets = [0, 1], sizes = [2, 1], strides = [1, 1]} : vector<2x2xf32> to vector<2x1xf32>
      %52 = vector.extract_strided_slice %44 {offsets = [1, 0], sizes = [1, 256], strides = [1, 1]} : vector<2x256xf32> to vector<1x256xf32>
      %53 = vector.broadcast %51 : vector<2x1xf32> to vector<2x256xf32>
      %54 = vector.broadcast %52 : vector<1x256xf32> to vector<2x256xf32>
      %55 = arith.mulf %53, %54 : vector<2x256xf32>
      %56 = arith.addf %50, %55 : vector<2x256xf32>
      %cst_36 = arith.constant 0.000000e+00 : f32
      %57 = vector.broadcast %cst_36 : f32 to vector<2x256xf32>
      %58 = arith.maximumf %56, %57 : vector<2x256xf32>
      %59 = arith.truncf %58 : vector<2x256xf32> to vector<2x256xbf16>
      %c0_37 = arith.constant 0 : index
      %c0_38 = arith.constant 0 : index
      %60 = vector.load %arg11[%c0_37, %c0_38] : memref<256x128xbf16, #tpu.memory_space<vmem>>, vector<256x128xbf16>
      %cst_39 = arith.constant dense<0.000000e+00> : vector<2x128xf32>
      %61 = tpu.matmul %59, %60, %cst_39 {dimension_numbers = #tpu.dot_dimension_numbers<[1], [0], [0], [1], [0, 0, 1, 1], [], []>} : vector<2x256xbf16>, vector<256x128xbf16>, vector<2x128xf32> -> vector<2x128xf32>
      %c0_40 = arith.constant 0 : index
      %c0_41 = arith.constant 0 : index
      %62 = vector.load %arg12[%c0_40, %c0_41] : memref<1x128xf32, #tpu.memory_space<vmem>>, vector<1x128xf32>
      %63 = vector.broadcast %62 : vector<1x128xf32> to vector<2x128xf32>
      %64 = arith.addf %61, %63 : vector<2x128xf32>
      %c0_42 = arith.constant 0 : index
      %c0_43 = arith.constant 0 : index
      %65 = vector.load %arg13[%c0_42, %c0_43] : memref<2x128xf32, #tpu.memory_space<vmem>>, vector<2x128xf32>
      tpu.vector_store %arg13[%c0_42, %c0_43], %64 {strides = array<i32>} : memref<2x128xf32, #tpu.memory_space<vmem>>, vector<2x128xf32>,
    } else {
    }
    return
  }
  func.func @transform_0(%arg0: i32) -> (i32, i32, i32) {
    %c0_i32 = arith.constant 0 : i32
    %c0_i32_0 = arith.constant 0 : i32
    %c0_i32_1 = arith.constant 0 : i32
    %c0_i32_2 = arith.constant 0 : i32
    return %c0_i32, %c0_i32_0, %c0_i32_1 : i32, i32, i32
  }
  func.func @transform_1(%arg0: i32) -> (i32, i32, i32) {
    %c0_i32 = arith.constant 0 : i32
    %c0_i32_0 = arith.constant 0 : i32
    %c0_i32_1 = arith.constant 0 : i32
    %c0_i32_2 = arith.constant 0 : i32
    return %c0_i32, %c0_i32_0, %c0_i32_1 : i32, i32, i32
  }
  func.func @transform_2(%arg0: i32) -> (i32, i32) {
    %c0_i32 = arith.constant 0 : i32
    %c0_i32_0 = arith.constant 0 : i32
    %c0_i32_1 = arith.constant 0 : i32
    return %c0_i32, %c0_i32_0 : i32, i32
  }
  func.func @transform_3(%arg0: i32) -> (i32, i32) {
    %c0_i32 = arith.constant 0 : i32
    %c0_i32_0 = arith.constant 0 : i32
    return %arg0, %c0_i32 : i32, i32
  }
  func.func @transform_4(%arg0: i32) -> (i32, i32) {
    %c0_i32 = arith.constant 0 : i32
    %c0_i32_0 = arith.constant 0 : i32
    %c0_i32_1 = arith.constant 0 : i32
    return %c0_i32, %c0_i32_0 : i32, i32
  }
  func.func @transform_5(%arg0: i32) -> (i32, i32) {
    %c0_i32 = arith.constant 0 : i32
    %c0_i32_0 = arith.constant 0 : i32
    %c0_i32_1 = arith.constant 0 : i32
    return %c0_i32, %c0_i32_0 : i32, i32
  }
  func.func @transform_6(%arg0: i32) -> (i32, i32) {
    %c0_i32 = arith.constant 0 : i32
    %c0_i32_0 = arith.constant 0 : i32
    %c0_i32_1 = arith.constant 0 : i32
    return %c0_i32, %c0_i32_0 : i32, i32
  }
  func.func @transform_7(%arg0: i32) -> (i32, i32) {
    %c0_i32 = arith.constant 0 : i32
    %c0_i32_0 = arith.constant 0 : i32
    %c0_i32_1 = arith.constant 0 : i32
    return %c0_i32, %c0_i32_0 : i32, i32
  }
  func.func @transform_8(%arg0: i32) -> (i32, i32) {
    %c0_i32 = arith.constant 0 : i32
    %c0_i32_0 = arith.constant 0 : i32
    %c0_i32_1 = arith.constant 0 : i32
    return %c0_i32, %c0_i32_0 : i32, i32
  }
  func.func @transform_9(%arg0: i32) -> (i32, i32) {
    %c0_i32 = arith.constant 0 : i32
    %c0_i32_0 = arith.constant 0 : i32
    %c0_i32_1 = arith.constant 0 : i32
    return %c0_i32, %c0_i32_0 : i32, i32
  }
  func.func @transform_10(%arg0: i32) -> (i32, i32) {
    %c0_i32 = arith.constant 0 : i32
    %c0_i32_0 = arith.constant 0 : i32
    %c0_i32_1 = arith.constant 0 : i32
    return %c0_i32, %c0_i32_0 : i32, i32
  }
  func.func @transform_11(%arg0: i32) -> (i32, i32) {
    %c0_i32 = arith.constant 0 : i32
    %c0_i32_0 = arith.constant 0 : i32
    %c0_i32_1 = arith.constant 0 : i32
    return %c0_i32, %c0_i32_0 : i32, i32
  }
  func.func @transform_12(%arg0: i32) -> (i32, i32) {
    %c0_i32 = arith.constant 0 : i32
    %c0_i32_0 = arith.constant 0 : i32
    %c0_i32_1 = arith.constant 0 : i32
    return %c0_i32, %c0_i32_0 : i32, i32
  }
}

</mosaic_0001>

<llo_original>
// kernel: tpu_custom_call.1
$region0: #{tpu_custom_call.1}
  #allocation0 [shape = 'u32[]', space=smem, size = 0x4, offset = 0x4, fixed_abs, tag = 'smem constant byte address 0x4 - core index']
  #allocation1 [shape = 'u32[144,128]{1,0:T(1,128)}', space=vmem, size = 0x12000, scoped, tag = 'internal scratch']
  #allocation2 [shape = 'f32[2,2048]{1,0:T(2,128)}', space=vmem, size = 0x4000, scoped, tag = 'scratch operand']
  %s0 = inlined_call_operand.hbm [shape: bf16[1,2,1024], index: 0, kind: input, shape index: {}]
  %s1 = inlined_call_operand.hbm [shape: bf16[1,2,1024], index: 1, kind: input, shape index: {}]
  %s2 = inlined_call_operand.hbm [shape: f32[2,2], index: 2, kind: input, shape index: {}]
  %s3 = inlined_call_operand.hbm [shape: bf16[1024,2048], index: 3, kind: input, shape index: {}]
  %s4 = inlined_call_operand.hbm [shape: f32[1,2048], index: 4, kind: input, shape index: {}]
  %s5 = inlined_call_operand.hbm [shape: bf16[2048,512], index: 5, kind: input, shape index: {}]
  %s6 = inlined_call_operand.hbm [shape: f32[1,512], index: 6, kind: input, shape index: {}]
  %s7 = inlined_call_operand.hbm [shape: bf16[512,256], index: 7, kind: input, shape index: {}]
  %s8 = inlined_call_operand.hbm [shape: f32[2,256], index: 8, kind: input, shape index: {}]
  %s9 = inlined_call_operand.hbm [shape: f32[1,256], index: 9, kind: input, shape index: {}]
  %s10 = inlined_call_operand.hbm [shape: bf16[256,128], index: 10, kind: input, shape index: {}]
  %s11 = inlined_call_operand.hbm [shape: f32[1,128], index: 11, kind: input, shape index: {}]
  %s12 = inlined_call_operand.hbm [shape: f32[2,128], index: 12, kind: output, shape index: {}]
  %s13 = sld [smem:[#allocation0]]
  $region114: #{tpu_custom_call.1} parent=0
    _
  %s15 = ssub.s32 1, %s13
  %s16 = scalar_select 0, %s15, %s13
  $region1: #{tpu_custom_call.1} parent=0
    #allocation3 [shape = 'u8[4096]{0}', space=vmem, size = 0x1000, scoped, tag = 'input window, operand 0, single buffered']
    #allocation4 [shape = 's32[1]{0}', space=sflag, size = 0x4, scoped, tag = 'scoped memory for tpu_custom_call.1']
    #allocation5 [shape = 's32[1]{0}', space=sflag, size = 0x4, scoped, tag = 'scoped memory for tpu_custom_call.1']
    #allocation6 [shape = 'u8[4096]{0}', space=vmem, size = 0x1000, scoped, tag = 'input window, operand 1, single buffered']
    #allocation7 [shape = 's32[1]{0}', space=sflag, size = 0x4, scoped, tag = 'scoped memory for tpu_custom_call.1']
    #allocation8 [shape = 'u8[1024]{0}', space=vmem, size = 0x400, scoped, tag = 'input window, operand 2, single buffered']
    #allocation9 [shape = 'u8[4194304]{0}', space=vmem, size = 0x400000, scoped, tag = 'input window, operand 3, single buffered']
    #allocation10 [shape = 's32[1]{0}', space=sflag, size = 0x4, scoped, tag = 'scoped memory for tpu_custom_call.1']
    #allocation11 [shape = 'u8[8192]{0}', space=vmem, size = 0x2000, scoped, tag = 'input window, operand 4, single buffered']
    #allocation12 [shape = 'u8[2097152]{0}', space=vmem, size = 0x200000, scoped, tag = 'input window, operand 5, single buffered']
    #allocation13 [shape = 's32[1]{0}', space=sflag, size = 0x4, scoped, tag = 'scoped memory for tpu_custom_call.1']
    #allocation14 [shape = 'u8[2048]{0}', space=vmem, size = 0x800, scoped, tag = 'input window, operand 6, single buffered']
    #allocation15 [shape = 'u8[262144]{0}', space=vmem, size = 0x40000, scoped, tag = 'input window, operand 7, single buffered']
    #allocation16 [shape = 's32[1]{0}', space=sflag, size = 0x4, scoped, tag = 'scoped memory for tpu_custom_call.1']
    #allocation17 [shape = 'u8[2048]{0}', space=vmem, size = 0x800, scoped, tag = 'input window, operand 8, single buffered']
    #allocation18 [shape = 'u8[1024]{0}', space=vmem, size = 0x400, scoped, tag = 'input window, operand 9, single buffered']
    #allocation19 [shape = 's32[1]{0}', space=sflag, size = 0x4, scoped, tag = 'scoped memory for tpu_custom_call.1']
    #allocation20 [shape = 'u8[65536]{0}', space=vmem, size = 0x10000, scoped, tag = 'input window, operand 10, single buffered']
    #allocation21 [shape = 'u8[512]{0}', space=vmem, size = 0x400, scoped, tag = 'input window, operand 11, single buffered']
    #allocation22 [shape = 's32[1]{0}', space=sflag, size = 0x4, scoped, tag = 'scoped memory for tpu_custom_call.1']
    #allocation23 [shape = 'u8[1024]{0}', space=vmem, size = 0x400, scoped, tag = 'output window, operand 0, single buffered']
    %17 = vsyncpa [#allocation4], 0
    %18 = vsyncpa [#allocation7], 0
    %19 = vsyncpa [#allocation10], 0
    %20 = vsyncpa [#allocation13], 0
    %21 = vsyncpa [#allocation16], 0
    %22 = vsyncpa [#allocation19], 0
    %23 = vsyncpa [#allocation22], 0
    %24 = vsyncpa [#allocation5], 0
    // Predicated region
    $region2: #{tpu_custom_call.1} parent=1 // pred_check
      _
    $region3: #{tpu_custom_call.1} parent=1 // pred_check_branch
      %26 = sbr.rel (0) target = $region5
    $region4: #{tpu_custom_call.1} parent=1 // pred_region
      %s28 = ssub.s32 128, 128
      %29 = vsyncadd [#allocation4], %s28
      %s31 = sshll.u32 [#allocation3], 4
      %s32 = int_to_ptr.vmem [resolvable:$true] %s31
      %34 = dma.hbm_to_vmem [thread:$0]  %s0, 128, %s32, [#allocation4]
    $region5: #{tpu_custom_call.1} parent=1 // pred_fallthru
      _
    // Predicated region
    $region6: #{tpu_custom_call.1} parent=1 // pred_check
      _
    $region7: #{tpu_custom_call.1} parent=1 // pred_check_branch
      %36 = sbr.rel (0) target = $region9
    $region8: #{tpu_custom_call.1} parent=1 // pred_region
      %s38 = ssub.s32 128, 128
      %39 = vsyncadd [#allocation7], %s38
      %s41 = sshll.u32 [#allocation6], 4
      %s42 = int_to_ptr.vmem [resolvable:$true] %s41
      %44 = dma.hbm_to_vmem [thread:$0]  %s1, 128, %s42, [#allocation7]
    $region9: #{tpu_custom_call.1} parent=1 // pred_fallthru
      _
    // Predicated region
    $region10: #{tpu_custom_call.1} parent=1 // pred_check
      _
    $region11: #{tpu_custom_call.1} parent=1 // pred_check_branch
      %46 = sbr.rel (0) target = $region13
    $region12: #{tpu_custom_call.1} parent=1 // pred_region
      %s48 = ssub.s32 32, 32
      %49 = vsyncadd [#allocation7], %s48
      %s51 = sshll.u32 [#allocation8], 4
      %s52 = int_to_ptr.vmem [resolvable:$true] %s51
      %54 = dma.hbm_to_vmem [thread:$0]  %s2, 32, %s52, [#allocation7]
    $region13: #{tpu_custom_call.1} parent=1 // pred_fallthru
      _
    // Predicated region
    $region14: #{tpu_custom_call.1} parent=1 // pred_check
      _
    $region15: #{tpu_custom_call.1} parent=1 // pred_check_branch
      %56 = sbr.rel (0) target = $region17
    $region16: #{tpu_custom_call.1} parent=1 // pred_region
      %s58 = ssub.s32 131072, 131072
      %59 = vsyncadd [#allocation10], %s58
      %s60 = sshll.u32 [#allocation9], 4
      %s61 = int_to_ptr.vmem [resolvable:$true] %s60
      %66 = dma.hbm_to_vmem [thread:$0]  %s3, 131072, %s61, [#allocation10], 1024, 1024, 64
    $region17: #{tpu_custom_call.1} parent=1 // pred_fallthru
      _
    // Predicated region
    $region18: #{tpu_custom_call.1} parent=1 // pred_check
      _
    $region19: #{tpu_custom_call.1} parent=1 // pred_check_branch
      %68 = sbr.rel (0) target = $region21
    $region20: #{tpu_custom_call.1} parent=1 // pred_region
      %s70 = ssub.s32 256, 256
      %71 = vsyncadd [#allocation10], %s70
      %s73 = sshll.u32 [#allocation11], 4
      %s74 = int_to_ptr.vmem [resolvable:$true] %s73
      %76 = dma.hbm_to_vmem [thread:$0]  %s4, 256, %s74, [#allocation10]
    $region21: #{tpu_custom_call.1} parent=1 // pred_fallthru
      _
    // Predicated region
    $region22: #{tpu_custom_call.1} parent=1 // pred_check
      _
    $region23: #{tpu_custom_call.1} parent=1 // pred_check_branch
      %78 = sbr.rel (0) target = $region25
    $region24: #{tpu_custom_call.1} parent=1 // pred_region
      %s80 = ssub.s32 65536, 65536
      %81 = vsyncadd [#allocation13], %s80
      %s82 = sshll.u32 [#allocation12], 4
      %s83 = int_to_ptr.vmem [resolvable:$true] %s82
      %88 = dma.hbm_to_vmem [thread:$0]  %s5, 65536, %s83, [#allocation13], 256, 256, 16
    $region25: #{tpu_custom_call.1} parent=1 // pred_fallthru
      _
    // Predicated region
    $region26: #{tpu_custom_call.1} parent=1 // pred_check
      _
    $region27: #{tpu_custom_call.1} parent=1 // pred_check_branch
      %90 = sbr.rel (0) target = $region29
    $region28: #{tpu_custom_call.1} parent=1 // pred_region
      %s92 = ssub.s32 64, 64
      %93 = vsyncadd [#allocation13], %s92
      %s95 = sshll.u32 [#allocation14], 4
      %s96 = int_to_ptr.vmem [resolvable:$true] %s95
      %98 = dma.hbm_to_vmem [thread:$0]  %s6, 64, %s96, [#allocation13]
    $region29: #{tpu_custom_call.1} parent=1 // pred_fallthru
      _
    // Predicated region
    $region30: #{tpu_custom_call.1} parent=1 // pred_check
      _
    $region31: #{tpu_custom_call.1} parent=1 // pred_check_branch
      %100 = sbr.rel (0) target = $region33
    $region32: #{tpu_custom_call.1} parent=1 // pred_region
      %s102 = ssub.s32 8192, 8192
      %103 = vsyncadd [#allocation16], %s102
      %s104 = sshll.u32 [#allocation15], 4
      %s105 = int_to_ptr.vmem [resolvable:$true] %s104
      %110 = dma.hbm_to_vmem [thread:$0]  %s7, 8192, %s105, [#allocation16], 128, 128, 8
    $region33: #{tpu_custom_call.1} parent=1 // pred_fallthru
      _
    // Predicated region
    $region34: #{tpu_custom_call.1} parent=1 // pred_check
      _
    $region35: #{tpu_custom_call.1} parent=1 // pred_check_branch
      %112 = sbr.rel (0) target = $region37
    $region36: #{tpu_custom_call.1} parent=1 // pred_region
      %s114 = ssub.s32 64, 64
      %115 = vsyncadd [#allocation16], %s114
      %s117 = sshll.u32 [#allocation17], 4
      %s118 = int_to_ptr.vmem [resolvable:$true] %s117
      %120 = dma.hbm_to_vmem [thread:$0]  %s8, 64, %s118, [#allocation16]
    $region37: #{tpu_custom_call.1} parent=1 // pred_fallthru
      _
    // Predicated region
    $region38: #{tpu_custom_call.1} parent=1 // pred_check
      _
    $region39: #{tpu_custom_call.1} parent=1 // pred_check_branch
      %122 = sbr.rel (0) target = $region41
    $region40: #{tpu_custom_call.1} parent=1 // pred_region
      %s124 = ssub.s32 32, 32
      %125 = vsyncadd [#allocation19], %s124
      %s127 = sshll.u32 [#allocation18], 4
      %s128 = int_to_ptr.vmem [resolvable:$true] %s127
      %130 = dma.hbm_to_vmem [thread:$0]  %s9, 32, %s128, [#allocation19]
    $region41: #{tpu_custom_call.1} parent=1 // pred_fallthru
      _
    // Predicated region
    $region42: #{tpu_custom_call.1} parent=1 // pred_check
      _
    $region43: #{tpu_custom_call.1} parent=1 // pred_check_branch
      %132 = sbr.rel (0) target = $region45
    $region44: #{tpu_custom_call.1} parent=1 // pred_region
      %s134 = ssub.s32 2048, 2048
      %135 = vsyncadd [#allocation19], %s134
      %s136 = sshll.u32 [#allocation20], 4
      %s137 = int_to_ptr.vmem [resolvable:$true] %s136
      %142 = dma.hbm_to_vmem [thread:$0]  %s10, 2048, %s137, [#allocation19], 64, 64, 4
    $region45: #{tpu_custom_call.1} parent=1 // pred_fallthru
      _
    // Predicated region
    $region46: #{tpu_custom_call.1} parent=1 // pred_check
      _
    $region47: #{tpu_custom_call.1} parent=1 // pred_check_branch
      %144 = sbr.rel (0) target = $region49
    $region48: #{tpu_custom_call.1} parent=1 // pred_region
      %s146 = ssub.s32 16, 16
      %147 = vsyncadd [#allocation22], %s146
      %s149 = sshll.u32 [#allocation21], 4
      %s150 = int_to_ptr.vmem [resolvable:$true] %s149
      %152 = dma.hbm_to_vmem [thread:$0]  %s11, 16, %s150, [#allocation22]
    $region49: #{tpu_custom_call.1} parent=1 // pred_fallthru
      _
    // Predicated region
    $region50: #{tpu_custom_call.1} parent=1 // pred_check
      _
    $region51: #{tpu_custom_call.1} parent=1 // pred_check_branch
      %154 = sbr.rel (0) target = $region53
    $region52: #{tpu_custom_call.1} parent=1 // pred_region
      %155 = dma.done [#allocation4], 128
    $region53: #{tpu_custom_call.1} parent=1 // pred_fallthru
      _
    // Predicated region
    $region54: #{tpu_custom_call.1} parent=1 // pred_check
      _
    $region55: #{tpu_custom_call.1} parent=1 // pred_check_branch
      %157 = sbr.rel (0) target = $region57
    $region56: #{tpu_custom_call.1} parent=1 // pred_region
      %158 = dma.done [#allocation7], 128
    $region57: #{tpu_custom_call.1} parent=1 // pred_fallthru
      _
    // Predicated region
    $region58: #{tpu_custom_call.1} parent=1 // pred_check
      _
    $region59: #{tpu_custom_call.1} parent=1 // pred_check_branch
      %160 = sbr.rel (0) target = $region61
    $region60: #{tpu_custom_call.1} parent=1 // pred_region
      %161 = dma.done [#allocation7], 32
    $region61: #{tpu_custom_call.1} parent=1 // pred_fallthru
      _
    // Predicated region
    $region62: #{tpu_custom_call.1} parent=1 // pred_check
      _
    $region63: #{tpu_custom_call.1} parent=1 // pred_check_branch
      %163 = sbr.rel (0) target = $region65
    $region64: #{tpu_custom_call.1} parent=1 // pred_region
      %164 = dma.done [#allocation10], 131072
    $region65: #{tpu_custom_call.1} parent=1 // pred_fallthru
      _
    // Predicated region
    $region66: #{tpu_custom_call.1} parent=1 // pred_check
      _
    $region67: #{tpu_custom_call.1} parent=1 // pred_check_branch
      %166 = sbr.rel (0) target = $region69
    $region68: #{tpu_custom_call.1} parent=1 // pred_region
      %167 = dma.done [#allocation10], 256
    $region69: #{tpu_custom_call.1} parent=1 // pred_fallthru
      _
    // Predicated region
    $region70: #{tpu_custom_call.1} parent=1 // pred_check
      _
    $region71: #{tpu_custom_call.1} parent=1 // pred_check_branch
      %169 = sbr.rel (0) target = $region73
    $region72: #{tpu_custom_call.1} parent=1 // pred_region
      %170 = dma.done [#allocation13], 65536
    $region73: #{tpu_custom_call.1} parent=1 // pred_fallthru
      _
    // Predicated region
    $region74: #{tpu_custom_call.1} parent=1 // pred_check
      _
    $region75: #{tpu_custom_call.1} parent=1 // pred_check_branch
      %172 = sbr.rel (0) target = $region77
    $region76: #{tpu_custom_call.1} parent=1 // pred_region
      %173 = dma.done [#allocation13], 64
    $region77: #{tpu_custom_call.1} parent=1 // pred_fallthru
      _
    // Predicated region
    $region78: #{tpu_custom_call.1} parent=1 // pred_check
      _
    $region79: #{tpu_custom_call.1} parent=1 // pred_check_branch
      %175 = sbr.rel (0) target = $region81
    $region80: #{tpu_custom_call.1} parent=1 // pred_region
      %176 = dma.done [#allocation16], 8192
    $region81: #{tpu_custom_call.1} parent=1 // pred_fallthru
      _
    // Predicated region
    $region82: #{tpu_custom_call.1} parent=1 // pred_check
      _
    $region83: #{tpu_custom_call.1} parent=1 // pred_check_branch
      %178 = sbr.rel (0) target = $region85
    $region84: #{tpu_custom_call.1} parent=1 // pred_region
      %179 = dma.done [#allocation16], 64
    $region85: #{tpu_custom_call.1} parent=1 // pred_fallthru
      _
    // Predicated region
    $region86: #{tpu_custom_call.1} parent=1 // pred_check
      _
    $region87: #{tpu_custom_call.1} parent=1 // pred_check_branch
      %181 = sbr.rel (0) target = $region89
    $region88: #{tpu_custom_call.1} parent=1 // pred_region
      %182 = dma.done [#allocation19], 32
    $region89: #{tpu_custom_call.1} parent=1 // pred_fallthru
      _
    // Predicated region
    $region90: #{tpu_custom_call.1} parent=1 // pred_check
      _
    $region91: #{tpu_custom_call.1} parent=1 // pred_check_branch
      %184 = sbr.rel (0) target = $region93
    $region92: #{tpu_custom_call.1} parent=1 // pred_region
      %185 = dma.done [#allocation19], 2048
    $region93: #{tpu_custom_call.1} parent=1 // pred_fallthru
      _
    // Predicated region
    $region94: #{tpu_custom_call.1} parent=1 // pred_check
      _
    $region95: #{tpu_custom_call.1} parent=1 // pred_check_branch
      %187 = sbr.rel (0) target = $region97
    $region96: #{tpu_custom_call.1} parent=1 // pred_region
      %188 = dma.done [#allocation22], 16
    $region97: #{tpu_custom_call.1} parent=1 // pred_fallthru
      _
    %p190 = scmp.eq.s32.totalorder 0, 0
    // Predicated region
    $region98: #{tpu_custom_call.1} parent=1 // pred_check
      %p191 = pneg %p190
    $region99: #{tpu_custom_call.1} parent=1 // pred_check_branch
      %193 = sbr.rel (%p191) target = $region101
    $region100: #{tpu_custom_call.1} parent=1 // pred_region
      %194 = vst [vmem:[#allocation2] sm:$0xff] 0.0
      %195 = vst [vmem:[#allocation2 + $0x8] sm:$0xff] 0.0
      %196 = vst [vmem:[#allocation2 + $0x10] sm:$0xff] 0.0
      %197 = vst [vmem:[#allocation2 + $0x18] sm:$0xff] 0.0
    $region101: #{tpu_custom_call.1} parent=1 // pred_fallthru
      _
    %v198 = vld [vmem:[#allocation9] sm:$0xff]
    %v199 = vld [vmem:[#allocation9 + $0x8] sm:$0xff]
    %v200 = vld [vmem:[#allocation9 + $0x10] sm:$0xff]
    %v201 = vld [vmem:[#allocation9 + $0x18] sm:$0xff]
    %v202 = vld [vmem:[#allocation9 + $0x20] sm:$0xff]
    %v203 = vld [vmem:[#allocation9 + $0x28] sm:$0xff]
    %v204 = vld [vmem:[#allocation9 + $0x30] sm:$0xff]
    %v205 = vld [vmem:[#allocation9 + $0x38] sm:$0xff]
    %v206 = vld [vmem:[#allocation9 + $0x40] sm:$0xff]
    %v207 = vld [vmem:[#allocation9 + $0x48] sm:$0xff]
    %v208 = vld [vmem:[#allocation9 + $0x50] sm:$0xff]
    %v209 = vld [vmem:[#allocation9 + $0x58] sm:$0xff]
    %v210 = vld [vmem:[#allocation9 + $0x60] sm:$0xff]
    %v211 = vld [vmem:[#allocation9 + $0x68] sm:$0xff]
    %v212 = vld [vmem:[#allocation9 + $0x70] sm:$0xff]
    %v213 = vld [vmem:[#allocation9 + $0x78] sm:$0xff]
    %v214 = vld [vmem:[#allocation9 + $0x80] sm:$0xff]
    %v215 = vld [vmem:[#allocation9 + $0x88] sm:$0xff]
    %v216 = vld [vmem:[#allocation9 + $0x90] sm:$0xff]
    %v217 = vld [vmem:[#allocation9 + $0x98] sm:$0xff]
    %v218 = vld [vmem:[#allocation9 + $0xa0] sm:$0xff]
    %v219 = vld [vmem:[#allocation9 + $0xa8] sm:$0xff]
    %v220 = vld [vmem:[#allocation9 + $0xb0] sm:$0xff]
    %v221 = vld [vmem:[#allocation9 + $0xb8] sm:$0xff]
    %v222 = vld [vmem:[#allocation9 + $0xc0] sm:$0xff]
    %v223 = vld [vmem:[#allocation9 + $0xc8] sm:$0xff]
    %v224 = vld [vmem:[#allocation9 + $0xd0] sm:$0xff]
    %v225 = vld [vmem:[#allocation9 + $0xd8] sm:$0xff]
    %v226 = vld [vmem:[#allocation9 + $0xe0] sm:$0xff]
    %v227 = vld [vmem:[#allocation9 + $0xe8] sm:$0xff]
    %v228 = vld [vmem:[#allocation9 + $0xf0] sm:$0xff]
    %v229 = vld [vmem:[#allocation9 + $0xf8] sm:$0xff]
    %v230 = vld [vmem:[#allocation9 + $0x100] sm:$0xff]
    %v231 = vld [vmem:[#allocation9 + $0x108] sm:$0xff]
    %v232 = vld [vmem:[#allocation9 + $0x110] sm:$0xff]
    %v233 = vld [vmem:[#allocation9 + $0x118] sm:$0xff]
    %v234 = vld [vmem:[#allocation9 + $0x120] sm:$0xff]
    %v235 = vld [vmem:[#allocation9 + $0x128] sm:$0xff]
    %v236 = vld [vmem:[#allocation9 + $0x130] sm:$0xff]
    %v237 = vld [vmem:[#allocation9 + $0x138] sm:$0xff]
    %v238 = vld [vmem:[#allocation9 + $0x140] sm:$0xff]
    %v239 = vld [vmem:[#allocation9 + $0x148] sm:$0xff]
    %v240 = vld [vmem:[#allocation9 + $0x150] sm:$0xff]
    %v241 = vld [vmem:[#allocation9 + $0x158] sm:$0xff]
    %v242 = vld [vmem:[#allocation9 + $0x160] sm:$0xff]
    %v243 = vld [vmem:[#allocation9 + $0x168] sm:$0xff]
    %v244 = vld [vmem:[#allocation9 + $0x170] sm:$0xff]
    %v245 = vld [vmem:[#allocation9 + $0x178] sm:$0xff]
    %v246 = vld [vmem:[#allocation9 + $0x180] sm:$0xff]
    %v247 = vld [vmem:[#allocation9 + $0x188] sm:$0xff]
    %v248 = vld [vmem:[#allocation9 + $0x190] sm:$0xff]
    %v249 = vld [vmem:[#allocation9 + $0x198] sm:$0xff]
    %v250 = vld [vmem:[#allocation9 + $0x1a0] sm:$0xff]
    %v251 = vld [vmem:[#allocation9 + $0x1a8] sm:$0xff]
    %v252 = vld [vmem:[#allocation9 + $0x1b0] sm:$0xff]
    %v253 = vld [vmem:[#allocation9 + $0x1b8] sm:$0xff]
    %v254 = vld [vmem:[#allocation9 + $0x1c0] sm:$0xff]
    %v255 = vld [vmem:[#allocation9 + $0x1c8] sm:$0xff]
    %v256 = vld [vmem:[#allocation9 + $0x1d0] sm:$0xff]
    %v257 = vld [vmem:[#allocation9 + $0x1d8] sm:$0xff]
    %v258 = vld [vmem:[#allocation9 + $0x1e0] sm:$0xff]
    %v259 = vld [vmem:[#allocation9 + $0x1e8] sm:$0xff]
    %v260 = vld [vmem:[#allocation9 + $0x1f0] sm:$0xff]
    %v261 = vld [vmem:[#allocation9 + $0x1f8] sm:$0xff]
    %v262 = vld [vmem:[#allocation9 + $0x200] sm:$0xff]
    %v263 = vld [vmem:[#allocation9 + $0x208] sm:$0xff]
    %v264 = vld [vmem:[#allocation9 + $0x210] sm:$0xff]
    %v265 = vld [vmem:[#allocation9 + $0x218] sm:$0xff]
    %v266 = vld [vmem:[#allocation9 + $0x220] sm:$0xff]
    %v267 = vld [vmem:[#allocation9 + $0x228] sm:$0xff]
    %v268 = vld [vmem:[#allocation9 + $0x230] sm:$0xff]
    %v269 = vld [vmem:[#allocation9 + $0x238] sm:$0xff]
    %v270 = vld [vmem:[#allocation9 + $0x240] sm:$0xff]
    %v271 = vld [vmem:[#allocation9 + $0x248] sm:$0xff]
    %v272 = vld [vmem:[#allocation9 + $0x250] sm:$0xff]
    %v273 = vld [vmem:[#allocation9 + $0x258] sm:$0xff]
    %v274 = vld [vmem:[#allocation9 + $0x260] sm:$0xff]
    %v275 = vld [vmem:[#allocation9 + $0x268] sm:$0xff]
    %v276 = vld [vmem:[#allocation9 + $0x270] sm:$0xff]
    %v277 = vld [vmem:[#allocation9 + $0x278] sm:$0xff]
    %v278 = vld [vmem:[#allocation9 + $0x280] sm:$0xff]
    %v279 = vld [vmem:[#allocation9 + $0x288] sm:$0xff]
    %v280 = vld [vmem:[#allocation9 + $0x290] sm:$0xff]
    %v281 = vld [vmem:[#allocation9 + $0x298] sm:$0xff]
    %v282 = vld [vmem:[#allocation9 + $0x2a0] sm:$0xff]
    %v283 = vld [vmem:[#allocation9 + $0x2a8] sm:$0xff]
    %v284 = vld [vmem:[#allocation9 + $0x2b0] sm:$0xff]
    %v285 = vld [vmem:[#allocation9 + $0x2b8] sm:$0xff]
    %v286 = vld [vmem:[#allocation9 + $0x2c0] sm:$0xff]
    %v287 = vld [vmem:[#allocation9 + $0x2c8] sm:$0xff]
    %v288 = vld [vmem:[#allocation9 + $0x2d0] sm:$0xff]
    %v289 = vld [vmem:[#allocation9 + $0x2d8] sm:$0xff]
    %v290 = vld [vmem:[#allocation9 + $0x2e0] sm:$0xff]
    %v291 = vld [vmem:[#allocation9 + $0x2e8] sm:$0xff]
    %v292 = vld [vmem:[#allocation9 + $0x2f0] sm:$0xff]
    %v293 = vld [vmem:[#allocation9 + $0x2f8] sm:$0xff]
    %v294 = vld [vmem:[#allocation9 + $0x300] sm:$0xff]
    %v295 = vld [vmem:[#allocation9 + $0x308] sm:$0xff]
    %v296 = vld [vmem:[#allocation9 + $0x310] sm:$0xff]
    %v297 = vld [vmem:[#allocation9 + $0x318] sm:$0xff]
    %v298 = vld [vmem:[#allocation9 + $0x320] sm:$0xff]
    %v299 = vld [vmem:[#allocation9 + $0x328] sm:$0xff]
    %v300 = vld [vmem:[#allocation9 + $0x330] sm:$0xff]
    %v301 = vld [vmem:[#allocation9 + $0x338] sm:$0xff]
    %v302 = vld [vmem:[#allocation9 + $0x340] sm:$0xff]
    %v303 = vld [vmem:[#allocation9 + $0x348] sm:$0xff]
    %v304 = vld [vmem:[#allocation9 + $0x350] sm:$0xff]
    %v305 = vld [vmem:[#allocation9 + $0x358] sm:$0xff]
    %v306 = vld [vmem:[#allocation9 + $0x360] sm:$0xff]
    %v307 = vld [vmem:[#allocation9 + $0x368] sm:$0xff]
    %v308 = vld [vmem:[#allocation9 + $0x370] sm:$0xff]
    %v309 = vld [vmem:[#allocation9 + $0x378] sm:$0xff]
    %v310 = vld [vmem:[#allocation9 + $0x380] sm:$0xff]
    %v311 = vld [vmem:[#allocation9 + $0x388] sm:$0xff]
    %v312 = vld [vmem:[#allocation9 + $0x390] sm:$0xff]
    %v313 = vld [vmem:[#allocation9 + $0x398] sm:$0xff]
    %v314 = vld [vmem:[#allocation9 + $0x3a0] sm:$0xff]
    %v315 = vld [vmem:[#allocation9 + $0x3a8] sm:$0xff]
    %v316 = vld [vmem:[#allocation9 + $0x3b0] sm:$0xff]
    %v317 = vld [vmem:[#allocation9 + $0x3b8] sm:$0xff]
    %v318 = vld [vmem:[#allocation9 + $0x3c0] sm:$0xff]
    %v319 = vld [vmem:[#allocation9 + $0x3c8] sm:$0xff]
    %v320 = vld [vmem:[#allocation9 + $0x3d0] sm:$0xff]
    %v321 = vld [vmem:[#allocation9 + $0x3d8] sm:$0xff]
    %v322 = vld [vmem:[#allocation9 + $0x3e0] sm:$0xff]
    %v323 = vld [vmem:[#allocation9 + $0x3e8] sm:$0xff]
    %v324 = vld [vmem:[#allocation9 + $0x3f0] sm:$0xff]
    %v325 = vld [vmem:[#allocation9 + $0x3f8] sm:$0xff]
    %v326 = vld [vmem:[#allocation9 + $0x400] sm:$0xff]
    %v327 = vld [vmem:[#allocation9 + $0x408] sm:$0xff]
    %v328 = vld [vmem:[#allocation9 + $0x410] sm:$0xff]
    %v329 = vld [vmem:[#allocation9 + $0x418] sm:$0xff]
    %v330 = vld [vmem:[#allocation9 + $0x420] sm:$0xff]
    %v331 = vld [vmem:[#allocation9 + $0x428] sm:$0xff]
    %v332 = vld [vmem:[#allocation9 + $0x430] sm:$0xff]
    %v333 = vld [vmem:[#allocation9 + $0x438] sm:$0xff]
    %v334 = vld [vmem:[#allocation9 + $0x440] sm:$0xff]
    %v335 = vld [vmem:[#allocation9 + $0x448] sm:$0xff]
    %v336 = vld [vmem:[#allocation9 + $0x450] sm:$0xff]
    %v337 = vld [vmem:[#allocation9 + $0x458] sm:$0xff]
    %v338 = vld [vmem:[#allocation9 + $0x460] sm:$0xff]
    %v339 = vld [vmem:[#allocation9 + $0x468] sm:$0xff]
    %v340 = vld [vmem:[#allocation9 + $0x470] sm:$0xff]
    %v341 = vld [vmem:[#allocation9 + $0x478] sm:$0xff]
    %v342 = vld [vmem:[#allocation9 + $0x480] sm:$0xff]
    %v343 = vld [vmem:[#allocation9 + $0x488] sm:$0xff]
    %v344 = vld [vmem:[#allocation9 + $0x490] sm:$0xff]
    %v345 = vld [vmem:[#allocation9 + $0x498] sm:$0xff]
    %v346 = vld [vmem:[#allocation9 + $0x4a0] sm:$0xff]
    %v347 = vld [vmem:[#allocation9 + $0x4a8] sm:$0xff]
    %v348 = vld [vmem:[#allocation9 + $0x4b0] sm:$0xff]
    %v349 = vld [vmem:[#allocation9 + $0x4b8] sm:$0xff]
    %v350 = vld [vmem:[#allocation9 + $0x4c0] sm:$0xff]
    %v351 = vld [vmem:[#allocation9 + $0x4c8] sm:$0xff]
    %v352 = vld [vmem:[#allocation9 + $0x4d0] sm:$0xff]
    %v353 = vld [vmem:[#allocation9 + $0x4d8] sm:$0xff]
    %v354 = vld [vmem:[#allocation9 + $0x4e0] sm:$0xff]
    %v355 = vld [vmem:[#allocation9 + $0x4e8] sm:$0xff]
    %v356 = vld [vmem:[#allocation9 + $0x4f0] sm:$0xff]
    %v357 = vld [vmem:[#allocation9 + $0x4f8] sm:$0xff]
    %v358 = vld [vmem:[#allocation9 + $0x500] sm:$0xff]
    %v359 = vld [vmem:[#allocation9 + $0x508] sm:$0xff]
    %v360 = vld [vmem:[#allocation9 + $0x510] sm:$0xff]
    %v361 = vld [vmem:[#allocation9 + $0x518] sm:$0xff]
    %v362 = vld [vmem:[#allocation9 + $0x520] sm:$0xff]
    %v363 = vld [vmem:[#allocation9 + $0x528] sm:$0xff]
    %v364 = vld [vmem:[#allocation9 + $0x530] sm:$0xff]
    %v365 = vld [vmem:[#allocation9 + $0x538] sm:$0xff]
    %v366 = vld [vmem:[#allocation9 + $0x540] sm:$0xff]
    %v367 = vld [vmem:[#allocation9 + $0x548] sm:$0xff]
    %v368 = vld [vmem:[#allocation9 + $0x550] sm:$0xff]
    %v369 = vld [vmem:[#allocation9 + $0x558] sm:$0xff]
    %v370 = vld [vmem:[#allocation9 + $0x560] sm:$0xff]
    %v371 = vld [vmem:[#allocation9 + $0x568] sm:$0xff]
    %v372 = vld [vmem:[#allocation9 + $0x570] sm:$0xff]
    %v373 = vld [vmem:[#allocation9 + $0x578] sm:$0xff]
    %v374 = vld [vmem:[#allocation9 + $0x580] sm:$0xff]
    %v375 = vld [vmem:[#allocation9 + $0x588] sm:$0xff]
    %v376 = vld [vmem:[#allocation9 + $0x590] sm:$0xff]
    %v377 = vld [vmem:[#allocation9 + $0x598] sm:$0xff]
    %v378 = vld [vmem:[#allocation9 + $0x5a0] sm:$0xff]
    %v379 = vld [vmem:[#allocation9 + $0x5a8] sm:$0xff]
    %v380 = vld [vmem:[#allocation9 + $0x5b0] sm:$0xff]
    %v381 = vld [vmem:[#allocation9 + $0x5b8] sm:$0xff]
    %v382 = vld [vmem:[#allocation9 + $0x5c0] sm:$0xff]
    %v383 = vld [vmem:[#allocation9 + $0x5c8] sm:$0xff]
    %v384 = vld [vmem:[#allocation9 + $0x5d0] sm:$0xff]
    %v385 = vld [vmem:[#allocation9 + $0x5d8] sm:$0xff]
    %v386 = vld [vmem:[#allocation9 + $0x5e0] sm:$0xff]
    %v387 = vld [vmem:[#allocation9 + $0x5e8] sm:$0xff]
    %v388 = vld [vmem:[#allocation9 + $0x5f0] sm:$0xff]
    %v389 = vld [vmem:[#allocation9 + $0x5f8] sm:$0xff]
    %v390 = vld [vmem:[#allocation9 + $0x600] sm:$0xff]
    %v391 = vld [vmem:[#allocation9 + $0x608] sm:$0xff]
    %v392 = vld [vmem:[#allocation9 + $0x610] sm:$0xff]
    %v393 = vld [vmem:[#allocation9 + $0x618] sm:$0xff]
    %v394 = vld [vmem:[#allocation9 + $0x620] sm:$0xff]
    %v395 = vld [vmem:[#allocation9 + $0x628] sm:$0xff]
    %v396 = vld [vmem:[#allocation9 + $0x630] sm:$0xff]
    %v397 = vld [vmem:[#allocation9 + $0x638] sm:$0xff]
    %v398 = vld [vmem:[#allocation9 + $0x640] sm:$0xff]
    %v399 = vld [vmem:[#allocation9 + $0x648] sm:$0xff]
    %v400 = vld [vmem:[#allocation9 + $0x650] sm:$0xff]
    %v401 = vld [vmem:[#allocation9 + $0x658] sm:$0xff]
    %v402 = vld [vmem:[#allocation9 + $0x660] sm:$0xff]
    %v403 = vld [vmem:[#allocation9 + $0x668] sm:$0xff]
    %v404 = vld [vmem:[#allocation9 + $0x670] sm:$0xff]
    %v405 = vld [vmem:[#allocation9 + $0x678] sm:$0xff]
    %v406 = vld [vmem:[#allocation9 + $0x680] sm:$0xff]
    %v407 = vld [vmem:[#allocation9 + $0x688] sm:$0xff]
    %v408 = vld [vmem:[#allocation9 + $0x690] sm:$0xff]
    %v409 = vld [vmem:[#allocation9 + $0x698] sm:$0xff]
    %v410 = vld [vmem:[#allocation9 + $0x6a0] sm:$0xff]
    %v411 = vld [vmem:[#allocation9 + $0x6a8] sm:$0xff]
    %v412 = vld [vmem:[#allocation9 + $0x6b0] sm:$0xff]
    %v413 = vld [vmem:[#allocation9 + $0x6b8] sm:$0xff]
    %v414 = vld [vmem:[#allocation9 + $0x6c0] sm:$0xff]
    %v415 = vld [vmem:[#allocation9 + $0x6c8] sm:$0xff]
    %v416 = vld [vmem:[#allocation9 + $0x6d0] sm:$0xff]
    %v417 = vld [vmem:[#allocation9 + $0x6d8] sm:$0xff]
    %v418 = vld [vmem:[#allocation9 + $0x6e0] sm:$0xff]
    %v419 = vld [vmem:[#allocation9 + $0x6e8] sm:$0xff]
    %v420 = vld [vmem:[#allocation9 + $0x6f0] sm:$0xff]
    %v421 = vld [vmem:[#allocation9 + $0x6f8] sm:$0xff]
    %v422 = vld [vmem:[#allocation9 + $0x700] sm:$0xff]
    %v423 = vld [vmem:[#allocation9 + $0x708] sm:$0xff]
    %v424 = vld [vmem:[#allocation9 + $0x710] sm:$0xff]
    %v425 = vld [vmem:[#allocation9 + $0x718] sm:$0xff]
    %v426 = vld [vmem:[#allocation9 + $0x720] sm:$0xff]
    %v427 = vld [vmem:[#allocation9 + $0x728] sm:$0xff]
    %v428 = vld [vmem:[#allocation9 + $0x730] sm:$0xff]
    %v429 = vld [vmem:[#allocation9 + $0x738] sm:$0xff]
    %v430 = vld [vmem:[#allocation9 + $0x740] sm:$0xff]
    %v431 = vld [vmem:[#allocation9 + $0x748] sm:$0xff]
    %v432 = vld [vmem:[#allocation9 + $0x750] sm:$0xff]
    %v433 = vld [vmem:[#allocation9 + $0x758] sm:$0xff]
    %v434 = vld [vmem:[#allocation9 + $0x760] sm:$0xff]
    %v435 = vld [vmem:[#allocation9 + $0x768] sm:$0xff]
    %v436 = vld [vmem:[#allocation9 + $0x770] sm:$0xff]
    %v437 = vld [vmem:[#allocation9 + $0x778] sm:$0xff]
    %v438 = vld [vmem:[#allocation9 + $0x780] sm:$0xff]
    %v439 = vld [vmem:[#allocation9 + $0x788] sm:$0xff]
    %v440 = vld [vmem:[#allocation9 + $0x790] sm:$0xff]
    %v441 = vld [vmem:[#allocation9 + $0x798] sm:$0xff]
    %v442 = vld [vmem:[#allocation9 + $0x7a0] sm:$0xff]
    %v443 = vld [vmem:[#allocation9 + $0x7a8] sm:$0xff]
    %v444 = vld [vmem:[#allocation9 + $0x7b0] sm:$0xff]
    %v445 = vld [vmem:[#allocation9 + $0x7b8] sm:$0xff]
    %v446 = vld [vmem:[#allocation9 + $0x7c0] sm:$0xff]
    %v447 = vld [vmem:[#allocation9 + $0x7c8] sm:$0xff]
    %v448 = vld [vmem:[#allocation9 + $0x7d0] sm:$0xff]
    %v449 = vld [vmem:[#allocation9 + $0x7d8] sm:$0xff]
    %v450 = vld [vmem:[#allocation9 + $0x7e0] sm:$0xff]
    %v451 = vld [vmem:[#allocation9 + $0x7e8] sm:$0xff]
    %v452 = vld [vmem:[#allocation9 + $0x7f0] sm:$0xff]
    %v453 = vld [vmem:[#allocation9 + $0x7f8] sm:$0xff]
    %v454 = vld [vmem:[#allocation9 + $0x800] sm:$0xff]
    %v455 = vld [vmem:[#allocation9 + $0x808] sm:$0xff]
    %v456 = vld [vmem:[#allocation9 + $0x810] sm:$0xff]
    %v457 = vld [vmem:[#allocation9 + $0x818] sm:$0xff]
    %v458 = vld [vmem:[#allocation9 + $0x820] sm:$0xff]
    %v459 = vld [vmem:[#allocation9 + $0x828] sm:$0xff]
    %v460 = vld [vmem:[#allocation9 + $0x830] sm:$0xff]
    %v461 = vld [vmem:[#allocation9 + $0x838] sm:$0xff]
    %v462 = vld [vmem:[#allocation9 + $0x840] sm:$0xff]
    %v463 = vld [vmem:[#allocation9 + $0x848] sm:$0xff]
    %v464 = vld [vmem:[#allocation9 + $0x850] sm:$0xff]
    %v465 = vld [vmem:[#allocation9 + $0x858] sm:$0xff]
    %v466 = vld [vmem:[#allocation9 + $0x860] sm:$0xff]
    %v467 = vld [vmem:[#allocation9 + $0x868] sm:$0xff]
    %v468 = vld [vmem:[#allocation9 + $0x870] sm:$0xff]
    %v469 = vld [vmem:[#allocation9 + $0x878] sm:$0xff]
    %v470 = vld [vmem:[#allocation9 + $0x880] sm:$0xff]
    %v471 = vld [vmem:[#allocation9 + $0x888] sm:$0xff]
    %v472 = vld [vmem:[#allocation9 + $0x890] sm:$0xff]
    %v473 = vld [vmem:[#allocation9 + $0x898] sm:$0xff]
    %v474 = vld [vmem:[#allocation9 + $0x8a0] sm:$0xff]
    %v475 = vld [vmem:[#allocation9 + $0x8a8] sm:$0xff]
    %v476 = vld [vmem:[#allocation9 + $0x8b0] sm:$0xff]
    %v477 = vld [vmem:[#allocation9 + $0x8b8] sm:$0xff]
    %v478 = vld [vmem:[#allocation9 + $0x8c0] sm:$0xff]
    %v479 = vld [vmem:[#allocation9 + $0x8c8] sm:$0xff]
    %v480 = vld [vmem:[#allocation9 + $0x8d0] sm:$0xff]
    %v481 = vld [vmem:[#allocation9 + $0x8d8] sm:$0xff]
    %v482 = vld [vmem:[#allocation9 + $0x8e0] sm:$0xff]
    %v483 = vld [vmem:[#allocation9 + $0x8e8] sm:$0xff]
    %v484 = vld [vmem:[#allocation9 + $0x8f0] sm:$0xff]
    %v485 = vld [vmem:[#allocation9 + $0x8f8] sm:$0xff]
    %v486 = vld [vmem:[#allocation9 + $0x900] sm:$0xff]
    %v487 = vld [vmem:[#allocation9 + $0x908] sm:$0xff]
    %v488 = vld [vmem:[#allocation9 + $0x910] sm:$0xff]
    %v489 = vld [vmem:[#allocation9 + $0x918] sm:$0xff]
    %v490 = vld [vmem:[#allocation9 + $0x920] sm:$0xff]
    %v491 = vld [vmem:[#allocation9 + $0x928] sm:$0xff]
    %v492 = vld [vmem:[#allocation9 + $0x930] sm:$0xff]
    %v493 = vld [vmem:[#allocation9 + $0x938] sm:$0xff]
    %v494 = vld [vmem:[#allocation9 + $0x940] sm:$0xff]
    %v495 = vld [vmem:[#allocation9 + $0x948] sm:$0xff]
    %v496 = vld [vmem:[#allocation9 + $0x950] sm:$0xff]
    %v497 = vld [vmem:[#allocation9 + $0x958] sm:$0xff]
    %v498 = vld [vmem:[#allocation9 + $0x960] sm:$0xff]
    %v499 = vld [vmem:[#allocation9 + $0x968] sm:$0xff]
    %v500 = vld [vmem:[#allocation9 + $0x970] sm:$0xff]
    %v501 = vld [vmem:[#allocation9 + $0x978] sm:$0xff]
    %v502 = vld [vmem:[#allocation9 + $0x980] sm:$0xff]
    %v503 = vld [vmem:[#allocation9 + $0x988] sm:$0xff]
    %v504 = vld [vmem:[#allocation9 + $0x990] sm:$0xff]
    %v505 = vld [vmem:[#allocation9 + $0x998] sm:$0xff]
    %v506 = vld [vmem:[#allocation9 + $0x9a0] sm:$0xff]
    %v507 = vld [vmem:[#allocation9 + $0x9a8] sm:$0xff]
    %v508 = vld [vmem:[#allocation9 + $0x9b0] sm:$0xff]
    %v509 = vld [vmem:[#allocation9 + $0x9b8] sm:$0xff]
    %v510 = vld [vmem:[#allocation9 + $0x9c0] sm:$0xff]
    %v511 = vld [vmem:[#allocation9 + $0x9c8] sm:$0xff]
    %v512 = vld [vmem:[#allocation9 + $0x9d0] sm:$0xff]
    %v513 = vld [vmem:[#allocation9 + $0x9d8] sm:$0xff]
    %v514 = vld [vmem:[#allocation9 + $0x9e0] sm:$0xff]
    %v515 = vld [vmem:[#allocation9 + $0x9e8] sm:$0xff]
    %v516 = vld [vmem:[#allocation9 + $0x9f0] sm:$0xff]
    %v517 = vld [vmem:[#allocation9 + $0x9f8] sm:$0xff]
    %v518 = vld [vmem:[#allocation9 + $0xa00] sm:$0xff]
    %v519 = vld [vmem:[#allocation9 + $0xa08] sm:$0xff]
    %v520 = vld [vmem:[#allocation9 + $0xa10] sm:$0xff]
    %v521 = vld [vmem:[#allocation9 + $0xa18] sm:$0xff]
    %v522 = vld [vmem:[#allocation9 + $0xa20] sm:$0xff]
    %v523 = vld [vmem:[#allocation9 + $0xa28] sm:$0xff]
    %v524 = vld [vmem:[#allocation9 + $0xa30] sm:$0xff]
    %v525 = vld [vmem:[#allocation9 + $0xa38] sm:$0xff]
    %v526 = vld [vmem:[#allocation9 + $0xa40] sm:$0xff]
    %v527 = vld [vmem:[#allocation9 + $0xa48] sm:$0xff]
    %v528 = vld [vmem:[#allocation9 + $0xa50] sm:$0xff]
    %v529 = vld [vmem:[#allocation9 + $0xa58] sm:$0xff]
    %v530 = vld [vmem:[#allocation9 + $0xa60] sm:$0xff]
    %v531 = vld [vmem:[#allocation9 + $0xa68] sm:$0xff]
    %v532 = vld [vmem:[#allocation9 + $0xa70] sm:$0xff]
    %v533 = vld [vmem:[#allocation9 + $0xa78] sm:$0xff]
    %v534 = vld [vmem:[#allocation9 + $0xa80] sm:$0xff]
    %v535 = vld [vmem:[#allocation9 + $0xa88] sm:$0xff]
    %v536 = vld [vmem:[#allocation9 + $0xa90] sm:$0xff]
    %v537 = vld [vmem:[#allocation9 + $0xa98] sm:$0xff]
    %v538 = vld [vmem:[#allocation9 + $0xaa0] sm:$0xff]
    %v539 = vld [vmem:[#allocation9 + $0xaa8] sm:$0xff]
    %v540 = vld [vmem:[#allocation9 + $0xab0] sm:$0xff]
    %v541 = vld [vmem:[#allocation9 + $0xab8] sm:$0xff]
    %v542 = vld [vmem:[#allocation9 + $0xac0] sm:$0xff]
    %v543 = vld [vmem:[#allocation9 + $0xac8] sm:$0xff]
    %v544 = vld [vmem:[#allocation9 + $0xad0] sm:$0xff]
    %v545 = vld [vmem:[#allocation9 + $0xad8] sm:$0xff]
    %v546 = vld [vmem:[#allocation9 + $0xae0] sm:$0xff]
    %v547 = vld [vmem:[#allocation9 + $0xae8] sm:$0xff]
    %v548 = vld [vmem:[#allocation9 + $0xaf0] sm:$0xff]
    %v549 = vld [vmem:[#allocation9 + $0xaf8] sm:$0xff]
    %v550 = vld [vmem:[#allocation9 + $0xb00] sm:$0xff]
    %v551 = vld [vmem:[#allocation9 + $0xb08] sm:$0xff]
    %v552 = vld [vmem:[#allocation9 + $0xb10] sm:$0xff]
    %v553 = vld [vmem:[#allocation9 + $0xb18] sm:$0xff]
    %v554 = vld [vmem:[#allocation9 + $0xb20] sm:$0xff]
    %v555 = vld [vmem:[#allocation9 + $0xb28] sm:$0xff]
    %v556 = vld [vmem:[#allocation9 + $0xb30] sm:$0xff]
    %v557 = vld [vmem:[#allocation9 + $0xb38] sm:$0xff]
    %v558 = vld [vmem:[#allocation9 + $0xb40] sm:$0xff]
    %v559 = vld [vmem:[#allocation9 + $0xb48] sm:$0xff]
    %v560 = vld [vmem:[#allocation9 + $0xb50] sm:$0xff]
    %v561 = vld [vmem:[#allocation9 + $0xb58] sm:$0xff]
    %v562 = vld [vmem:[#allocation9 + $0xb60] sm:$0xff]
    %v563 = vld [vmem:[#allocation9 + $0xb68] sm:$0xff]
    %v564 = vld [vmem:[#allocation9 + $0xb70] sm:$0xff]
    %v565 = vld [vmem:[#allocation9 + $0xb78] sm:$0xff]
    %v566 = vld [vmem:[#allocation9 + $0xb80] sm:$0xff]
    %v567 = vld [vmem:[#allocation9 + $0xb88] sm:$0xff]
    %v568 = vld [vmem:[#allocation9 + $0xb90] sm:$0xff]
    %v569 = vld [vmem:[#allocation9 + $0xb98] sm:$0xff]
    %v570 = vld [vmem:[#allocation9 + $0xba0] sm:$0xff]
    %v571 = vld [vmem:[#allocation9 + $0xba8] sm:$0xff]
    %v572 = vld [vmem:[#allocation9 + $0xbb0] sm:$0xff]
    %v573 = vld [vmem:[#allocation9 + $0xbb8] sm:$0xff]
    %v574 = vld [vmem:[#allocation9 + $0xbc0] sm:$0xff]
    %v575 = vld [vmem:[#allocation9 + $0xbc8] sm:$0xff]
    %v576 = vld [vmem:[#allocation9 + $0xbd0] sm:$0xff]
    %v577 = vld [vmem:[#allocation9 + $0xbd8] sm:$0xff]
    %v578 = vld [vmem:[#allocation9 + $0xbe0] sm:$0xff]
    %v579 = vld [vmem:[#allocation9 + $0xbe8] sm:$0xff]
    %v580 = vld [vmem:[#allocation9 + $0xbf0] sm:$0xff]
    %v581 = vld [vmem:[#allocation9 + $0xbf8] sm:$0xff]
    %v582 = vld [vmem:[#allocation9 + $0xc00] sm:$0xff]
    %v583 = vld [vmem:[#allocation9 + $0xc08] sm:$0xff]
    %v584 = vld [vmem:[#allocation9 + $0xc10] sm:$0xff]
    %v585 = vld [vmem:[#allocation9 + $0xc18] sm:$0xff]
    %v586 = vld [vmem:[#allocation9 + $0xc20] sm:$0xff]
    %v587 = vld [vmem:[#allocation9 + $0xc28] sm:$0xff]
    %v588 = vld [vmem:[#allocation9 + $0xc30] sm:$0xff]
    %v589 = vld [vmem:[#allocation9 + $0xc38] sm:$0xff]
    %v590 = vld [vmem:[#allocation9 + $0xc40] sm:$0xff]
    %v591 = vld [vmem:[#allocation9 + $0xc48] sm:$0xff]
    %v592 = vld [vmem:[#allocation9 + $0xc50] sm:$0xff]
    %v593 = vld [vmem:[#allocation9 + $0xc58] sm:$0xff]
    %v594 = vld [vmem:[#allocation9 + $0xc60] sm:$0xff]
    %v595 = vld [vmem:[#allocation9 + $0xc68] sm:$0xff]
    %v596 = vld [vmem:[#allocation9 + $0xc70] sm:$0xff]
    %v597 = vld [vmem:[#allocation9 + $0xc78] sm:$0xff]
    %v598 = vld [vmem:[#allocation9 + $0xc80] sm:$0xff]
    %v599 = vld [vmem:[#allocation9 + $0xc88] sm:$0xff]
    %v600 = vld [vmem:[#allocation9 + $0xc90] sm:$0xff]
    %v601 = vld [vmem:[#allocation9 + $0xc98] sm:$0xff]
    %v602 = vld [vmem:[#allocation9 + $0xca0] sm:$0xff]
    %v603 = vld [vmem:[#allocation9 + $0xca8] sm:$0xff]
    %v604 = vld [vmem:[#allocation9 + $0xcb0] sm:$0xff]
    %v605 = vld [vmem:[#allocation9 + $0xcb8] sm:$0xff]
    %v606 = vld [vmem:[#allocation9 + $0xcc0] sm:$0xff]
    %v607 = vld [vmem:[#allocation9 + $0xcc8] sm:$0xff]
    %v608 = vld [vmem:[#allocation9 + $0xcd0] sm:$0xff]
    %v609 = vld [vmem:[#allocation9 + $0xcd8] sm:$0xff]
    %v610 = vld [vmem:[#allocation9 + $0xce0] sm:$0xff]
    %v611 = vld [vmem:[#allocation9 + $0xce8] sm:$0xff]
    %v612 = vld [vmem:[#allocation9 + $0xcf0] sm:$0xff]
    %v613 = vld [vmem:[#allocation9 + $0xcf8] sm:$0xff]
    %v614 = vld [vmem:[#allocation9 + $0xd00] sm:$0xff]
    %v615 = vld [vmem:[#allocation9 + $0xd08] sm:$0xff]
    %v616 = vld [vmem:[#allocation9 + $0xd10] sm:$0xff]
    %v617 = vld [vmem:[#allocation9 + $0xd18] sm:$0xff]
    %v618 = vld [vmem:[#allocation9 + $0xd20] sm:$0xff]
    %v619 = vld [vmem:[#allocation9 + $0xd28] sm:$0xff]
    %v620 = vld [vmem:[#allocation9 + $0xd30] sm:$0xff]
    %v621 = vld [vmem:[#allocation9 + $0xd38] sm:$0xff]
    %v622 = vld [vmem:[#allocation9 + $0xd40] sm:$0xff]
    %v623 = vld [vmem:[#allocation9 + $0xd48] sm:$0xff]
    %v624 = vld [vmem:[#allocation9 + $0xd50] sm:$0xff]
    %v625 = vld [vmem:[#allocation9 + $0xd58] sm:$0xff]
    %v626 = vld [vmem:[#allocation9 + $0xd60] sm:$0xff]
    %v627 = vld [vmem:[#allocation9 + $0xd68] sm:$0xff]
    %v628 = vld [vmem:[#allocation9 + $0xd70] sm:$0xff]
    %v629 = vld [vmem:[#allocation9 + $0xd78] sm:$0xff]
    %v630 = vld [vmem:[#allocation9 + $0xd80] sm:$0xff]
    %v631 = vld [vmem:[#allocation9 + $0xd88] sm:$0xff]
    %v632 = vld [vmem:[#allocation9 + $0xd90] sm:$0xff]
    %v633 = vld [vmem:[#allocation9 + $0xd98] sm:$0xff]
    %v634 = vld [vmem:[#allocation9 + $0xda0] sm:$0xff]
    %v635 = vld [vmem:[#allocation9 + $0xda8] sm:$0xff]
    %v636 = vld [vmem:[#allocation9 + $0xdb0] sm:$0xff]
    %v637 = vld [vmem:[#allocation9 + $0xdb8] sm:$0xff]
    %v638 = vld [vmem:[#allocation9 + $0xdc0] sm:$0xff]
    %v639 = vld [vmem:[#allocation9 + $0xdc8] sm:$0xff]
    %v640 = vld [vmem:[#allocation9 + $0xdd0] sm:$0xff]
    %v641 = vld [vmem:[#allocation9 + $0xdd8] sm:$0xff]
    %v642 = vld [vmem:[#allocation9 + $0xde0] sm:$0xff]
    %v643 = vld [vmem:[#allocation9 + $0xde8] sm:$0xff]
    %v644 = vld [vmem:[#allocation9 + $0xdf0] sm:$0xff]
    %v645 = vld [vmem:[#allocation9 + $0xdf8] sm:$0xff]
    %v646 = vld [vmem:[#allocation9 + $0xe00] sm:$0xff]
    %v647 = vld [vmem:[#allocation9 + $0xe08] sm:$0xff]
    %v648 = vld [vmem:[#allocation9 + $0xe10] sm:$0xff]
    %v649 = vld [vmem:[#allocation9 + $0xe18] sm:$0xff]
    %v650 = vld [vmem:[#allocation9 + $0xe20] sm:$0xff]
    %v651 = vld [vmem:[#allocation9 + $0xe28] sm:$0xff]
    %v652 = vld [vmem:[#allocation9 + $0xe30] sm:$0xff]
    %v653 = vld [vmem:[#allocation9 + $0xe38] sm:$0xff]
    %v654 = vld [vmem:[#allocation9 + $0xe40] sm:$0xff]
    %v655 = vld [vmem:[#allocation9 + $0xe48] sm:$0xff]
    %v656 = vld [vmem:[#allocation9 + $0xe50] sm:$0xff]
    %v657 = vld [vmem:[#allocation9 + $0xe58] sm:$0xff]
    %v658 = vld [vmem:[#allocation9 + $0xe60] sm:$0xff]
    %v659 = vld [vmem:[#allocation9 + $0xe68] sm:$0xff]
    %v660 = vld [vmem:[#allocation9 + $0xe70] sm:$0xff]
    %v661 = vld [vmem:[#allocation9 + $0xe78] sm:$0xff]
    %v662 = vld [vmem:[#allocation9 + $0xe80] sm:$0xff]
    %v663 = vld [vmem:[#allocation9 + $0xe88] sm:$0xff]
    %v664 = vld [vmem:[#allocation9 + $0xe90] sm:$0xff]
    %v665 = vld [vmem:[#allocation9 + $0xe98] sm:$0xff]
    %v666 = vld [vmem:[#allocation9 + $0xea0] sm:$0xff]
    %v667 = vld [vmem:[#allocation9 + $0xea8] sm:$0xff]
    %v668 = vld [vmem:[#allocation9 + $0xeb0] sm:$0xff]
    %v669 = vld [vmem:[#allocation9 + $0xeb8] sm:$0xff]
    %v670 = vld [vmem:[#allocation9 + $0xec0] sm:$0xff]
    %v671 = vld [vmem:[#allocation9 + $0xec8] sm:$0xff]
    %v672 = vld [vmem:[#allocation9 + $0xed0] sm:$0xff]
    %v673 = vld [vmem:[#allocation9 + $0xed8] sm:$0xff]
    %v674 = vld [vmem:[#allocation9 + $0xee0] sm:$0xff]
    %v675 = vld [vmem:[#allocation9 + $0xee8] sm:$0xff]
    %v676 = vld [vmem:[#allocation9 + $0xef0] sm:$0xff]
    %v677 = vld [vmem:[#allocation9 + $0xef8] sm:$0xff]
    %v678 = vld [vmem:[#allocation9 + $0xf00] sm:$0xff]
    %v679 = vld [vmem:[#allocation9 + $0xf08] sm:$0xff]
    %v680 = vld [vmem:[#allocation9 + $0xf10] sm:$0xff]
    %v681 = vld [vmem:[#allocation9 + $0xf18] sm:$0xff]
    %v682 = vld [vmem:[#allocation9 + $0xf20] sm:$0xff]
    %v683 = vld [vmem:[#allocation9 + $0xf28] sm:$0xff]
    %v684 = vld [vmem:[#allocation9 + $0xf30] sm:$0xff]
    %v685 = vld [vmem:[#allocation9 + $0xf38] sm:$0xff]
    %v686 = vld [vmem:[#allocation9 + $0xf40] sm:$0xff]
    %v687 = vld [vmem:[#allocation9 + $0xf48] sm:$0xff]
    %v688 = vld [vmem:[#allocation9 + $0xf50] sm:$0xff]
    %v689 = vld [vmem:[#allocation9 + $0xf58] sm:$0xff]
    %v690 = vld [vmem:[#allocation9 + $0xf60] sm:$0xff]
    %v691 = vld [vmem:[#allocation9 + $0xf68] sm:$0xff]
    %v692 = vld [vmem:[#allocation9 + $0xf70] sm:$0xff]
    %v693 = vld [vmem:[#allocation9 + $0xf78] sm:$0xff]
    %v694 = vld [vmem:[#allocation9 + $0xf80] sm:$0xff]
    %v695 = vld [vmem:[#allocation9 + $0xf88] sm:$0xff]
    %v696 = vld [vmem:[#allocation9 + $0xf90] sm:$0xff]
    %v697 = vld [vmem:[#allocation9 + $0xf98] sm:$0xff]
    %v698 = vld [vmem:[#allocation9 + $0xfa0] sm:$0xff]
    %v699 = vld [vmem:[#allocation9 + $0xfa8] sm:$0xff]
    %v700 = vld [vmem:[#allocation9 + $0xfb0] sm:$0xff]
    %v701 = vld [vmem:[#allocation9 + $0xfb8] sm:$0xff]
    %v702 = vld [vmem:[#allocation9 + $0xfc0] sm:$0xff]
    %v703 = vld [vmem:[#allocation9 + $0xfc8] sm:$0xff]
    %v704 = vld [vmem:[#allocation9 + $0xfd0] sm:$0xff]
    %v705 = vld [vmem:[#allocation9 + $0xfd8] sm:$0xff]
    %v706 = vld [vmem:[#allocation9 + $0xfe0] sm:$0xff]
    %v707 = vld [vmem:[#allocation9 + $0xfe8] sm:$0xff]
    %v708 = vld [vmem:[#allocation9 + $0xff0] sm:$0xff]
    %v709 = vld [vmem:[#allocation9 + $0xff8] sm:$0xff]
    %v710 = vld [vmem:[#allocation9 + $0x1000] sm:$0xff]
    %v711 = vld [vmem:[#allocation9 + $0x1008] sm:$0xff]
    %v712 = vld [vmem:[#allocation9 + $0x1010] sm:$0xff]
    %v713 = vld [vmem:[#allocation9 + $0x1018] sm:$0xff]
    %v714 = vld [vmem:[#allocation9 + $0x1020] sm:$0xff]
    %v715 = vld [vmem:[#allocation9 + $0x1028] sm:$0xff]
    %v716 = vld [vmem:[#allocation9 + $0x1030] sm:$0xff]
    %v717 = vld [vmem:[#allocation9 + $0x1038] sm:$0xff]
    %v718 = vld [vmem:[#allocation9 + $0x1040] sm:$0xff]
    %v719 = vld [vmem:[#allocation9 + $0x1048] sm:$0xff]
    %v720 = vld [vmem:[#allocation9 + $0x1050] sm:$0xff]
    %v721 = vld [vmem:[#allocation9 + $0x1058] sm:$0xff]
    %v722 = vld [vmem:[#allocation9 + $0x1060] sm:$0xff]
    %v723 = vld [vmem:[#allocation9 + $0x1068] sm:$0xff]
    %v724 = vld [vmem:[#allocation9 + $0x1070] sm:$0xff]
    %v725 = vld [vmem:[#allocation9 + $0x1078] sm:$0xff]
    %v726 = vld [vmem:[#allocation9 + $0x1080] sm:$0xff]
    %v727 = vld [vmem:[#allocation9 + $0x1088] sm:$0xff]
    %v728 = vld [vmem:[#allocation9 + $0x1090] sm:$0xff]
    %v729 = vld [vmem:[#allocation9 + $0x1098] sm:$0xff]
    %v730 = vld [vmem:[#allocation9 + $0x10a0] sm:$0xff]
    %v731 = vld [vmem:[#allocation9 + $0x10a8] sm:$0xff]
    %v732 = vld [vmem:[#allocation9 + $0x10b0] sm:$0xff]
    %v733 = vld [vmem:[#allocation9 + $0x10b8] sm:$0xff]
    %v734 = vld [vmem:[#allocation9 + $0x10c0] sm:$0xff]
    %v735 = vld [vmem:[#allocation9 + $0x10c8] sm:$0xff]
    %v736 = vld [vmem:[#allocation9 + $0x10d0] sm:$0xff]
    %v737 = vld [vmem:[#allocation9 + $0x10d8] sm:$0xff]
    %v738 = vld [vmem:[#allocation9 + $0x10e0] sm:$0xff]
    %v739 = vld [vmem:[#allocation9 + $0x10e8] sm:$0xff]
    %v740 = vld [vmem:[#allocation9 + $0x10f0] sm:$0xff]
    %v741 = vld [vmem:[#allocation9 + $0x10f8] sm:$0xff]
    %v742 = vld [vmem:[#allocation9 + $0x1100] sm:$0xff]
    %v743 = vld [vmem:[#allocation9 + $0x1108] sm:$0xff]
    %v744 = vld [vmem:[#allocation9 + $0x1110] sm:$0xff]
    %v745 = vld [vmem:[#allocation9 + $0x1118] sm:$0xff]
    %v746 = vld [vmem:[#allocation9 + $0x1120] sm:$0xff]
    %v747 = vld [vmem:[#allocation9 + $0x1128] sm:$0xff]
    %v748 = vld [vmem:[#allocation9 + $0x1130] sm:$0xff]
    %v749 = vld [vmem:[#allocation9 + $0x1138] sm:$0xff]
    %v750 = vld [vmem:[#allocation9 + $0x1140] sm:$0xff]
    %v751 = vld [vmem:[#allocation9 + $0x1148] sm:$0xff]
    %v752 = vld [vmem:[#allocation9 + $0x1150] sm:$0xff]
    %v753 = vld [vmem:[#allocation9 + $0x1158] sm:$0xff]
    %v754 = vld [vmem:[#allocation9 + $0x1160] sm:$0xff]
    %v755 = vld [vmem:[#allocation9 + $0x1168] sm:$0xff]
    %v756 = vld [vmem:[#allocation9 + $0x1170] sm:$0xff]
    %v757 = vld [vmem:[#allocation9 + $0x1178] sm:$0xff]
    %v758 = vld [vmem:[#allocation9 + $0x1180] sm:$0xff]
    %v759 = vld [vmem:[#allocation9 + $0x1188] sm:$0xff]
    %v760 = vld [vmem:[#allocation9 + $0x1190] sm:$0xff]
    %v761 = vld [vmem:[#allocation9 + $0x1198] sm:$0xff]
    %v762 = vld [vmem:[#allocation9 + $0x11a0] sm:$0xff]
    %v763 = vld [vmem:[#allocation9 + $0x11a8] sm:$0xff]
    %v764 = vld [vmem:[#allocation9 + $0x11b0] sm:$0xff]
    %v765 = vld [vmem:[#allocation9 + $0x11b8] sm:$0xff]
    %v766 = vld [vmem:[#allocation9 + $0x11c0] sm:$0xff]
    %v767 = vld [vmem:[#allocation9 + $0x11c8] sm:$0xff]
    %v768 = vld [vmem:[#allocation9 + $0x11d0] sm:$0xff]
    %v769 = vld [vmem:[#allocation9 + $0x11d8] sm:$0xff]
    %v770 = vld [vmem:[#allocation9 + $0x11e0] sm:$0xff]
    %v771 = vld [vmem:[#allocation9 + $0x11e8] sm:$0xff]
    %v772 = vld [vmem:[#allocation9 + $0x11f0] sm:$0xff]
    %v773 = vld [vmem:[#allocation9 + $0x11f8] sm:$0xff]
    %v774 = vld [vmem:[#allocation9 + $0x1200] sm:$0xff]
    %v775 = vld [vmem:[#allocation9 + $0x1208] sm:$0xff]
    %v776 = vld [vmem:[#allocation9 + $0x1210] sm:$0xff]
    %v777 = vld [vmem:[#allocation9 + $0x1218] sm:$0xff]
    %v778 = vld [vmem:[#allocation9 + $0x1220] sm:$0xff]
    %v779 = vld [vmem:[#allocation9 + $0x1228] sm:$0xff]
    %v780 = vld [vmem:[#allocation9 + $0x1230] sm:$0xff]
    %v781 = vld [vmem:[#allocation9 + $0x1238] sm:$0xff]
    %v782 = vld [vmem:[#allocation9 + $0x1240] sm:$0xff]
    %v783 = vld [vmem:[#allocation9 + $0x1248] sm:$0xff]
    %v784 = vld [vmem:[#allocation9 + $0x1250] sm:$0xff]
    %v785 = vld [vmem:[#allocation9 + $0x1258] sm:$0xff]
    %v786 = vld [vmem:[#allocation9 + $0x1260] sm:$0xff]
    %v787 = vld [vmem:[#allocation9 + $0x1268] sm:$0xff]
    %v788 = vld [vmem:[#allocation9 + $0x1270] sm:$0xff]
    %v789 = vld [vmem:[#allocation9 + $0x1278] sm:$0xff]
    %v790 = vld [vmem:[#allocation9 + $0x1280] sm:$0xff]
    %v791 = vld [vmem:[#allocation9 + $0x1288] sm:$0xff]
    %v792 = vld [vmem:[#allocation9 + $0x1290] sm:$0xff]
    %v793 = vld [vmem:[#allocation9 + $0x1298] sm:$0xff]
    %v794 = vld [vmem:[#allocation9 + $0x12a0] sm:$0xff]
    %v795 = vld [vmem:[#allocation9 + $0x12a8] sm:$0xff]
    %v796 = vld [vmem:[#allocation9 + $0x12b0] sm:$0xff]
    %v797 = vld [vmem:[#allocation9 + $0x12b8] sm:$0xff]
    %v798 = vld [vmem:[#allocation9 + $0x12c0] sm:$0xff]
    %v799 = vld [vmem:[#allocation9 + $0x12c8] sm:$0xff]
    %v800 = vld [vmem:[#allocation9 + $0x12d0] sm:$0xff]
    %v801 = vld [vmem:[#allocation9 + $0x12d8] sm:$0xff]
    %v802 = vld [vmem:[#allocation9 + $0x12e0] sm:$0xff]
    %v803 = vld [vmem:[#allocation9 + $0x12e8] sm:$0xff]
    %v804 = vld [vmem:[#allocation9 + $0x12f0] sm:$0xff]
    %v805 = vld [vmem:[#allocation9 + $0x12f8] sm:$0xff]
    %v806 = vld [vmem:[#allocation9 + $0x1300] sm:$0xff]
    %v807 = vld [vmem:[#allocation9 + $0x1308] sm:$0xff]
    %v808 = vld [vmem:[#allocation9 + $0x1310] sm:$0xff]
    %v809 = vld [vmem:[#allocation9 + $0x1318] sm:$0xff]
    %v810 = vld [vmem:[#allocation9 + $0x1320] sm:$0xff]
    %v811 = vld [vmem:[#allocation9 + $0x1328] sm:$0xff]
    %v812 = vld [vmem:[#allocation9 + $0x1330] sm:$0xff]
    %v813 = vld [vmem:[#allocation9 + $0x1338] sm:$0xff]
    %v814 = vld [vmem:[#allocation9 + $0x1340] sm:$0xff]
    %v815 = vld [vmem:[#allocation9 + $0x1348] sm:$0xff]
    %v816 = vld [vmem:[#allocation9 + $0x1350] sm:$0xff]
    %v817 = vld [vmem:[#allocation9 + $0x1358] sm:$0xff]
    %v818 = vld [vmem:[#allocation9 + $0x1360] sm:$0xff]
    %v819 = vld [vmem:[#allocation9 + $0x1368] sm:$0xff]
    %v820 = vld [vmem:[#allocation9 + $0x1370] sm:$0xff]
    %v821 = vld [vmem:[#allocation9 + $0x1378] sm:$0xff]
    %v822 = vld [vmem:[#allocation9 + $0x1380] sm:$0xff]
    %v823 = vld [vmem:[#allocation9 + $0x1388] sm:$0xff]
    %v824 = vld [vmem:[#allocation9 + $0x1390] sm:$0xff]
    %v825 = vld [vmem:[#allocation9 + $0x1398] sm:$0xff]
    %v826 = vld [vmem:[#allocation9 + $0x13a0] sm:$0xff]
    %v827 = vld [vmem:[#allocation9 + $0x13a8] sm:$0xff]
    %v828 = vld [vmem:[#allocation9 + $0x13b0] sm:$0xff]
    %v829 = vld [vmem:[#allocation9 + $0x13b8] sm:$0xff]
    %v830 = vld [vmem:[#allocation9 + $0x13c0] sm:$0xff]
    %v831 = vld [vmem:[#allocation9 + $0x13c8] sm:$0xff]
    %v832 = vld [vmem:[#allocation9 + $0x13d0] sm:$0xff]
    %v833 = vld [vmem:[#allocation9 + $0x13d8] sm:$0xff]
    %v834 = vld [vmem:[#allocation9 + $0x13e0] sm:$0xff]
    %v835 = vld [vmem:[#allocation9 + $0x13e8] sm:$0xff]
    %v836 = vld [vmem:[#allocation9 + $0x13f0] sm:$0xff]
    %v837 = vld [vmem:[#allocation9 + $0x13f8] sm:$0xff]
    %v838 = vld [vmem:[#allocation9 + $0x1400] sm:$0xff]
    %v839 = vld [vmem:[#allocation9 + $0x1408] sm:$0xff]
    %v840 = vld [vmem:[#allocation9 + $0x1410] sm:$0xff]
    %v841 = vld [vmem:[#allocation9 + $0x1418] sm:$0xff]
    %v842 = vld [vmem:[#allocation9 + $0x1420] sm:$0xff]
    %v843 = vld [vmem:[#allocation9 + $0x1428] sm:$0xff]
    %v844 = vld [vmem:[#allocation9 + $0x1430] sm:$0xff]
    %v845 = vld [vmem:[#allocation9 + $0x1438] sm:$0xff]
    %v846 = vld [vmem:[#allocation9 + $0x1440] sm:$0xff]
    %v847 = vld [vmem:[#allocation9 + $0x1448] sm:$0xff]
    %v848 = vld [vmem:[#allocation9 + $0x1450] sm:$0xff]
    %v849 = vld [vmem:[#allocation9 + $0x1458] sm:$0xff]
    %v850 = vld [vmem:[#allocation9 + $0x1460] sm:$0xff]
    %v851 = vld [vmem:[#allocation9 + $0x1468] sm:$0xff]
    %v852 = vld [vmem:[#allocation9 + $0x1470] sm:$0xff]
    %v853 = vld [vmem:[#allocation9 + $0x1478] sm:$0xff]
    %v854 = vld [vmem:[#allocation9 + $0x1480] sm:$0xff]
    %v855 = vld [vmem:[#allocation9 + $0x1488] sm:$0xff]
    %v856 = vld [vmem:[#allocation9 + $0x1490] sm:$0xff]
    %v857 = vld [vmem:[#allocation9 + $0x1498] sm:$0xff]
    %v858 = vld [vmem:[#allocation9 + $0x14a0] sm:$0xff]
    %v859 = vld [vmem:[#allocation9 + $0x14a8] sm:$0xff]
    %v860 = vld [vmem:[#allocation9 + $0x14b0] sm:$0xff]
    %v861 = vld [vmem:[#allocation9 + $0x14b8] sm:$0xff]
    %v862 = vld [vmem:[#allocation9 + $0x14c0] sm:$0xff]
    %v863 = vld [vmem:[#allocation9 + $0x14c8] sm:$0xff]
    %v864 = vld [vmem:[#allocation9 + $0x14d0] sm:$0xff]
    %v865 = vld [vmem:[#allocation9 + $0x14d8] sm:$0xff]
    %v866 = vld [vmem:[#allocation9 + $0x14e0] sm:$0xff]
    %v867 = vld [vmem:[#allocation9 + $0x14e8] sm:$0xff]
    %v868 = vld [vmem:[#allocation9 + $0x14f0] sm:$0xff]
    %v869 = vld [vmem:[#allocation9 + $0x14f8] sm:$0xff]
    %v870 = vld [vmem:[#allocation9 + $0x1500] sm:$0xff]
    %v871 = vld [vmem:[#allocation9 + $0x1508] sm:$0xff]
    %v872 = vld [vmem:[#allocation9 + $0x1510] sm:$0xff]
    %v873 = vld [vmem:[#allocation9 + $0x1518] sm:$0xff]
    %v874 = vld [vmem:[#allocation9 + $0x1520] sm:$0xff]
    %v875 = vld [vmem:[#allocation9 + $0x1528] sm:$0xff]
    %v876 = vld [vmem:[#allocation9 + $0x1530] sm:$0xff]
    %v877 = vld [vmem:[#allocation9 + $0x1538] sm:$0xff]
    %v878 = vld [vmem:[#allocation9 + $0x1540] sm:$0xff]
    %v879 = vld [vmem:[#allocation9 + $0x1548] sm:$0xff]
    %v880 = vld [vmem:[#allocation9 + $0x1550] sm:$0xff]
    %v881 = vld [vmem:[#allocation9 + $0x1558] sm:$0xff]
    %v882 = vld [vmem:[#allocation9 + $0x1560] sm:$0xff]
    %v883 = vld [vmem:[#allocation9 + $0x1568] sm:$0xff]
    %v884 = vld [vmem:[#allocation9 + $0x1570] sm:$0xff]
    %v885 = vld [vmem:[#allocation9 + $0x1578] sm:$0xff]
    %v886 = vld [vmem:[#allocation9 + $0x1580] sm:$0xff]
    %v887 = vld [vmem:[#allocation9 + $0x1588] sm:$0xff]
    %v888 = vld [vmem:[#allocation9 + $0x1590] sm:$0xff]
    %v889 = vld [vmem:[#allocation9 + $0x1598] sm:$0xff]
    %v890 = vld [vmem:[#allocation9 + $0x15a0] sm:$0xff]
    %v891 = vld [vmem:[#allocation9 + $0x15a8] sm:$0xff]
    %v892 = vld [vmem:[#allocation9 + $0x15b0] sm:$0xff]
    %v893 = vld [vmem:[#allocation9 + $0x15b8] sm:$0xff]
    %v894 = vld [vmem:[#allocation9 + $0x15c0] sm:$0xff]
    %v895 = vld [vmem:[#allocation9 + $0x15c8] sm:$0xff]
    %v896 = vld [vmem:[#allocation9 + $0x15d0] sm:$0xff]
    %v897 = vld [vmem:[#allocation9 + $0x15d8] sm:$0xff]
    %v898 = vld [vmem:[#allocation9 + $0x15e0] sm:$0xff]
    %v899 = vld [vmem:[#allocation9 + $0x15e8] sm:$0xff]
    %v900 = vld [vmem:[#allocation9 + $0x15f0] sm:$0xff]
    %v901 = vld [vmem:[#allocation9 + $0x15f8] sm:$0xff]
    %v902 = vld [vmem:[#allocation9 + $0x1600] sm:$0xff]
    %v903 = vld [vmem:[#allocation9 + $0x1608] sm:$0xff]
    %v904 = vld [vmem:[#allocation9 + $0x1610] sm:$0xff]
    %v905 = vld [vmem:[#allocation9 + $0x1618] sm:$0xff]
    %v906 = vld [vmem:[#allocation9 + $0x1620] sm:$0xff]
    %v907 = vld [vmem:[#allocation9 + $0x1628] sm:$0xff]
    %v908 = vld [vmem:[#allocation9 + $0x1630] sm:$0xff]
    %v909 = vld [vmem:[#allocation9 + $0x1638] sm:$0xff]
    %v910 = vld [vmem:[#allocation9 + $0x1640] sm:$0xff]
    %v911 = vld [vmem:[#allocation9 + $0x1648] sm:$0xff]
    %v912 = vld [vmem:[#allocation9 + $0x1650] sm:$0xff]
    %v913 = vld [vmem:[#allocation9 + $0x1658] sm:$0xff]
    %v914 = vld [vmem:[#allocation9 + $0x1660] sm:$0xff]
    %v915 = vld [vmem:[#allocation9 + $0x1668] sm:$0xff]
    %v916 = vld [vmem:[#allocation9 + $0x1670] sm:$0xff]
    %v917 = vld [vmem:[#allocation9 + $0x1678] sm:$0xff]
    %v918 = vld [vmem:[#allocation9 + $0x1680] sm:$0xff]
    %v919 = vld [vmem:[#allocation9 + $0x1688] sm:$0xff]
    %v920 = vld [vmem:[#allocation9 + $0x1690] sm:$0xff]
    %v921 = vld [vmem:[#allocation9 + $0x1698] sm:$0xff]
    %v922 = vld [vmem:[#allocation9 + $0x16a0] sm:$0xff]
    %v923 = vld [vmem:[#allocation9 + $0x16a8] sm:$0xff]
    %v924 = vld [vmem:[#allocation9 + $0x16b0] sm:$0xff]
    %v925 = vld [vmem:[#allocation9 + $0x16b8] sm:$0xff]
    %v926 = vld [vmem:[#allocation9 + $0x16c0] sm:$0xff]
    %v927 = vld [vmem:[#allocation9 + $0x16c8] sm:$0xff]
    %v928 = vld [vmem:[#allocation9 + $0x16d0] sm:$0xff]
    %v929 = vld [vmem:[#allocation9 + $0x16d8] sm:$0xff]
    %v930 = vld [vmem:[#allocation9 + $0x16e0] sm:$0xff]
    %v931 = vld [vmem:[#allocation9 + $0x16e8] sm:$0xff]
    %v932 = vld [vmem:[#allocation9 + $0x16f0] sm:$0xff]
    %v933 = vld [vmem:[#allocation9 + $0x16f8] sm:$0xff]
    %v934 = vld [vmem:[#allocation9 + $0x1700] sm:$0xff]
    %v935 = vld [vmem:[#allocation9 + $0x1708] sm:$0xff]
    %v936 = vld [vmem:[#allocation9 + $0x1710] sm:$0xff]
    %v937 = vld [vmem:[#allocation9 + $0x1718] sm:$0xff]
    %v938 = vld [vmem:[#allocation9 + $0x1720] sm:$0xff]
    %v939 = vld [vmem:[#allocation9 + $0x1728] sm:$0xff]
    %v940 = vld [vmem:[#allocation9 + $0x1730] sm:$0xff]
    %v941 = vld [vmem:[#allocation9 + $0x1738] sm:$0xff]
    %v942 = vld [vmem:[#allocation9 + $0x1740] sm:$0xff]
    %v943 = vld [vmem:[#allocation9 + $0x1748] sm:$0xff]
    %v944 = vld [vmem:[#allocation9 + $0x1750] sm:$0xff]
    %v945 = vld [vmem:[#allocation9 + $0x1758] sm:$0xff]
    %v946 = vld [vmem:[#allocation9 + $0x1760] sm:$0xff]
    %v947 = vld [vmem:[#allocation9 + $0x1768] sm:$0xff]
    %v948 = vld [vmem:[#allocation9 + $0x1770] sm:$0xff]
    %v949 = vld [vmem:[#allocation9 + $0x1778] sm:$0xff]
    %v950 = vld [vmem:[#allocation9 + $0x1780] sm:$0xff]
    %v951 = vld [vmem:[#allocation9 + $0x1788] sm:$0xff]
    %v952 = vld [vmem:[#allocation9 + $0x1790] sm:$0xff]
    %v953 = vld [vmem:[#allocation9 + $0x1798] sm:$0xff]
    %v954 = vld [vmem:[#allocation9 + $0x17a0] sm:$0xff]
    %v955 = vld [vmem:[#allocation9 + $0x17a8] sm:$0xff]
    %v956 = vld [vmem:[#allocation9 + $0x17b0] sm:$0xff]
    %v957 = vld [vmem:[#allocation9 + $0x17b8] sm:$0xff]
    %v958 = vld [vmem:[#allocation9 + $0x17c0] sm:$0xff]
    %v959 = vld [vmem:[#allocation9 + $0x17c8] sm:$0xff]
    %v960 = vld [vmem:[#allocation9 + $0x17d0] sm:$0xff]
    %v961 = vld [vmem:[#allocation9 + $0x17d8] sm:$0xff]
    %v962 = vld [vmem:[#allocation9 + $0x17e0] sm:$0xff]
    %v963 = vld [vmem:[#allocation9 + $0x17e8] sm:$0xff]
    %v964 = vld [vmem:[#allocation9 + $0x17f0] sm:$0xff]
    %v965 = vld [vmem:[#allocation9 + $0x17f8] sm:$0xff]
    %v966 = vld [vmem:[#allocation9 + $0x1800] sm:$0xff]
    %v967 = vld [vmem:[#allocation9 + $0x1808] sm:$0xff]
    %v968 = vld [vmem:[#allocation9 + $0x1810] sm:$0xff]
    %v969 = vld [vmem:[#allocation9 + $0x1818] sm:$0xff]
    %v970 = vld [vmem:[#allocation9 + $0x1820] sm:$0xff]
    %v971 = vld [vmem:[#allocation9 + $0x1828] sm:$0xff]
    %v972 = vld [vmem:[#allocation9 + $0x1830] sm:$0xff]
    %v973 = vld [vmem:[#allocation9 + $0x1838] sm:$0xff]
    %v974 = vld [vmem:[#allocation9 + $0x1840] sm:$0xff]
    %v975 = vld [vmem:[#allocation9 + $0x1848] sm:$0xff]
    %v976 = vld [vmem:[#allocation9 + $0x1850] sm:$0xff]
    %v977 = vld [vmem:[#allocation9 + $0x1858] sm:$0xff]
    %v978 = vld [vmem:[#allocation9 + $0x1860] sm:$0xff]
    %v979 = vld [vmem:[#allocation9 + $0x1868] sm:$0xff]
    %v980 = vld [vmem:[#allocation9 + $0x1870] sm:$0xff]
    %v981 = vld [vmem:[#allocation9 + $0x1878] sm:$0xff]
    %v982 = vld [vmem:[#allocation9 + $0x1880] sm:$0xff]
    %v983 = vld [vmem:[#allocation9 + $0x1888] sm:$0xff]
    %v984 = vld [vmem:[#allocation9 + $0x1890] sm:$0xff]
    %v985 = vld [vmem:[#allocation9 + $0x1898] sm:$0xff]
    %v986 = vld [vmem:[#allocation9 + $0x18a0] sm:$0xff]
    %v987 = vld [vmem:[#allocation9 + $0x18a8] sm:$0xff]
    %v988 = vld [vmem:[#allocation9 + $0x18b0] sm:$0xff]
    %v989 = vld [vmem:[#allocation9 + $0x18b8] sm:$0xff]
    %v990 = vld [vmem:[#allocation9 + $0x18c0] sm:$0xff]
    %v991 = vld [vmem:[#allocation9 + $0x18c8] sm:$0xff]
    %v992 = vld [vmem:[#allocation9 + $0x18d0] sm:$0xff]
    %v993 = vld [vmem:[#allocation9 + $0x18d8] sm:$0xff]
    %v994 = vld [vmem:[#allocation9 + $0x18e0] sm:$0xff]
    %v995 = vld [vmem:[#allocation9 + $0x18e8] sm:$0xff]
    %v996 = vld [vmem:[#allocation9 + $0x18f0] sm:$0xff]
    %v997 = vld [vmem:[#allocation9 + $0x18f8] sm:$0xff]
    %v998 = vld [vmem:[#allocation9 + $0x1900] sm:$0xff]
    %v999 = vld [vmem:[#allocation9 + $0x1908] sm:$0xff]
    %v1000 = vld [vmem:[#allocation9 + $0x1910] sm:$0xff]
    %v1001 = vld [vmem:[#allocation9 + $0x1918] sm:$0xff]
    %v1002 = vld [vmem:[#allocation9 + $0x1920] sm:$0xff]
    %v1003 = vld [vmem:[#allocation9 + $0x1928] sm:$0xff]
    %v1004 = vld [vmem:[#allocation9 + $0x1930] sm:$0xff]
    %v1005 = vld [vmem:[#allocation9 + $0x1938] sm:$0xff]
    %v1006 = vld [vmem:[#allocation9 + $0x1940] sm:$0xff]
    %v1007 = vld [vmem:[#allocation9 + $0x1948] sm:$0xff]
    %v1008 = vld [vmem:[#allocation9 + $0x1950] sm:$0xff]
    %v1009 = vld [vmem:[#allocation9 + $0x1958] sm:$0xff]
    %v1010 = vld [vmem:[#allocation9 + $0x1960] sm:$0xff]
    %v1011 = vld [vmem:[#allocation9 + $0x1968] sm:$0xff]
    %v1012 = vld [vmem:[#allocation9 + $0x1970] sm:$0xff]
    %v1013 = vld [vmem:[#allocation9 + $0x1978] sm:$0xff]
    %v1014 = vld [vmem:[#allocation9 + $0x1980] sm:$0xff]
    %v1015 = vld [vmem:[#allocation9 + $0x1988] sm:$0xff]
    %v1016 = vld [vmem:[#allocation9 + $0x1990] sm:$0xff]
    %v1017 = vld [vmem:[#allocation9 + $0x1998] sm:$0xff]
    %v1018 = vld [vmem:[#allocation9 + $0x19a0] sm:$0xff]
    %v1019 = vld [vmem:[#allocation9 + $0x19a8] sm:$0xff]
    %v1020 = vld [vmem:[#allocation9 + $0x19b0] sm:$0xff]
    %v1021 = vld [vmem:[#allocation9 + $0x19b8] sm:$0xff]
    %v1022 = vld [vmem:[#allocation9 + $0x19c0] sm:$0xff]
    %v1023 = vld [vmem:[#allocation9 + $0x19c8] sm:$0xff]
    %v1024 = vld [vmem:[#allocation9 + $0x19d0] sm:$0xff]
    %v1025 = vld [vmem:[#allocation9 + $0x19d8] sm:$0xff]
    %v1026 = vld [vmem:[#allocation9 + $0x19e0] sm:$0xff]
    %v1027 = vld [vmem:[#allocation9 + $0x19e8] sm:$0xff]
    %v1028 = vld [vmem:[#allocation9 + $0x19f0] sm:$0xff]
    %v1029 = vld [vmem:[#allocation9 + $0x19f8] sm:$0xff]
    %v1030 = vld [vmem:[#allocation9 + $0x1a00] sm:$0xff]
    %v1031 = vld [vmem:[#allocation9 + $0x1a08] sm:$0xff]
    %v1032 = vld [vmem:[#allocation9 + $0x1a10] sm:$0xff]
    %v1033 = vld [vmem:[#allocation9 + $0x1a18] sm:$0xff]
    %v1034 = vld [vmem:[#allocation9 + $0x1a20] sm:$0xff]
    %v1035 = vld [vmem:[#allocation9 + $0x1a28] sm:$0xff]
    %v1036 = vld [vmem:[#allocation9 + $0x1a30] sm:$0xff]
    %v1037 = vld [vmem:[#allocation9 + $0x1a38] sm:$0xff]
    %v1038 = vld [vmem:[#allocation9 + $0x1a40] sm:$0xff]
    %v1039 = vld [vmem:[#allocation9 + $0x1a48] sm:$0xff]
    %v1040 = vld [vmem:[#allocation9 + $0x1a50] sm:$0xff]
    %v1041 = vld [vmem:[#allocation9 + $0x1a58] sm:$0xff]
    %v1042 = vld [vmem:[#allocation9 + $0x1a60] sm:$0xff]
    %v1043 = vld [vmem:[#allocation9 + $0x1a68] sm:$0xff]
    %v1044 = vld [vmem:[#allocation9 + $0x1a70] sm:$0xff]
    %v1045 = vld [vmem:[#allocation9 + $0x1a78] sm:$0xff]
    %v1046 = vld [vmem:[#allocation9 + $0x1a80] sm:$0xff]
    %v1047 = vld [vmem:[#allocation9 + $0x1a88] sm:$0xff]
    %v1048 = vld [vmem:[#allocation9 + $0x1a90] sm:$0xff]
    %v1049 = vld [vmem:[#allocation9 + $0x1a98] sm:$0xff]
    %v1050 = vld [vmem:[#allocation9 + $0x1aa0] sm:$0xff]
    %v1051 = vld [vmem:[#allocation9 + $0x1aa8] sm:$0xff]
    %v1052 = vld [vmem:[#allocation9 + $0x1ab0] sm:$0xff]
    %v1053 = vld [vmem:[#allocation9 + $0x1ab8] sm:$0xff]
    %v1054 = vld [vmem:[#allocation9 + $0x1ac0] sm:$0xff]
    %v1055 = vld [vmem:[#allocation9 + $0x1ac8] sm:$0xff]
    %v1056 = vld [vmem:[#allocation9 + $0x1ad0] sm:$0xff]
    %v1057 = vld [vmem:[#allocation9 + $0x1ad8] sm:$0xff]
    %v1058 = vld [vmem:[#allocation9 + $0x1ae0] sm:$0xff]
    %v1059 = vld [vmem:[#allocation9 + $0x1ae8] sm:$0xff]
    %v1060 = vld [vmem:[#allocation9 + $0x1af0] sm:$0xff]
    %v1061 = vld [vmem:[#allocation9 + $0x1af8] sm:$0xff]
    %v1062 = vld [vmem:[#allocation9 + $0x1b00] sm:$0xff]
    %v1063 = vld [vmem:[#allocation9 + $0x1b08] sm:$0xff]
    %v1064 = vld [vmem:[#allocation9 + $0x1b10] sm:$0xff]
    %v1065 = vld [vmem:[#allocation9 + $0x1b18] sm:$0xff]
    %v1066 = vld [vmem:[#allocation9 + $0x1b20] sm:$0xff]
    %v1067 = vld [vmem:[#allocation9 + $0x1b28] sm:$0xff]
    %v1068 = vld [vmem:[#allocation9 + $0x1b30] sm:$0xff]
    %v1069 = vld [vmem:[#allocation9 + $0x1b38] sm:$0xff]
    %v1070 = vld [vmem:[#allocation9 + $0x1b40] sm:$0xff]
    %v1071 = vld [vmem:[#allocation9 + $0x1b48] sm:$0xff]
    %v1072 = vld [vmem:[#allocation9 + $0x1b50] sm:$0xff]
    %v1073 = vld [vmem:[#allocation9 + $0x1b58] sm:$0xff]
    %v1074 = vld [vmem:[#allocation9 + $0x1b60] sm:$0xff]
    %v1075 = vld [vmem:[#allocation9 + $0x1b68] sm:$0xff]
    %v1076 = vld [vmem:[#allocation9 + $0x1b70] sm:$0xff]
    %v1077 = vld [vmem:[#allocation9 + $0x1b78] sm:$0xff]
    %v1078 = vld [vmem:[#allocation9 + $0x1b80] sm:$0xff]
    %v1079 = vld [vmem:[#allocation9 + $0x1b88] sm:$0xff]
    %v1080 = vld [vmem:[#allocation9 + $0x1b90] sm:$0xff]
    %v1081 = vld [vmem:[#allocation9 + $0x1b98] sm:$0xff]
    %v1082 = vld [vmem:[#allocation9 + $0x1ba0] sm:$0xff]
    %v1083 = vld [vmem:[#allocation9 + $0x1ba8] sm:$0xff]
    %v1084 = vld [vmem:[#allocation9 + $0x1bb0] sm:$0xff]
    %v1085 = vld [vmem:[#allocation9 + $0x1bb8] sm:$0xff]
    %v1086 = vld [vmem:[#allocation9 + $0x1bc0] sm:$0xff]
    %v1087 = vld [vmem:[#allocation9 + $0x1bc8] sm:$0xff]
    %v1088 = vld [vmem:[#allocation9 + $0x1bd0] sm:$0xff]
    %v1089 = vld [vmem:[#allocation9 + $0x1bd8] sm:$0xff]
    %v1090 = vld [vmem:[#allocation9 + $0x1be0] sm:$0xff]
    %v1091 = vld [vmem:[#allocation9 + $0x1be8] sm:$0xff]
    %v1092 = vld [vmem:[#allocation9 + $0x1bf0] sm:$0xff]
    %v1093 = vld [vmem:[#allocation9 + $0x1bf8] sm:$0xff]
    %v1094 = vld [vmem:[#allocation9 + $0x1c00] sm:$0xff]
    %v1095 = vld [vmem:[#allocation9 + $0x1c08] sm:$0xff]
    %v1096 = vld [vmem:[#allocation9 + $0x1c10] sm:$0xff]
    %v1097 = vld [vmem:[#allocation9 + $0x1c18] sm:$0xff]
    %v1098 = vld [vmem:[#allocation9 + $0x1c20] sm:$0xff]
    %v1099 = vld [vmem:[#allocation9 + $0x1c28] sm:$0xff]
    %v1100 = vld [vmem:[#allocation9 + $0x1c30] sm:$0xff]
    %v1101 = vld [vmem:[#allocation9 + $0x1c38] sm:$0xff]
    %v1102 = vld [vmem:[#allocation9 + $0x1c40] sm:$0xff]
    %v1103 = vld [vmem:[#allocation9 + $0x1c48] sm:$0xff]
    %v1104 = vld [vmem:[#allocation9 + $0x1c50] sm:$0xff]
    %v1105 = vld [vmem:[#allocation9 + $0x1c58] sm:$0xff]
    %v1106 = vld [vmem:[#allocation9 + $0x1c60] sm:$0xff]
    %v1107 = vld [vmem:[#allocation9 + $0x1c68] sm:$0xff]
    %v1108 = vld [vmem:[#allocation9 + $0x1c70] sm:$0xff]
    %v1109 = vld [vmem:[#allocation9 + $0x1c78] sm:$0xff]
    %v1110 = vld [vmem:[#allocation9 + $0x1c80] sm:$0xff]
    %v1111 = vld [vmem:[#allocation9 + $0x1c88] sm:$0xff]
    %v1112 = vld [vmem:[#allocation9 + $0x1c90] sm:$0xff]
    %v1113 = vld [vmem:[#allocation9 + $0x1c98] sm:$0xff]
    %v1114 = vld [vmem:[#allocation9 + $0x1ca0] sm:$0xff]
    %v1115 = vld [vmem:[#allocation9 + $0x1ca8] sm:$0xff]
    %v1116 = vld [vmem:[#allocation9 + $0x1cb0] sm:$0xff]
    %v1117 = vld [vmem:[#allocation9 + $0x1cb8] sm:$0xff]
    %v1118 = vld [vmem:[#allocation9 + $0x1cc0] sm:$0xff]
    %v1119 = vld [vmem:[#allocation9 + $0x1cc8] sm:$0xff]
    %v1120 = vld [vmem:[#allocation9 + $0x1cd0] sm:$0xff]
    %v1121 = vld [vmem:[#allocation9 + $0x1cd8] sm:$0xff]
    %v1122 = vld [vmem:[#allocation9 + $0x1ce0] sm:$0xff]
    %v1123 = vld [vmem:[#allocation9 + $0x1ce8] sm:$0xff]
    %v1124 = vld [vmem:[#allocation9 + $0x1cf0] sm:$0xff]
    %v1125 = vld [vmem:[#allocation9 + $0x1cf8] sm:$0xff]
    %v1126 = vld [vmem:[#allocation9 + $0x1d00] sm:$0xff]
    %v1127 = vld [vmem:[#allocation9 + $0x1d08] sm:$0xff]
    %v1128 = vld [vmem:[#allocation9 + $0x1d10] sm:$0xff]
    %v1129 = vld [vmem:[#allocation9 + $0x1d18] sm:$0xff]
    %v1130 = vld [vmem:[#allocation9 + $0x1d20] sm:$0xff]
    %v1131 = vld [vmem:[#allocation9 + $0x1d28] sm:$0xff]
    %v1132 = vld [vmem:[#allocation9 + $0x1d30] sm:$0xff]
    %v1133 = vld [vmem:[#allocation9 + $0x1d38] sm:$0xff]
    %v1134 = vld [vmem:[#allocation9 + $0x1d40] sm:$0xff]
    %v1135 = vld [vmem:[#allocation9 + $0x1d48] sm:$0xff]
    %v1136 = vld [vmem:[#allocation9 + $0x1d50] sm:$0xff]
    %v1137 = vld [vmem:[#allocation9 + $0x1d58] sm:$0xff]
    %v1138 = vld [vmem:[#allocation9 + $0x1d60] sm:$0xff]
    %v1139 = vld [vmem:[#allocation9 + $0x1d68] sm:$0xff]
    %v1140 = vld [vmem:[#allocation9 + $0x1d70] sm:$0xff]
    %v1141 = vld [vmem:[#allocation9 + $0x1d78] sm:$0xff]
    %v1142 = vld [vmem:[#allocation9 + $0x1d80] sm:$0xff]
    %v1143 = vld [vmem:[#allocation9 + $0x1d88] sm:$0xff]
    %v1144 = vld [vmem:[#allocation9 + $0x1d90] sm:$0xff]
    %v1145 = vld [vmem:[#allocation9 + $0x1d98] sm:$0xff]
    %v1146 = vld [vmem:[#allocation9 + $0x1da0] sm:$0xff]
    %v1147 = vld [vmem:[#allocation9 + $0x1da8] sm:$0xff]
    %v1148 = vld [vmem:[#allocation9 + $0x1db0] sm:$0xff]
    %v1149 = vld [vmem:[#allocation9 + $0x1db8] sm:$0xff]
    %v1150 = vld [vmem:[#allocation9 + $0x1dc0] sm:$0xff]
    %v1151 = vld [vmem:[#allocation9 + $0x1dc8] sm:$0xff]
    %v1152 = vld [vmem:[#allocation9 + $0x1dd0] sm:$0xff]
    %v1153 = vld [vmem:[#allocation9 + $0x1dd8] sm:$0xff]
    %v1154 = vld [vmem:[#allocation9 + $0x1de0] sm:$0xff]
    %v1155 = vld [vmem:[#allocation9 + $0x1de8] sm:$0xff]
    %v1156 = vld [vmem:[#allocation9 + $0x1df0] sm:$0xff]
    %v1157 = vld [vmem:[#allocation9 + $0x1df8] sm:$0xff]
    %v1158 = vld [vmem:[#allocation9 + $0x1e00] sm:$0xff]
    %v1159 = vld [vmem:[#allocation9 + $0x1e08] sm:$0xff]
    %v1160 = vld [vmem:[#allocation9 + $0x1e10] sm:$0xff]
    %v1161 = vld [vmem:[#allocation9 + $0x1e18] sm:$0xff]
    %v1162 = vld [vmem:[#allocation9 + $0x1e20] sm:$0xff]
    %v1163 = vld [vmem:[#allocation9 + $0x1e28] sm:$0xff]
    %v1164 = vld [vmem:[#allocation9 + $0x1e30] sm:$0xff]
    %v1165 = vld [vmem:[#allocation9 + $0x1e38] sm:$0xff]
    %v1166 = vld [vmem:[#allocation9 + $0x1e40] sm:$0xff]
    %v1167 = vld [vmem:[#allocation9 + $0x1e48] sm:$0xff]
    %v1168 = vld [vmem:[#allocation9 + $0x1e50] sm:$0xff]
    %v1169 = vld [vmem:[#allocation9 + $0x1e58] sm:$0xff]
    %v1170 = vld [vmem:[#allocation9 + $0x1e60] sm:$0xff]
    %v1171 = vld [vmem:[#allocation9 + $0x1e68] sm:$0xff]
    %v1172 = vld [vmem:[#allocation9 + $0x1e70] sm:$0xff]
    %v1173 = vld [vmem:[#allocation9 + $0x1e78] sm:$0xff]
    %v1174 = vld [vmem:[#allocation9 + $0x1e80] sm:$0xff]
    %v1175 = vld [vmem:[#allocation9 + $0x1e88] sm:$0xff]
    %v1176 = vld [vmem:[#allocation9 + $0x1e90] sm:$0xff]
    %v1177 = vld [vmem:[#allocation9 + $0x1e98] sm:$0xff]
    %v1178 = vld [vmem:[#allocation9 + $0x1ea0] sm:$0xff]
    %v1179 = vld [vmem:[#allocation9 + $0x1ea8] sm:$0xff]
    %v1180 = vld [vmem:[#allocation9 + $0x1eb0] sm:$0xff]
    %v1181 = vld [vmem:[#allocation9 + $0x1eb8] sm:$0xff]
    %v1182 = vld [vmem:[#allocation9 + $0x1ec0] sm:$0xff]
    %v1183 = vld [vmem:[#allocation9 + $0x1ec8] sm:$0xff]
    %v1184 = vld [vmem:[#allocation9 + $0x1ed0] sm:$0xff]
    %v1185 = vld [vmem:[#allocation9 + $0x1ed8] sm:$0xff]
    %v1186 = vld [vmem:[#allocation9 + $0x1ee0] sm:$0xff]
    %v1187 = vld [vmem:[#allocation9 + $0x1ee8] sm:$0xff]
    %v1188 = vld [vmem:[#allocation9 + $0x1ef0] sm:$0xff]
    %v1189 = vld [vmem:[#allocation9 + $0x1ef8] sm:$0xff]
    %v1190 = vld [vmem:[#allocation9 + $0x1f00] sm:$0xff]
    %v1191 = vld [vmem:[#allocation9 + $0x1f08] sm:$0xff]
    %v1192 = vld [vmem:[#allocation9 + $0x1f10] sm:$0xff]
    %v1193 = vld [vmem:[#allocation9 + $0x1f18] sm:$0xff]
    %v1194 = vld [vmem:[#allocation9 + $0x1f20] sm:$0xff]
    %v1195 = vld [vmem:[#allocation9 + $0x1f28] sm:$0xff]
    %v1196 = vld [vmem:[#allocation9 + $0x1f30] sm:$0xff]
    %v1197 = vld [vmem:[#allocation9 + $0x1f38] sm:$0xff]
    %v1198 = vld [vmem:[#allocation9 + $0x1f40] sm:$0xff]
    %v1199 = vld [vmem:[#allocation9 + $0x1f48] sm:$0xff]
    %v1200 = vld [vmem:[#allocation9 + $0x1f50] sm:$0xff]
    %v1201 = vld [vmem:[#allocation9 + $0x1f58] sm:$0xff]
    %v1202 = vld [vmem:[#allocation9 + $0x1f60] sm:$0xff]
    %v1203 = vld [vmem:[#allocation9 + $0x1f68] sm:$0xff]
    %v1204 = vld [vmem:[#allocation9 + $0x1f70] sm:$0xff]
    %v1205 = vld [vmem:[#allocation9 + $0x1f78] sm:$0xff]
    %v1206 = vld [vmem:[#allocation9 + $0x1f80] sm:$0xff]
    %v1207 = vld [vmem:[#allocation9 + $0x1f88] sm:$0xff]
    %v1208 = vld [vmem:[#allocation9 + $0x1f90] sm:$0xff]
    %v1209 = vld [vmem:[#allocation9 + $0x1f98] sm:$0xff]
    %v1210 = vld [vmem:[#allocation9 + $0x1fa0] sm:$0xff]
    %v1211 = vld [vmem:[#allocation9 + $0x1fa8] sm:$0xff]
    %v1212 = vld [vmem:[#allocation9 + $0x1fb0] sm:$0xff]
    %v1213 = vld [vmem:[#allocation9 + $0x1fb8] sm:$0xff]
    %v1214 = vld [vmem:[#allocation9 + $0x1fc0] sm:$0xff]
    %v1215 = vld [vmem:[#allocation9 + $0x1fc8] sm:$0xff]
    %v1216 = vld [vmem:[#allocation9 + $0x1fd0] sm:$0xff]
    %v1217 = vld [vmem:[#allocation9 + $0x1fd8] sm:$0xff]
    %v1218 = vld [vmem:[#allocation9 + $0x1fe0] sm:$0xff]
    %v1219 = vld [vmem:[#allocation9 + $0x1fe8] sm:$0xff]
    %v1220 = vld [vmem:[#allocation9 + $0x1ff0] sm:$0xff]
    %v1221 = vld [vmem:[#allocation9 + $0x1ff8] sm:$0xff]
    %s1222 = smul.u32 0, 8
    %s1223 = scalar_lea.vmem [#allocation3], %s1222
    %v1224 = vld [vmem:[%s1223] sm:$0xff]
    %s1225 = scalar_lea.vmem [#allocation6], %s1222
    %v1226 = vld [vmem:[%s1225] sm:$0xff]
    %v1227 = vld [vmem:[#allocation2] sm:$0xff]
    %v1228 = vld [vmem:[#allocation2 + $0x8] sm:$0xff]
    %v1230 = vcombine.high %v1224, %v1224
    %v1232 = vunpack.c.l.s4 1966171168
    %v1233 = vunpack.c.0.s8 %v1232
    %v1234 = vlaneseq
    %v1235 = vshrl.u32 %v1234, 7
    %v1236 = vsub.s32 %v1233, %v1235
    %v1237 = vrot.slane %v1224, %v1236
    %v1239 = vunpack.c.l.s4 1966171168
    %v1240 = vunpack.c.0.s8 %v1239
    %v1241 = vlaneseq
    %v1242 = vshrl.u32 %v1241, 7
    %v1243 = vsub.s32 %v1240, %v1242
    %v1244 = vrot.slane %v1230, %v1243
    %v1245 = vcombine.high %v1237, %v1237
    %v1246 = vcombine.high %v1244, %v1244
    %v1248 = vunpack.c.l.s4 1966171168
    %v1249 = vunpack.c.0.s8 %v1248
    %v1250 = vlaneseq
    %v1251 = vshrl.u32 %v1250, 7
    %v1252 = vsub.s32 %v1249, %v1251
    %v1253 = vrot.slane %v1237, %v1252
    %v1255 = vunpack.c.l.s4 1966171168
    %v1256 = vunpack.c.0.s8 %v1255
    %v1257 = vlaneseq
    %v1258 = vshrl.u32 %v1257, 7
    %v1259 = vsub.s32 %v1256, %v1258
    %v1260 = vrot.slane %v1244, %v1259
    %v1262 = vunpack.c.l.s4 1966171168
    %v1263 = vunpack.c.0.s8 %v1262
    %v1264 = vlaneseq
    %v1265 = vshrl.u32 %v1264, 7
    %v1266 = vsub.s32 %v1263, %v1265
    %v1267 = vrot.slane %v1245, %v1266
    %v1269 = vunpack.c.l.s4 1966171168
    %v1270 = vunpack.c.0.s8 %v1269
    %v1271 = vlaneseq
    %v1272 = vshrl.u32 %v1271, 7
    %v1273 = vsub.s32 %v1270, %v1272
    %v1274 = vrot.slane %v1246, %v1273
    %v1275 = vcombine.high %v1253, %v1253
    %v1276 = vcombine.high %v1260, %v1260
    %v1277 = vcombine.high %v1267, %v1267
    %v1278 = vcombine.high %v1274, %v1274
    %v1799 = vunpack.c.l.b16 %v198
    %v1800 = vunpack.c.h.b16 %v198
    %v1801 = vunpack.c.l.b16 %v199
    %v1802 = vunpack.c.h.b16 %v199
    %v1803 = vunpack.c.l.b16 %v200
    %v1804 = vunpack.c.h.b16 %v200
    %v1805 = vunpack.c.l.b16 %v201
    %v1806 = vunpack.c.h.b16 %v201
    %v1807 = vunpack.c.l.b16 %v206
    %v1808 = vunpack.c.h.b16 %v206
    %v1809 = vunpack.c.l.b16 %v207
    %v1810 = vunpack.c.h.b16 %v207
    %v1811 = vunpack.c.l.b16 %v208
    %v1812 = vunpack.c.h.b16 %v208
    %v1813 = vunpack.c.l.b16 %v209
    %v1814 = vunpack.c.h.b16 %v209
    %v1815 = vunpack.c.l.b16 %v214
    %v1816 = vunpack.c.h.b16 %v214
    %v1817 = vunpack.c.l.b16 %v215
    %v1818 = vunpack.c.h.b16 %v215
    %v1819 = vunpack.c.l.b16 %v216
    %v1820 = vunpack.c.h.b16 %v216
    %v1821 = vunpack.c.l.b16 %v217
    %v1822 = vunpack.c.h.b16 %v217
    %v1823 = vunpack.c.l.b16 %v222
    %v1824 = vunpack.c.h.b16 %v222
    %v1825 = vunpack.c.l.b16 %v223
    %v1826 = vunpack.c.h.b16 %v223
    %v1827 = vunpack.c.l.b16 %v224
    %v1828 = vunpack.c.h.b16 %v224
    %v1829 = vunpack.c.l.b16 %v225
    %v1830 = vunpack.c.h.b16 %v225
    %v1831 = vunpack.c.l.b16 %v230
    %v1832 = vunpack.c.h.b16 %v230
    %v1833 = vunpack.c.l.b16 %v231
    %v1834 = vunpack.c.h.b16 %v231
    %v1835 = vunpack.c.l.b16 %v232
    %v1836 = vunpack.c.h.b16 %v232
    %v1837 = vunpack.c.l.b16 %v233
    %v1838 = vunpack.c.h.b16 %v233
    %v1839 = vunpack.c.l.b16 %v238
    %v1840 = vunpack.c.h.b16 %v238
    %v1841 = vunpack.c.l.b16 %v239
    %v1842 = vunpack.c.h.b16 %v239
    %v1843 = vunpack.c.l.b16 %v240
    %v1844 = vunpack.c.h.b16 %v240
    %v1845 = vunpack.c.l.b16 %v241
    %v1846 = vunpack.c.h.b16 %v241
    %v1847 = vunpack.c.l.b16 %v246
    %v1848 = vunpack.c.h.b16 %v246
    %v1849 = vunpack.c.l.b16 %v247
    %v1850 = vunpack.c.h.b16 %v247
    %v1851 = vunpack.c.l.b16 %v248
    %v1852 = vunpack.c.h.b16 %v248
    %v1853 = vunpack.c.l.b16 %v249
    %v1854 = vunpack.c.h.b16 %v249
    %v1855 = vunpack.c.l.b16 %v254
    %v1856 = vunpack.c.h.b16 %v254
    %v1857 = vunpack.c.l.b16 %v255
    %v1858 = vunpack.c.h.b16 %v255
    %v1859 = vunpack.c.l.b16 %v256
    %v1860 = vunpack.c.h.b16 %v256
    %v1861 = vunpack.c.l.b16 %v257
    %v1862 = vunpack.c.h.b16 %v257
    %v1863 = vunpack.c.l.b16 %v262
    %v1864 = vunpack.c.h.b16 %v262
    %v1865 = vunpack.c.l.b16 %v263
    %v1866 = vunpack.c.h.b16 %v263
    %v1867 = vunpack.c.l.b16 %v264
    %v1868 = vunpack.c.h.b16 %v264
    %v1869 = vunpack.c.l.b16 %v265
    %v1870 = vunpack.c.h.b16 %v265
    %v1871 = vunpack.c.l.b16 %v270
    %v1872 = vunpack.c.h.b16 %v270
    %v1873 = vunpack.c.l.b16 %v271
    %v1874 = vunpack.c.h.b16 %v271
    %v1875 = vunpack.c.l.b16 %v272
    %v1876 = vunpack.c.h.b16 %v272
    %v1877 = vunpack.c.l.b16 %v273
    %v1878 = vunpack.c.h.b16 %v273
    %v1879 = vunpack.c.l.b16 %v278
    %v1880 = vunpack.c.h.b16 %v278
    %v1881 = vunpack.c.l.b16 %v279
    %v1882 = vunpack.c.h.b16 %v279
    %v1883 = vunpack.c.l.b16 %v280
    %v1884 = vunpack.c.h.b16 %v280
    %v1885 = vunpack.c.l.b16 %v281
    %v1886 = vunpack.c.h.b16 %v281
    %v1887 = vunpack.c.l.b16 %v286
    %v1888 = vunpack.c.h.b16 %v286
    %v1889 = vunpack.c.l.b16 %v287
    %v1890 = vunpack.c.h.b16 %v287
    %v1891 = vunpack.c.l.b16 %v288
    %v1892 = vunpack.c.h.b16 %v288
    %v1893 = vunpack.c.l.b16 %v289
    %v1894 = vunpack.c.h.b16 %v289
    %v1895 = vunpack.c.l.b16 %v294
    %v1896 = vunpack.c.h.b16 %v294
    %v1897 = vunpack.c.l.b16 %v295
    %v1898 = vunpack.c.h.b16 %v295
    %v1899 = vunpack.c.l.b16 %v296
    %v1900 = vunpack.c.h.b16 %v296
    %v1901 = vunpack.c.l.b16 %v297
    %v1902 = vunpack.c.h.b16 %v297
    %v1903 = vunpack.c.l.b16 %v302
    %v1904 = vunpack.c.h.b16 %v302
    %v1905 = vunpack.c.l.b16 %v303
    %v1906 = vunpack.c.h.b16 %v303
    %v1907 = vunpack.c.l.b16 %v304
    %v1908 = vunpack.c.h.b16 %v304
    %v1909 = vunpack.c.l.b16 %v305
    %v1910 = vunpack.c.h.b16 %v305
    %v1911 = vunpack.c.l.b16 %v310
    %v1912 = vunpack.c.h.b16 %v310
    %v1913 = vunpack.c.l.b16 %v311
    %v1914 = vunpack.c.h.b16 %v311
    %v1915 = vunpack.c.l.b16 %v312
    %v1916 = vunpack.c.h.b16 %v312
    %v1917 = vunpack.c.l.b16 %v313
    %v1918 = vunpack.c.h.b16 %v313
    %v1919 = vunpack.c.l.b16 %v318
    %v1920 = vunpack.c.h.b16 %v318
    %v1921 = vunpack.c.l.b16 %v319
    %v1922 = vunpack.c.h.b16 %v319
    %v1923 = vunpack.c.l.b16 %v320
    %v1924 = vunpack.c.h.b16 %v320
    %v1925 = vunpack.c.l.b16 %v321
    %v1926 = vunpack.c.h.b16 %v321
    %v1927 = vunpack.c.l.b16 %v326
    %v1928 = vunpack.c.h.b16 %v326
    %v1929 = vunpack.c.l.b16 %v327
    %v1930 = vunpack.c.h.b16 %v327
    %v1931 = vunpack.c.l.b16 %v328
    %v1932 = vunpack.c.h.b16 %v328
    %v1933 = vunpack.c.l.b16 %v329
    %v1934 = vunpack.c.h.b16 %v329
    %v1935 = vunpack.c.l.b16 %v334
    %v1936 = vunpack.c.h.b16 %v334
    %v1937 = vunpack.c.l.b16 %v335
    %v1938 = vunpack.c.h.b16 %v335
    %v1939 = vunpack.c.l.b16 %v336
    %v1940 = vunpack.c.h.b16 %v336
    %v1941 = vunpack.c.l.b16 %v337
    %v1942 = vunpack.c.h.b16 %v337
    %v1943 = vunpack.c.l.b16 %v342
    %v1944 = vunpack.c.h.b16 %v342
    %v1945 = vunpack.c.l.b16 %v343
    %v1946 = vunpack.c.h.b16 %v343
    %v1947 = vunpack.c.l.b16 %v344
    %v1948 = vunpack.c.h.b16 %v344
    %v1949 = vunpack.c.l.b16 %v345
    %v1950 = vunpack.c.h.b16 %v345
    %v1951 = vunpack.c.l.b16 %v350
    %v1952 = vunpack.c.h.b16 %v350
    %v1953 = vunpack.c.l.b16 %v351
    %v1954 = vunpack.c.h.b16 %v351
    %v1955 = vunpack.c.l.b16 %v352
    %v1956 = vunpack.c.h.b16 %v352
    %v1957 = vunpack.c.l.b16 %v353
    %v1958 = vunpack.c.h.b16 %v353
    %v1959 = vunpack.c.l.b16 %v358
    %v1960 = vunpack.c.h.b16 %v358
    %v1961 = vunpack.c.l.b16 %v359
    %v1962 = vunpack.c.h.b16 %v359
    %v1963 = vunpack.c.l.b16 %v360
    %v1964 = vunpack.c.h.b16 %v360
    %v1965 = vunpack.c.l.b16 %v361
    %v1966 = vunpack.c.h.b16 %v361
    %v1967 = vunpack.c.l.b16 %v366
    %v1968 = vunpack.c.h.b16 %v366
    %v1969 = vunpack.c.l.b16 %v367
    %v1970 = vunpack.c.h.b16 %v367
    %v1971 = vunpack.c.l.b16 %v368
    %v1972 = vunpack.c.h.b16 %v368
    %v1973 = vunpack.c.l.b16 %v369
    %v1974 = vunpack.c.h.b16 %v369
    %v1975 = vunpack.c.l.b16 %v374
    %v1976 = vunpack.c.h.b16 %v374
    %v1977 = vunpack.c.l.b16 %v375
    %v1978 = vunpack.c.h.b16 %v375
    %v1979 = vunpack.c.l.b16 %v376
    %v1980 = vunpack.c.h.b16 %v376
    %v1981 = vunpack.c.l.b16 %v377
    %v1982 = vunpack.c.h.b16 %v377
    %v1983 = vunpack.c.l.b16 %v382
    %v1984 = vunpack.c.h.b16 %v382
    %v1985 = vunpack.c.l.b16 %v383
    %v1986 = vunpack.c.h.b16 %v383
    %v1987 = vunpack.c.l.b16 %v384
    %v1988 = vunpack.c.h.b16 %v384
    %v1989 = vunpack.c.l.b16 %v385
    %v1990 = vunpack.c.h.b16 %v385
    %v1991 = vunpack.c.l.b16 %v390
    %v1992 = vunpack.c.h.b16 %v390
    %v1993 = vunpack.c.l.b16 %v391
    %v1994 = vunpack.c.h.b16 %v391
    %v1995 = vunpack.c.l.b16 %v392
    %v1996 = vunpack.c.h.b16 %v392
    %v1997 = vunpack.c.l.b16 %v393
    %v1998 = vunpack.c.h.b16 %v393
    %v1999 = vunpack.c.l.b16 %v398
    %v2000 = vunpack.c.h.b16 %v398
    %v2001 = vunpack.c.l.b16 %v399
    %v2002 = vunpack.c.h.b16 %v399
    %v2003 = vunpack.c.l.b16 %v400
    %v2004 = vunpack.c.h.b16 %v400
    %v2005 = vunpack.c.l.b16 %v401
    %v2006 = vunpack.c.h.b16 %v401
    %v2007 = vunpack.c.l.b16 %v406
    %v2008 = vunpack.c.h.b16 %v406
    %v2009 = vunpack.c.l.b16 %v407
    %v2010 = vunpack.c.h.b16 %v407
    %v2011 = vunpack.c.l.b16 %v408
    %v2012 = vunpack.c.h.b16 %v408
    %v2013 = vunpack.c.l.b16 %v409
    %v2014 = vunpack.c.h.b16 %v409
    %v2015 = vunpack.c.l.b16 %v414
    %v2016 = vunpack.c.h.b16 %v414
    %v2017 = vunpack.c.l.b16 %v415
    %v2018 = vunpack.c.h.b16 %v415
    %v2019 = vunpack.c.l.b16 %v416
    %v2020 = vunpack.c.h.b16 %v416
    %v2021 = vunpack.c.l.b16 %v417
    %v2022 = vunpack.c.h.b16 %v417
    %v2023 = vunpack.c.l.b16 %v422
    %v2024 = vunpack.c.h.b16 %v422
    %v2025 = vunpack.c.l.b16 %v423
    %v2026 = vunpack.c.h.b16 %v423
    %v2027 = vunpack.c.l.b16 %v424
    %v2028 = vunpack.c.h.b16 %v424
    %v2029 = vunpack.c.l.b16 %v425
    %v2030 = vunpack.c.h.b16 %v425
    %v2031 = vunpack.c.l.b16 %v430
    %v2032 = vunpack.c.h.b16 %v430
    %v2033 = vunpack.c.l.b16 %v431
    %v2034 = vunpack.c.h.b16 %v431
    %v2035 = vunpack.c.l.b16 %v432
    %v2036 = vunpack.c.h.b16 %v432
    %v2037 = vunpack.c.l.b16 %v433
    %v2038 = vunpack.c.h.b16 %v433
    %v2039 = vunpack.c.l.b16 %v438
    %v2040 = vunpack.c.h.b16 %v438
    %v2041 = vunpack.c.l.b16 %v439
    %v2042 = vunpack.c.h.b16 %v439
    %v2043 = vunpack.c.l.b16 %v440
    %v2044 = vunpack.c.h.b16 %v440
    %v2045 = vunpack.c.l.b16 %v441
    %v2046 = vunpack.c.h.b16 %v441
    %v2047 = vunpack.c.l.b16 %v446
    %v2048 = vunpack.c.h.b16 %v446
    %v2049 = vunpack.c.l.b16 %v447
    %v2050 = vunpack.c.h.b16 %v447
    %v2051 = vunpack.c.l.b16 %v448
    %v2052 = vunpack.c.h.b16 %v448
    %v2053 = vunpack.c.l.b16 %v449
    %v2054 = vunpack.c.h.b16 %v449
    %v2055 = vunpack.c.l.b16 %v454
    %v2056 = vunpack.c.h.b16 %v454
    %v2057 = vunpack.c.l.b16 %v455
    %v2058 = vunpack.c.h.b16 %v455
    %v2059 = vunpack.c.l.b16 %v456
    %v2060 = vunpack.c.h.b16 %v456
    %v2061 = vunpack.c.l.b16 %v457
    %v2062 = vunpack.c.h.b16 %v457
    %v2063 = vunpack.c.l.b16 %v462
    %v2064 = vunpack.c.h.b16 %v462
    %v2065 = vunpack.c.l.b16 %v463
    %v2066 = vunpack.c.h.b16 %v463
    %v2067 = vunpack.c.l.b16 %v464
    %v2068 = vunpack.c.h.b16 %v464
    %v2069 = vunpack.c.l.b16 %v465
    %v2070 = vunpack.c.h.b16 %v465
    %v2071 = vunpack.c.l.b16 %v470
    %v2072 = vunpack.c.h.b16 %v470
    %v2073 = vunpack.c.l.b16 %v471
    %v2074 = vunpack.c.h.b16 %v471
    %v2075 = vunpack.c.l.b16 %v472
    %v2076 = vunpack.c.h.b16 %v472
    %v2077 = vunpack.c.l.b16 %v473
    %v2078 = vunpack.c.h.b16 %v473
    %v2079 = vunpack.c.l.b16 %v478
    %v2080 = vunpack.c.h.b16 %v478
    %v2081 = vunpack.c.l.b16 %v479
    %v2082 = vunpack.c.h.b16 %v479
    %v2083 = vunpack.c.l.b16 %v480
    %v2084 = vunpack.c.h.b16 %v480
    %v2085 = vunpack.c.l.b16 %v481
    %v2086 = vunpack.c.h.b16 %v481
    %v2087 = vunpack.c.l.b16 %v486
    %v2088 = vunpack.c.h.b16 %v486
    %v2089 = vunpack.c.l.b16 %v487
    %v2090 = vunpack.c.h.b16 %v487
    %v2091 = vunpack.c.l.b16 %v488
    %v2092 = vunpack.c.h.b16 %v488
    %v2093 = vunpack.c.l.b16 %v489
    %v2094 = vunpack.c.h.b16 %v489
    %v2095 = vunpack.c.l.b16 %v494
    %v2096 = vunpack.c.h.b16 %v494
    %v2097 = vunpack.c.l.b16 %v495
    %v2098 = vunpack.c.h.b16 %v495
    %v2099 = vunpack.c.l.b16 %v496
    %v2100 = vunpack.c.h.b16 %v496
    %v2101 = vunpack.c.l.b16 %v497
    %v2102 = vunpack.c.h.b16 %v497
    %v2103 = vunpack.c.l.b16 %v502
    %v2104 = vunpack.c.h.b16 %v502
    %v2105 = vunpack.c.l.b16 %v503
    %v2106 = vunpack.c.h.b16 %v503
    %v2107 = vunpack.c.l.b16 %v504
    %v2108 = vunpack.c.h.b16 %v504
    %v2109 = vunpack.c.l.b16 %v505
    %v2110 = vunpack.c.h.b16 %v505
    %v2111 = vunpack.c.l.b16 %v510
    %v2112 = vunpack.c.h.b16 %v510
    %v2113 = vunpack.c.l.b16 %v511
    %v2114 = vunpack.c.h.b16 %v511
    %v2115 = vunpack.c.l.b16 %v512
    %v2116 = vunpack.c.h.b16 %v512
    %v2117 = vunpack.c.l.b16 %v513
    %v2118 = vunpack.c.h.b16 %v513
    %v2119 = vunpack.c.l.b16 %v518
    %v2120 = vunpack.c.h.b16 %v518
    %v2121 = vunpack.c.l.b16 %v519
    %v2122 = vunpack.c.h.b16 %v519
    %v2123 = vunpack.c.l.b16 %v520
    %v2124 = vunpack.c.h.b16 %v520
    %v2125 = vunpack.c.l.b16 %v521
    %v2126 = vunpack.c.h.b16 %v521
    %v2127 = vunpack.c.l.b16 %v526
    %v2128 = vunpack.c.h.b16 %v526
    %v2129 = vunpack.c.l.b16 %v527
    %v2130 = vunpack.c.h.b16 %v527
    %v2131 = vunpack.c.l.b16 %v528
    %v2132 = vunpack.c.h.b16 %v528
    %v2133 = vunpack.c.l.b16 %v529
    %v2134 = vunpack.c.h.b16 %v529
    %v2135 = vunpack.c.l.b16 %v534
    %v2136 = vunpack.c.h.b16 %v534
    %v2137 = vunpack.c.l.b16 %v535
    %v2138 = vunpack.c.h.b16 %v535
    %v2139 = vunpack.c.l.b16 %v536
    %v2140 = vunpack.c.h.b16 %v536
    %v2141 = vunpack.c.l.b16 %v537
    %v2142 = vunpack.c.h.b16 %v537
    %v2143 = vunpack.c.l.b16 %v542
    %v2144 = vunpack.c.h.b16 %v542
    %v2145 = vunpack.c.l.b16 %v543
    %v2146 = vunpack.c.h.b16 %v543
    %v2147 = vunpack.c.l.b16 %v544
    %v2148 = vunpack.c.h.b16 %v544
    %v2149 = vunpack.c.l.b16 %v545
    %v2150 = vunpack.c.h.b16 %v545
    %v2151 = vunpack.c.l.b16 %v550
    %v2152 = vunpack.c.h.b16 %v550
    %v2153 = vunpack.c.l.b16 %v551
    %v2154 = vunpack.c.h.b16 %v551
    %v2155 = vunpack.c.l.b16 %v552
    %v2156 = vunpack.c.h.b16 %v552
    %v2157 = vunpack.c.l.b16 %v553
    %v2158 = vunpack.c.h.b16 %v553
    %v2159 = vunpack.c.l.b16 %v558
    %v2160 = vunpack.c.h.b16 %v558
    %v2161 = vunpack.c.l.b16 %v559
    %v2162 = vunpack.c.h.b16 %v559
    %v2163 = vunpack.c.l.b16 %v560
    %v2164 = vunpack.c.h.b16 %v560
    %v2165 = vunpack.c.l.b16 %v561
    %v2166 = vunpack.c.h.b16 %v561
    %v2167 = vunpack.c.l.b16 %v566
    %v2168 = vunpack.c.h.b16 %v566
    %v2169 = vunpack.c.l.b16 %v567
    %v2170 = vunpack.c.h.b16 %v567
    %v2171 = vunpack.c.l.b16 %v568
    %v2172 = vunpack.c.h.b16 %v568
    %v2173 = vunpack.c.l.b16 %v569
    %v2174 = vunpack.c.h.b16 %v569
    %v2175 = vunpack.c.l.b16 %v574
    %v2176 = vunpack.c.h.b16 %v574
    %v2177 = vunpack.c.l.b16 %v575
    %v2178 = vunpack.c.h.b16 %v575
    %v2179 = vunpack.c.l.b16 %v576
    %v2180 = vunpack.c.h.b16 %v576
    %v2181 = vunpack.c.l.b16 %v577
    %v2182 = vunpack.c.h.b16 %v577
    %v2183 = vunpack.c.l.b16 %v582
    %v2184 = vunpack.c.h.b16 %v582
    %v2185 = vunpack.c.l.b16 %v583
    %v2186 = vunpack.c.h.b16 %v583
    %v2187 = vunpack.c.l.b16 %v584
    %v2188 = vunpack.c.h.b16 %v584
    %v2189 = vunpack.c.l.b16 %v585
    %v2190 = vunpack.c.h.b16 %v585
    %v2191 = vunpack.c.l.b16 %v590
    %v2192 = vunpack.c.h.b16 %v590
    %v2193 = vunpack.c.l.b16 %v591
    %v2194 = vunpack.c.h.b16 %v591
    %v2195 = vunpack.c.l.b16 %v592
    %v2196 = vunpack.c.h.b16 %v592
    %v2197 = vunpack.c.l.b16 %v593
    %v2198 = vunpack.c.h.b16 %v593
    %v2199 = vunpack.c.l.b16 %v598
    %v2200 = vunpack.c.h.b16 %v598
    %v2201 = vunpack.c.l.b16 %v599
    %v2202 = vunpack.c.h.b16 %v599
    %v2203 = vunpack.c.l.b16 %v600
    %v2204 = vunpack.c.h.b16 %v600
    %v2205 = vunpack.c.l.b16 %v601
    %v2206 = vunpack.c.h.b16 %v601
    %v2207 = vunpack.c.l.b16 %v606
    %v2208 = vunpack.c.h.b16 %v606
    %v2209 = vunpack.c.l.b16 %v607
    %v2210 = vunpack.c.h.b16 %v607
    %v2211 = vunpack.c.l.b16 %v608
    %v2212 = vunpack.c.h.b16 %v608
    %v2213 = vunpack.c.l.b16 %v609
    %v2214 = vunpack.c.h.b16 %v609
    %v2215 = vunpack.c.l.b16 %v614
    %v2216 = vunpack.c.h.b16 %v614
    %v2217 = vunpack.c.l.b16 %v615
    %v2218 = vunpack.c.h.b16 %v615
    %v2219 = vunpack.c.l.b16 %v616
    %v2220 = vunpack.c.h.b16 %v616
    %v2221 = vunpack.c.l.b16 %v617
    %v2222 = vunpack.c.h.b16 %v617
    %v2223 = vunpack.c.l.b16 %v622
    %v2224 = vunpack.c.h.b16 %v622
    %v2225 = vunpack.c.l.b16 %v623
    %v2226 = vunpack.c.h.b16 %v623
    %v2227 = vunpack.c.l.b16 %v624
    %v2228 = vunpack.c.h.b16 %v624
    %v2229 = vunpack.c.l.b16 %v625
    %v2230 = vunpack.c.h.b16 %v625
    %v2231 = vunpack.c.l.b16 %v630
    %v2232 = vunpack.c.h.b16 %v630
    %v2233 = vunpack.c.l.b16 %v631
    %v2234 = vunpack.c.h.b16 %v631
    %v2235 = vunpack.c.l.b16 %v632
    %v2236 = vunpack.c.h.b16 %v632
    %v2237 = vunpack.c.l.b16 %v633
    %v2238 = vunpack.c.h.b16 %v633
    %v2239 = vunpack.c.l.b16 %v638
    %v2240 = vunpack.c.h.b16 %v638
    %v2241 = vunpack.c.l.b16 %v639
    %v2242 = vunpack.c.h.b16 %v639
    %v2243 = vunpack.c.l.b16 %v640
    %v2244 = vunpack.c.h.b16 %v640
    %v2245 = vunpack.c.l.b16 %v641
    %v2246 = vunpack.c.h.b16 %v641
    %v2247 = vunpack.c.l.b16 %v646
    %v2248 = vunpack.c.h.b16 %v646
    %v2249 = vunpack.c.l.b16 %v647
    %v2250 = vunpack.c.h.b16 %v647
    %v2251 = vunpack.c.l.b16 %v648
    %v2252 = vunpack.c.h.b16 %v648
    %v2253 = vunpack.c.l.b16 %v649
    %v2254 = vunpack.c.h.b16 %v649
    %v2255 = vunpack.c.l.b16 %v654
    %v2256 = vunpack.c.h.b16 %v654
    %v2257 = vunpack.c.l.b16 %v655
    %v2258 = vunpack.c.h.b16 %v655
    %v2259 = vunpack.c.l.b16 %v656
    %v2260 = vunpack.c.h.b16 %v656
    %v2261 = vunpack.c.l.b16 %v657
    %v2262 = vunpack.c.h.b16 %v657
    %v2263 = vunpack.c.l.b16 %v662
    %v2264 = vunpack.c.h.b16 %v662
    %v2265 = vunpack.c.l.b16 %v663
    %v2266 = vunpack.c.h.b16 %v663
    %v2267 = vunpack.c.l.b16 %v664
    %v2268 = vunpack.c.h.b16 %v664
    %v2269 = vunpack.c.l.b16 %v665
    %v2270 = vunpack.c.h.b16 %v665
    %v2271 = vunpack.c.l.b16 %v670
    %v2272 = vunpack.c.h.b16 %v670
    %v2273 = vunpack.c.l.b16 %v671
    %v2274 = vunpack.c.h.b16 %v671
    %v2275 = vunpack.c.l.b16 %v672
    %v2276 = vunpack.c.h.b16 %v672
    %v2277 = vunpack.c.l.b16 %v673
    %v2278 = vunpack.c.h.b16 %v673
    %v2279 = vunpack.c.l.b16 %v678
    %v2280 = vunpack.c.h.b16 %v678
    %v2281 = vunpack.c.l.b16 %v679
    %v2282 = vunpack.c.h.b16 %v679
    %v2283 = vunpack.c.l.b16 %v680
    %v2284 = vunpack.c.h.b16 %v680
    %v2285 = vunpack.c.l.b16 %v681
    %v2286 = vunpack.c.h.b16 %v681
    %v2287 = vunpack.c.l.b16 %v686
    %v2288 = vunpack.c.h.b16 %v686
    %v2289 = vunpack.c.l.b16 %v687
    %v2290 = vunpack.c.h.b16 %v687
    %v2291 = vunpack.c.l.b16 %v688
    %v2292 = vunpack.c.h.b16 %v688
    %v2293 = vunpack.c.l.b16 %v689
    %v2294 = vunpack.c.h.b16 %v689
    %v2295 = vunpack.c.l.b16 %v694
    %v2296 = vunpack.c.h.b16 %v694
    %v2297 = vunpack.c.l.b16 %v695
    %v2298 = vunpack.c.h.b16 %v695
    %v2299 = vunpack.c.l.b16 %v696
    %v2300 = vunpack.c.h.b16 %v696
    %v2301 = vunpack.c.l.b16 %v697
    %v2302 = vunpack.c.h.b16 %v697
    %v2303 = vunpack.c.l.b16 %v702
    %v2304 = vunpack.c.h.b16 %v702
    %v2305 = vunpack.c.l.b16 %v703
    %v2306 = vunpack.c.h.b16 %v703
    %v2307 = vunpack.c.l.b16 %v704
    %v2308 = vunpack.c.h.b16 %v704
    %v2309 = vunpack.c.l.b16 %v705
    %v2310 = vunpack.c.h.b16 %v705
    %v2311 = vunpack.c.l.b16 %v710
    %v2312 = vunpack.c.h.b16 %v710
    %v2313 = vunpack.c.l.b16 %v711
    %v2314 = vunpack.c.h.b16 %v711
    %v2315 = vunpack.c.l.b16 %v712
    %v2316 = vunpack.c.h.b16 %v712
    %v2317 = vunpack.c.l.b16 %v713
    %v2318 = vunpack.c.h.b16 %v713
    %v2319 = vunpack.c.l.b16 %v718
    %v2320 = vunpack.c.h.b16 %v718
    %v2321 = vunpack.c.l.b16 %v719
    %v2322 = vunpack.c.h.b16 %v719
    %v2323 = vunpack.c.l.b16 %v720
    %v2324 = vunpack.c.h.b16 %v720
    %v2325 = vunpack.c.l.b16 %v721
    %v2326 = vunpack.c.h.b16 %v721
    %v2327 = vunpack.c.l.b16 %v726
    %v2328 = vunpack.c.h.b16 %v726
    %v2329 = vunpack.c.l.b16 %v727
    %v2330 = vunpack.c.h.b16 %v727
    %v2331 = vunpack.c.l.b16 %v728
    %v2332 = vunpack.c.h.b16 %v728
    %v2333 = vunpack.c.l.b16 %v729
    %v2334 = vunpack.c.h.b16 %v729
    %v2335 = vunpack.c.l.b16 %v734
    %v2336 = vunpack.c.h.b16 %v734
    %v2337 = vunpack.c.l.b16 %v735
    %v2338 = vunpack.c.h.b16 %v735
    %v2339 = vunpack.c.l.b16 %v736
    %v2340 = vunpack.c.h.b16 %v736
    %v2341 = vunpack.c.l.b16 %v737
    %v2342 = vunpack.c.h.b16 %v737
    %v2343 = vunpack.c.l.b16 %v742
    %v2344 = vunpack.c.h.b16 %v742
    %v2345 = vunpack.c.l.b16 %v743
    %v2346 = vunpack.c.h.b16 %v743
    %v2347 = vunpack.c.l.b16 %v744
    %v2348 = vunpack.c.h.b16 %v744
    %v2349 = vunpack.c.l.b16 %v745
    %v2350 = vunpack.c.h.b16 %v745
    %v2351 = vunpack.c.l.b16 %v750
    %v2352 = vunpack.c.h.b16 %v750
    %v2353 = vunpack.c.l.b16 %v751
    %v2354 = vunpack.c.h.b16 %v751
    %v2355 = vunpack.c.l.b16 %v752
    %v2356 = vunpack.c.h.b16 %v752
    %v2357 = vunpack.c.l.b16 %v753
    %v2358 = vunpack.c.h.b16 %v753
    %v2359 = vunpack.c.l.b16 %v758
    %v2360 = vunpack.c.h.b16 %v758
    %v2361 = vunpack.c.l.b16 %v759
    %v2362 = vunpack.c.h.b16 %v759
    %v2363 = vunpack.c.l.b16 %v760
    %v2364 = vunpack.c.h.b16 %v760
    %v2365 = vunpack.c.l.b16 %v761
    %v2366 = vunpack.c.h.b16 %v761
    %v2367 = vunpack.c.l.b16 %v766
    %v2368 = vunpack.c.h.b16 %v766
    %v2369 = vunpack.c.l.b16 %v767
    %v2370 = vunpack.c.h.b16 %v767
    %v2371 = vunpack.c.l.b16 %v768
    %v2372 = vunpack.c.h.b16 %v768
    %v2373 = vunpack.c.l.b16 %v769
    %v2374 = vunpack.c.h.b16 %v769
    %v2375 = vunpack.c.l.b16 %v774
    %v2376 = vunpack.c.h.b16 %v774
    %v2377 = vunpack.c.l.b16 %v775
    %v2378 = vunpack.c.h.b16 %v775
    %v2379 = vunpack.c.l.b16 %v776
    %v2380 = vunpack.c.h.b16 %v776
    %v2381 = vunpack.c.l.b16 %v777
    %v2382 = vunpack.c.h.b16 %v777
    %v2383 = vunpack.c.l.b16 %v782
    %v2384 = vunpack.c.h.b16 %v782
    %v2385 = vunpack.c.l.b16 %v783
    %v2386 = vunpack.c.h.b16 %v783
    %v2387 = vunpack.c.l.b16 %v784
    %v2388 = vunpack.c.h.b16 %v784
    %v2389 = vunpack.c.l.b16 %v785
    %v2390 = vunpack.c.h.b16 %v785
    %v2391 = vunpack.c.l.b16 %v790
    %v2392 = vunpack.c.h.b16 %v790
    %v2393 = vunpack.c.l.b16 %v791
    %v2394 = vunpack.c.h.b16 %v791
    %v2395 = vunpack.c.l.b16 %v792
    %v2396 = vunpack.c.h.b16 %v792
    %v2397 = vunpack.c.l.b16 %v793
    %v2398 = vunpack.c.h.b16 %v793
    %v2399 = vunpack.c.l.b16 %v798
    %v2400 = vunpack.c.h.b16 %v798
    %v2401 = vunpack.c.l.b16 %v799
    %v2402 = vunpack.c.h.b16 %v799
    %v2403 = vunpack.c.l.b16 %v800
    %v2404 = vunpack.c.h.b16 %v800
    %v2405 = vunpack.c.l.b16 %v801
    %v2406 = vunpack.c.h.b16 %v801
    %v2407 = vunpack.c.l.b16 %v806
    %v2408 = vunpack.c.h.b16 %v806
    %v2409 = vunpack.c.l.b16 %v807
    %v2410 = vunpack.c.h.b16 %v807
    %v2411 = vunpack.c.l.b16 %v808
    %v2412 = vunpack.c.h.b16 %v808
    %v2413 = vunpack.c.l.b16 %v809
    %v2414 = vunpack.c.h.b16 %v809
    %v2415 = vunpack.c.l.b16 %v814
    %v2416 = vunpack.c.h.b16 %v814
    %v2417 = vunpack.c.l.b16 %v815
    %v2418 = vunpack.c.h.b16 %v815
    %v2419 = vunpack.c.l.b16 %v816
    %v2420 = vunpack.c.h.b16 %v816
    %v2421 = vunpack.c.l.b16 %v817
    %v2422 = vunpack.c.h.b16 %v817
    %v2423 = vunpack.c.l.b16 %v822
    %v2424 = vunpack.c.h.b16 %v822
    %v2425 = vunpack.c.l.b16 %v823
    %v2426 = vunpack.c.h.b16 %v823
    %v2427 = vunpack.c.l.b16 %v824
    %v2428 = vunpack.c.h.b16 %v824
    %v2429 = vunpack.c.l.b16 %v825
    %v2430 = vunpack.c.h.b16 %v825
    %v2431 = vunpack.c.l.b16 %v830
    %v2432 = vunpack.c.h.b16 %v830
    %v2433 = vunpack.c.l.b16 %v831
    %v2434 = vunpack.c.h.b16 %v831
    %v2435 = vunpack.c.l.b16 %v832
    %v2436 = vunpack.c.h.b16 %v832
    %v2437 = vunpack.c.l.b16 %v833
    %v2438 = vunpack.c.h.b16 %v833
    %v2439 = vunpack.c.l.b16 %v838
    %v2440 = vunpack.c.h.b16 %v838
    %v2441 = vunpack.c.l.b16 %v839
    %v2442 = vunpack.c.h.b16 %v839
    %v2443 = vunpack.c.l.b16 %v840
    %v2444 = vunpack.c.h.b16 %v840
    %v2445 = vunpack.c.l.b16 %v841
    %v2446 = vunpack.c.h.b16 %v841
    %v2447 = vunpack.c.l.b16 %v846
    %v2448 = vunpack.c.h.b16 %v846
    %v2449 = vunpack.c.l.b16 %v847
    %v2450 = vunpack.c.h.b16 %v847
    %v2451 = vunpack.c.l.b16 %v848
    %v2452 = vunpack.c.h.b16 %v848
    %v2453 = vunpack.c.l.b16 %v849
    %v2454 = vunpack.c.h.b16 %v849
    %v2455 = vunpack.c.l.b16 %v854
    %v2456 = vunpack.c.h.b16 %v854
    %v2457 = vunpack.c.l.b16 %v855
    %v2458 = vunpack.c.h.b16 %v855
    %v2459 = vunpack.c.l.b16 %v856
    %v2460 = vunpack.c.h.b16 %v856
    %v2461 = vunpack.c.l.b16 %v857
    %v2462 = vunpack.c.h.b16 %v857
    %v2463 = vunpack.c.l.b16 %v862
    %v2464 = vunpack.c.h.b16 %v862
    %v2465 = vunpack.c.l.b16 %v863
    %v2466 = vunpack.c.h.b16 %v863
    %v2467 = vunpack.c.l.b16 %v864
    %v2468 = vunpack.c.h.b16 %v864
    %v2469 = vunpack.c.l.b16 %v865
    %v2470 = vunpack.c.h.b16 %v865
    %v2471 = vunpack.c.l.b16 %v870
    %v2472 = vunpack.c.h.b16 %v870
    %v2473 = vunpack.c.l.b16 %v871
    %v2474 = vunpack.c.h.b16 %v871
    %v2475 = vunpack.c.l.b16 %v872
    %v2476 = vunpack.c.h.b16 %v872
    %v2477 = vunpack.c.l.b16 %v873
    %v2478 = vunpack.c.h.b16 %v873
    %v2479 = vunpack.c.l.b16 %v878
    %v2480 = vunpack.c.h.b16 %v878
    %v2481 = vunpack.c.l.b16 %v879
    %v2482 = vunpack.c.h.b16 %v879
    %v2483 = vunpack.c.l.b16 %v880
    %v2484 = vunpack.c.h.b16 %v880
    %v2485 = vunpack.c.l.b16 %v881
    %v2486 = vunpack.c.h.b16 %v881
    %v2487 = vunpack.c.l.b16 %v886
    %v2488 = vunpack.c.h.b16 %v886
    %v2489 = vunpack.c.l.b16 %v887
    %v2490 = vunpack.c.h.b16 %v887
    %v2491 = vunpack.c.l.b16 %v888
    %v2492 = vunpack.c.h.b16 %v888
    %v2493 = vunpack.c.l.b16 %v889
    %v2494 = vunpack.c.h.b16 %v889
    %v2495 = vunpack.c.l.b16 %v894
    %v2496 = vunpack.c.h.b16 %v894
    %v2497 = vunpack.c.l.b16 %v895
    %v2498 = vunpack.c.h.b16 %v895
    %v2499 = vunpack.c.l.b16 %v896
    %v2500 = vunpack.c.h.b16 %v896
    %v2501 = vunpack.c.l.b16 %v897
    %v2502 = vunpack.c.h.b16 %v897
    %v2503 = vunpack.c.l.b16 %v902
    %v2504 = vunpack.c.h.b16 %v902
    %v2505 = vunpack.c.l.b16 %v903
    %v2506 = vunpack.c.h.b16 %v903
    %v2507 = vunpack.c.l.b16 %v904
    %v2508 = vunpack.c.h.b16 %v904
    %v2509 = vunpack.c.l.b16 %v905
    %v2510 = vunpack.c.h.b16 %v905
    %v2511 = vunpack.c.l.b16 %v910
    %v2512 = vunpack.c.h.b16 %v910
    %v2513 = vunpack.c.l.b16 %v911
    %v2514 = vunpack.c.h.b16 %v911
    %v2515 = vunpack.c.l.b16 %v912
    %v2516 = vunpack.c.h.b16 %v912
    %v2517 = vunpack.c.l.b16 %v913
    %v2518 = vunpack.c.h.b16 %v913
    %v2519 = vunpack.c.l.b16 %v918
    %v2520 = vunpack.c.h.b16 %v918
    %v2521 = vunpack.c.l.b16 %v919
    %v2522 = vunpack.c.h.b16 %v919
    %v2523 = vunpack.c.l.b16 %v920
    %v2524 = vunpack.c.h.b16 %v920
    %v2525 = vunpack.c.l.b16 %v921
    %v2526 = vunpack.c.h.b16 %v921
    %v2527 = vunpack.c.l.b16 %v926
    %v2528 = vunpack.c.h.b16 %v926
    %v2529 = vunpack.c.l.b16 %v927
    %v2530 = vunpack.c.h.b16 %v927
    %v2531 = vunpack.c.l.b16 %v928
    %v2532 = vunpack.c.h.b16 %v928
    %v2533 = vunpack.c.l.b16 %v929
    %v2534 = vunpack.c.h.b16 %v929
    %v2535 = vunpack.c.l.b16 %v934
    %v2536 = vunpack.c.h.b16 %v934
    %v2537 = vunpack.c.l.b16 %v935
    %v2538 = vunpack.c.h.b16 %v935
    %v2539 = vunpack.c.l.b16 %v936
    %v2540 = vunpack.c.h.b16 %v936
    %v2541 = vunpack.c.l.b16 %v937
    %v2542 = vunpack.c.h.b16 %v937
    %v2543 = vunpack.c.l.b16 %v942
    %v2544 = vunpack.c.h.b16 %v942
    %v2545 = vunpack.c.l.b16 %v943
    %v2546 = vunpack.c.h.b16 %v943
    %v2547 = vunpack.c.l.b16 %v944
    %v2548 = vunpack.c.h.b16 %v944
    %v2549 = vunpack.c.l.b16 %v945
    %v2550 = vunpack.c.h.b16 %v945
    %v2551 = vunpack.c.l.b16 %v950
    %v2552 = vunpack.c.h.b16 %v950
    %v2553 = vunpack.c.l.b16 %v951
    %v2554 = vunpack.c.h.b16 %v951
    %v2555 = vunpack.c.l.b16 %v952
    %v2556 = vunpack.c.h.b16 %v952
    %v2557 = vunpack.c.l.b16 %v953
    %v2558 = vunpack.c.h.b16 %v953
    %v2559 = vunpack.c.l.b16 %v958
    %v2560 = vunpack.c.h.b16 %v958
    %v2561 = vunpack.c.l.b16 %v959
    %v2562 = vunpack.c.h.b16 %v959
    %v2563 = vunpack.c.l.b16 %v960
    %v2564 = vunpack.c.h.b16 %v960
    %v2565 = vunpack.c.l.b16 %v961
    %v2566 = vunpack.c.h.b16 %v961
    %v2567 = vunpack.c.l.b16 %v966
    %v2568 = vunpack.c.h.b16 %v966
    %v2569 = vunpack.c.l.b16 %v967
    %v2570 = vunpack.c.h.b16 %v967
    %v2571 = vunpack.c.l.b16 %v968
    %v2572 = vunpack.c.h.b16 %v968
    %v2573 = vunpack.c.l.b16 %v969
    %v2574 = vunpack.c.h.b16 %v969
    %v2575 = vunpack.c.l.b16 %v974
    %v2576 = vunpack.c.h.b16 %v974
    %v2577 = vunpack.c.l.b16 %v975
    %v2578 = vunpack.c.h.b16 %v975
    %v2579 = vunpack.c.l.b16 %v976
    %v2580 = vunpack.c.h.b16 %v976
    %v2581 = vunpack.c.l.b16 %v977
    %v2582 = vunpack.c.h.b16 %v977
    %v2583 = vunpack.c.l.b16 %v982
    %v2584 = vunpack.c.h.b16 %v982
    %v2585 = vunpack.c.l.b16 %v983
    %v2586 = vunpack.c.h.b16 %v983
    %v2587 = vunpack.c.l.b16 %v984
    %v2588 = vunpack.c.h.b16 %v984
    %v2589 = vunpack.c.l.b16 %v985
    %v2590 = vunpack.c.h.b16 %v985
    %v2591 = vunpack.c.l.b16 %v990
    %v2592 = vunpack.c.h.b16 %v990
    %v2593 = vunpack.c.l.b16 %v991
    %v2594 = vunpack.c.h.b16 %v991
    %v2595 = vunpack.c.l.b16 %v992
    %v2596 = vunpack.c.h.b16 %v992
    %v2597 = vunpack.c.l.b16 %v993
    %v2598 = vunpack.c.h.b16 %v993
    %v2599 = vunpack.c.l.b16 %v998
    %v2600 = vunpack.c.h.b16 %v998
    %v2601 = vunpack.c.l.b16 %v999
    %v2602 = vunpack.c.h.b16 %v999
    %v2603 = vunpack.c.l.b16 %v1000
    %v2604 = vunpack.c.h.b16 %v1000
    %v2605 = vunpack.c.l.b16 %v1001
    %v2606 = vunpack.c.h.b16 %v1001
    %v2607 = vunpack.c.l.b16 %v1006
    %v2608 = vunpack.c.h.b16 %v1006
    %v2609 = vunpack.c.l.b16 %v1007
    %v2610 = vunpack.c.h.b16 %v1007
    %v2611 = vunpack.c.l.b16 %v1008
    %v2612 = vunpack.c.h.b16 %v1008
    %v2613 = vunpack.c.l.b16 %v1009
    %v2614 = vunpack.c.h.b16 %v1009
    %v2615 = vunpack.c.l.b16 %v1014
    %v2616 = vunpack.c.h.b16 %v1014
    %v2617 = vunpack.c.l.b16 %v1015
    %v2618 = vunpack.c.h.b16 %v1015
    %v2619 = vunpack.c.l.b16 %v1016
    %v2620 = vunpack.c.h.b16 %v1016
    %v2621 = vunpack.c.l.b16 %v1017
    %v2622 = vunpack.c.h.b16 %v1017
    %v2623 = vunpack.c.l.b16 %v1022
    %v2624 = vunpack.c.h.b16 %v1022
    %v2625 = vunpack.c.l.b16 %v1023
    %v2626 = vunpack.c.h.b16 %v1023
    %v2627 = vunpack.c.l.b16 %v1024
    %v2628 = vunpack.c.h.b16 %v1024
    %v2629 = vunpack.c.l.b16 %v1025
    %v2630 = vunpack.c.h.b16 %v1025
    %v2631 = vunpack.c.l.b16 %v1030
    %v2632 = vunpack.c.h.b16 %v1030
    %v2633 = vunpack.c.l.b16 %v1031
    %v2634 = vunpack.c.h.b16 %v1031
    %v2635 = vunpack.c.l.b16 %v1032
    %v2636 = vunpack.c.h.b16 %v1032
    %v2637 = vunpack.c.l.b16 %v1033
    %v2638 = vunpack.c.h.b16 %v1033
    %v2639 = vunpack.c.l.b16 %v1038
    %v2640 = vunpack.c.h.b16 %v1038
    %v2641 = vunpack.c.l.b16 %v1039
    %v2642 = vunpack.c.h.b16 %v1039
    %v2643 = vunpack.c.l.b16 %v1040
    %v2644 = vunpack.c.h.b16 %v1040
    %v2645 = vunpack.c.l.b16 %v1041
    %v2646 = vunpack.c.h.b16 %v1041
    %v2647 = vunpack.c.l.b16 %v1046
    %v2648 = vunpack.c.h.b16 %v1046
    %v2649 = vunpack.c.l.b16 %v1047
    %v2650 = vunpack.c.h.b16 %v1047
    %v2651 = vunpack.c.l.b16 %v1048
    %v2652 = vunpack.c.h.b16 %v1048
    %v2653 = vunpack.c.l.b16 %v1049
    %v2654 = vunpack.c.h.b16 %v1049
    %v2655 = vunpack.c.l.b16 %v1054
    %v2656 = vunpack.c.h.b16 %v1054
    %v2657 = vunpack.c.l.b16 %v1055
    %v2658 = vunpack.c.h.b16 %v1055
    %v2659 = vunpack.c.l.b16 %v1056
    %v2660 = vunpack.c.h.b16 %v1056
    %v2661 = vunpack.c.l.b16 %v1057
    %v2662 = vunpack.c.h.b16 %v1057
    %v2663 = vunpack.c.l.b16 %v1062
    %v2664 = vunpack.c.h.b16 %v1062
    %v2665 = vunpack.c.l.b16 %v1063
    %v2666 = vunpack.c.h.b16 %v1063
    %v2667 = vunpack.c.l.b16 %v1064
    %v2668 = vunpack.c.h.b16 %v1064
    %v2669 = vunpack.c.l.b16 %v1065
    %v2670 = vunpack.c.h.b16 %v1065
    %v2671 = vunpack.c.l.b16 %v1070
    %v2672 = vunpack.c.h.b16 %v1070
    %v2673 = vunpack.c.l.b16 %v1071
    %v2674 = vunpack.c.h.b16 %v1071
    %v2675 = vunpack.c.l.b16 %v1072
    %v2676 = vunpack.c.h.b16 %v1072
    %v2677 = vunpack.c.l.b16 %v1073
    %v2678 = vunpack.c.h.b16 %v1073
    %v2679 = vunpack.c.l.b16 %v1078
    %v2680 = vunpack.c.h.b16 %v1078
    %v2681 = vunpack.c.l.b16 %v1079
    %v2682 = vunpack.c.h.b16 %v1079
    %v2683 = vunpack.c.l.b16 %v1080
    %v2684 = vunpack.c.h.b16 %v1080
    %v2685 = vunpack.c.l.b16 %v1081
    %v2686 = vunpack.c.h.b16 %v1081
    %v2687 = vunpack.c.l.b16 %v1086
    %v2688 = vunpack.c.h.b16 %v1086
    %v2689 = vunpack.c.l.b16 %v1087
    %v2690 = vunpack.c.h.b16 %v1087
    %v2691 = vunpack.c.l.b16 %v1088
    %v2692 = vunpack.c.h.b16 %v1088
    %v2693 = vunpack.c.l.b16 %v1089
    %v2694 = vunpack.c.h.b16 %v1089
    %v2695 = vunpack.c.l.b16 %v1094
    %v2696 = vunpack.c.h.b16 %v1094
    %v2697 = vunpack.c.l.b16 %v1095
    %v2698 = vunpack.c.h.b16 %v1095
    %v2699 = vunpack.c.l.b16 %v1096
    %v2700 = vunpack.c.h.b16 %v1096
    %v2701 = vunpack.c.l.b16 %v1097
    %v2702 = vunpack.c.h.b16 %v1097
    %v2703 = vunpack.c.l.b16 %v1102
    %v2704 = vunpack.c.h.b16 %v1102
    %v2705 = vunpack.c.l.b16 %v1103
    %v2706 = vunpack.c.h.b16 %v1103
    %v2707 = vunpack.c.l.b16 %v1104
    %v2708 = vunpack.c.h.b16 %v1104
    %v2709 = vunpack.c.l.b16 %v1105
    %v2710 = vunpack.c.h.b16 %v1105
    %v2711 = vunpack.c.l.b16 %v1110
    %v2712 = vunpack.c.h.b16 %v1110
    %v2713 = vunpack.c.l.b16 %v1111
    %v2714 = vunpack.c.h.b16 %v1111
    %v2715 = vunpack.c.l.b16 %v1112
    %v2716 = vunpack.c.h.b16 %v1112
    %v2717 = vunpack.c.l.b16 %v1113
    %v2718 = vunpack.c.h.b16 %v1113
    %v2719 = vunpack.c.l.b16 %v1118
    %v2720 = vunpack.c.h.b16 %v1118
    %v2721 = vunpack.c.l.b16 %v1119
    %v2722 = vunpack.c.h.b16 %v1119
    %v2723 = vunpack.c.l.b16 %v1120
    %v2724 = vunpack.c.h.b16 %v1120
    %v2725 = vunpack.c.l.b16 %v1121
    %v2726 = vunpack.c.h.b16 %v1121
    %v2727 = vunpack.c.l.b16 %v1126
    %v2728 = vunpack.c.h.b16 %v1126
    %v2729 = vunpack.c.l.b16 %v1127
    %v2730 = vunpack.c.h.b16 %v1127
    %v2731 = vunpack.c.l.b16 %v1128
    %v2732 = vunpack.c.h.b16 %v1128
    %v2733 = vunpack.c.l.b16 %v1129
    %v2734 = vunpack.c.h.b16 %v1129
    %v2735 = vunpack.c.l.b16 %v1134
    %v2736 = vunpack.c.h.b16 %v1134
    %v2737 = vunpack.c.l.b16 %v1135
    %v2738 = vunpack.c.h.b16 %v1135
    %v2739 = vunpack.c.l.b16 %v1136
    %v2740 = vunpack.c.h.b16 %v1136
    %v2741 = vunpack.c.l.b16 %v1137
    %v2742 = vunpack.c.h.b16 %v1137
    %v2743 = vunpack.c.l.b16 %v1142
    %v2744 = vunpack.c.h.b16 %v1142
    %v2745 = vunpack.c.l.b16 %v1143
    %v2746 = vunpack.c.h.b16 %v1143
    %v2747 = vunpack.c.l.b16 %v1144
    %v2748 = vunpack.c.h.b16 %v1144
    %v2749 = vunpack.c.l.b16 %v1145
    %v2750 = vunpack.c.h.b16 %v1145
    %v2751 = vunpack.c.l.b16 %v1150
    %v2752 = vunpack.c.h.b16 %v1150
    %v2753 = vunpack.c.l.b16 %v1151
    %v2754 = vunpack.c.h.b16 %v1151
    %v2755 = vunpack.c.l.b16 %v1152
    %v2756 = vunpack.c.h.b16 %v1152
    %v2757 = vunpack.c.l.b16 %v1153
    %v2758 = vunpack.c.h.b16 %v1153
    %v2759 = vunpack.c.l.b16 %v1158
    %v2760 = vunpack.c.h.b16 %v1158
    %v2761 = vunpack.c.l.b16 %v1159
    %v2762 = vunpack.c.h.b16 %v1159
    %v2763 = vunpack.c.l.b16 %v1160
    %v2764 = vunpack.c.h.b16 %v1160
    %v2765 = vunpack.c.l.b16 %v1161
    %v2766 = vunpack.c.h.b16 %v1161
    %v2767 = vunpack.c.l.b16 %v1166
    %v2768 = vunpack.c.h.b16 %v1166
    %v2769 = vunpack.c.l.b16 %v1167
    %v2770 = vunpack.c.h.b16 %v1167
    %v2771 = vunpack.c.l.b16 %v1168
    %v2772 = vunpack.c.h.b16 %v1168
    %v2773 = vunpack.c.l.b16 %v1169
    %v2774 = vunpack.c.h.b16 %v1169
    %v2775 = vunpack.c.l.b16 %v1174
    %v2776 = vunpack.c.h.b16 %v1174
    %v2777 = vunpack.c.l.b16 %v1175
    %v2778 = vunpack.c.h.b16 %v1175
    %v2779 = vunpack.c.l.b16 %v1176
    %v2780 = vunpack.c.h.b16 %v1176
    %v2781 = vunpack.c.l.b16 %v1177
    %v2782 = vunpack.c.h.b16 %v1177
    %v2783 = vunpack.c.l.b16 %v1182
    %v2784 = vunpack.c.h.b16 %v1182
    %v2785 = vunpack.c.l.b16 %v1183
    %v2786 = vunpack.c.h.b16 %v1183
    %v2787 = vunpack.c.l.b16 %v1184
    %v2788 = vunpack.c.h.b16 %v1184
    %v2789 = vunpack.c.l.b16 %v1185
    %v2790 = vunpack.c.h.b16 %v1185
    %v2791 = vunpack.c.l.b16 %v1190
    %v2792 = vunpack.c.h.b16 %v1190
    %v2793 = vunpack.c.l.b16 %v1191
    %v2794 = vunpack.c.h.b16 %v1191
    %v2795 = vunpack.c.l.b16 %v1192
    %v2796 = vunpack.c.h.b16 %v1192
    %v2797 = vunpack.c.l.b16 %v1193
    %v2798 = vunpack.c.h.b16 %v1193
    %v2799 = vunpack.c.l.b16 %v1198
    %v2800 = vunpack.c.h.b16 %v1198
    %v2801 = vunpack.c.l.b16 %v1199
    %v2802 = vunpack.c.h.b16 %v1199
    %v2803 = vunpack.c.l.b16 %v1200
    %v2804 = vunpack.c.h.b16 %v1200
    %v2805 = vunpack.c.l.b16 %v1201
    %v2806 = vunpack.c.h.b16 %v1201
    %v2807 = vunpack.c.l.b16 %v1206
    %v2808 = vunpack.c.h.b16 %v1206
    %v2809 = vunpack.c.l.b16 %v1207
    %v2810 = vunpack.c.h.b16 %v1207
    %v2811 = vunpack.c.l.b16 %v1208
    %v2812 = vunpack.c.h.b16 %v1208
    %v2813 = vunpack.c.l.b16 %v1209
    %v2814 = vunpack.c.h.b16 %v1209
    %v2815 = vunpack.c.l.b16 %v1214
    %v2816 = vunpack.c.h.b16 %v1214
    %v2817 = vunpack.c.l.b16 %v1215
    %v2818 = vunpack.c.h.b16 %v1215
    %v2819 = vunpack.c.l.b16 %v1216
    %v2820 = vunpack.c.h.b16 %v1216
    %v2821 = vunpack.c.l.b16 %v1217
    %v2822 = vunpack.c.h.b16 %v1217
    %v2823 = vpack.c.b16 %v1807, %v1799
    %v2824 = vpack.c.b16 %v1808, %v1800
    %v2825 = vpack.c.b16 %v1809, %v1801
    %v2826 = vpack.c.b16 %v1810, %v1802
    %v2827 = vpack.c.b16 %v1811, %v1803
    %v2828 = vpack.c.b16 %v1812, %v1804
    %v2829 = vpack.c.b16 %v1813, %v1805
    %v2830 = vpack.c.b16 %v1814, %v1806
    %v2831 = vpack.c.b16 %v1823, %v1815
    %v2832 = vpack.c.b16 %v1824, %v1816
    %v2833 = vpack.c.b16 %v1825, %v1817
    %v2834 = vpack.c.b16 %v1826, %v1818
    %v2835 = vpack.c.b16 %v1827, %v1819
    %v2836 = vpack.c.b16 %v1828, %v1820
    %v2837 = vpack.c.b16 %v1829, %v1821
    %v2838 = vpack.c.b16 %v1830, %v1822
    %v2839 = vpack.c.b16 %v1839, %v1831
    %v2840 = vpack.c.b16 %v1840, %v1832
    %v2841 = vpack.c.b16 %v1841, %v1833
    %v2842 = vpack.c.b16 %v1842, %v1834
    %v2843 = vpack.c.b16 %v1843, %v1835
    %v2844 = vpack.c.b16 %v1844, %v1836
    %v2845 = vpack.c.b16 %v1845, %v1837
    %v2846 = vpack.c.b16 %v1846, %v1838
    %v2847 = vpack.c.b16 %v1855, %v1847
    %v2848 = vpack.c.b16 %v1856, %v1848
    %v2849 = vpack.c.b16 %v1857, %v1849
    %v2850 = vpack.c.b16 %v1858, %v1850
    %v2851 = vpack.c.b16 %v1859, %v1851
    %v2852 = vpack.c.b16 %v1860, %v1852
    %v2853 = vpack.c.b16 %v1861, %v1853
    %v2854 = vpack.c.b16 %v1862, %v1854
    %v2855 = vpack.c.b16 %v1871, %v1863
    %v2856 = vpack.c.b16 %v1872, %v1864
    %v2857 = vpack.c.b16 %v1873, %v1865
    %v2858 = vpack.c.b16 %v1874, %v1866
    %v2859 = vpack.c.b16 %v1875, %v1867
    %v2860 = vpack.c.b16 %v1876, %v1868
    %v2861 = vpack.c.b16 %v1877, %v1869
    %v2862 = vpack.c.b16 %v1878, %v1870
    %v2863 = vpack.c.b16 %v1887, %v1879
    %v2864 = vpack.c.b16 %v1888, %v1880
    %v2865 = vpack.c.b16 %v1889, %v1881
    %v2866 = vpack.c.b16 %v1890, %v1882
    %v2867 = vpack.c.b16 %v1891, %v1883
    %v2868 = vpack.c.b16 %v1892, %v1884
    %v2869 = vpack.c.b16 %v1893, %v1885
    %v2870 = vpack.c.b16 %v1894, %v1886
    %v2871 = vpack.c.b16 %v1903, %v1895
    %v2872 = vpack.c.b16 %v1904, %v1896
    %v2873 = vpack.c.b16 %v1905, %v1897
    %v2874 = vpack.c.b16 %v1906, %v1898
    %v2875 = vpack.c.b16 %v1907, %v1899
    %v2876 = vpack.c.b16 %v1908, %v1900
    %v2877 = vpack.c.b16 %v1909, %v1901
    %v2878 = vpack.c.b16 %v1910, %v1902
    %v2879 = vpack.c.b16 %v1919, %v1911
    %v2880 = vpack.c.b16 %v1920, %v1912
    %v2881 = vpack.c.b16 %v1921, %v1913
    %v2882 = vpack.c.b16 %v1922, %v1914
    %v2883 = vpack.c.b16 %v1923, %v1915
    %v2884 = vpack.c.b16 %v1924, %v1916
    %v2885 = vpack.c.b16 %v1925, %v1917
    %v2886 = vpack.c.b16 %v1926, %v1918
    %v2887 = vpack.c.b16 %v1935, %v1927
    %v2888 = vpack.c.b16 %v1936, %v1928
    %v2889 = vpack.c.b16 %v1937, %v1929
    %v2890 = vpack.c.b16 %v1938, %v1930
    %v2891 = vpack.c.b16 %v1939, %v1931
    %v2892 = vpack.c.b16 %v1940, %v1932
    %v2893 = vpack.c.b16 %v1941, %v1933
    %v2894 = vpack.c.b16 %v1942, %v1934
    %v2895 = vpack.c.b16 %v1951, %v1943
    %v2896 = vpack.c.b16 %v1952, %v1944
    %v2897 = vpack.c.b16 %v1953, %v1945
    %v2898 = vpack.c.b16 %v1954, %v1946
    %v2899 = vpack.c.b16 %v1955, %v1947
    %v2900 = vpack.c.b16 %v1956, %v1948
    %v2901 = vpack.c.b16 %v1957, %v1949
    %v2902 = vpack.c.b16 %v1958, %v1950
    %v2903 = vpack.c.b16 %v1967, %v1959
    %v2904 = vpack.c.b16 %v1968, %v1960
    %v2905 = vpack.c.b16 %v1969, %v1961
    %v2906 = vpack.c.b16 %v1970, %v1962
    %v2907 = vpack.c.b16 %v1971, %v1963
    %v2908 = vpack.c.b16 %v1972, %v1964
    %v2909 = vpack.c.b16 %v1973, %v1965
    %v2910 = vpack.c.b16 %v1974, %v1966
    %v2911 = vpack.c.b16 %v1983, %v1975
    %v2912 = vpack.c.b16 %v1984, %v1976
    %v2913 = vpack.c.b16 %v1985, %v1977
    %v2914 = vpack.c.b16 %v1986, %v1978
    %v2915 = vpack.c.b16 %v1987, %v1979
    %v2916 = vpack.c.b16 %v1988, %v1980
    %v2917 = vpack.c.b16 %v1989, %v1981
    %v2918 = vpack.c.b16 %v1990, %v1982
    %v2919 = vpack.c.b16 %v1999, %v1991
    %v2920 = vpack.c.b16 %v2000, %v1992
    %v2921 = vpack.c.b16 %v2001, %v1993
    %v2922 = vpack.c.b16 %v2002, %v1994
    %v2923 = vpack.c.b16 %v2003, %v1995
    %v2924 = vpack.c.b16 %v2004, %v1996
    %v2925 = vpack.c.b16 %v2005, %v1997
    %v2926 = vpack.c.b16 %v2006, %v1998
    %v2927 = vpack.c.b16 %v2015, %v2007
    %v2928 = vpack.c.b16 %v2016, %v2008
    %v2929 = vpack.c.b16 %v2017, %v2009
    %v2930 = vpack.c.b16 %v2018, %v2010
    %v2931 = vpack.c.b16 %v2019, %v2011
    %v2932 = vpack.c.b16 %v2020, %v2012
    %v2933 = vpack.c.b16 %v2021, %v2013
    %v2934 = vpack.c.b16 %v2022, %v2014
    %v2935 = vpack.c.b16 %v2031, %v2023
    %v2936 = vpack.c.b16 %v2032, %v2024
    %v2937 = vpack.c.b16 %v2033, %v2025
    %v2938 = vpack.c.b16 %v2034, %v2026
    %v2939 = vpack.c.b16 %v2035, %v2027
    %v2940 = vpack.c.b16 %v2036, %v2028
    %v2941 = vpack.c.b16 %v2037, %v2029
    %v2942 = vpack.c.b16 %v2038, %v2030
    %v2943 = vpack.c.b16 %v2047, %v2039
    %v2944 = vpack.c.b16 %v2048, %v2040
    %v2945 = vpack.c.b16 %v2049, %v2041
    %v2946 = vpack.c.b16 %v2050, %v2042
    %v2947 = vpack.c.b16 %v2051, %v2043
    %v2948 = vpack.c.b16 %v2052, %v2044
    %v2949 = vpack.c.b16 %v2053, %v2045
    %v2950 = vpack.c.b16 %v2054, %v2046
    %v2951 = vpack.c.b16 %v2063, %v2055
    %v2952 = vpack.c.b16 %v2064, %v2056
    %v2953 = vpack.c.b16 %v2065, %v2057
    %v2954 = vpack.c.b16 %v2066, %v2058
    %v2955 = vpack.c.b16 %v2067, %v2059
    %v2956 = vpack.c.b16 %v2068, %v2060
    %v2957 = vpack.c.b16 %v2069, %v2061
    %v2958 = vpack.c.b16 %v2070, %v2062
    %v2959 = vpack.c.b16 %v2079, %v2071
    %v2960 = vpack.c.b16 %v2080, %v2072
    %v2961 = vpack.c.b16 %v2081, %v2073
    %v2962 = vpack.c.b16 %v2082, %v2074
    %v2963 = vpack.c.b16 %v2083, %v2075
    %v2964 = vpack.c.b16 %v2084, %v2076
    %v2965 = vpack.c.b16 %v2085, %v2077
    %v2966 = vpack.c.b16 %v2086, %v2078
    %v2967 = vpack.c.b16 %v2095, %v2087
    %v2968 = vpack.c.b16 %v2096, %v2088
    %v2969 = vpack.c.b16 %v2097, %v2089
    %v2970 = vpack.c.b16 %v2098, %v2090
    %v2971 = vpack.c.b16 %v2099, %v2091
    %v2972 = vpack.c.b16 %v2100, %v2092
    %v2973 = vpack.c.b16 %v2101, %v2093
    %v2974 = vpack.c.b16 %v2102, %v2094
    %v2975 = vpack.c.b16 %v2111, %v2103
    %v2976 = vpack.c.b16 %v2112, %v2104
    %v2977 = vpack.c.b16 %v2113, %v2105
    %v2978 = vpack.c.b16 %v2114, %v2106
    %v2979 = vpack.c.b16 %v2115, %v2107
    %v2980 = vpack.c.b16 %v2116, %v2108
    %v2981 = vpack.c.b16 %v2117, %v2109
    %v2982 = vpack.c.b16 %v2118, %v2110
    %v2983 = vpack.c.b16 %v2127, %v2119
    %v2984 = vpack.c.b16 %v2128, %v2120
    %v2985 = vpack.c.b16 %v2129, %v2121
    %v2986 = vpack.c.b16 %v2130, %v2122
    %v2987 = vpack.c.b16 %v2131, %v2123
    %v2988 = vpack.c.b16 %v2132, %v2124
    %v2989 = vpack.c.b16 %v2133, %v2125
    %v2990 = vpack.c.b16 %v2134, %v2126
    %v2991 = vpack.c.b16 %v2143, %v2135
    %v2992 = vpack.c.b16 %v2144, %v2136
    %v2993 = vpack.c.b16 %v2145, %v2137
    %v2994 = vpack.c.b16 %v2146, %v2138
    %v2995 = vpack.c.b16 %v2147, %v2139
    %v2996 = vpack.c.b16 %v2148, %v2140
    %v2997 = vpack.c.b16 %v2149, %v2141
    %v2998 = vpack.c.b16 %v2150, %v2142
    %v2999 = vpack.c.b16 %v2159, %v2151
    %v3000 = vpack.c.b16 %v2160, %v2152
    %v3001 = vpack.c.b16 %v2161, %v2153
    %v3002 = vpack.c.b16 %v2162, %v2154
    %v3003 = vpack.c.b16 %v2163, %v2155
    %v3004 = vpack.c.b16 %v2164, %v2156
    %v3005 = vpack.c.b16 %v2165, %v2157
    %v3006 = vpack.c.b16 %v2166, %v2158
    %v3007 = vpack.c.b16 %v2175, %v2167
    %v3008 = vpack.c.b16 %v2176, %v2168
    %v3009 = vpack.c.b16 %v2177, %v2169
    %v3010 = vpack.c.b16 %v2178, %v2170
    %v3011 = vpack.c.b16 %v2179, %v2171
    %v3012 = vpack.c.b16 %v2180, %v2172
    %v3013 = vpack.c.b16 %v2181, %v2173
    %v3014 = vpack.c.b16 %v2182, %v2174
    %v3015 = vpack.c.b16 %v2191, %v2183
    %v3016 = vpack.c.b16 %v2192, %v2184
    %v3017 = vpack.c.b16 %v2193, %v2185
    %v3018 = vpack.c.b16 %v2194, %v2186
    %v3019 = vpack.c.b16 %v2195, %v2187
    %v3020 = vpack.c.b16 %v2196, %v2188
    %v3021 = vpack.c.b16 %v2197, %v2189
    %v3022 = vpack.c.b16 %v2198, %v2190
    %v3023 = vpack.c.b16 %v2207, %v2199
    %v3024 = vpack.c.b16 %v2208, %v2200
    %v3025 = vpack.c.b16 %v2209, %v2201
    %v3026 = vpack.c.b16 %v2210, %v2202
    %v3027 = vpack.c.b16 %v2211, %v2203
    %v3028 = vpack.c.b16 %v2212, %v2204
    %v3029 = vpack.c.b16 %v2213, %v2205
    %v3030 = vpack.c.b16 %v2214, %v2206
    %v3031 = vpack.c.b16 %v2223, %v2215
    %v3032 = vpack.c.b16 %v2224, %v2216
    %v3033 = vpack.c.b16 %v2225, %v2217
    %v3034 = vpack.c.b16 %v2226, %v2218
    %v3035 = vpack.c.b16 %v2227, %v2219
    %v3036 = vpack.c.b16 %v2228, %v2220
    %v3037 = vpack.c.b16 %v2229, %v2221
    %v3038 = vpack.c.b16 %v2230, %v2222
    %v3039 = vpack.c.b16 %v2239, %v2231
    %v3040 = vpack.c.b16 %v2240, %v2232
    %v3041 = vpack.c.b16 %v2241, %v2233
    %v3042 = vpack.c.b16 %v2242, %v2234
    %v3043 = vpack.c.b16 %v2243, %v2235
    %v3044 = vpack.c.b16 %v2244, %v2236
    %v3045 = vpack.c.b16 %v2245, %v2237
    %v3046 = vpack.c.b16 %v2246, %v2238
    %v3047 = vpack.c.b16 %v2255, %v2247
    %v3048 = vpack.c.b16 %v2256, %v2248
    %v3049 = vpack.c.b16 %v2257, %v2249
    %v3050 = vpack.c.b16 %v2258, %v2250
    %v3051 = vpack.c.b16 %v2259, %v2251
    %v3052 = vpack.c.b16 %v2260, %v2252
    %v3053 = vpack.c.b16 %v2261, %v2253
    %v3054 = vpack.c.b16 %v2262, %v2254
    %v3055 = vpack.c.b16 %v2271, %v2263
    %v3056 = vpack.c.b16 %v2272, %v2264
    %v3057 = vpack.c.b16 %v2273, %v2265
    %v3058 = vpack.c.b16 %v2274, %v2266
    %v3059 = vpack.c.b16 %v2275, %v2267
    %v3060 = vpack.c.b16 %v2276, %v2268
    %v3061 = vpack.c.b16 %v2277, %v2269
    %v3062 = vpack.c.b16 %v2278, %v2270
    %v3063 = vpack.c.b16 %v2287, %v2279
    %v3064 = vpack.c.b16 %v2288, %v2280
    %v3065 = vpack.c.b16 %v2289, %v2281
    %v3066 = vpack.c.b16 %v2290, %v2282
    %v3067 = vpack.c.b16 %v2291, %v2283
    %v3068 = vpack.c.b16 %v2292, %v2284
    %v3069 = vpack.c.b16 %v2293, %v2285
    %v3070 = vpack.c.b16 %v2294, %v2286
    %v3071 = vpack.c.b16 %v2303, %v2295
    %v3072 = vpack.c.b16 %v2304, %v2296
    %v3073 = vpack.c.b16 %v2305, %v2297
    %v3074 = vpack.c.b16 %v2306, %v2298
    %v3075 = vpack.c.b16 %v2307, %v2299
    %v3076 = vpack.c.b16 %v2308, %v2300
    %v3077 = vpack.c.b16 %v2309, %v2301
    %v3078 = vpack.c.b16 %v2310, %v2302
    %v3079 = vpack.c.b16 %v2319, %v2311
    %v3080 = vpack.c.b16 %v2320, %v2312
    %v3081 = vpack.c.b16 %v2321, %v2313
    %v3082 = vpack.c.b16 %v2322, %v2314
    %v3083 = vpack.c.b16 %v2323, %v2315
    %v3084 = vpack.c.b16 %v2324, %v2316
    %v3085 = vpack.c.b16 %v2325, %v2317
    %v3086 = vpack.c.b16 %v2326, %v2318
    %v3087 = vpack.c.b16 %v2335, %v2327
    %v3088 = vpack.c.b16 %v2336, %v2328
    %v3089 = vpack.c.b16 %v2337, %v2329
    %v3090 = vpack.c.b16 %v2338, %v2330
    %v3091 = vpack.c.b16 %v2339, %v2331
    %v3092 = vpack.c.b16 %v2340, %v2332
    %v3093 = vpack.c.b16 %v2341, %v2333
    %v3094 = vpack.c.b16 %v2342, %v2334
    %v3095 = vpack.c.b16 %v2351, %v2343
    %v3096 = vpack.c.b16 %v2352, %v2344
    %v3097 = vpack.c.b16 %v2353, %v2345
    %v3098 = vpack.c.b16 %v2354, %v2346
    %v3099 = vpack.c.b16 %v2355, %v2347
    %v3100 = vpack.c.b16 %v2356, %v2348
    %v3101 = vpack.c.b16 %v2357, %v2349
    %v3102 = vpack.c.b16 %v2358, %v2350
    %v3103 = vpack.c.b16 %v2367, %v2359
    %v3104 = vpack.c.b16 %v2368, %v2360
    %v3105 = vpack.c.b16 %v2369, %v2361
    %v3106 = vpack.c.b16 %v2370, %v2362
    %v3107 = vpack.c.b16 %v2371, %v2363
    %v3108 = vpack.c.b16 %v2372, %v2364
    %v3109 = vpack.c.b16 %v2373, %v2365
    %v3110 = vpack.c.b16 %v2374, %v2366
    %v3111 = vpack.c.b16 %v2383, %v2375
    %v3112 = vpack.c.b16 %v2384, %v2376
    %v3113 = vpack.c.b16 %v2385, %v2377
    %v3114 = vpack.c.b16 %v2386, %v2378
    %v3115 = vpack.c.b16 %v2387, %v2379
    %v3116 = vpack.c.b16 %v2388, %v2380
    %v3117 = vpack.c.b16 %v2389, %v2381
    %v3118 = vpack.c.b16 %v2390, %v2382
    %v3119 = vpack.c.b16 %v2399, %v2391
    %v3120 = vpack.c.b16 %v2400, %v2392
    %v3121 = vpack.c.b16 %v2401, %v2393
    %v3122 = vpack.c.b16 %v2402, %v2394
    %v3123 = vpack.c.b16 %v2403, %v2395
    %v3124 = vpack.c.b16 %v2404, %v2396
    %v3125 = vpack.c.b16 %v2405, %v2397
    %v3126 = vpack.c.b16 %v2406, %v2398
    %v3127 = vpack.c.b16 %v2415, %v2407
    %v3128 = vpack.c.b16 %v2416, %v2408
    %v3129 = vpack.c.b16 %v2417, %v2409
    %v3130 = vpack.c.b16 %v2418, %v2410
    %v3131 = vpack.c.b16 %v2419, %v2411
    %v3132 = vpack.c.b16 %v2420, %v2412
    %v3133 = vpack.c.b16 %v2421, %v2413
    %v3134 = vpack.c.b16 %v2422, %v2414
    %v3135 = vpack.c.b16 %v2431, %v2423
    %v3136 = vpack.c.b16 %v2432, %v2424
    %v3137 = vpack.c.b16 %v2433, %v2425
    %v3138 = vpack.c.b16 %v2434, %v2426
    %v3139 = vpack.c.b16 %v2435, %v2427
    %v3140 = vpack.c.b16 %v2436, %v2428
    %v3141 = vpack.c.b16 %v2437, %v2429
    %v3142 = vpack.c.b16 %v2438, %v2430
    %v3143 = vpack.c.b16 %v2447, %v2439
    %v3144 = vpack.c.b16 %v2448, %v2440
    %v3145 = vpack.c.b16 %v2449, %v2441
    %v3146 = vpack.c.b16 %v2450, %v2442
    %v3147 = vpack.c.b16 %v2451, %v2443
    %v3148 = vpack.c.b16 %v2452, %v2444
    %v3149 = vpack.c.b16 %v2453, %v2445
    %v3150 = vpack.c.b16 %v2454, %v2446
    %v3151 = vpack.c.b16 %v2463, %v2455
    %v3152 = vpack.c.b16 %v2464, %v2456
    %v3153 = vpack.c.b16 %v2465, %v2457
    %v3154 = vpack.c.b16 %v2466, %v2458
    %v3155 = vpack.c.b16 %v2467, %v2459
    %v3156 = vpack.c.b16 %v2468, %v2460
    %v3157 = vpack.c.b16 %v2469, %v2461
    %v3158 = vpack.c.b16 %v2470, %v2462
    %v3159 = vpack.c.b16 %v2479, %v2471
    %v3160 = vpack.c.b16 %v2480, %v2472
    %v3161 = vpack.c.b16 %v2481, %v2473
    %v3162 = vpack.c.b16 %v2482, %v2474
    %v3163 = vpack.c.b16 %v2483, %v2475
    %v3164 = vpack.c.b16 %v2484, %v2476
    %v3165 = vpack.c.b16 %v2485, %v2477
    %v3166 = vpack.c.b16 %v2486, %v2478
    %v3167 = vpack.c.b16 %v2495, %v2487
    %v3168 = vpack.c.b16 %v2496, %v2488
    %v3169 = vpack.c.b16 %v2497, %v2489
    %v3170 = vpack.c.b16 %v2498, %v2490
    %v3171 = vpack.c.b16 %v2499, %v2491
    %v3172 = vpack.c.b16 %v2500, %v2492
    %v3173 = vpack.c.b16 %v2501, %v2493
    %v3174 = vpack.c.b16 %v2502, %v2494
    %v3175 = vpack.c.b16 %v2511, %v2503
    %v3176 = vpack.c.b16 %v2512, %v2504
    %v3177 = vpack.c.b16 %v2513, %v2505
    %v3178 = vpack.c.b16 %v2514, %v2506
    %v3179 = vpack.c.b16 %v2515, %v2507
    %v3180 = vpack.c.b16 %v2516, %v2508
    %v3181 = vpack.c.b16 %v2517, %v2509
    %v3182 = vpack.c.b16 %v2518, %v2510
    %v3183 = vpack.c.b16 %v2527, %v2519
    %v3184 = vpack.c.b16 %v2528, %v2520
    %v3185 = vpack.c.b16 %v2529, %v2521
    %v3186 = vpack.c.b16 %v2530, %v2522
    %v3187 = vpack.c.b16 %v2531, %v2523
    %v3188 = vpack.c.b16 %v2532, %v2524
    %v3189 = vpack.c.b16 %v2533, %v2525
    %v3190 = vpack.c.b16 %v2534, %v2526
    %v3191 = vpack.c.b16 %v2543, %v2535
    %v3192 = vpack.c.b16 %v2544, %v2536
    %v3193 = vpack.c.b16 %v2545, %v2537
    %v3194 = vpack.c.b16 %v2546, %v2538
    %v3195 = vpack.c.b16 %v2547, %v2539
    %v3196 = vpack.c.b16 %v2548, %v2540
    %v3197 = vpack.c.b16 %v2549, %v2541
    %v3198 = vpack.c.b16 %v2550, %v2542
    %v3199 = vpack.c.b16 %v2559, %v2551
    %v3200 = vpack.c.b16 %v2560, %v2552
    %v3201 = vpack.c.b16 %v2561, %v2553
    %v3202 = vpack.c.b16 %v2562, %v2554
    %v3203 = vpack.c.b16 %v2563, %v2555
    %v3204 = vpack.c.b16 %v2564, %v2556
    %v3205 = vpack.c.b16 %v2565, %v2557
    %v3206 = vpack.c.b16 %v2566, %v2558
    %v3207 = vpack.c.b16 %v2575, %v2567
    %v3208 = vpack.c.b16 %v2576, %v2568
    %v3209 = vpack.c.b16 %v2577, %v2569
    %v3210 = vpack.c.b16 %v2578, %v2570
    %v3211 = vpack.c.b16 %v2579, %v2571
    %v3212 = vpack.c.b16 %v2580, %v2572
    %v3213 = vpack.c.b16 %v2581, %v2573
    %v3214 = vpack.c.b16 %v2582, %v2574
    %v3215 = vpack.c.b16 %v2591, %v2583
    %v3216 = vpack.c.b16 %v2592, %v2584
    %v3217 = vpack.c.b16 %v2593, %v2585
    %v3218 = vpack.c.b16 %v2594, %v2586
    %v3219 = vpack.c.b16 %v2595, %v2587
    %v3220 = vpack.c.b16 %v2596, %v2588
    %v3221 = vpack.c.b16 %v2597, %v2589
    %v3222 = vpack.c.b16 %v2598, %v2590
    %v3223 = vpack.c.b16 %v2607, %v2599
    %v3224 = vpack.c.b16 %v2608, %v2600
    %v3225 = vpack.c.b16 %v2609, %v2601
    %v3226 = vpack.c.b16 %v2610, %v2602
    %v3227 = vpack.c.b16 %v2611, %v2603
    %v3228 = vpack.c.b16 %v2612, %v2604
    %v3229 = vpack.c.b16 %v2613, %v2605
    %v3230 = vpack.c.b16 %v2614, %v2606
    %v3231 = vpack.c.b16 %v2623, %v2615
    %v3232 = vpack.c.b16 %v2624, %v2616
    %v3233 = vpack.c.b16 %v2625, %v2617
    %v3234 = vpack.c.b16 %v2626, %v2618
    %v3235 = vpack.c.b16 %v2627, %v2619
    %v3236 = vpack.c.b16 %v2628, %v2620
    %v3237 = vpack.c.b16 %v2629, %v2621
    %v3238 = vpack.c.b16 %v2630, %v2622
    %v3239 = vpack.c.b16 %v2639, %v2631
    %v3240 = vpack.c.b16 %v2640, %v2632
    %v3241 = vpack.c.b16 %v2641, %v2633
    %v3242 = vpack.c.b16 %v2642, %v2634
    %v3243 = vpack.c.b16 %v2643, %v2635
    %v3244 = vpack.c.b16 %v2644, %v2636
    %v3245 = vpack.c.b16 %v2645, %v2637
    %v3246 = vpack.c.b16 %v2646, %v2638
    %v3247 = vpack.c.b16 %v2655, %v2647
    %v3248 = vpack.c.b16 %v2656, %v2648
    %v3249 = vpack.c.b16 %v2657, %v2649
    %v3250 = vpack.c.b16 %v2658, %v2650
    %v3251 = vpack.c.b16 %v2659, %v2651
    %v3252 = vpack.c.b16 %v2660, %v2652
    %v3253 = vpack.c.b16 %v2661, %v2653
    %v3254 = vpack.c.b16 %v2662, %v2654
    %v3255 = vpack.c.b16 %v2671, %v2663
    %v3256 = vpack.c.b16 %v2672, %v2664
    %v3257 = vpack.c.b16 %v2673, %v2665
    %v3258 = vpack.c.b16 %v2674, %v2666
    %v3259 = vpack.c.b16 %v2675, %v2667
    %v3260 = vpack.c.b16 %v2676, %v2668
    %v3261 = vpack.c.b16 %v2677, %v2669
    %v3262 = vpack.c.b16 %v2678, %v2670
    %v3263 = vpack.c.b16 %v2687, %v2679
    %v3264 = vpack.c.b16 %v2688, %v2680
    %v3265 = vpack.c.b16 %v2689, %v2681
    %v3266 = vpack.c.b16 %v2690, %v2682
    %v3267 = vpack.c.b16 %v2691, %v2683
    %v3268 = vpack.c.b16 %v2692, %v2684
    %v3269 = vpack.c.b16 %v2693, %v2685
    %v3270 = vpack.c.b16 %v2694, %v2686
    %v3271 = vpack.c.b16 %v2703, %v2695
    %v3272 = vpack.c.b16 %v2704, %v2696
    %v3273 = vpack.c.b16 %v2705, %v2697
    %v3274 = vpack.c.b16 %v2706, %v2698
    %v3275 = vpack.c.b16 %v2707, %v2699
    %v3276 = vpack.c.b16 %v2708, %v2700
    %v3277 = vpack.c.b16 %v2709, %v2701
    %v3278 = vpack.c.b16 %v2710, %v2702
    %v3279 = vpack.c.b16 %v2719, %v2711
    %v3280 = vpack.c.b16 %v2720, %v2712
    %v3281 = vpack.c.b16 %v2721, %v2713
    %v3282 = vpack.c.b16 %v2722, %v2714
    %v3283 = vpack.c.b16 %v2723, %v2715
    %v3284 = vpack.c.b16 %v2724, %v2716
    %v3285 = vpack.c.b16 %v2725, %v2717
    %v3286 = vpack.c.b16 %v2726, %v2718
    %v3287 = vpack.c.b16 %v2735, %v2727
    %v3288 = vpack.c.b16 %v2736, %v2728
    %v3289 = vpack.c.b16 %v2737, %v2729
    %v3290 = vpack.c.b16 %v2738, %v2730
    %v3291 = vpack.c.b16 %v2739, %v2731
    %v3292 = vpack.c.b16 %v2740, %v2732
    %v3293 = vpack.c.b16 %v2741, %v2733
    %v3294 = vpack.c.b16 %v2742, %v2734
    %v3295 = vpack.c.b16 %v2751, %v2743
    %v3296 = vpack.c.b16 %v2752, %v2744
    %v3297 = vpack.c.b16 %v2753, %v2745
    %v3298 = vpack.c.b16 %v2754, %v2746
    %v3299 = vpack.c.b16 %v2755, %v2747
    %v3300 = vpack.c.b16 %v2756, %v2748
    %v3301 = vpack.c.b16 %v2757, %v2749
    %v3302 = vpack.c.b16 %v2758, %v2750
    %v3303 = vpack.c.b16 %v2767, %v2759
    %v3304 = vpack.c.b16 %v2768, %v2760
    %v3305 = vpack.c.b16 %v2769, %v2761
    %v3306 = vpack.c.b16 %v2770, %v2762
    %v3307 = vpack.c.b16 %v2771, %v2763
    %v3308 = vpack.c.b16 %v2772, %v2764
    %v3309 = vpack.c.b16 %v2773, %v2765
    %v3310 = vpack.c.b16 %v2774, %v2766
    %v3311 = vpack.c.b16 %v2783, %v2775
    %v3312 = vpack.c.b16 %v2784, %v2776
    %v3313 = vpack.c.b16 %v2785, %v2777
    %v3314 = vpack.c.b16 %v2786, %v2778
    %v3315 = vpack.c.b16 %v2787, %v2779
    %v3316 = vpack.c.b16 %v2788, %v2780
    %v3317 = vpack.c.b16 %v2789, %v2781
    %v3318 = vpack.c.b16 %v2790, %v2782
    %v3319 = vpack.c.b16 %v2799, %v2791
    %v3320 = vpack.c.b16 %v2800, %v2792
    %v3321 = vpack.c.b16 %v2801, %v2793
    %v3322 = vpack.c.b16 %v2802, %v2794
    %v3323 = vpack.c.b16 %v2803, %v2795
    %v3324 = vpack.c.b16 %v2804, %v2796
    %v3325 = vpack.c.b16 %v2805, %v2797
    %v3326 = vpack.c.b16 %v2806, %v2798
    %v3327 = vpack.c.b16 %v2815, %v2807
    %v3328 = vpack.c.b16 %v2816, %v2808
    %v3329 = vpack.c.b16 %v2817, %v2809
    %v3330 = vpack.c.b16 %v2818, %v2810
    %v3331 = vpack.c.b16 %v2819, %v2811
    %v3332 = vpack.c.b16 %v2820, %v2812
    %v3333 = vpack.c.b16 %v2821, %v2813
    %v3334 = vpack.c.b16 %v2822, %v2814
    %3847 = vmatprep.subr.bf16.mxu0 %v2824
    %3848 = vmatpush1.bf16.msra.mxu0 %v2823
    %3849 = vmatprep.subr.bf16.mxu0 %v2832
    %3850 = vmatpush1.bf16.msra.mxu0 %v2831
    %3851 = vmatprep.subr.bf16.mxu0 %v2840
    %3852 = vmatpush1.bf16.msra.mxu0 %v2839
    %3853 = vmatprep.subr.bf16.mxu0 %v2848
    %3854 = vmatpush1.bf16.msra.mxu0 %v2847
    %3855 = vmatprep.subr.bf16.mxu0 %v2856
    %3856 = vmatpush1.bf16.msra.mxu0 %v2855
    %3857 = vmatprep.subr.bf16.mxu0 %v2864
    %3858 = vmatpush1.bf16.msra.mxu0 %v2863
    %3859 = vmatprep.subr.bf16.mxu0 %v2872
    %3860 = vmatpush1.bf16.msra.mxu0 %v2871
    %3861 = vmatprep.subr.bf16.mxu0 %v2880
    %3862 = vmatpush1.bf16.msra.mxu0 %v2879
    %3863 = vmatprep.subr.bf16.mxu0 %v2888
    %3864 = vmatpush1.bf16.msra.mxu0 %v2887
    %3865 = vmatprep.subr.bf16.mxu0 %v2896
    %3866 = vmatpush1.bf16.msra.mxu0 %v2895
    %3867 = vmatprep.subr.bf16.mxu0 %v2904
    %3868 = vmatpush1.bf16.msra.mxu0 %v2903
    %3869 = vmatprep.subr.bf16.mxu0 %v2912
    %3870 = vmatpush1.bf16.msra.mxu0 %v2911
    %3871 = vmatprep.subr.bf16.mxu0 %v2920
    %3872 = vmatpush1.bf16.msra.mxu0 %v2919
    %3873 = vmatprep.subr.bf16.mxu0 %v2928
    %3874 = vmatpush1.bf16.msra.mxu0 %v2927
    %3875 = vmatprep.subr.bf16.mxu0 %v2936
    %3876 = vmatpush1.bf16.msra.mxu0 %v2935
    %3877 = vmatprep.subr.bf16.mxu0 %v2944
    %3878 = vmatpush1.bf16.msra.mxu0 %v2943
    %3879 = vmatprep.mubr.bf16.mxu0 %v1267
    %3880 = vmatmul.mubr.bf16.gmra.mrb[0].mxu0 %v1253
    %v3881 = vpop.f32.mrb[0].mxu0
    %v3882 = vadd.f32 0.0, %v3881
    %v3883 = vpop.f32.mrb[0].mxu0
    %v3884 = vadd.f32 0.0, %v3883
    %v3885 = vpop.f32.mrb[0].mxu0
    %v3886 = vpop.f32.mrb[0].mxu0
    %3887 = vdwg.mxu0
    %3888 = vmatprep.subr.bf16.mxu0 %v2952
    %3889 = vmatpush1.bf16.msra.mxu0 %v2951
    %3890 = vmatprep.subr.bf16.mxu0 %v2960
    %3891 = vmatpush1.bf16.msra.mxu0 %v2959
    %3892 = vmatprep.subr.bf16.mxu0 %v2968
    %3893 = vmatpush1.bf16.msra.mxu0 %v2967
    %3894 = vmatprep.subr.bf16.mxu0 %v2976
    %3895 = vmatpush1.bf16.msra.mxu0 %v2975
    %3896 = vmatprep.subr.bf16.mxu0 %v2984
    %3897 = vmatpush1.bf16.msra.mxu0 %v2983
    %3898 = vmatprep.subr.bf16.mxu0 %v2992
    %3899 = vmatpush1.bf16.msra.mxu0 %v2991
    %3900 = vmatprep.subr.bf16.mxu0 %v3000
    %3901 = vmatpush1.bf16.msra.mxu0 %v2999
    %3902 = vmatprep.subr.bf16.mxu0 %v3008
    %3903 = vmatpush1.bf16.msra.mxu0 %v3007
    %3904 = vmatprep.subr.bf16.mxu0 %v3016
    %3905 = vmatpush1.bf16.msra.mxu0 %v3015
    %3906 = vmatprep.subr.bf16.mxu0 %v3024
    %3907 = vmatpush1.bf16.msra.mxu0 %v3023
    %3908 = vmatprep.subr.bf16.mxu0 %v3032
    %3909 = vmatpush1.bf16.msra.mxu0 %v3031
    %3910 = vmatprep.subr.bf16.mxu0 %v3040
    %3911 = vmatpush1.bf16.msra.mxu0 %v3039
    %3912 = vmatprep.subr.bf16.mxu0 %v3048
    %3913 = vmatpush1.bf16.msra.mxu0 %v3047
    %3914 = vmatprep.subr.bf16.mxu0 %v3056
    %3915 = vmatpush1.bf16.msra.mxu0 %v3055
    %3916 = vmatprep.subr.bf16.mxu0 %v3064
    %3917 = vmatpush1.bf16.msra.mxu0 %v3063
    %3918 = vmatprep.subr.bf16.mxu0 %v3072
    %3919 = vmatpush1.bf16.msra.mxu0 %v3071
    %3920 = vmatprep.mubr.bf16.mxu0 %v1277
    %3921 = vmatmul.mubr.bf16.gmra.mrb[0].mxu0 %v1275
    %v3922 = vpop.f32.mrb[0].mxu0
    %v3923 = vadd.f32 %v3882, %v3922
    %v3924 = vpop.f32.mrb[0].mxu0
    %v3925 = vadd.f32 %v3884, %v3924
    %v3926 = vpop.f32.mrb[0].mxu0
    %v3927 = vpop.f32.mrb[0].mxu0
    %3928 = vdwg.mxu0
    %3929 = vmatprep.subr.bf16.mxu0 %v3080
    %3930 = vmatpush1.bf16.msra.mxu0 %v3079
    %3931 = vmatprep.subr.bf16.mxu0 %v3088
    %3932 = vmatpush1.bf16.msra.mxu0 %v3087
    %3933 = vmatprep.subr.bf16.mxu0 %v3096
    %3934 = vmatpush1.bf16.msra.mxu0 %v3095
    %3935 = vmatprep.subr.bf16.mxu0 %v3104
    %3936 = vmatpush1.bf16.msra.mxu0 %v3103
    %3937 = vmatprep.subr.bf16.mxu0 %v3112
    %3938 = vmatpush1.bf16.msra.mxu0 %v3111
    %3939 = vmatprep.subr.bf16.mxu0 %v3120
    %3940 = vmatpush1.bf16.msra.mxu0 %v3119
    %3941 = vmatprep.subr.bf16.mxu0 %v3128
    %3942 = vmatpush1.bf16.msra.mxu0 %v3127
    %3943 = vmatprep.subr.bf16.mxu0 %v3136
    %3944 = vmatpush1.bf16.msra.mxu0 %v3135
    %3945 = vmatprep.subr.bf16.mxu0 %v3144
    %3946 = vmatpush1.bf16.msra.mxu0 %v3143
    %3947 = vmatprep.subr.bf16.mxu0 %v3152
    %3948 = vmatpush1.bf16.msra.mxu0 %v3151
    %3949 = vmatprep.subr.bf16.mxu0 %v3160
    %3950 = vmatpush1.bf16.msra.mxu0 %v3159
    %3951 = vmatprep.subr.bf16.mxu0 %v3168
    %3952 = vmatpush1.bf16.msra.mxu0 %v3167
    %3953 = vmatprep.subr.bf16.mxu0 %v3176
    %3954 = vmatpush1.bf16.msra.mxu0 %v3175
    %3955 = vmatprep.subr.bf16.mxu0 %v3184
    %3956 = vmatpush1.bf16.msra.mxu0 %v3183
    %3957 = vmatprep.subr.bf16.mxu0 %v3192
    %3958 = vmatpush1.bf16.msra.mxu0 %v3191
    %3959 = vmatprep.subr.bf16.mxu0 %v3200
    %3960 = vmatpush1.bf16.msra.mxu0 %v3199
    %3961 = vmatprep.mubr.bf16.mxu0 %v1274
    %3962 = vmatmul.mubr.bf16.gmra.mrb[0].mxu0 %v1260
    %v3963 = vpop.f32.mrb[0].mxu0
    %v3964 = vadd.f32 %v3923, %v3963
    %v3965 = vpop.f32.mrb[0].mxu0
    %v3966 = vadd.f32 %v3925, %v3965
    %v3967 = vpop.f32.mrb[0].mxu0
    %v3968 = vpop.f32.mrb[0].mxu0
    %3969 = vdwg.mxu0
    %3970 = vmatprep.subr.bf16.mxu0 %v3208
    %3971 = vmatpush1.bf16.msra.mxu0 %v3207
    %3972 = vmatprep.subr.bf16.mxu0 %v3216
    %3973 = vmatpush1.bf16.msra.mxu0 %v3215
    %3974 = vmatprep.subr.bf16.mxu0 %v3224
    %3975 = vmatpush1.bf16.msra.mxu0 %v3223
    %3976 = vmatprep.subr.bf16.mxu0 %v3232
    %3977 = vmatpush1.bf16.msra.mxu0 %v3231
    %3978 = vmatprep.subr.bf16.mxu0 %v3240
    %3979 = vmatpush1.bf16.msra.mxu0 %v3239
    %3980 = vmatprep.subr.bf16.mxu0 %v3248
    %3981 = vmatpush1.bf16.msra.mxu0 %v3247
    %3982 = vmatprep.subr.bf16.mxu0 %v3256
    %3983 = vmatpush1.bf16.msra.mxu0 %v3255
    %3984 = vmatprep.subr.bf16.mxu0 %v3264
    %3985 = vmatpush1.bf16.msra.mxu0 %v3263
    %3986 = vmatprep.subr.bf16.mxu0 %v3272
    %3987 = vmatpush1.bf16.msra.mxu0 %v3271
    %3988 = vmatprep.subr.bf16.mxu0 %v3280
    %3989 = vmatpush1.bf16.msra.mxu0 %v3279
    %3990 = vmatprep.subr.bf16.mxu0 %v3288
    %3991 = vmatpush1.bf16.msra.mxu0 %v3287
    %3992 = vmatprep.subr.bf16.mxu0 %v3296
    %3993 = vmatpush1.bf16.msra.mxu0 %v3295
    %3994 = vmatprep.subr.bf16.mxu0 %v3304
    %3995 = vmatpush1.bf16.msra.mxu0 %v3303
    %3996 = vmatprep.subr.bf16.mxu0 %v3312
    %3997 = vmatpush1.bf16.msra.mxu0 %v3311
    %3998 = vmatprep.subr.bf16.mxu0 %v3320
    %3999 = vmatpush1.bf16.msra.mxu0 %v3319
    %4000 = vmatprep.subr.bf16.mxu0 %v3328
    %4001 = vmatpush1.bf16.msra.mxu0 %v3327
    %4002 = vmatprep.mubr.bf16.mxu0 %v1278
    %4003 = vmatmul.mubr.bf16.gmra.mrb[0].mxu0 %v1276
    %v4004 = vpop.f32.mrb[0].mxu0
    %v4005 = vadd.f32 %v3964, %v4004
    %v4006 = vpop.f32.mrb[0].mxu0
    %v4007 = vadd.f32 %v3966, %v4006
    %v4008 = vpop.f32.mrb[0].mxu0
    %v4009 = vpop.f32.mrb[0].mxu0
    %4010 = vdwg.mxu0
    %4011 = vmatprep.subr.bf16.mxu0 %v2826
    %4012 = vmatpush1.bf16.msra.mxu0 %v2825
    %4013 = vmatprep.subr.bf16.mxu0 %v2834
    %4014 = vmatpush1.bf16.msra.mxu0 %v2833
    %4015 = vmatprep.subr.bf16.mxu0 %v2842
    %4016 = vmatpush1.bf16.msra.mxu0 %v2841
    %4017 = vmatprep.subr.bf16.mxu0 %v2850
    %4018 = vmatpush1.bf16.msra.mxu0 %v2849
    %4019 = vmatprep.subr.bf16.mxu0 %v2858
    %4020 = vmatpush1.bf16.msra.mxu0 %v2857
    %4021 = vmatprep.subr.bf16.mxu0 %v2866
    %4022 = vmatpush1.bf16.msra.mxu0 %v2865
    %4023 = vmatprep.subr.bf16.mxu0 %v2874
    %4024 = vmatpush1.bf16.msra.mxu0 %v2873
    %4025 = vmatprep.subr.bf16.mxu0 %v2882
    %4026 = vmatpush1.bf16.msra.mxu0 %v2881
    %4027 = vmatprep.subr.bf16.mxu0 %v2890
    %4028 = vmatpush1.bf16.msra.mxu0 %v2889
    %4029 = vmatprep.subr.bf16.mxu0 %v2898
    %4030 = vmatpush1.bf16.msra.mxu0 %v2897
    %4031 = vmatprep.subr.bf16.mxu0 %v2906
    %4032 = vmatpush1.bf16.msra.mxu0 %v2905
    %4033 = vmatprep.subr.bf16.mxu0 %v2914
    %4034 = vmatpush1.bf16.msra.mxu0 %v2913
    %4035 = vmatprep.subr.bf16.mxu0 %v2922
    %4036 = vmatpush1.bf16.msra.mxu0 %v2921
    %4037 = vmatprep.subr.bf16.mxu0 %v2930
    %4038 = vmatpush1.bf16.msra.mxu0 %v2929
    %4039 = vmatprep.subr.bf16.mxu0 %v2938
    %4040 = vmatpush1.bf16.msra.mxu0 %v2937
    %4041 = vmatprep.subr.bf16.mxu0 %v2946
    %4042 = vmatpush1.bf16.msra.mxu0 %v2945
    %4043 = vmatprep.mubr.bf16.mxu0 %v1267
    %4044 = vmatmul.mubr.bf16.gmra.mrb[0].mxu0 %v1253
    %v4045 = vpop.f32.mrb[0].mxu0
    %v4046 = vadd.f32 0.0, %v4045
    %v4047 = vpop.f32.mrb[0].mxu0
    %v4048 = vadd.f32 0.0, %v4047
    %v4049 = vpop.f32.mrb[0].mxu0
    %v4050 = vpop.f32.mrb[0].mxu0
    %4051 = vdwg.mxu0
    %4052 = vmatprep.subr.bf16.mxu0 %v2954
    %4053 = vmatpush1.bf16.msra.mxu0 %v2953
    %4054 = vmatprep.subr.bf16.mxu0 %v2962
    %4055 = vmatpush1.bf16.msra.mxu0 %v2961
    %4056 = vmatprep.subr.bf16.mxu0 %v2970
    %4057 = vmatpush1.bf16.msra.mxu0 %v2969
    %4058 = vmatprep.subr.bf16.mxu0 %v2978
    %4059 = vmatpush1.bf16.msra.mxu0 %v2977
    %4060 = vmatprep.subr.bf16.mxu0 %v2986
    %4061 = vmatpush1.bf16.msra.mxu0 %v2985
    %4062 = vmatprep.subr.bf16.mxu0 %v2994
    %4063 = vmatpush1.bf16.msra.mxu0 %v2993
    %4064 = vmatprep.subr.bf16.mxu0 %v3002
    %4065 = vmatpush1.bf16.msra.mxu0 %v3001
    %4066 = vmatprep.subr.bf16.mxu0 %v3010
    %4067 = vmatpush1.bf16.msra.mxu0 %v3009
    %4068 = vmatprep.subr.bf16.mxu0 %v3018
    %4069 = vmatpush1.bf16.msra.mxu0 %v3017
    %4070 = vmatprep.subr.bf16.mxu0 %v3026
    %4071 = vmatpush1.bf16.msra.mxu0 %v3025
    %4072 = vmatprep.subr.bf16.mxu0 %v3034
    %4073 = vmatpush1.bf16.msra.mxu0 %v3033
    %4074 = vmatprep.subr.bf16.mxu0 %v3042
    %4075 = vmatpush1.bf16.msra.mxu0 %v3041
    %4076 = vmatprep.subr.bf16.mxu0 %v3050
    %4077 = vmatpush1.bf16.msra.mxu0 %v3049
    %4078 = vmatprep.subr.bf16.mxu0 %v3058
    %4079 = vmatpush1.bf16.msra.mxu0 %v3057
    %4080 = vmatprep.subr.bf16.mxu0 %v3066
    %4081 = vmatpush1.bf16.msra.mxu0 %v3065
    %4082 = vmatprep.subr.bf16.mxu0 %v3074
    %4083 = vmatpush1.bf16.msra.mxu0 %v3073
    %4084 = vmatprep.mubr.bf16.mxu0 %v1277
    %4085 = vmatmul.mubr.bf16.gmra.mrb[0].mxu0 %v1275
    %v4086 = vpop.f32.mrb[0].mxu0
    %v4087 = vadd.f32 %v4046, %v4086
    %v4088 = vpop.f32.mrb[0].mxu0
    %v4089 = vadd.f32 %v4048, %v4088
    %v4090 = vpop.f32.mrb[0].mxu0
    %v4091 = vpop.f32.mrb[0].mxu0
    %4092 = vdwg.mxu0
    %4093 = vmatprep.subr.bf16.mxu0 %v3082
    %4094 = vmatpush1.bf16.msra.mxu0 %v3081
    %4095 = vmatprep.subr.bf16.mxu0 %v3090
    %4096 = vmatpush1.bf16.msra.mxu0 %v3089
    %4097 = vmatprep.subr.bf16.mxu0 %v3098
    %4098 = vmatpush1.bf16.msra.mxu0 %v3097
    %4099 = vmatprep.subr.bf16.mxu0 %v3106
    %4100 = vmatpush1.bf16.msra.mxu0 %v3105
    %4101 = vmatprep.subr.bf16.mxu0 %v3114
    %4102 = vmatpush1.bf16.msra.mxu0 %v3113
    %4103 = vmatprep.subr.bf16.mxu0 %v3122
    %4104 = vmatpush1.bf16.msra.mxu0 %v3121
    %4105 = vmatprep.subr.bf16.mxu0 %v3130
    %4106 = vmatpush1.bf16.msra.mxu0 %v3129
    %4107 = vmatprep.subr.bf16.mxu0 %v3138
    %4108 = vmatpush1.bf16.msra.mxu0 %v3137
    %4109 = vmatprep.subr.bf16.mxu0 %v3146
    %4110 = vmatpush1.bf16.msra.mxu0 %v3145
    %4111 = vmatprep.subr.bf16.mxu0 %v3154
    %4112 = vmatpush1.bf16.msra.mxu0 %v3153
    %4113 = vmatprep.subr.bf16.mxu0 %v3162
    %4114 = vmatpush1.bf16.msra.mxu0 %v3161
    %4115 = vmatprep.subr.bf16.mxu0 %v3170
    %4116 = vmatpush1.bf16.msra.mxu0 %v3169
    %4117 = vmatprep.subr.bf16.mxu0 %v3178
    %4118 = vmatpush1.bf16.msra.mxu0 %v3177
    %4119 = vmatprep.subr.bf16.mxu0 %v3186
    %4120 = vmatpush1.bf16.msra.mxu0 %v3185
    %4121 = vmatprep.subr.bf16.mxu0 %v3194
    %4122 = vmatpush1.bf16.msra.mxu0 %v3193
    %4123 = vmatprep.subr.bf16.mxu0 %v3202
    %4124 = vmatpush1.bf16.msra.mxu0 %v3201
    %4125 = vmatprep.mubr.bf16.mxu0 %v1274
    %4126 = vmatmul.mubr.bf16.gmra.mrb[0].mxu0 %v1260
    %v4127 = vpop.f32.mrb[0].mxu0
    %v4128 = vadd.f32 %v4087, %v4127
    %v4129 = vpop.f32.mrb[0].mxu0
    %v4130 = vadd.f32 %v4089, %v4129
    %v4131 = vpop.f32.mrb[0].mxu0
    %v4132 = vpop.f32.mrb[0].mxu0
    %4133 = vdwg.mxu0
    %4134 = vmatprep.subr.bf16.mxu0 %v3210
    %4135 = vmatpush1.bf16.msra.mxu0 %v3209
    %4136 = vmatprep.subr.bf16.mxu0 %v3218
    %4137 = vmatpush1.bf16.msra.mxu0 %v3217
    %4138 = vmatprep.subr.bf16.mxu0 %v3226
    %4139 = vmatpush1.bf16.msra.mxu0 %v3225
    %4140 = vmatprep.subr.bf16.mxu0 %v3234
    %4141 = vmatpush1.bf16.msra.mxu0 %v3233
    %4142 = vmatprep.subr.bf16.mxu0 %v3242
    %4143 = vmatpush1.bf16.msra.mxu0 %v3241
    %4144 = vmatprep.subr.bf16.mxu0 %v3250
    %4145 = vmatpush1.bf16.msra.mxu0 %v3249
    %4146 = vmatprep.subr.bf16.mxu0 %v3258
    %4147 = vmatpush1.bf16.msra.mxu0 %v3257
    %4148 = vmatprep.subr.bf16.mxu0 %v3266
    %4149 = vmatpush1.bf16.msra.mxu0 %v3265
    %4150 = vmatprep.subr.bf16.mxu0 %v3274
    %4151 = vmatpush1.bf16.msra.mxu0 %v3273
    %4152 = vmatprep.subr.bf16.mxu0 %v3282
    %4153 = vmatpush1.bf16.msra.mxu0 %v3281
    %4154 = vmatprep.subr.bf16.mxu0 %v3290
    %4155 = vmatpush1.bf16.msra.mxu0 %v3289
    %4156 = vmatprep.subr.bf16.mxu0 %v3298
    %4157 = vmatpush1.bf16.msra.mxu0 %v3297
    %4158 = vmatprep.subr.bf16.mxu0 %v3306
    %4159 = vmatpush1.bf16.msra.mxu0 %v3305
    %4160 = vmatprep.subr.bf16.mxu0 %v3314
    %4161 = vmatpush1.bf16.msra.mxu0 %v3313
    %4162 = vmatprep.subr.bf16.mxu0 %v3322
    %4163 = vmatpush1.bf16.msra.mxu0 %v3321
    %4164 = vmatprep.subr.bf16.mxu0 %v3330
    %4165 = vmatpush1.bf16.msra.mxu0 %v3329
    %4166 = vmatprep.mubr.bf16.mxu0 %v1278
    %4167 = vmatmul.mubr.bf16.gmra.mrb[0].mxu0 %v1276
    %v4168 = vpop.f32.mrb[0].mxu0
    %v4169 = vadd.f32 %v4128, %v4168
    %v4170 = vpop.f32.mrb[0].mxu0
    %v4171 = vadd.f32 %v4130, %v4170
    %v4172 = vpop.f32.mrb[0].mxu0
    %v4173 = vpop.f32.mrb[0].mxu0
    %4174 = vdwg.mxu0
    %4175 = vmatprep.subr.bf16.mxu0 %v2828
    %4176 = vmatpush1.bf16.msra.mxu0 %v2827
    %4177 = vmatprep.subr.bf16.mxu0 %v2836
    %4178 = vmatpush1.bf16.msra.mxu0 %v2835
    %4179 = vmatprep.subr.bf16.mxu0 %v2844
    %4180 = vmatpush1.bf16.msra.mxu0 %v2843
    %4181 = vmatprep.subr.bf16.mxu0 %v2852
    %4182 = vmatpush1.bf16.msra.mxu0 %v2851
    %4183 = vmatprep.subr.bf16.mxu0 %v2860
    %4184 = vmatpush1.bf16.msra.mxu0 %v2859
    %4185 = vmatprep.subr.bf16.mxu0 %v2868
    %4186 = vmatpush1.bf16.msra.mxu0 %v2867
    %4187 = vmatprep.subr.bf16.mxu0 %v2876
    %4188 = vmatpush1.bf16.msra.mxu0 %v2875
    %4189 = vmatprep.subr.bf16.mxu0 %v2884
    %4190 = vmatpush1.bf16.msra.mxu0 %v2883
    %4191 = vmatprep.subr.bf16.mxu0 %v2892
    %4192 = vmatpush1.bf16.msra.mxu0 %v2891
    %4193 = vmatprep.subr.bf16.mxu0 %v2900
    %4194 = vmatpush1.bf16.msra.mxu0 %v2899
    %4195 = vmatprep.subr.bf16.mxu0 %v2908
    %4196 = vmatpush1.bf16.msra.mxu0 %v2907
    %4197 = vmatprep.subr.bf16.mxu0 %v2916
    %4198 = vmatpush1.bf16.msra.mxu0 %v2915
    %4199 = vmatprep.subr.bf16.mxu0 %v2924
    %4200 = vmatpush1.bf16.msra.mxu0 %v2923
    %4201 = vmatprep.subr.bf16.mxu0 %v2932
    %4202 = vmatpush1.bf16.msra.mxu0 %v2931
    %4203 = vmatprep.subr.bf16.mxu0 %v2940
    %4204 = vmatpush1.bf16.msra.mxu0 %v2939
    %4205 = vmatprep.subr.bf16.mxu0 %v2948
    %4206 = vmatpush1.bf16.msra.mxu0 %v2947
    %4207 = vmatprep.mubr.bf16.mxu0 %v1267
    %4208 = vmatmul.mubr.bf16.gmra.mrb[0].mxu0 %v1253
    %v4209 = vpop.f32.mrb[0].mxu0
    %v4210 = vadd.f32 0.0, %v4209
    %v4211 = vpop.f32.mrb[0].mxu0
    %v4212 = vadd.f32 0.0, %v4211
    %v4213 = vpop.f32.mrb[0].mxu0
    %v4214 = vpop.f32.mrb[0].mxu0
    %4215 = vdwg.mxu0
    %4216 = vmatprep.subr.bf16.mxu0 %v2956
    %4217 = vmatpush1.bf16.msra.mxu0 %v2955
    %4218 = vmatprep.subr.bf16.mxu0 %v2964
    %4219 = vmatpush1.bf16.msra.mxu0 %v2963
    %4220 = vmatprep.subr.bf16.mxu0 %v2972
    %4221 = vmatpush1.bf16.msra.mxu0 %v2971
    %4222 = vmatprep.subr.bf16.mxu0 %v2980
    %4223 = vmatpush1.bf16.msra.mxu0 %v2979
    %4224 = vmatprep.subr.bf16.mxu0 %v2988
    %4225 = vmatpush1.bf16.msra.mxu0 %v2987
    %4226 = vmatprep.subr.bf16.mxu0 %v2996
    %4227 = vmatpush1.bf16.msra.mxu0 %v2995
    %4228 = vmatprep.subr.bf16.mxu0 %v3004
    %4229 = vmatpush1.bf16.msra.mxu0 %v3003
    %4230 = vmatprep.subr.bf16.mxu0 %v3012
    %4231 = vmatpush1.bf16.msra.mxu0 %v3011
    %4232 = vmatprep.subr.bf16.mxu0 %v3020
    %4233 = vmatpush1.bf16.msra.mxu0 %v3019
    %4234 = vmatprep.subr.bf16.mxu0 %v3028
    %4235 = vmatpush1.bf16.msra.mxu0 %v3027
    %4236 = vmatprep.subr.bf16.mxu0 %v3036
    %4237 = vmatpush1.bf16.msra.mxu0 %v3035
    %4238 = vmatprep.subr.bf16.mxu0 %v3044
    %4239 = vmatpush1.bf16.msra.mxu0 %v3043
    %4240 = vmatprep.subr.bf16.mxu0 %v3052
    %4241 = vmatpush1.bf16.msra.mxu0 %v3051
    %4242 = vmatprep.subr.bf16.mxu0 %v3060
    %4243 = vmatpush1.bf16.msra.mxu0 %v3059
    %4244 = vmatprep.subr.bf16.mxu0 %v3068
    %4245 = vmatpush1.bf16.msra.mxu0 %v3067
    %4246 = vmatprep.subr.bf16.mxu0 %v3076
    %4247 = vmatpush1.bf16.msra.mxu0 %v3075
    %4248 = vmatprep.mubr.bf16.mxu0 %v1277
    %4249 = vmatmul.mubr.bf16.gmra.mrb[0].mxu0 %v1275
    %v4250 = vpop.f32.mrb[0].mxu0
    %v4251 = vadd.f32 %v4210, %v4250
    %v4252 = vpop.f32.mrb[0].mxu0
    %v4253 = vadd.f32 %v4212, %v4252
    %v4254 = vpop.f32.mrb[0].mxu0
    %v4255 = vpop.f32.mrb[0].mxu0
    %4256 = vdwg.mxu0
    %4257 = vmatprep.subr.bf16.mxu0 %v3084
    %4258 = vmatpush1.bf16.msra.mxu0 %v3083
    %4259 = vmatprep.subr.bf16.mxu0 %v3092
    %4260 = vmatpush1.bf16.msra.mxu0 %v3091
    %4261 = vmatprep.subr.bf16.mxu0 %v3100
    %4262 = vmatpush1.bf16.msra.mxu0 %v3099
    %4263 = vmatprep.subr.bf16.mxu0 %v3108
    %4264 = vmatpush1.bf16.msra.mxu0 %v3107
    %4265 = vmatprep.subr.bf16.mxu0 %v3116
    %4266 = vmatpush1.bf16.msra.mxu0 %v3115
    %4267 = vmatprep.subr.bf16.mxu0 %v3124
    %4268 = vmatpush1.bf16.msra.mxu0 %v3123
    %4269 = vmatprep.subr.bf16.mxu0 %v3132
    %4270 = vmatpush1.bf16.msra.mxu0 %v3131
    %4271 = vmatprep.subr.bf16.mxu0 %v3140
    %4272 = vmatpush1.bf16.msra.mxu0 %v3139
    %4273 = vmatprep.subr.bf16.mxu0 %v3148
    %4274 = vmatpush1.bf16.msra.mxu0 %v3147
    %4275 = vmatprep.subr.bf16.mxu0 %v3156
    %4276 = vmatpush1.bf16.msra.mxu0 %v3155
    %4277 = vmatprep.subr.bf16.mxu0 %v3164
    %4278 = vmatpush1.bf16.msra.mxu0 %v3163
    %4279 = vmatprep.subr.bf16.mxu0 %v3172
    %4280 = vmatpush1.bf16.msra.mxu0 %v3171
    %4281 = vmatprep.subr.bf16.mxu0 %v3180
    %4282 = vmatpush1.bf16.msra.mxu0 %v3179
    %4283 = vmatprep.subr.bf16.mxu0 %v3188
    %4284 = vmatpush1.bf16.msra.mxu0 %v3187
    %4285 = vmatprep.subr.bf16.mxu0 %v3196
    %4286 = vmatpush1.bf16.msra.mxu0 %v3195
    %4287 = vmatprep.subr.bf16.mxu0 %v3204
    %4288 = vmatpush1.bf16.msra.mxu0 %v3203
    %4289 = vmatprep.mubr.bf16.mxu0 %v1274
    %4290 = vmatmul.mubr.bf16.gmra.mrb[0].mxu0 %v1260
    %v4291 = vpop.f32.mrb[0].mxu0
    %v4292 = vadd.f32 %v4251, %v4291
    %v4293 = vpop.f32.mrb[0].mxu0
    %v4294 = vadd.f32 %v4253, %v4293
    %v4295 = vpop.f32.mrb[0].mxu0
    %v4296 = vpop.f32.mrb[0].mxu0
    %4297 = vdwg.mxu0
    %4298 = vmatprep.subr.bf16.mxu0 %v3212
    %4299 = vmatpush1.bf16.msra.mxu0 %v3211
    %4300 = vmatprep.subr.bf16.mxu0 %v3220
    %4301 = vmatpush1.bf16.msra.mxu0 %v3219
    %4302 = vmatprep.subr.bf16.mxu0 %v3228
    %4303 = vmatpush1.bf16.msra.mxu0 %v3227
    %4304 = vmatprep.subr.bf16.mxu0 %v3236
    %4305 = vmatpush1.bf16.msra.mxu0 %v3235
    %4306 = vmatprep.subr.bf16.mxu0 %v3244
    %4307 = vmatpush1.bf16.msra.mxu0 %v3243
    %4308 = vmatprep.subr.bf16.mxu0 %v3252
    %4309 = vmatpush1.bf16.msra.mxu0 %v3251
    %4310 = vmatprep.subr.bf16.mxu0 %v3260
    %4311 = vmatpush1.bf16.msra.mxu0 %v3259
    %4312 = vmatprep.subr.bf16.mxu0 %v3268
    %4313 = vmatpush1.bf16.msra.mxu0 %v3267
    %4314 = vmatprep.subr.bf16.mxu0 %v3276
    %4315 = vmatpush1.bf16.msra.mxu0 %v3275
    %4316 = vmatprep.subr.bf16.mxu0 %v3284
    %4317 = vmatpush1.bf16.msra.mxu0 %v3283
    %4318 = vmatprep.subr.bf16.mxu0 %v3292
    %4319 = vmatpush1.bf16.msra.mxu0 %v3291
    %4320 = vmatprep.subr.bf16.mxu0 %v3300
    %4321 = vmatpush1.bf16.msra.mxu0 %v3299
    %4322 = vmatprep.subr.bf16.mxu0 %v3308
    %4323 = vmatpush1.bf16.msra.mxu0 %v3307
    %4324 = vmatprep.subr.bf16.mxu0 %v3316
    %4325 = vmatpush1.bf16.msra.mxu0 %v3315
    %4326 = vmatprep.subr.bf16.mxu0 %v3324
    %4327 = vmatpush1.bf16.msra.mxu0 %v3323
    %4328 = vmatprep.subr.bf16.mxu0 %v3332
    %4329 = vmatpush1.bf16.msra.mxu0 %v3331
    %4330 = vmatprep.mubr.bf16.mxu0 %v1278
    %4331 = vmatmul.mubr.bf16.gmra.mrb[0].mxu0 %v1276
    %v4332 = vpop.f32.mrb[0].mxu0
    %v4333 = vadd.f32 %v4292, %v4332
    %v4334 = vpop.f32.mrb[0].mxu0
    %v4335 = vadd.f32 %v4294, %v4334
    %v4336 = vpop.f32.mrb[0].mxu0
    %v4337 = vpop.f32.mrb[0].mxu0
    %4338 = vdwg.mxu0
    %4339 = vmatprep.subr.bf16.mxu0 %v2830
    %4340 = vmatpush1.bf16.msra.mxu0 %v2829
    %4341 = vmatprep.subr.bf16.mxu0 %v2838
    %4342 = vmatpush1.bf16.msra.mxu0 %v2837
    %4343 = vmatprep.subr.bf16.mxu0 %v2846
    %4344 = vmatpush1.bf16.msra.mxu0 %v2845
    %4345 = vmatprep.subr.bf16.mxu0 %v2854
    %4346 = vmatpush1.bf16.msra.mxu0 %v2853
    %4347 = vmatprep.subr.bf16.mxu0 %v2862
    %4348 = vmatpush1.bf16.msra.mxu0 %v2861
    %4349 = vmatprep.subr.bf16.mxu0 %v2870
    %4350 = vmatpush1.bf16.msra.mxu0 %v2869
    %4351 = vmatprep.subr.bf16.mxu0 %v2878
    %4352 = vmatpush1.bf16.msra.mxu0 %v2877
    %4353 = vmatprep.subr.bf16.mxu0 %v2886
    %4354 = vmatpush1.bf16.msra.mxu0 %v2885
    %4355 = vmatprep.subr.bf16.mxu0 %v2894
    %4356 = vmatpush1.bf16.msra.mxu0 %v2893
    %4357 = vmatprep.subr.bf16.mxu0 %v2902
    %4358 = vmatpush1.bf16.msra.mxu0 %v2901
    %4359 = vmatprep.subr.bf16.mxu0 %v2910
    %4360 = vmatpush1.bf16.msra.mxu0 %v2909
    %4361 = vmatprep.subr.bf16.mxu0 %v2918
    %4362 = vmatpush1.bf16.msra.mxu0 %v2917
    %4363 = vmatprep.subr.bf16.mxu0 %v2926
    %4364 = vmatpush1.bf16.msra.mxu0 %v2925
    %4365 = vmatprep.subr.bf16.mxu0 %v2934
    %4366 = vmatpush1.bf16.msra.mxu0 %v2933
    %4367 = vmatprep.subr.bf16.mxu0 %v2942
    %4368 = vmatpush1.bf16.msra.mxu0 %v2941
    %4369 = vmatprep.subr.bf16.mxu0 %v2950
    %4370 = vmatpush1.bf16.msra.mxu0 %v2949
    %4371 = vmatprep.mubr.bf16.mxu0 %v1267
    %4372 = vmatmul.mubr.bf16.gmra.mrb[0].mxu0 %v1253
    %v4373 = vpop.f32.mrb[0].mxu0
    %v4374 = vadd.f32 0.0, %v4373
    %v4375 = vpop.f32.mrb[0].mxu0
    %v4376 = vadd.f32 0.0, %v4375
    %v4377 = vpop.f32.mrb[0].mxu0
    %v4378 = vpop.f32.mrb[0].mxu0
    %4379 = vdwg.mxu0
    %4380 = vmatprep.subr.bf16.mxu0 %v2958
    %4381 = vmatpush1.bf16.msra.mxu0 %v2957
    %4382 = vmatprep.subr.bf16.mxu0 %v2966
    %4383 = vmatpush1.bf16.msra.mxu0 %v2965
    %4384 = vmatprep.subr.bf16.mxu0 %v2974
    %4385 = vmatpush1.bf16.msra.mxu0 %v2973
    %4386 = vmatprep.subr.bf16.mxu0 %v2982
    %4387 = vmatpush1.bf16.msra.mxu0 %v2981
    %4388 = vmatprep.subr.bf16.mxu0 %v2990
    %4389 = vmatpush1.bf16.msra.mxu0 %v2989
    %4390 = vmatprep.subr.bf16.mxu0 %v2998
    %4391 = vmatpush1.bf16.msra.mxu0 %v2997
    %4392 = vmatprep.subr.bf16.mxu0 %v3006
    %4393 = vmatpush1.bf16.msra.mxu0 %v3005
    %4394 = vmatprep.subr.bf16.mxu0 %v3014
    %4395 = vmatpush1.bf16.msra.mxu0 %v3013
    %4396 = vmatprep.subr.bf16.mxu0 %v3022
    %4397 = vmatpush1.bf16.msra.mxu0 %v3021
    %4398 = vmatprep.subr.bf16.mxu0 %v3030
    %4399 = vmatpush1.bf16.msra.mxu0 %v3029
    %4400 = vmatprep.subr.bf16.mxu0 %v3038
    %4401 = vmatpush1.bf16.msra.mxu0 %v3037
    %4402 = vmatprep.subr.bf16.mxu0 %v3046
    %4403 = vmatpush1.bf16.msra.mxu0 %v3045
    %4404 = vmatprep.subr.bf16.mxu0 %v3054
    %4405 = vmatpush1.bf16.msra.mxu0 %v3053
    %4406 = vmatprep.subr.bf16.mxu0 %v3062
    %4407 = vmatpush1.bf16.msra.mxu0 %v3061
    %4408 = vmatprep.subr.bf16.mxu0 %v3070
    %4409 = vmatpush1.bf16.msra.mxu0 %v3069
    %4410 = vmatprep.subr.bf16.mxu0 %v3078
    %4411 = vmatpush1.bf16.msra.mxu0 %v3077
    %4412 = vmatprep.mubr.bf16.mxu0 %v1277
    %4413 = vmatmul.mubr.bf16.gmra.mrb[0].mxu0 %v1275
    %v4414 = vpop.f32.mrb[0].mxu0
    %v4415 = vadd.f32 %v4374, %v4414
    %v4416 = vpop.f32.mrb[0].mxu0
    %v4417 = vadd.f32 %v4376, %v4416
    %v4418 = vpop.f32.mrb[0].mxu0
    %v4419 = vpop.f32.mrb[0].mxu0
    %4420 = vdwg.mxu0
    %4421 = vmatprep.subr.bf16.mxu0 %v3086
    %4422 = vmatpush1.bf16.msra.mxu0 %v3085
    %4423 = vmatprep.subr.bf16.mxu0 %v3094
    %4424 = vmatpush1.bf16.msra.mxu0 %v3093
    %4425 = vmatprep.subr.bf16.mxu0 %v3102
    %4426 = vmatpush1.bf16.msra.mxu0 %v3101
    %4427 = vmatprep.subr.bf16.mxu0 %v3110
    %4428 = vmatpush1.bf16.msra.mxu0 %v3109
    %4429 = vmatprep.subr.bf16.mxu0 %v3118
    %4430 = vmatpush1.bf16.msra.mxu0 %v3117
    %4431 = vmatprep.subr.bf16.mxu0 %v3126
    %4432 = vmatpush1.bf16.msra.mxu0 %v3125
    %4433 = vmatprep.subr.bf16.mxu0 %v3134
    %4434 = vmatpush1.bf16.msra.mxu0 %v3133
    %4435 = vmatprep.subr.bf16.mxu0 %v3142
    %4436 = vmatpush1.bf16.msra.mxu0 %v3141
    %4437 = vmatprep.subr.bf16.mxu0 %v3150
    %4438 = vmatpush1.bf16.msra.mxu0 %v3149
    %4439 = vmatprep.subr.bf16.mxu0 %v3158
    %4440 = vmatpush1.bf16.msra.mxu0 %v3157
    %4441 = vmatprep.subr.bf16.mxu0 %v3166
    %4442 = vmatpush1.bf16.msra.mxu0 %v3165
    %4443 = vmatprep.subr.bf16.mxu0 %v3174
    %4444 = vmatpush1.bf16.msra.mxu0 %v3173
    %4445 = vmatprep.subr.bf16.mxu0 %v3182
    %4446 = vmatpush1.bf16.msra.mxu0 %v3181
    %4447 = vmatprep.subr.bf16.mxu0 %v3190
    %4448 = vmatpush1.bf16.msra.mxu0 %v3189
    %4449 = vmatprep.subr.bf16.mxu0 %v3198
    %4450 = vmatpush1.bf16.msra.mxu0 %v3197
    %4451 = vmatprep.subr.bf16.mxu0 %v3206
    %4452 = vmatpush1.bf16.msra.mxu0 %v3205
    %4453 = vmatprep.mubr.bf16.mxu0 %v1274
    %4454 = vmatmul.mubr.bf16.gmra.mrb[0].mxu0 %v1260
    %v4455 = vpop.f32.mrb[0].mxu0
    %v4456 = vadd.f32 %v4415, %v4455
    %v4457 = vpop.f32.mrb[0].mxu0
    %v4458 = vadd.f32 %v4417, %v4457
    %v4459 = vpop.f32.mrb[0].mxu0
    %v4460 = vpop.f32.mrb[0].mxu0
    %4461 = vdwg.mxu0
    %4462 = vmatprep.subr.bf16.mxu0 %v3214
    %4463 = vmatpush1.bf16.msra.mxu0 %v3213
    %4464 = vmatprep.subr.bf16.mxu0 %v3222
    %4465 = vmatpush1.bf16.msra.mxu0 %v3221
    %4466 = vmatprep.subr.bf16.mxu0 %v3230
    %4467 = vmatpush1.bf16.msra.mxu0 %v3229
    %4468 = vmatprep.subr.bf16.mxu0 %v3238
    %4469 = vmatpush1.bf16.msra.mxu0 %v3237
    %4470 = vmatprep.subr.bf16.mxu0 %v3246
    %4471 = vmatpush1.bf16.msra.mxu0 %v3245
    %4472 = vmatprep.subr.bf16.mxu0 %v3254
    %4473 = vmatpush1.bf16.msra.mxu0 %v3253
    %4474 = vmatprep.subr.bf16.mxu0 %v3262
    %4475 = vmatpush1.bf16.msra.mxu0 %v3261
    %4476 = vmatprep.subr.bf16.mxu0 %v3270
    %4477 = vmatpush1.bf16.msra.mxu0 %v3269
    %4478 = vmatprep.subr.bf16.mxu0 %v3278
    %4479 = vmatpush1.bf16.msra.mxu0 %v3277
    %4480 = vmatprep.subr.bf16.mxu0 %v3286
    %4481 = vmatpush1.bf16.msra.mxu0 %v3285
    %4482 = vmatprep.subr.bf16.mxu0 %v3294
    %4483 = vmatpush1.bf16.msra.mxu0 %v3293
    %4484 = vmatprep.subr.bf16.mxu0 %v3302
    %4485 = vmatpush1.bf16.msra.mxu0 %v3301
    %4486 = vmatprep.subr.bf16.mxu0 %v3310
    %4487 = vmatpush1.bf16.msra.mxu0 %v3309
    %4488 = vmatprep.subr.bf16.mxu0 %v3318
    %4489 = vmatpush1.bf16.msra.mxu0 %v3317
    %4490 = vmatprep.subr.bf16.mxu0 %v3326
    %4491 = vmatpush1.bf16.msra.mxu0 %v3325
    %4492 = vmatprep.subr.bf16.mxu0 %v3334
    %4493 = vmatpush1.bf16.msra.mxu0 %v3333
    %4494 = vmatprep.mubr.bf16.mxu0 %v1278
    %4495 = vmatmul.mubr.bf16.gmra.mrb[0].mxu0 %v1276
    %v4496 = vpop.f32.mrb[0].mxu0
    %v4497 = vadd.f32 %v4456, %v4496
    %v4498 = vpop.f32.mrb[0].mxu0
    %v4499 = vadd.f32 %v4458, %v4498
    %v4500 = vpop.f32.mrb[0].mxu0
    %v4501 = vpop.f32.mrb[0].mxu0
    %4502 = vdwg.mxu0
    %v4511 = vcombine.low %v4005, %v4007
    %v4512 = vcombine.low %v4169, %v4171
    %v4514 = vunpack.c.l.s4 1983009808
    %v4515 = vunpack.c.0.s8 %v4514
    %v4516 = vlaneseq
    %v4517 = vshrl.u32 %v4516, 7
    %v4518 = vsub.s32 %v4515, %v4517
    %v4519 = vrot.slane %v4511, %v4518
    %v4521 = vunpack.c.l.s4 1983009808
    %v4522 = vunpack.c.0.s8 %v4521
    %v4523 = vlaneseq
    %v4524 = vshrl.u32 %v4523, 7
    %v4525 = vsub.s32 %v4522, %v4524
    %v4526 = vrot.slane %v4512, %v4525
    %v4527 = vcombine.low %v4519, %v4526
    %v4528 = vcombine.low %v4333, %v4335
    %v4529 = vcombine.low %v4497, %v4499
    %v4531 = vunpack.c.l.s4 1983009808
    %v4532 = vunpack.c.0.s8 %v4531
    %v4533 = vlaneseq
    %v4534 = vshrl.u32 %v4533, 7
    %v4535 = vsub.s32 %v4532, %v4534
    %v4536 = vrot.slane %v4528, %v4535
    %v4538 = vunpack.c.l.s4 1983009808
    %v4539 = vunpack.c.0.s8 %v4538
    %v4540 = vlaneseq
    %v4541 = vshrl.u32 %v4540, 7
    %v4542 = vsub.s32 %v4539, %v4541
    %v4543 = vrot.slane %v4529, %v4542
    %v4544 = vcombine.low %v4536, %v4543
    %v4547 = vadd.f32 %v1227, %v4527
    %v4548 = vadd.f32 %v1228, %v4544
    %4549 = vst [vmem:[#allocation2] sm:$0xff] %v4547
    %4550 = vst [vmem:[#allocation2 + $0x8] sm:$0xff] %v4548
    %v4551 = vld [vmem:[#allocation2 + $0x10] sm:$0xff]
    %v4552 = vld [vmem:[#allocation2 + $0x18] sm:$0xff]
    %v4554 = vcombine.high %v1226, %v1226
    %v4556 = vunpack.c.l.s4 1966171168
    %v4557 = vunpack.c.0.s8 %v4556
    %v4558 = vlaneseq
    %v4559 = vshrl.u32 %v4558, 7
    %v4560 = vsub.s32 %v4557, %v4559
    %v4561 = vrot.slane %v1226, %v4560
    %v4563 = vunpack.c.l.s4 1966171168
    %v4564 = vunpack.c.0.s8 %v4563
    %v4565 = vlaneseq
    %v4566 = vshrl.u32 %v4565, 7
    %v4567 = vsub.s32 %v4564, %v4566
    %v4568 = vrot.slane %v4554, %v4567
    %v4569 = vcombine.high %v4561, %v4561
    %v4570 = vcombine.high %v4568, %v4568
    %v4572 = vunpack.c.l.s4 1966171168
    %v4573 = vunpack.c.0.s8 %v4572
    %v4574 = vlaneseq
    %v4575 = vshrl.u32 %v4574, 7
    %v4576 = vsub.s32 %v4573, %v4575
    %v4577 = vrot.slane %v4561, %v4576
    %v4579 = vunpack.c.l.s4 1966171168
    %v4580 = vunpack.c.0.s8 %v4579
    %v4581 = vlaneseq
    %v4582 = vshrl.u32 %v4581, 7
    %v4583 = vsub.s32 %v4580, %v4582
    %v4584 = vrot.slane %v4568, %v4583
    %v4586 = vunpack.c.l.s4 1966171168
    %v4587 = vunpack.c.0.s8 %v4586
    %v4588 = vlaneseq
    %v4589 = vshrl.u32 %v4588, 7
    %v4590 = vsub.s32 %v4587, %v4589
    %v4591 = vrot.slane %v4569, %v4590
    %v4593 = vunpack.c.l.s4 1966171168
    %v4594 = vunpack.c.0.s8 %v4593
    %v4595 = vlaneseq
    %v4596 = vshrl.u32 %v4595, 7
    %v4597 = vsub.s32 %v4594, %v4596
    %v4598 = vrot.slane %v4570, %v4597
    %v4599 = vcombine.high %v4577, %v4577
    %v4600 = vcombine.high %v4584, %v4584
    %v4601 = vcombine.high %v4591, %v4591
    %v4602 = vcombine.high %v4598, %v4598
    %v5123 = vunpack.c.l.b16 %v202
    %v5124 = vunpack.c.h.b16 %v202
    %v5125 = vunpack.c.l.b16 %v203
    %v5126 = vunpack.c.h.b16 %v203
    %v5127 = vunpack.c.l.b16 %v204
    %v5128 = vunpack.c.h.b16 %v204
    %v5129 = vunpack.c.l.b16 %v205
    %v5130 = vunpack.c.h.b16 %v205
    %v5131 = vunpack.c.l.b16 %v210
    %v5132 = vunpack.c.h.b16 %v210
    %v5133 = vunpack.c.l.b16 %v211
    %v5134 = vunpack.c.h.b16 %v211
    %v5135 = vunpack.c.l.b16 %v212
    %v5136 = vunpack.c.h.b16 %v212
    %v5137 = vunpack.c.l.b16 %v213
    %v5138 = vunpack.c.h.b16 %v213
    %v5139 = vunpack.c.l.b16 %v218
    %v5140 = vunpack.c.h.b16 %v218
    %v5141 = vunpack.c.l.b16 %v219
    %v5142 = vunpack.c.h.b16 %v219
    %v5143 = vunpack.c.l.b16 %v220
    %v5144 = vunpack.c.h.b16 %v220
    %v5145 = vunpack.c.l.b16 %v221
    %v5146 = vunpack.c.h.b16 %v221
    %v5147 = vunpack.c.l.b16 %v226
    %v5148 = vunpack.c.h.b16 %v226
    %v5149 = vunpack.c.l.b16 %v227
    %v5150 = vunpack.c.h.b16 %v227
    %v5151 = vunpack.c.l.b16 %v228
    %v5152 = vunpack.c.h.b16 %v228
    %v5153 = vunpack.c.l.b16 %v229
    %v5154 = vunpack.c.h.b16 %v229
    %v5155 = vunpack.c.l.b16 %v234
    %v5156 = vunpack.c.h.b16 %v234
    %v5157 = vunpack.c.l.b16 %v235
    %v5158 = vunpack.c.h.b16 %v235
    %v5159 = vunpack.c.l.b16 %v236
    %v5160 = vunpack.c.h.b16 %v236
    %v5161 = vunpack.c.l.b16 %v237
    %v5162 = vunpack.c.h.b16 %v237
    %v5163 = vunpack.c.l.b16 %v242
    %v5164 = vunpack.c.h.b16 %v242
    %v5165 = vunpack.c.l.b16 %v243
    %v5166 = vunpack.c.h.b16 %v243
    %v5167 = vunpack.c.l.b16 %v244
    %v5168 = vunpack.c.h.b16 %v244
    %v5169 = vunpack.c.l.b16 %v245
    %v5170 = vunpack.c.h.b16 %v245
    %v5171 = vunpack.c.l.b16 %v250
    %v5172 = vunpack.c.h.b16 %v250
    %v5173 = vunpack.c.l.b16 %v251
    %v5174 = vunpack.c.h.b16 %v251
    %v5175 = vunpack.c.l.b16 %v252
    %v5176 = vunpack.c.h.b16 %v252
    %v5177 = vunpack.c.l.b16 %v253
    %v5178 = vunpack.c.h.b16 %v253
    %v5179 = vunpack.c.l.b16 %v258
    %v5180 = vunpack.c.h.b16 %v258
    %v5181 = vunpack.c.l.b16 %v259
    %v5182 = vunpack.c.h.b16 %v259
    %v5183 = vunpack.c.l.b16 %v260
    %v5184 = vunpack.c.h.b16 %v260
    %v5185 = vunpack.c.l.b16 %v261
    %v5186 = vunpack.c.h.b16 %v261
    %v5187 = vunpack.c.l.b16 %v266
    %v5188 = vunpack.c.h.b16 %v266
    %v5189 = vunpack.c.l.b16 %v267
    %v5190 = vunpack.c.h.b16 %v267
    %v5191 = vunpack.c.l.b16 %v268
    %v5192 = vunpack.c.h.b16 %v268
    %v5193 = vunpack.c.l.b16 %v269
    %v5194 = vunpack.c.h.b16 %v269
    %v5195 = vunpack.c.l.b16 %v274
    %v5196 = vunpack.c.h.b16 %v274
    %v5197 = vunpack.c.l.b16 %v275
    %v5198 = vunpack.c.h.b16 %v275
    %v5199 = vunpack.c.l.b16 %v276
    %v5200 = vunpack.c.h.b16 %v276
    %v5201 = vunpack.c.l.b16 %v277
    %v5202 = vunpack.c.h.b16 %v277
    %v5203 = vunpack.c.l.b16 %v282
    %v5204 = vunpack.c.h.b16 %v282
    %v5205 = vunpack.c.l.b16 %v283
    %v5206 = vunpack.c.h.b16 %v283
    %v5207 = vunpack.c.l.b16 %v284
    %v5208 = vunpack.c.h.b16 %v284
    %v5209 = vunpack.c.l.b16 %v285
    %v5210 = vunpack.c.h.b16 %v285
    %v5211 = vunpack.c.l.b16 %v290
    %v5212 = vunpack.c.h.b16 %v290
    %v5213 = vunpack.c.l.b16 %v291
    %v5214 = vunpack.c.h.b16 %v291
    %v5215 = vunpack.c.l.b16 %v292
    %v5216 = vunpack.c.h.b16 %v292
    %v5217 = vunpack.c.l.b16 %v293
    %v5218 = vunpack.c.h.b16 %v293
    %v5219 = vunpack.c.l.b16 %v298
    %v5220 = vunpack.c.h.b16 %v298
    %v5221 = vunpack.c.l.b16 %v299
    %v5222 = vunpack.c.h.b16 %v299
    %v5223 = vunpack.c.l.b16 %v300
    %v5224 = vunpack.c.h.b16 %v300
    %v5225 = vunpack.c.l.b16 %v301
    %v5226 = vunpack.c.h.b16 %v301
    %v5227 = vunpack.c.l.b16 %v306
    %v5228 = vunpack.c.h.b16 %v306
    %v5229 = vunpack.c.l.b16 %v307
    %v5230 = vunpack.c.h.b16 %v307
    %v5231 = vunpack.c.l.b16 %v308
    %v5232 = vunpack.c.h.b16 %v308
    %v5233 = vunpack.c.l.b16 %v309
    %v5234 = vunpack.c.h.b16 %v309
    %v5235 = vunpack.c.l.b16 %v314
    %v5236 = vunpack.c.h.b16 %v314
    %v5237 = vunpack.c.l.b16 %v315
    %v5238 = vunpack.c.h.b16 %v315
    %v5239 = vunpack.c.l.b16 %v316
    %v5240 = vunpack.c.h.b16 %v316
    %v5241 = vunpack.c.l.b16 %v317
    %v5242 = vunpack.c.h.b16 %v317
    %v5243 = vunpack.c.l.b16 %v322
    %v5244 = vunpack.c.h.b16 %v322
    %v5245 = vunpack.c.l.b16 %v323
    %v5246 = vunpack.c.h.b16 %v323
    %v5247 = vunpack.c.l.b16 %v324
    %v5248 = vunpack.c.h.b16 %v324
    %v5249 = vunpack.c.l.b16 %v325
    %v5250 = vunpack.c.h.b16 %v325
    %v5251 = vunpack.c.l.b16 %v330
    %v5252 = vunpack.c.h.b16 %v330
    %v5253 = vunpack.c.l.b16 %v331
    %v5254 = vunpack.c.h.b16 %v331
    %v5255 = vunpack.c.l.b16 %v332
    %v5256 = vunpack.c.h.b16 %v332
    %v5257 = vunpack.c.l.b16 %v333
    %v5258 = vunpack.c.h.b16 %v333
    %v5259 = vunpack.c.l.b16 %v338
    %v5260 = vunpack.c.h.b16 %v338
    %v5261 = vunpack.c.l.b16 %v339
    %v5262 = vunpack.c.h.b16 %v339
    %v5263 = vunpack.c.l.b16 %v340
    %v5264 = vunpack.c.h.b16 %v340
    %v5265 = vunpack.c.l.b16 %v341
    %v5266 = vunpack.c.h.b16 %v341
    %v5267 = vunpack.c.l.b16 %v346
    %v5268 = vunpack.c.h.b16 %v346
    %v5269 = vunpack.c.l.b16 %v347
    %v5270 = vunpack.c.h.b16 %v347
    %v5271 = vunpack.c.l.b16 %v348
    %v5272 = vunpack.c.h.b16 %v348
    %v5273 = vunpack.c.l.b16 %v349
    %v5274 = vunpack.c.h.b16 %v349
    %v5275 = vunpack.c.l.b16 %v354
    %v5276 = vunpack.c.h.b16 %v354
    %v5277 = vunpack.c.l.b16 %v355
    %v5278 = vunpack.c.h.b16 %v355
    %v5279 = vunpack.c.l.b16 %v356
    %v5280 = vunpack.c.h.b16 %v356
    %v5281 = vunpack.c.l.b16 %v357
    %v5282 = vunpack.c.h.b16 %v357
    %v5283 = vunpack.c.l.b16 %v362
    %v5284 = vunpack.c.h.b16 %v362
    %v5285 = vunpack.c.l.b16 %v363
    %v5286 = vunpack.c.h.b16 %v363
    %v5287 = vunpack.c.l.b16 %v364
    %v5288 = vunpack.c.h.b16 %v364
    %v5289 = vunpack.c.l.b16 %v365
    %v5290 = vunpack.c.h.b16 %v365
    %v5291 = vunpack.c.l.b16 %v370
    %v5292 = vunpack.c.h.b16 %v370
    %v5293 = vunpack.c.l.b16 %v371
    %v5294 = vunpack.c.h.b16 %v371
    %v5295 = vunpack.c.l.b16 %v372
    %v5296 = vunpack.c.h.b16 %v372
    %v5297 = vunpack.c.l.b16 %v373
    %v5298 = vunpack.c.h.b16 %v373
    %v5299 = vunpack.c.l.b16 %v378
    %v5300 = vunpack.c.h.b16 %v378
    %v5301 = vunpack.c.l.b16 %v379
    %v5302 = vunpack.c.h.b16 %v379
    %v5303 = vunpack.c.l.b16 %v380
    %v5304 = vunpack.c.h.b16 %v380
    %v5305 = vunpack.c.l.b16 %v381
    %v5306 = vunpack.c.h.b16 %v381
    %v5307 = vunpack.c.l.b16 %v386
    %v5308 = vunpack.c.h.b16 %v386
    %v5309 = vunpack.c.l.b16 %v387
    %v5310 = vunpack.c.h.b16 %v387
    %v5311 = vunpack.c.l.b16 %v388
    %v5312 = vunpack.c.h.b16 %v388
    %v5313 = vunpack.c.l.b16 %v389
    %v5314 = vunpack.c.h.b16 %v389
    %v5315 = vunpack.c.l.b16 %v394
    %v5316 = vunpack.c.h.b16 %v394
    %v5317 = vunpack.c.l.b16 %v395
    %v5318 = vunpack.c.h.b16 %v395
    %v5319 = vunpack.c.l.b16 %v396
    %v5320 = vunpack.c.h.b16 %v396
    %v5321 = vunpack.c.l.b16 %v397
    %v5322 = vunpack.c.h.b16 %v397
    %v5323 = vunpack.c.l.b16 %v402
    %v5324 = vunpack.c.h.b16 %v402
    %v5325 = vunpack.c.l.b16 %v403
    %v5326 = vunpack.c.h.b16 %v403
    %v5327 = vunpack.c.l.b16 %v404
    %v5328 = vunpack.c.h.b16 %v404
    %v5329 = vunpack.c.l.b16 %v405
    %v5330 = vunpack.c.h.b16 %v405
    %v5331 = vunpack.c.l.b16 %v410
    %v5332 = vunpack.c.h.b16 %v410
    %v5333 = vunpack.c.l.b16 %v411
    %v5334 = vunpack.c.h.b16 %v411
    %v5335 = vunpack.c.l.b16 %v412
    %v5336 = vunpack.c.h.b16 %v412
    %v5337 = vunpack.c.l.b16 %v413
    %v5338 = vunpack.c.h.b16 %v413
    %v5339 = vunpack.c.l.b16 %v418
    %v5340 = vunpack.c.h.b16 %v418
    %v5341 = vunpack.c.l.b16 %v419
    %v5342 = vunpack.c.h.b16 %v419
    %v5343 = vunpack.c.l.b16 %v420
    %v5344 = vunpack.c.h.b16 %v420
    %v5345 = vunpack.c.l.b16 %v421
    %v5346 = vunpack.c.h.b16 %v421
    %v5347 = vunpack.c.l.b16 %v426
    %v5348 = vunpack.c.h.b16 %v426
    %v5349 = vunpack.c.l.b16 %v427
    %v5350 = vunpack.c.h.b16 %v427
    %v5351 = vunpack.c.l.b16 %v428
    %v5352 = vunpack.c.h.b16 %v428
    %v5353 = vunpack.c.l.b16 %v429
    %v5354 = vunpack.c.h.b16 %v429
    %v5355 = vunpack.c.l.b16 %v434
    %v5356 = vunpack.c.h.b16 %v434
    %v5357 = vunpack.c.l.b16 %v435
    %v5358 = vunpack.c.h.b16 %v435
    %v5359 = vunpack.c.l.b16 %v436
    %v5360 = vunpack.c.h.b16 %v436
    %v5361 = vunpack.c.l.b16 %v437
    %v5362 = vunpack.c.h.b16 %v437
    %v5363 = vunpack.c.l.b16 %v442
    %v5364 = vunpack.c.h.b16 %v442
    %v5365 = vunpack.c.l.b16 %v443
    %v5366 = vunpack.c.h.b16 %v443
    %v5367 = vunpack.c.l.b16 %v444
    %v5368 = vunpack.c.h.b16 %v444
    %v5369 = vunpack.c.l.b16 %v445
    %v5370 = vunpack.c.h.b16 %v445
    %v5371 = vunpack.c.l.b16 %v450
    %v5372 = vunpack.c.h.b16 %v450
    %v5373 = vunpack.c.l.b16 %v451
    %v5374 = vunpack.c.h.b16 %v451
    %v5375 = vunpack.c.l.b16 %v452
    %v5376 = vunpack.c.h.b16 %v452
    %v5377 = vunpack.c.l.b16 %v453
    %v5378 = vunpack.c.h.b16 %v453
    %v5379 = vunpack.c.l.b16 %v458
    %v5380 = vunpack.c.h.b16 %v458
    %v5381 = vunpack.c.l.b16 %v459
    %v5382 = vunpack.c.h.b16 %v459
    %v5383 = vunpack.c.l.b16 %v460
    %v5384 = vunpack.c.h.b16 %v460
    %v5385 = vunpack.c.l.b16 %v461
    %v5386 = vunpack.c.h.b16 %v461
    %v5387 = vunpack.c.l.b16 %v466
    %v5388 = vunpack.c.h.b16 %v466
    %v5389 = vunpack.c.l.b16 %v467
    %v5390 = vunpack.c.h.b16 %v467
    %v5391 = vunpack.c.l.b16 %v468
    %v5392 = vunpack.c.h.b16 %v468
    %v5393 = vunpack.c.l.b16 %v469
    %v5394 = vunpack.c.h.b16 %v469
    %v5395 = vunpack.c.l.b16 %v474
    %v5396 = vunpack.c.h.b16 %v474
    %v5397 = vunpack.c.l.b16 %v475
    %v5398 = vunpack.c.h.b16 %v475
    %v5399 = vunpack.c.l.b16 %v476
    %v5400 = vunpack.c.h.b16 %v476
    %v5401 = vunpack.c.l.b16 %v477
    %v5402 = vunpack.c.h.b16 %v477
    %v5403 = vunpack.c.l.b16 %v482
    %v5404 = vunpack.c.h.b16 %v482
    %v5405 = vunpack.c.l.b16 %v483
    %v5406 = vunpack.c.h.b16 %v483
    %v5407 = vunpack.c.l.b16 %v484
    %v5408 = vunpack.c.h.b16 %v484
    %v5409 = vunpack.c.l.b16 %v485
    %v5410 = vunpack.c.h.b16 %v485
    %v5411 = vunpack.c.l.b16 %v490
    %v5412 = vunpack.c.h.b16 %v490
    %v5413 = vunpack.c.l.b16 %v491
    %v5414 = vunpack.c.h.b16 %v491
    %v5415 = vunpack.c.l.b16 %v492
    %v5416 = vunpack.c.h.b16 %v492
    %v5417 = vunpack.c.l.b16 %v493
    %v5418 = vunpack.c.h.b16 %v493
    %v5419 = vunpack.c.l.b16 %v498
    %v5420 = vunpack.c.h.b16 %v498
    %v5421 = vunpack.c.l.b16 %v499
    %v5422 = vunpack.c.h.b16 %v499
    %v5423 = vunpack.c.l.b16 %v500
    %v5424 = vunpack.c.h.b16 %v500
    %v5425 = vunpack.c.l.b16 %v501
    %v5426 = vunpack.c.h.b16 %v501
    %v5427 = vunpack.c.l.b16 %v506
    %v5428 = vunpack.c.h.b16 %v506
    %v5429 = vunpack.c.l.b16 %v507
    %v5430 = vunpack.c.h.b16 %v507
    %v5431 = vunpack.c.l.b16 %v508
    %v5432 = vunpack.c.h.b16 %v508
    %v5433 = vunpack.c.l.b16 %v509
    %v5434 = vunpack.c.h.b16 %v509
    %v5435 = vunpack.c.l.b16 %v514
    %v5436 = vunpack.c.h.b16 %v514
    %v5437 = vunpack.c.l.b16 %v515
    %v5438 = vunpack.c.h.b16 %v515
    %v5439 = vunpack.c.l.b16 %v516
    %v5440 = vunpack.c.h.b16 %v516
    %v5441 = vunpack.c.l.b16 %v517
    %v5442 = vunpack.c.h.b16 %v517
    %v5443 = vunpack.c.l.b16 %v522
    %v5444 = vunpack.c.h.b16 %v522
    %v5445 = vunpack.c.l.b16 %v523
    %v5446 = vunpack.c.h.b16 %v523
    %v5447 = vunpack.c.l.b16 %v524
    %v5448 = vunpack.c.h.b16 %v524
    %v5449 = vunpack.c.l.b16 %v525
    %v5450 = vunpack.c.h.b16 %v525
    %v5451 = vunpack.c.l.b16 %v530
    %v5452 = vunpack.c.h.b16 %v530
    %v5453 = vunpack.c.l.b16 %v531
    %v5454 = vunpack.c.h.b16 %v531
    %v5455 = vunpack.c.l.b16 %v532
    %v5456 = vunpack.c.h.b16 %v532
    %v5457 = vunpack.c.l.b16 %v533
    %v5458 = vunpack.c.h.b16 %v533
    %v5459 = vunpack.c.l.b16 %v538
    %v5460 = vunpack.c.h.b16 %v538
    %v5461 = vunpack.c.l.b16 %v539
    %v5462 = vunpack.c.h.b16 %v539
    %v5463 = vunpack.c.l.b16 %v540
    %v5464 = vunpack.c.h.b16 %v540
    %v5465 = vunpack.c.l.b16 %v541
    %v5466 = vunpack.c.h.b16 %v541
    %v5467 = vunpack.c.l.b16 %v546
    %v5468 = vunpack.c.h.b16 %v546
    %v5469 = vunpack.c.l.b16 %v547
    %v5470 = vunpack.c.h.b16 %v547
    %v5471 = vunpack.c.l.b16 %v548
    %v5472 = vunpack.c.h.b16 %v548
    %v5473 = vunpack.c.l.b16 %v549
    %v5474 = vunpack.c.h.b16 %v549
    %v5475 = vunpack.c.l.b16 %v554
    %v5476 = vunpack.c.h.b16 %v554
    %v5477 = vunpack.c.l.b16 %v555
    %v5478 = vunpack.c.h.b16 %v555
    %v5479 = vunpack.c.l.b16 %v556
    %v5480 = vunpack.c.h.b16 %v556
    %v5481 = vunpack.c.l.b16 %v557
    %v5482 = vunpack.c.h.b16 %v557
    %v5483 = vunpack.c.l.b16 %v562
    %v5484 = vunpack.c.h.b16 %v562
    %v5485 = vunpack.c.l.b16 %v563
    %v5486 = vunpack.c.h.b16 %v563
    %v5487 = vunpack.c.l.b16 %v564
    %v5488 = vunpack.c.h.b16 %v564
    %v5489 = vunpack.c.l.b16 %v565
    %v5490 = vunpack.c.h.b16 %v565
    %v5491 = vunpack.c.l.b16 %v570
    %v5492 = vunpack.c.h.b16 %v570
    %v5493 = vunpack.c.l.b16 %v571
    %v5494 = vunpack.c.h.b16 %v571
    %v5495 = vunpack.c.l.b16 %v572
    %v5496 = vunpack.c.h.b16 %v572
    %v5497 = vunpack.c.l.b16 %v573
    %v5498 = vunpack.c.h.b16 %v573
    %v5499 = vunpack.c.l.b16 %v578
    %v5500 = vunpack.c.h.b16 %v578
    %v5501 = vunpack.c.l.b16 %v579
    %v5502 = vunpack.c.h.b16 %v579
    %v5503 = vunpack.c.l.b16 %v580
    %v5504 = vunpack.c.h.b16 %v580
    %v5505 = vunpack.c.l.b16 %v581
    %v5506 = vunpack.c.h.b16 %v581
    %v5507 = vunpack.c.l.b16 %v586
    %v5508 = vunpack.c.h.b16 %v586
    %v5509 = vunpack.c.l.b16 %v587
    %v5510 = vunpack.c.h.b16 %v587
    %v5511 = vunpack.c.l.b16 %v588
    %v5512 = vunpack.c.h.b16 %v588
    %v5513 = vunpack.c.l.b16 %v589
    %v5514 = vunpack.c.h.b16 %v589
    %v5515 = vunpack.c.l.b16 %v594
    %v5516 = vunpack.c.h.b16 %v594
    %v5517 = vunpack.c.l.b16 %v595
    %v5518 = vunpack.c.h.b16 %v595
    %v5519 = vunpack.c.l.b16 %v596
    %v5520 = vunpack.c.h.b16 %v596
    %v5521 = vunpack.c.l.b16 %v597
    %v5522 = vunpack.c.h.b16 %v597
    %v5523 = vunpack.c.l.b16 %v602
    %v5524 = vunpack.c.h.b16 %v602
    %v5525 = vunpack.c.l.b16 %v603
    %v5526 = vunpack.c.h.b16 %v603
    %v5527 = vunpack.c.l.b16 %v604
    %v5528 = vunpack.c.h.b16 %v604
    %v5529 = vunpack.c.l.b16 %v605
    %v5530 = vunpack.c.h.b16 %v605
    %v5531 = vunpack.c.l.b16 %v610
    %v5532 = vunpack.c.h.b16 %v610
    %v5533 = vunpack.c.l.b16 %v611
    %v5534 = vunpack.c.h.b16 %v611
    %v5535 = vunpack.c.l.b16 %v612
    %v5536 = vunpack.c.h.b16 %v612
    %v5537 = vunpack.c.l.b16 %v613
    %v5538 = vunpack.c.h.b16 %v613
    %v5539 = vunpack.c.l.b16 %v618
    %v5540 = vunpack.c.h.b16 %v618
    %v5541 = vunpack.c.l.b16 %v619
    %v5542 = vunpack.c.h.b16 %v619
    %v5543 = vunpack.c.l.b16 %v620
    %v5544 = vunpack.c.h.b16 %v620
    %v5545 = vunpack.c.l.b16 %v621
    %v5546 = vunpack.c.h.b16 %v621
    %v5547 = vunpack.c.l.b16 %v626
    %v5548 = vunpack.c.h.b16 %v626
    %v5549 = vunpack.c.l.b16 %v627
    %v5550 = vunpack.c.h.b16 %v627
    %v5551 = vunpack.c.l.b16 %v628
    %v5552 = vunpack.c.h.b16 %v628
    %v5553 = vunpack.c.l.b16 %v629
    %v5554 = vunpack.c.h.b16 %v629
    %v5555 = vunpack.c.l.b16 %v634
    %v5556 = vunpack.c.h.b16 %v634
    %v5557 = vunpack.c.l.b16 %v635
    %v5558 = vunpack.c.h.b16 %v635
    %v5559 = vunpack.c.l.b16 %v636
    %v5560 = vunpack.c.h.b16 %v636
    %v5561 = vunpack.c.l.b16 %v637
    %v5562 = vunpack.c.h.b16 %v637
    %v5563 = vunpack.c.l.b16 %v642
    %v5564 = vunpack.c.h.b16 %v642
    %v5565 = vunpack.c.l.b16 %v643
    %v5566 = vunpack.c.h.b16 %v643
    %v5567 = vunpack.c.l.b16 %v644
    %v5568 = vunpack.c.h.b16 %v644
    %v5569 = vunpack.c.l.b16 %v645
    %v5570 = vunpack.c.h.b16 %v645
    %v5571 = vunpack.c.l.b16 %v650
    %v5572 = vunpack.c.h.b16 %v650
    %v5573 = vunpack.c.l.b16 %v651
    %v5574 = vunpack.c.h.b16 %v651
    %v5575 = vunpack.c.l.b16 %v652
    %v5576 = vunpack.c.h.b16 %v652
    %v5577 = vunpack.c.l.b16 %v653
    %v5578 = vunpack.c.h.b16 %v653
    %v5579 = vunpack.c.l.b16 %v658
    %v5580 = vunpack.c.h.b16 %v658
    %v5581 = vunpack.c.l.b16 %v659
    %v5582 = vunpack.c.h.b16 %v659
    %v5583 = vunpack.c.l.b16 %v660
    %v5584 = vunpack.c.h.b16 %v660
    %v5585 = vunpack.c.l.b16 %v661
    %v5586 = vunpack.c.h.b16 %v661
    %v5587 = vunpack.c.l.b16 %v666
    %v5588 = vunpack.c.h.b16 %v666
    %v5589 = vunpack.c.l.b16 %v667
    %v5590 = vunpack.c.h.b16 %v667
    %v5591 = vunpack.c.l.b16 %v668
    %v5592 = vunpack.c.h.b16 %v668
    %v5593 = vunpack.c.l.b16 %v669
    %v5594 = vunpack.c.h.b16 %v669
    %v5595 = vunpack.c.l.b16 %v674
    %v5596 = vunpack.c.h.b16 %v674
    %v5597 = vunpack.c.l.b16 %v675
    %v5598 = vunpack.c.h.b16 %v675
    %v5599 = vunpack.c.l.b16 %v676
    %v5600 = vunpack.c.h.b16 %v676
    %v5601 = vunpack.c.l.b16 %v677
    %v5602 = vunpack.c.h.b16 %v677
    %v5603 = vunpack.c.l.b16 %v682
    %v5604 = vunpack.c.h.b16 %v682
    %v5605 = vunpack.c.l.b16 %v683
    %v5606 = vunpack.c.h.b16 %v683
    %v5607 = vunpack.c.l.b16 %v684
    %v5608 = vunpack.c.h.b16 %v684
    %v5609 = vunpack.c.l.b16 %v685
    %v5610 = vunpack.c.h.b16 %v685
    %v5611 = vunpack.c.l.b16 %v690
    %v5612 = vunpack.c.h.b16 %v690
    %v5613 = vunpack.c.l.b16 %v691
    %v5614 = vunpack.c.h.b16 %v691
    %v5615 = vunpack.c.l.b16 %v692
    %v5616 = vunpack.c.h.b16 %v692
    %v5617 = vunpack.c.l.b16 %v693
    %v5618 = vunpack.c.h.b16 %v693
    %v5619 = vunpack.c.l.b16 %v698
    %v5620 = vunpack.c.h.b16 %v698
    %v5621 = vunpack.c.l.b16 %v699
    %v5622 = vunpack.c.h.b16 %v699
    %v5623 = vunpack.c.l.b16 %v700
    %v5624 = vunpack.c.h.b16 %v700
    %v5625 = vunpack.c.l.b16 %v701
    %v5626 = vunpack.c.h.b16 %v701
    %v5627 = vunpack.c.l.b16 %v706
    %v5628 = vunpack.c.h.b16 %v706
    %v5629 = vunpack.c.l.b16 %v707
    %v5630 = vunpack.c.h.b16 %v707
    %v5631 = vunpack.c.l.b16 %v708
    %v5632 = vunpack.c.h.b16 %v708
    %v5633 = vunpack.c.l.b16 %v709
    %v5634 = vunpack.c.h.b16 %v709
    %v5635 = vunpack.c.l.b16 %v714
    %v5636 = vunpack.c.h.b16 %v714
    %v5637 = vunpack.c.l.b16 %v715
    %v5638 = vunpack.c.h.b16 %v715
    %v5639 = vunpack.c.l.b16 %v716
    %v5640 = vunpack.c.h.b16 %v716
    %v5641 = vunpack.c.l.b16 %v717
    %v5642 = vunpack.c.h.b16 %v717
    %v5643 = vunpack.c.l.b16 %v722
    %v5644 = vunpack.c.h.b16 %v722
    %v5645 = vunpack.c.l.b16 %v723
    %v5646 = vunpack.c.h.b16 %v723
    %v5647 = vunpack.c.l.b16 %v724
    %v5648 = vunpack.c.h.b16 %v724
    %v5649 = vunpack.c.l.b16 %v725
    %v5650 = vunpack.c.h.b16 %v725
    %v5651 = vunpack.c.l.b16 %v730
    %v5652 = vunpack.c.h.b16 %v730
    %v5653 = vunpack.c.l.b16 %v731
    %v5654 = vunpack.c.h.b16 %v731
    %v5655 = vunpack.c.l.b16 %v732
    %v5656 = vunpack.c.h.b16 %v732
    %v5657 = vunpack.c.l.b16 %v733
    %v5658 = vunpack.c.h.b16 %v733
    %v5659 = vunpack.c.l.b16 %v738
    %v5660 = vunpack.c.h.b16 %v738
    %v5661 = vunpack.c.l.b16 %v739
    %v5662 = vunpack.c.h.b16 %v739
    %v5663 = vunpack.c.l.b16 %v740
    %v5664 = vunpack.c.h.b16 %v740
    %v5665 = vunpack.c.l.b16 %v741
    %v5666 = vunpack.c.h.b16 %v741
    %v5667 = vunpack.c.l.b16 %v746
    %v5668 = vunpack.c.h.b16 %v746
    %v5669 = vunpack.c.l.b16 %v747
    %v5670 = vunpack.c.h.b16 %v747
    %v5671 = vunpack.c.l.b16 %v748
    %v5672 = vunpack.c.h.b16 %v748
    %v5673 = vunpack.c.l.b16 %v749
    %v5674 = vunpack.c.h.b16 %v749
    %v5675 = vunpack.c.l.b16 %v754
    %v5676 = vunpack.c.h.b16 %v754
    %v5677 = vunpack.c.l.b16 %v755
    %v5678 = vunpack.c.h.b16 %v755
    %v5679 = vunpack.c.l.b16 %v756
    %v5680 = vunpack.c.h.b16 %v756
    %v5681 = vunpack.c.l.b16 %v757
    %v5682 = vunpack.c.h.b16 %v757
    %v5683 = vunpack.c.l.b16 %v762
    %v5684 = vunpack.c.h.b16 %v762
    %v5685 = vunpack.c.l.b16 %v763
    %v5686 = vunpack.c.h.b16 %v763
    %v5687 = vunpack.c.l.b16 %v764
    %v5688 = vunpack.c.h.b16 %v764
    %v5689 = vunpack.c.l.b16 %v765
    %v5690 = vunpack.c.h.b16 %v765
    %v5691 = vunpack.c.l.b16 %v770
    %v5692 = vunpack.c.h.b16 %v770
    %v5693 = vunpack.c.l.b16 %v771
    %v5694 = vunpack.c.h.b16 %v771
    %v5695 = vunpack.c.l.b16 %v772
    %v5696 = vunpack.c.h.b16 %v772
    %v5697 = vunpack.c.l.b16 %v773
    %v5698 = vunpack.c.h.b16 %v773
    %v5699 = vunpack.c.l.b16 %v778
    %v5700 = vunpack.c.h.b16 %v778
    %v5701 = vunpack.c.l.b16 %v779
    %v5702 = vunpack.c.h.b16 %v779
    %v5703 = vunpack.c.l.b16 %v780
    %v5704 = vunpack.c.h.b16 %v780
    %v5705 = vunpack.c.l.b16 %v781
    %v5706 = vunpack.c.h.b16 %v781
    %v5707 = vunpack.c.l.b16 %v786
    %v5708 = vunpack.c.h.b16 %v786
    %v5709 = vunpack.c.l.b16 %v787
    %v5710 = vunpack.c.h.b16 %v787
    %v5711 = vunpack.c.l.b16 %v788
    %v5712 = vunpack.c.h.b16 %v788
    %v5713 = vunpack.c.l.b16 %v789
    %v5714 = vunpack.c.h.b16 %v789
    %v5715 = vunpack.c.l.b16 %v794
    %v5716 = vunpack.c.h.b16 %v794
    %v5717 = vunpack.c.l.b16 %v795
    %v5718 = vunpack.c.h.b16 %v795
    %v5719 = vunpack.c.l.b16 %v796
    %v5720 = vunpack.c.h.b16 %v796
    %v5721 = vunpack.c.l.b16 %v797
    %v5722 = vunpack.c.h.b16 %v797
    %v5723 = vunpack.c.l.b16 %v802
    %v5724 = vunpack.c.h.b16 %v802
    %v5725 = vunpack.c.l.b16 %v803
    %v5726 = vunpack.c.h.b16 %v803
    %v5727 = vunpack.c.l.b16 %v804
    %v5728 = vunpack.c.h.b16 %v804
    %v5729 = vunpack.c.l.b16 %v805
    %v5730 = vunpack.c.h.b16 %v805
    %v5731 = vunpack.c.l.b16 %v810
    %v5732 = vunpack.c.h.b16 %v810
    %v5733 = vunpack.c.l.b16 %v811
    %v5734 = vunpack.c.h.b16 %v811
    %v5735 = vunpack.c.l.b16 %v812
    %v5736 = vunpack.c.h.b16 %v812
    %v5737 = vunpack.c.l.b16 %v813
    %v5738 = vunpack.c.h.b16 %v813
    %v5739 = vunpack.c.l.b16 %v818
    %v5740 = vunpack.c.h.b16 %v818
    %v5741 = vunpack.c.l.b16 %v819
    %v5742 = vunpack.c.h.b16 %v819
    %v5743 = vunpack.c.l.b16 %v820
    %v5744 = vunpack.c.h.b16 %v820
    %v5745 = vunpack.c.l.b16 %v821
    %v5746 = vunpack.c.h.b16 %v821
    %v5747 = vunpack.c.l.b16 %v826
    %v5748 = vunpack.c.h.b16 %v826
    %v5749 = vunpack.c.l.b16 %v827
    %v5750 = vunpack.c.h.b16 %v827
    %v5751 = vunpack.c.l.b16 %v828
    %v5752 = vunpack.c.h.b16 %v828
    %v5753 = vunpack.c.l.b16 %v829
    %v5754 = vunpack.c.h.b16 %v829
    %v5755 = vunpack.c.l.b16 %v834
    %v5756 = vunpack.c.h.b16 %v834
    %v5757 = vunpack.c.l.b16 %v835
    %v5758 = vunpack.c.h.b16 %v835
    %v5759 = vunpack.c.l.b16 %v836
    %v5760 = vunpack.c.h.b16 %v836
    %v5761 = vunpack.c.l.b16 %v837
    %v5762 = vunpack.c.h.b16 %v837
    %v5763 = vunpack.c.l.b16 %v842
    %v5764 = vunpack.c.h.b16 %v842
    %v5765 = vunpack.c.l.b16 %v843
    %v5766 = vunpack.c.h.b16 %v843
    %v5767 = vunpack.c.l.b16 %v844
    %v5768 = vunpack.c.h.b16 %v844
    %v5769 = vunpack.c.l.b16 %v845
    %v5770 = vunpack.c.h.b16 %v845
    %v5771 = vunpack.c.l.b16 %v850
    %v5772 = vunpack.c.h.b16 %v850
    %v5773 = vunpack.c.l.b16 %v851
    %v5774 = vunpack.c.h.b16 %v851
    %v5775 = vunpack.c.l.b16 %v852
    %v5776 = vunpack.c.h.b16 %v852
    %v5777 = vunpack.c.l.b16 %v853
    %v5778 = vunpack.c.h.b16 %v853
    %v5779 = vunpack.c.l.b16 %v858
    %v5780 = vunpack.c.h.b16 %v858
    %v5781 = vunpack.c.l.b16 %v859
    %v5782 = vunpack.c.h.b16 %v859
    %v5783 = vunpack.c.l.b16 %v860
    %v5784 = vunpack.c.h.b16 %v860
    %v5785 = vunpack.c.l.b16 %v861
    %v5786 = vunpack.c.h.b16 %v861
    %v5787 = vunpack.c.l.b16 %v866
    %v5788 = vunpack.c.h.b16 %v866
    %v5789 = vunpack.c.l.b16 %v867
    %v5790 = vunpack.c.h.b16 %v867
    %v5791 = vunpack.c.l.b16 %v868
    %v5792 = vunpack.c.h.b16 %v868
    %v5793 = vunpack.c.l.b16 %v869
    %v5794 = vunpack.c.h.b16 %v869
    %v5795 = vunpack.c.l.b16 %v874
    %v5796 = vunpack.c.h.b16 %v874
    %v5797 = vunpack.c.l.b16 %v875
    %v5798 = vunpack.c.h.b16 %v875
    %v5799 = vunpack.c.l.b16 %v876
    %v5800 = vunpack.c.h.b16 %v876
    %v5801 = vunpack.c.l.b16 %v877
    %v5802 = vunpack.c.h.b16 %v877
    %v5803 = vunpack.c.l.b16 %v882
    %v5804 = vunpack.c.h.b16 %v882
    %v5805 = vunpack.c.l.b16 %v883
    %v5806 = vunpack.c.h.b16 %v883
    %v5807 = vunpack.c.l.b16 %v884
    %v5808 = vunpack.c.h.b16 %v884
    %v5809 = vunpack.c.l.b16 %v885
    %v5810 = vunpack.c.h.b16 %v885
    %v5811 = vunpack.c.l.b16 %v890
    %v5812 = vunpack.c.h.b16 %v890
    %v5813 = vunpack.c.l.b16 %v891
    %v5814 = vunpack.c.h.b16 %v891
    %v5815 = vunpack.c.l.b16 %v892
    %v5816 = vunpack.c.h.b16 %v892
    %v5817 = vunpack.c.l.b16 %v893
    %v5818 = vunpack.c.h.b16 %v893
    %v5819 = vunpack.c.l.b16 %v898
    %v5820 = vunpack.c.h.b16 %v898
    %v5821 = vunpack.c.l.b16 %v899
    %v5822 = vunpack.c.h.b16 %v899
    %v5823 = vunpack.c.l.b16 %v900
    %v5824 = vunpack.c.h.b16 %v900
    %v5825 = vunpack.c.l.b16 %v901
    %v5826 = vunpack.c.h.b16 %v901
    %v5827 = vunpack.c.l.b16 %v906
    %v5828 = vunpack.c.h.b16 %v906
    %v5829 = vunpack.c.l.b16 %v907
    %v5830 = vunpack.c.h.b16 %v907
    %v5831 = vunpack.c.l.b16 %v908
    %v5832 = vunpack.c.h.b16 %v908
    %v5833 = vunpack.c.l.b16 %v909
    %v5834 = vunpack.c.h.b16 %v909
    %v5835 = vunpack.c.l.b16 %v914
    %v5836 = vunpack.c.h.b16 %v914
    %v5837 = vunpack.c.l.b16 %v915
    %v5838 = vunpack.c.h.b16 %v915
    %v5839 = vunpack.c.l.b16 %v916
    %v5840 = vunpack.c.h.b16 %v916
    %v5841 = vunpack.c.l.b16 %v917
    %v5842 = vunpack.c.h.b16 %v917
    %v5843 = vunpack.c.l.b16 %v922
    %v5844 = vunpack.c.h.b16 %v922
    %v5845 = vunpack.c.l.b16 %v923
    %v5846 = vunpack.c.h.b16 %v923
    %v5847 = vunpack.c.l.b16 %v924
    %v5848 = vunpack.c.h.b16 %v924
    %v5849 = vunpack.c.l.b16 %v925
    %v5850 = vunpack.c.h.b16 %v925
    %v5851 = vunpack.c.l.b16 %v930
    %v5852 = vunpack.c.h.b16 %v930
    %v5853 = vunpack.c.l.b16 %v931
    %v5854 = vunpack.c.h.b16 %v931
    %v5855 = vunpack.c.l.b16 %v932
    %v5856 = vunpack.c.h.b16 %v932
    %v5857 = vunpack.c.l.b16 %v933
    %v5858 = vunpack.c.h.b16 %v933
    %v5859 = vunpack.c.l.b16 %v938
    %v5860 = vunpack.c.h.b16 %v938
    %v5861 = vunpack.c.l.b16 %v939
    %v5862 = vunpack.c.h.b16 %v939
    %v5863 = vunpack.c.l.b16 %v940
    %v5864 = vunpack.c.h.b16 %v940
    %v5865 = vunpack.c.l.b16 %v941
    %v5866 = vunpack.c.h.b16 %v941
    %v5867 = vunpack.c.l.b16 %v946
    %v5868 = vunpack.c.h.b16 %v946
    %v5869 = vunpack.c.l.b16 %v947
    %v5870 = vunpack.c.h.b16 %v947
    %v5871 = vunpack.c.l.b16 %v948
    %v5872 = vunpack.c.h.b16 %v948
    %v5873 = vunpack.c.l.b16 %v949
    %v5874 = vunpack.c.h.b16 %v949
    %v5875 = vunpack.c.l.b16 %v954
    %v5876 = vunpack.c.h.b16 %v954
    %v5877 = vunpack.c.l.b16 %v955
    %v5878 = vunpack.c.h.b16 %v955
    %v5879 = vunpack.c.l.b16 %v956
    %v5880 = vunpack.c.h.b16 %v956
    %v5881 = vunpack.c.l.b16 %v957
    %v5882 = vunpack.c.h.b16 %v957
    %v5883 = vunpack.c.l.b16 %v962
    %v5884 = vunpack.c.h.b16 %v962
    %v5885 = vunpack.c.l.b16 %v963
    %v5886 = vunpack.c.h.b16 %v963
    %v5887 = vunpack.c.l.b16 %v964
    %v5888 = vunpack.c.h.b16 %v964
    %v5889 = vunpack.c.l.b16 %v965
    %v5890 = vunpack.c.h.b16 %v965
    %v5891 = vunpack.c.l.b16 %v970
    %v5892 = vunpack.c.h.b16 %v970
    %v5893 = vunpack.c.l.b16 %v971
    %v5894 = vunpack.c.h.b16 %v971
    %v5895 = vunpack.c.l.b16 %v972
    %v5896 = vunpack.c.h.b16 %v972
    %v5897 = vunpack.c.l.b16 %v973
    %v5898 = vunpack.c.h.b16 %v973
    %v5899 = vunpack.c.l.b16 %v978
    %v5900 = vunpack.c.h.b16 %v978
    %v5901 = vunpack.c.l.b16 %v979
    %v5902 = vunpack.c.h.b16 %v979
    %v5903 = vunpack.c.l.b16 %v980
    %v5904 = vunpack.c.h.b16 %v980
    %v5905 = vunpack.c.l.b16 %v981
    %v5906 = vunpack.c.h.b16 %v981
    %v5907 = vunpack.c.l.b16 %v986
    %v5908 = vunpack.c.h.b16 %v986
    %v5909 = vunpack.c.l.b16 %v987
    %v5910 = vunpack.c.h.b16 %v987
    %v5911 = vunpack.c.l.b16 %v988
    %v5912 = vunpack.c.h.b16 %v988
    %v5913 = vunpack.c.l.b16 %v989
    %v5914 = vunpack.c.h.b16 %v989
    %v5915 = vunpack.c.l.b16 %v994
    %v5916 = vunpack.c.h.b16 %v994
    %v5917 = vunpack.c.l.b16 %v995
    %v5918 = vunpack.c.h.b16 %v995
    %v5919 = vunpack.c.l.b16 %v996
    %v5920 = vunpack.c.h.b16 %v996
    %v5921 = vunpack.c.l.b16 %v997
    %v5922 = vunpack.c.h.b16 %v997
    %v5923 = vunpack.c.l.b16 %v1002
    %v5924 = vunpack.c.h.b16 %v1002
    %v5925 = vunpack.c.l.b16 %v1003
    %v5926 = vunpack.c.h.b16 %v1003
    %v5927 = vunpack.c.l.b16 %v1004
    %v5928 = vunpack.c.h.b16 %v1004
    %v5929 = vunpack.c.l.b16 %v1005
    %v5930 = vunpack.c.h.b16 %v1005
    %v5931 = vunpack.c.l.b16 %v1010
    %v5932 = vunpack.c.h.b16 %v1010
    %v5933 = vunpack.c.l.b16 %v1011
    %v5934 = vunpack.c.h.b16 %v1011
    %v5935 = vunpack.c.l.b16 %v1012
    %v5936 = vunpack.c.h.b16 %v1012
    %v5937 = vunpack.c.l.b16 %v1013
    %v5938 = vunpack.c.h.b16 %v1013
    %v5939 = vunpack.c.l.b16 %v1018
    %v5940 = vunpack.c.h.b16 %v1018
    %v5941 = vunpack.c.l.b16 %v1019
    %v5942 = vunpack.c.h.b16 %v1019
    %v5943 = vunpack.c.l.b16 %v1020
    %v5944 = vunpack.c.h.b16 %v1020
    %v5945 = vunpack.c.l.b16 %v1021
    %v5946 = vunpack.c.h.b16 %v1021
    %v5947 = vunpack.c.l.b16 %v1026
    %v5948 = vunpack.c.h.b16 %v1026
    %v5949 = vunpack.c.l.b16 %v1027
    %v5950 = vunpack.c.h.b16 %v1027
    %v5951 = vunpack.c.l.b16 %v1028
    %v5952 = vunpack.c.h.b16 %v1028
    %v5953 = vunpack.c.l.b16 %v1029
    %v5954 = vunpack.c.h.b16 %v1029
    %v5955 = vunpack.c.l.b16 %v1034
    %v5956 = vunpack.c.h.b16 %v1034
    %v5957 = vunpack.c.l.b16 %v1035
    %v5958 = vunpack.c.h.b16 %v1035
    %v5959 = vunpack.c.l.b16 %v1036
    %v5960 = vunpack.c.h.b16 %v1036
    %v5961 = vunpack.c.l.b16 %v1037
    %v5962 = vunpack.c.h.b16 %v1037
    %v5963 = vunpack.c.l.b16 %v1042
    %v5964 = vunpack.c.h.b16 %v1042
    %v5965 = vunpack.c.l.b16 %v1043
    %v5966 = vunpack.c.h.b16 %v1043
    %v5967 = vunpack.c.l.b16 %v1044
    %v5968 = vunpack.c.h.b16 %v1044
    %v5969 = vunpack.c.l.b16 %v1045
    %v5970 = vunpack.c.h.b16 %v1045
    %v5971 = vunpack.c.l.b16 %v1050
    %v5972 = vunpack.c.h.b16 %v1050
    %v5973 = vunpack.c.l.b16 %v1051
    %v5974 = vunpack.c.h.b16 %v1051
    %v5975 = vunpack.c.l.b16 %v1052
    %v5976 = vunpack.c.h.b16 %v1052
    %v5977 = vunpack.c.l.b16 %v1053
    %v5978 = vunpack.c.h.b16 %v1053
    %v5979 = vunpack.c.l.b16 %v1058
    %v5980 = vunpack.c.h.b16 %v1058
    %v5981 = vunpack.c.l.b16 %v1059
    %v5982 = vunpack.c.h.b16 %v1059
    %v5983 = vunpack.c.l.b16 %v1060
    %v5984 = vunpack.c.h.b16 %v1060
    %v5985 = vunpack.c.l.b16 %v1061
    %v5986 = vunpack.c.h.b16 %v1061
    %v5987 = vunpack.c.l.b16 %v1066
    %v5988 = vunpack.c.h.b16 %v1066
    %v5989 = vunpack.c.l.b16 %v1067
    %v5990 = vunpack.c.h.b16 %v1067
    %v5991 = vunpack.c.l.b16 %v1068
    %v5992 = vunpack.c.h.b16 %v1068
    %v5993 = vunpack.c.l.b16 %v1069
    %v5994 = vunpack.c.h.b16 %v1069
    %v5995 = vunpack.c.l.b16 %v1074
    %v5996 = vunpack.c.h.b16 %v1074
    %v5997 = vunpack.c.l.b16 %v1075
    %v5998 = vunpack.c.h.b16 %v1075
    %v5999 = vunpack.c.l.b16 %v1076
    %v6000 = vunpack.c.h.b16 %v1076
    %v6001 = vunpack.c.l.b16 %v1077
    %v6002 = vunpack.c.h.b16 %v1077
    %v6003 = vunpack.c.l.b16 %v1082
    %v6004 = vunpack.c.h.b16 %v1082
    %v6005 = vunpack.c.l.b16 %v1083
    %v6006 = vunpack.c.h.b16 %v1083
    %v6007 = vunpack.c.l.b16 %v1084
    %v6008 = vunpack.c.h.b16 %v1084
    %v6009 = vunpack.c.l.b16 %v1085
    %v6010 = vunpack.c.h.b16 %v1085
    %v6011 = vunpack.c.l.b16 %v1090
    %v6012 = vunpack.c.h.b16 %v1090
    %v6013 = vunpack.c.l.b16 %v1091
    %v6014 = vunpack.c.h.b16 %v1091
    %v6015 = vunpack.c.l.b16 %v1092
    %v6016 = vunpack.c.h.b16 %v1092
    %v6017 = vunpack.c.l.b16 %v1093
    %v6018 = vunpack.c.h.b16 %v1093
    %v6019 = vunpack.c.l.b16 %v1098
    %v6020 = vunpack.c.h.b16 %v1098
    %v6021 = vunpack.c.l.b16 %v1099
    %v6022 = vunpack.c.h.b16 %v1099
    %v6023 = vunpack.c.l.b16 %v1100
    %v6024 = vunpack.c.h.b16 %v1100
    %v6025 = vunpack.c.l.b16 %v1101
    %v6026 = vunpack.c.h.b16 %v1101
    %v6027 = vunpack.c.l.b16 %v1106
    %v6028 = vunpack.c.h.b16 %v1106
    %v6029 = vunpack.c.l.b16 %v1107
    %v6030 = vunpack.c.h.b16 %v1107
    %v6031 = vunpack.c.l.b16 %v1108
    %v6032 = vunpack.c.h.b16 %v1108
    %v6033 = vunpack.c.l.b16 %v1109
    %v6034 = vunpack.c.h.b16 %v1109
    %v6035 = vunpack.c.l.b16 %v1114
    %v6036 = vunpack.c.h.b16 %v1114
    %v6037 = vunpack.c.l.b16 %v1115
    %v6038 = vunpack.c.h.b16 %v1115
    %v6039 = vunpack.c.l.b16 %v1116
    %v6040 = vunpack.c.h.b16 %v1116
    %v6041 = vunpack.c.l.b16 %v1117
    %v6042 = vunpack.c.h.b16 %v1117
    %v6043 = vunpack.c.l.b16 %v1122
    %v6044 = vunpack.c.h.b16 %v1122
    %v6045 = vunpack.c.l.b16 %v1123
    %v6046 = vunpack.c.h.b16 %v1123
    %v6047 = vunpack.c.l.b16 %v1124
    %v6048 = vunpack.c.h.b16 %v1124
    %v6049 = vunpack.c.l.b16 %v1125
    %v6050 = vunpack.c.h.b16 %v1125
    %v6051 = vunpack.c.l.b16 %v1130
    %v6052 = vunpack.c.h.b16 %v1130
    %v6053 = vunpack.c.l.b16 %v1131
    %v6054 = vunpack.c.h.b16 %v1131
    %v6055 = vunpack.c.l.b16 %v1132
    %v6056 = vunpack.c.h.b16 %v1132
    %v6057 = vunpack.c.l.b16 %v1133
    %v6058 = vunpack.c.h.b16 %v1133
    %v6059 = vunpack.c.l.b16 %v1138
    %v6060 = vunpack.c.h.b16 %v1138
    %v6061 = vunpack.c.l.b16 %v1139
    %v6062 = vunpack.c.h.b16 %v1139
    %v6063 = vunpack.c.l.b16 %v1140
    %v6064 = vunpack.c.h.b16 %v1140
    %v6065 = vunpack.c.l.b16 %v1141
    %v6066 = vunpack.c.h.b16 %v1141
    %v6067 = vunpack.c.l.b16 %v1146
    %v6068 = vunpack.c.h.b16 %v1146
    %v6069 = vunpack.c.l.b16 %v1147
    %v6070 = vunpack.c.h.b16 %v1147
    %v6071 = vunpack.c.l.b16 %v1148
    %v6072 = vunpack.c.h.b16 %v1148
    %v6073 = vunpack.c.l.b16 %v1149
    %v6074 = vunpack.c.h.b16 %v1149
    %v6075 = vunpack.c.l.b16 %v1154
    %v6076 = vunpack.c.h.b16 %v1154
    %v6077 = vunpack.c.l.b16 %v1155
    %v6078 = vunpack.c.h.b16 %v1155
    %v6079 = vunpack.c.l.b16 %v1156
    %v6080 = vunpack.c.h.b16 %v1156
    %v6081 = vunpack.c.l.b16 %v1157
    %v6082 = vunpack.c.h.b16 %v1157
    %v6083 = vunpack.c.l.b16 %v1162
    %v6084 = vunpack.c.h.b16 %v1162
    %v6085 = vunpack.c.l.b16 %v1163
    %v6086 = vunpack.c.h.b16 %v1163
    %v6087 = vunpack.c.l.b16 %v1164
    %v6088 = vunpack.c.h.b16 %v1164
    %v6089 = vunpack.c.l.b16 %v1165
    %v6090 = vunpack.c.h.b16 %v1165
    %v6091 = vunpack.c.l.b16 %v1170
    %v6092 = vunpack.c.h.b16 %v1170
    %v6093 = vunpack.c.l.b16 %v1171
    %v6094 = vunpack.c.h.b16 %v1171
    %v6095 = vunpack.c.l.b16 %v1172
    %v6096 = vunpack.c.h.b16 %v1172
    %v6097 = vunpack.c.l.b16 %v1173
    %v6098 = vunpack.c.h.b16 %v1173
    %v6099 = vunpack.c.l.b16 %v1178
    %v6100 = vunpack.c.h.b16 %v1178
    %v6101 = vunpack.c.l.b16 %v1179
    %v6102 = vunpack.c.h.b16 %v1179
    %v6103 = vunpack.c.l.b16 %v1180
    %v6104 = vunpack.c.h.b16 %v1180
    %v6105 = vunpack.c.l.b16 %v1181
    %v6106 = vunpack.c.h.b16 %v1181
    %v6107 = vunpack.c.l.b16 %v1186
    %v6108 = vunpack.c.h.b16 %v1186
    %v6109 = vunpack.c.l.b16 %v1187
    %v6110 = vunpack.c.h.b16 %v1187
    %v6111 = vunpack.c.l.b16 %v1188
    %v6112 = vunpack.c.h.b16 %v1188
    %v6113 = vunpack.c.l.b16 %v1189
    %v6114 = vunpack.c.h.b16 %v1189
    %v6115 = vunpack.c.l.b16 %v1194
    %v6116 = vunpack.c.h.b16 %v1194
    %v6117 = vunpack.c.l.b16 %v1195
    %v6118 = vunpack.c.h.b16 %v1195
    %v6119 = vunpack.c.l.b16 %v1196
    %v6120 = vunpack.c.h.b16 %v1196
    %v6121 = vunpack.c.l.b16 %v1197
    %v6122 = vunpack.c.h.b16 %v1197
    %v6123 = vunpack.c.l.b16 %v1202
    %v6124 = vunpack.c.h.b16 %v1202
    %v6125 = vunpack.c.l.b16 %v1203
    %v6126 = vunpack.c.h.b16 %v1203
    %v6127 = vunpack.c.l.b16 %v1204
    %v6128 = vunpack.c.h.b16 %v1204
    %v6129 = vunpack.c.l.b16 %v1205
    %v6130 = vunpack.c.h.b16 %v1205
    %v6131 = vunpack.c.l.b16 %v1210
    %v6132 = vunpack.c.h.b16 %v1210
    %v6133 = vunpack.c.l.b16 %v1211
    %v6134 = vunpack.c.h.b16 %v1211
    %v6135 = vunpack.c.l.b16 %v1212
    %v6136 = vunpack.c.h.b16 %v1212
    %v6137 = vunpack.c.l.b16 %v1213
    %v6138 = vunpack.c.h.b16 %v1213
    %v6139 = vunpack.c.l.b16 %v1218
    %v6140 = vunpack.c.h.b16 %v1218
    %v6141 = vunpack.c.l.b16 %v1219
    %v6142 = vunpack.c.h.b16 %v1219
    %v6143 = vunpack.c.l.b16 %v1220
    %v6144 = vunpack.c.h.b16 %v1220
    %v6145 = vunpack.c.l.b16 %v1221
    %v6146 = vunpack.c.h.b16 %v1221
    %v6147 = vpack.c.b16 %v5131, %v5123
    %v6148 = vpack.c.b16 %v5132, %v5124
    %v6149 = vpack.c.b16 %v5133, %v5125
    %v6150 = vpack.c.b16 %v5134, %v5126
    %v6151 = vpack.c.b16 %v5135, %v5127
    %v6152 = vpack.c.b16 %v5136, %v5128
    %v6153 = vpack.c.b16 %v5137, %v5129
    %v6154 = vpack.c.b16 %v5138, %v5130
    %v6155 = vpack.c.b16 %v5147, %v5139
    %v6156 = vpack.c.b16 %v5148, %v5140
    %v6157 = vpack.c.b16 %v5149, %v5141
    %v6158 = vpack.c.b16 %v5150, %v5142
    %v6159 = vpack.c.b16 %v5151, %v5143
    %v6160 = vpack.c.b16 %v5152, %v5144
    %v6161 = vpack.c.b16 %v5153, %v5145
    %v6162 = vpack.c.b16 %v5154, %v5146
    %v6163 = vpack.c.b16 %v5163, %v5155
    %v6164 = vpack.c.b16 %v5164, %v5156
    %v6165 = vpack.c.b16 %v5165, %v5157
    %v6166 = vpack.c.b16 %v5166, %v5158
    %v6167 = vpack.c.b16 %v5167, %v5159
    %v6168 = vpack.c.b16 %v5168, %v5160
    %v6169 = vpack.c.b16 %v5169, %v5161
    %v6170 = vpack.c.b16 %v5170, %v5162
    %v6171 = vpack.c.b16 %v5179, %v5171
    %v6172 = vpack.c.b16 %v5180, %v5172
    %v6173 = vpack.c.b16 %v5181, %v5173
    %v6174 = vpack.c.b16 %v5182, %v5174
    %v6175 = vpack.c.b16 %v5183, %v5175
    %v6176 = vpack.c.b16 %v5184, %v5176
    %v6177 = vpack.c.b16 %v5185, %v5177
    %v6178 = vpack.c.b16 %v5186, %v5178
    %v6179 = vpack.c.b16 %v5195, %v5187
    %v6180 = vpack.c.b16 %v5196, %v5188
    %v6181 = vpack.c.b16 %v5197, %v5189
    %v6182 = vpack.c.b16 %v5198, %v5190
    %v6183 = vpack.c.b16 %v5199, %v5191
    %v6184 = vpack.c.b16 %v5200, %v5192
    %v6185 = vpack.c.b16 %v5201, %v5193
    %v6186 = vpack.c.b16 %v5202, %v5194
    %v6187 = vpack.c.b16 %v5211, %v5203
    %v6188 = vpack.c.b16 %v5212, %v5204
    %v6189 = vpack.c.b16 %v5213, %v5205
    %v6190 = vpack.c.b16 %v5214, %v5206
    %v6191 = vpack.c.b16 %v5215, %v5207
    %v6192 = vpack.c.b16 %v5216, %v5208
    %v6193 = vpack.c.b16 %v5217, %v5209
    %v6194 = vpack.c.b16 %v5218, %v5210
    %v6195 = vpack.c.b16 %v5227, %v5219
    %v6196 = vpack.c.b16 %v5228, %v5220
    %v6197 = vpack.c.b16 %v5229, %v5221
    %v6198 = vpack.c.b16 %v5230, %v5222
    %v6199 = vpack.c.b16 %v5231, %v5223
    %v6200 = vpack.c.b16 %v5232, %v5224
    %v6201 = vpack.c.b16 %v5233, %v5225
    %v6202 = vpack.c.b16 %v5234, %v5226
    %v6203 = vpack.c.b16 %v5243, %v5235
    %v6204 = vpack.c.b16 %v5244, %v5236
    %v6205 = vpack.c.b16 %v5245, %v5237
    %v6206 = vpack.c.b16 %v5246, %v5238
    %v6207 = vpack.c.b16 %v5247, %v5239
    %v6208 = vpack.c.b16 %v5248, %v5240
    %v6209 = vpack.c.b16 %v5249, %v5241
    %v6210 = vpack.c.b16 %v5250, %v5242
    %v6211 = vpack.c.b16 %v5259, %v5251
    %v6212 = vpack.c.b16 %v5260, %v5252
    %v6213 = vpack.c.b16 %v5261, %v5253
    %v6214 = vpack.c.b16 %v5262, %v5254
    %v6215 = vpack.c.b16 %v5263, %v5255
    %v6216 = vpack.c.b16 %v5264, %v5256
    %v6217 = vpack.c.b16 %v5265, %v5257
    %v6218 = vpack.c.b16 %v5266, %v5258
    %v6219 = vpack.c.b16 %v5275, %v5267
    %v6220 = vpack.c.b16 %v5276, %v5268
    %v6221 = vpack.c.b16 %v5277, %v5269
    %v6222 = vpack.c.b16 %v5278, %v5270
    %v6223 = vpack.c.b16 %v5279, %v5271
    %v6224 = vpack.c.b16 %v5280, %v5272
    %v6225 = vpack.c.b16 %v5281, %v5273
    %v6226 = vpack.c.b16 %v5282, %v5274
    %v6227 = vpack.c.b16 %v5291, %v5283
    %v6228 = vpack.c.b16 %v5292, %v5284
    %v6229 = vpack.c.b16 %v5293, %v5285
    %v6230 = vpack.c.b16 %v5294, %v5286
    %v6231 = vpack.c.b16 %v5295, %v5287
    %v6232 = vpack.c.b16 %v5296, %v5288
    %v6233 = vpack.c.b16 %v5297, %v5289
    %v6234 = vpack.c.b16 %v5298, %v5290
    %v6235 = vpack.c.b16 %v5307, %v5299
    %v6236 = vpack.c.b16 %v5308, %v5300
    %v6237 = vpack.c.b16 %v5309, %v5301
    %v6238 = vpack.c.b16 %v5310, %v5302
    %v6239 = vpack.c.b16 %v5311, %v5303
    %v6240 = vpack.c.b16 %v5312, %v5304
    %v6241 = vpack.c.b16 %v5313, %v5305
    %v6242 = vpack.c.b16 %v5314, %v5306
    %v6243 = vpack.c.b16 %v5323, %v5315
    %v6244 = vpack.c.b16 %v5324, %v5316
    %v6245 = vpack.c.b16 %v5325, %v5317
    %v6246 = vpack.c.b16 %v5326, %v5318
    %v6247 = vpack.c.b16 %v5327, %v5319
    %v6248 = vpack.c.b16 %v5328, %v5320
    %v6249 = vpack.c.b16 %v5329, %v5321
    %v6250 = vpack.c.b16 %v5330, %v5322
    %v6251 = vpack.c.b16 %v5339, %v5331
    %v6252 = vpack.c.b16 %v5340, %v5332
    %v6253 = vpack.c.b16 %v5341, %v5333
    %v6254 = vpack.c.b16 %v5342, %v5334
    %v6255 = vpack.c.b16 %v5343, %v5335
    %v6256 = vpack.c.b16 %v5344, %v5336
    %v6257 = vpack.c.b16 %v5345, %v5337
    %v6258 = vpack.c.b16 %v5346, %v5338
    %v6259 = vpack.c.b16 %v5355, %v5347
    %v6260 = vpack.c.b16 %v5356, %v5348
    %v6261 = vpack.c.b16 %v5357, %v5349
    %v6262 = vpack.c.b16 %v5358, %v5350
    %v6263 = vpack.c.b16 %v5359, %v5351
    %v6264 = vpack.c.b16 %v5360, %v5352
    %v6265 = vpack.c.b16 %v5361, %v5353
    %v6266 = vpack.c.b16 %v5362, %v5354
    %v6267 = vpack.c.b16 %v5371, %v5363
    %v6268 = vpack.c.b16 %v5372, %v5364
    %v6269 = vpack.c.b16 %v5373, %v5365
    %v6270 = vpack.c.b16 %v5374, %v5366
    %v6271 = vpack.c.b16 %v5375, %v5367
    %v6272 = vpack.c.b16 %v5376, %v5368
    %v6273 = vpack.c.b16 %v5377, %v5369
    %v6274 = vpack.c.b16 %v5378, %v5370
    %v6275 = vpack.c.b16 %v5387, %v5379
    %v6276 = vpack.c.b16 %v5388, %v5380
    %v6277 = vpack.c.b16 %v5389, %v5381
    %v6278 = vpack.c.b16 %v5390, %v5382
    %v6279 = vpack.c.b16 %v5391, %v5383
    %v6280 = vpack.c.b16 %v5392, %v5384
    %v6281 = vpack.c.b16 %v5393, %v5385
    %v6282 = vpack.c.b16 %v5394, %v5386
    %v6283 = vpack.c.b16 %v5403, %v5395
    %v6284 = vpack.c.b16 %v5404, %v5396
    %v6285 = vpack.c.b16 %v5405, %v5397
    %v6286 = vpack.c.b16 %v5406, %v5398
    %v6287 = vpack.c.b16 %v5407, %v5399
    %v6288 = vpack.c.b16 %v5408, %v5400
    %v6289 = vpack.c.b16 %v5409, %v5401
    %v6290 = vpack.c.b16 %v5410, %v5402
    %v6291 = vpack.c.b16 %v5419, %v5411
    %v6292 = vpack.c.b16 %v5420, %v5412
    %v6293 = vpack.c.b16 %v5421, %v5413
    %v6294 = vpack.c.b16 %v5422, %v5414
    %v6295 = vpack.c.b16 %v5423, %v5415
    %v6296 = vpack.c.b16 %v5424, %v5416
    %v6297 = vpack.c.b16 %v5425, %v5417
    %v6298 = vpack.c.b16 %v5426, %v5418
    %v6299 = vpack.c.b16 %v5435, %v5427
    %v6300 = vpack.c.b16 %v5436, %v5428
    %v6301 = vpack.c.b16 %v5437, %v5429
    %v6302 = vpack.c.b16 %v5438, %v5430
    %v6303 = vpack.c.b16 %v5439, %v5431
    %v6304 = vpack.c.b16 %v5440, %v5432
    %v6305 = vpack.c.b16 %v5441, %v5433
    %v6306 = vpack.c.b16 %v5442, %v5434
    %v6307 = vpack.c.b16 %v5451, %v5443
    %v6308 = vpack.c.b16 %v5452, %v5444
    %v6309 = vpack.c.b16 %v5453, %v5445
    %v6310 = vpack.c.b16 %v5454, %v5446
    %v6311 = vpack.c.b16 %v5455, %v5447
    %v6312 = vpack.c.b16 %v5456, %v5448
    %v6313 = vpack.c.b16 %v5457, %v5449
    %v6314 = vpack.c.b16 %v5458, %v5450
    %v6315 = vpack.c.b16 %v5467, %v5459
    %v6316 = vpack.c.b16 %v5468, %v5460
    %v6317 = vpack.c.b16 %v5469, %v5461
    %v6318 = vpack.c.b16 %v5470, %v5462
    %v6319 = vpack.c.b16 %v5471, %v5463
    %v6320 = vpack.c.b16 %v5472, %v5464
    %v6321 = vpack.c.b16 %v5473, %v5465
    %v6322 = vpack.c.b16 %v5474, %v5466
    %v6323 = vpack.c.b16 %v5483, %v5475
    %v6324 = vpack.c.b16 %v5484, %v5476
    %v6325 = vpack.c.b16 %v5485, %v5477
    %v6326 = vpack.c.b16 %v5486, %v5478
    %v6327 = vpack.c.b16 %v5487, %v5479
    %v6328 = vpack.c.b16 %v5488, %v5480
    %v6329 = vpack.c.b16 %v5489, %v5481
    %v6330 = vpack.c.b16 %v5490, %v5482
    %v6331 = vpack.c.b16 %v5499, %v5491
    %v6332 = vpack.c.b16 %v5500, %v5492
    %v6333 = vpack.c.b16 %v5501, %v5493
    %v6334 = vpack.c.b16 %v5502, %v5494
    %v6335 = vpack.c.b16 %v5503, %v5495
    %v6336 = vpack.c.b16 %v5504, %v5496
    %v6337 = vpack.c.b16 %v5505, %v5497
    %v6338 = vpack.c.b16 %v5506, %v5498
    %v6339 = vpack.c.b16 %v5515, %v5507
    %v6340 = vpack.c.b16 %v5516, %v5508
    %v6341 = vpack.c.b16 %v5517, %v5509
    %v6342 = vpack.c.b16 %v5518, %v5510
    %v6343 = vpack.c.b16 %v5519, %v5511
    %v6344 = vpack.c.b16 %v5520, %v5512
    %v6345 = vpack.c.b16 %v5521, %v5513
    %v6346 = vpack.c.b16 %v5522, %v5514
    %v6347 = vpack.c.b16 %v5531, %v5523
    %v6348 = vpack.c.b16 %v5532, %v5524
    %v6349 = vpack.c.b16 %v5533, %v5525
    %v6350 = vpack.c.b16 %v5534, %v5526
    %v6351 = vpack.c.b16 %v5535, %v5527
    %v6352 = vpack.c.b16 %v5536, %v5528
    %v6353 = vpack.c.b16 %v5537, %v5529
    %v6354 = vpack.c.b16 %v5538, %v5530
    %v6355 = vpack.c.b16 %v5547, %v5539
    %v6356 = vpack.c.b16 %v5548, %v5540
    %v6357 = vpack.c.b16 %v5549, %v5541
    %v6358 = vpack.c.b16 %v5550, %v5542
    %v6359 = vpack.c.b16 %v5551, %v5543
    %v6360 = vpack.c.b16 %v5552, %v5544
    %v6361 = vpack.c.b16 %v5553, %v5545
    %v6362 = vpack.c.b16 %v5554, %v5546
    %v6363 = vpack.c.b16 %v5563, %v5555
    %v6364 = vpack.c.b16 %v5564, %v5556
    %v6365 = vpack.c.b16 %v5565, %v5557
    %v6366 = vpack.c.b16 %v5566, %v5558
    %v6367 = vpack.c.b16 %v5567, %v5559
    %v6368 = vpack.c.b16 %v5568, %v5560
    %v6369 = vpack.c.b16 %v5569, %v5561
    %v6370 = vpack.c.b16 %v5570, %v5562
    %v6371 = vpack.c.b16 %v5579, %v5571
    %v6372 = vpack.c.b16 %v5580, %v5572
    %v6373 = vpack.c.b16 %v5581, %v5573
    %v6374 = vpack.c.b16 %v5582, %v5574
    %v6375 = vpack.c.b16 %v5583, %v5575
    %v6376 = vpack.c.b16 %v5584, %v5576
    %v6377 = vpack.c.b16 %v5585, %v5577
    %v6378 = vpack.c.b16 %v5586, %v5578
    %v6379 = vpack.c.b16 %v5595, %v5587
    %v6380 = vpack.c.b16 %v5596, %v5588
    %v6381 = vpack.c.b16 %v5597, %v5589
    %v6382 = vpack.c.b16 %v5598, %v5590
    %v6383 = vpack.c.b16 %v5599, %v5591
    %v6384 = vpack.c.b16 %v5600, %v5592
    %v6385 = vpack.c.b16 %v5601, %v5593
    %v6386 = vpack.c.b16 %v5602, %v5594
    %v6387 = vpack.c.b16 %v5611, %v5603
    %v6388 = vpack.c.b16 %v5612, %v5604
    %v6389 = vpack.c.b16 %v5613, %v5605
    %v6390 = vpack.c.b16 %v5614, %v5606
    %v6391 = vpack.c.b16 %v5615, %v5607
    %v6392 = vpack.c.b16 %v5616, %v5608
    %v6393 = vpack.c.b16 %v5617, %v5609
    %v6394 = vpack.c.b16 %v5618, %v5610
    %v6395 = vpack.c.b16 %v5627, %v5619
    %v6396 = vpack.c.b16 %v5628, %v5620
    %v6397 = vpack.c.b16 %v5629, %v5621
    %v6398 = vpack.c.b16 %v5630, %v5622
    %v6399 = vpack.c.b16 %v5631, %v5623
    %v6400 = vpack.c.b16 %v5632, %v5624
    %v6401 = vpack.c.b16 %v5633, %v5625
    %v6402 = vpack.c.b16 %v5634, %v5626
    %v6403 = vpack.c.b16 %v5643, %v5635
    %v6404 = vpack.c.b16 %v5644, %v5636
    %v6405 = vpack.c.b16 %v5645, %v5637
    %v6406 = vpack.c.b16 %v5646, %v5638
    %v6407 = vpack.c.b16 %v5647, %v5639
    %v6408 = vpack.c.b16 %v5648, %v5640
    %v6409 = vpack.c.b16 %v5649, %v5641
    %v6410 = vpack.c.b16 %v5650, %v5642
    %v6411 = vpack.c.b16 %v5659, %v5651
    %v6412 = vpack.c.b16 %v5660, %v5652
    %v6413 = vpack.c.b16 %v5661, %v5653
    %v6414 = vpack.c.b16 %v5662, %v5654
    %v6415 = vpack.c.b16 %v5663, %v5655
    %v6416 = vpack.c.b16 %v5664, %v5656
    %v6417 = vpack.c.b16 %v5665, %v5657
    %v6418 = vpack.c.b16 %v5666, %v5658
    %v6419 = vpack.c.b16 %v5675, %v5667
    %v6420 = vpack.c.b16 %v5676, %v5668
    %v6421 = vpack.c.b16 %v5677, %v5669
    %v6422 = vpack.c.b16 %v5678, %v5670
    %v6423 = vpack.c.b16 %v5679, %v5671
    %v6424 = vpack.c.b16 %v5680, %v5672
    %v6425 = vpack.c.b16 %v5681, %v5673
    %v6426 = vpack.c.b16 %v5682, %v5674
    %v6427 = vpack.c.b16 %v5691, %v5683
    %v6428 = vpack.c.b16 %v5692, %v5684
    %v6429 = vpack.c.b16 %v5693, %v5685
    %v6430 = vpack.c.b16 %v5694, %v5686
    %v6431 = vpack.c.b16 %v5695, %v5687
    %v6432 = vpack.c.b16 %v5696, %v5688
    %v6433 = vpack.c.b16 %v5697, %v5689
    %v6434 = vpack.c.b16 %v5698, %v5690
    %v6435 = vpack.c.b16 %v5707, %v5699
    %v6436 = vpack.c.b16 %v5708, %v5700
    %v6437 = vpack.c.b16 %v5709, %v5701
    %v6438 = vpack.c.b16 %v5710, %v5702
    %v6439 = vpack.c.b16 %v5711, %v5703
    %v6440 = vpack.c.b16 %v5712, %v5704
    %v6441 = vpack.c.b16 %v5713, %v5705
    %v6442 = vpack.c.b16 %v5714, %v5706
    %v6443 = vpack.c.b16 %v5723, %v5715
    %v6444 = vpack.c.b16 %v5724, %v5716
    %v6445 = vpack.c.b16 %v5725, %v5717
    %v6446 = vpack.c.b16 %v5726, %v5718
    %v6447 = vpack.c.b16 %v5727, %v5719
    %v6448 = vpack.c.b16 %v5728, %v5720
    %v6449 = vpack.c.b16 %v5729, %v5721
    %v6450 = vpack.c.b16 %v5730, %v5722
    %v6451 = vpack.c.b16 %v5739, %v5731
    %v6452 = vpack.c.b16 %v5740, %v5732
    %v6453 = vpack.c.b16 %v5741, %v5733
    %v6454 = vpack.c.b16 %v5742, %v5734
    %v6455 = vpack.c.b16 %v5743, %v5735
    %v6456 = vpack.c.b16 %v5744, %v5736
    %v6457 = vpack.c.b16 %v5745, %v5737
    %v6458 = vpack.c.b16 %v5746, %v5738
    %v6459 = vpack.c.b16 %v5755, %v5747
    %v6460 = vpack.c.b16 %v5756, %v5748
    %v6461 = vpack.c.b16 %v5757, %v5749
    %v6462 = vpack.c.b16 %v5758, %v5750
    %v6463 = vpack.c.b16 %v5759, %v5751
    %v6464 = vpack.c.b16 %v5760, %v5752
    %v6465 = vpack.c.b16 %v5761, %v5753
    %v6466 = vpack.c.b16 %v5762, %v5754
    %v6467 = vpack.c.b16 %v5771, %v5763
    %v6468 = vpack.c.b16 %v5772, %v5764
    %v6469 = vpack.c.b16 %v5773, %v5765
    %v6470 = vpack.c.b16 %v5774, %v5766
    %v6471 = vpack.c.b16 %v5775, %v5767
    %v6472 = vpack.c.b16 %v5776, %v5768
    %v6473 = vpack.c.b16 %v5777, %v5769
    %v6474 = vpack.c.b16 %v5778, %v5770
    %v6475 = vpack.c.b16 %v5787, %v5779
    %v6476 = vpack.c.b16 %v5788, %v5780
    %v6477 = vpack.c.b16 %v5789, %v5781
    %v6478 = vpack.c.b16 %v5790, %v5782
    %v6479 = vpack.c.b16 %v5791, %v5783
    %v6480 = vpack.c.b16 %v5792, %v5784
    %v6481 = vpack.c.b16 %v5793, %v5785
    %v6482 = vpack.c.b16 %v5794, %v5786
    %v6483 = vpack.c.b16 %v5803, %v5795
    %v6484 = vpack.c.b16 %v5804, %v5796
    %v6485 = vpack.c.b16 %v5805, %v5797
    %v6486 = vpack.c.b16 %v5806, %v5798
    %v6487 = vpack.c.b16 %v5807, %v5799
    %v6488 = vpack.c.b16 %v5808, %v5800
    %v6489 = vpack.c.b16 %v5809, %v5801
    %v6490 = vpack.c.b16 %v5810, %v5802
    %v6491 = vpack.c.b16 %v5819, %v5811
    %v6492 = vpack.c.b16 %v5820, %v5812
    %v6493 = vpack.c.b16 %v5821, %v5813
    %v6494 = vpack.c.b16 %v5822, %v5814
    %v6495 = vpack.c.b16 %v5823, %v5815
    %v6496 = vpack.c.b16 %v5824, %v5816
    %v6497 = vpack.c.b16 %v5825, %v5817
    %v6498 = vpack.c.b16 %v5826, %v5818
    %v6499 = vpack.c.b16 %v5835, %v5827
    %v6500 = vpack.c.b16 %v5836, %v5828
    %v6501 = vpack.c.b16 %v5837, %v5829
    %v6502 = vpack.c.b16 %v5838, %v5830
    %v6503 = vpack.c.b16 %v5839, %v5831
    %v6504 = vpack.c.b16 %v5840, %v5832
    %v6505 = vpack.c.b16 %v5841, %v5833
    %v6506 = vpack.c.b16 %v5842, %v5834
    %v6507 = vpack.c.b16 %v5851, %v5843
    %v6508 = vpack.c.b16 %v5852, %v5844
    %v6509 = vpack.c.b16 %v5853, %v5845
    %v6510 = vpack.c.b16 %v5854, %v5846
    %v6511 = vpack.c.b16 %v5855, %v5847
    %v6512 = vpack.c.b16 %v5856, %v5848
    %v6513 = vpack.c.b16 %v5857, %v5849
    %v6514 = vpack.c.b16 %v5858, %v5850
    %v6515 = vpack.c.b16 %v5867, %v5859
    %v6516 = vpack.c.b16 %v5868, %v5860
    %v6517 = vpack.c.b16 %v5869, %v5861
    %v6518 = vpack.c.b16 %v5870, %v5862
    %v6519 = vpack.c.b16 %v5871, %v5863
    %v6520 = vpack.c.b16 %v5872, %v5864
    %v6521 = vpack.c.b16 %v5873, %v5865
    %v6522 = vpack.c.b16 %v5874, %v5866
    %v6523 = vpack.c.b16 %v5883, %v5875
    %v6524 = vpack.c.b16 %v5884, %v5876
    %v6525 = vpack.c.b16 %v5885, %v5877
    %v6526 = vpack.c.b16 %v5886, %v5878
    %v6527 = vpack.c.b16 %v5887, %v5879
    %v6528 = vpack.c.b16 %v5888, %v5880
    %v6529 = vpack.c.b16 %v5889, %v5881
    %v6530 = vpack.c.b16 %v5890, %v5882
    %v6531 = vpack.c.b16 %v5899, %v5891
    %v6532 = vpack.c.b16 %v5900, %v5892
    %v6533 = vpack.c.b16 %v5901, %v5893
    %v6534 = vpack.c.b16 %v5902, %v5894
    %v6535 = vpack.c.b16 %v5903, %v5895
    %v6536 = vpack.c.b16 %v5904, %v5896
    %v6537 = vpack.c.b16 %v5905, %v5897
    %v6538 = vpack.c.b16 %v5906, %v5898
    %v6539 = vpack.c.b16 %v5915, %v5907
    %v6540 = vpack.c.b16 %v5916, %v5908
    %v6541 = vpack.c.b16 %v5917, %v5909
    %v6542 = vpack.c.b16 %v5918, %v5910
    %v6543 = vpack.c.b16 %v5919, %v5911
    %v6544 = vpack.c.b16 %v5920, %v5912
    %v6545 = vpack.c.b16 %v5921, %v5913
    %v6546 = vpack.c.b16 %v5922, %v5914
    %v6547 = vpack.c.b16 %v5931, %v5923
    %v6548 = vpack.c.b16 %v5932, %v5924
    %v6549 = vpack.c.b16 %v5933, %v5925
    %v6550 = vpack.c.b16 %v5934, %v5926
    %v6551 = vpack.c.b16 %v5935, %v5927
    %v6552 = vpack.c.b16 %v5936, %v5928
    %v6553 = vpack.c.b16 %v5937, %v5929
    %v6554 = vpack.c.b16 %v5938, %v5930
    %v6555 = vpack.c.b16 %v5947, %v5939
    %v6556 = vpack.c.b16 %v5948, %v5940
    %v6557 = vpack.c.b16 %v5949, %v5941
    %v6558 = vpack.c.b16 %v5950, %v5942
    %v6559 = vpack.c.b16 %v5951, %v5943
    %v6560 = vpack.c.b16 %v5952, %v5944
    %v6561 = vpack.c.b16 %v5953, %v5945
    %v6562 = vpack.c.b16 %v5954, %v5946
    %v6563 = vpack.c.b16 %v5963, %v5955
    %v6564 = vpack.c.b16 %v5964, %v5956
    %v6565 = vpack.c.b16 %v5965, %v5957
    %v6566 = vpack.c.b16 %v5966, %v5958
    %v6567 = vpack.c.b16 %v5967, %v5959
    %v6568 = vpack.c.b16 %v5968, %v5960
    %v6569 = vpack.c.b16 %v5969, %v5961
    %v6570 = vpack.c.b16 %v5970, %v5962
    %v6571 = vpack.c.b16 %v5979, %v5971
    %v6572 = vpack.c.b16 %v5980, %v5972
    %v6573 = vpack.c.b16 %v5981, %v5973
    %v6574 = vpack.c.b16 %v5982, %v5974
    %v6575 = vpack.c.b16 %v5983, %v5975
    %v6576 = vpack.c.b16 %v5984, %v5976
    %v6577 = vpack.c.b16 %v5985, %v5977
    %v6578 = vpack.c.b16 %v5986, %v5978
    %v6579 = vpack.c.b16 %v5995, %v5987
    %v6580 = vpack.c.b16 %v5996, %v5988
    %v6581 = vpack.c.b16 %v5997, %v5989
    %v6582 = vpack.c.b16 %v5998, %v5990
    %v6583 = vpack.c.b16 %v5999, %v5991
    %v6584 = vpack.c.b16 %v6000, %v5992
    %v6585 = vpack.c.b16 %v6001, %v5993
    %v6586 = vpack.c.b16 %v6002, %v5994
    %v6587 = vpack.c.b16 %v6011, %v6003
    %v6588 = vpack.c.b16 %v6012, %v6004
    %v6589 = vpack.c.b16 %v6013, %v6005
    %v6590 = vpack.c.b16 %v6014, %v6006
    %v6591 = vpack.c.b16 %v6015, %v6007
    %v6592 = vpack.c.b16 %v6016, %v6008
    %v6593 = vpack.c.b16 %v6017, %v6009
    %v6594 = vpack.c.b16 %v6018, %v6010
    %v6595 = vpack.c.b16 %v6027, %v6019
    %v6596 = vpack.c.b16 %v6028, %v6020
    %v6597 = vpack.c.b16 %v6029, %v6021
    %v6598 = vpack.c.b16 %v6030, %v6022
    %v6599 = vpack.c.b16 %v6031, %v6023
    %v6600 = vpack.c.b16 %v6032, %v6024
    %v6601 = vpack.c.b16 %v6033, %v6025
    %v6602 = vpack.c.b16 %v6034, %v6026
    %v6603 = vpack.c.b16 %v6043, %v6035
    %v6604 = vpack.c.b16 %v6044, %v6036
    %v6605 = vpack.c.b16 %v6045, %v6037
    %v6606 = vpack.c.b16 %v6046, %v6038
    %v6607 = vpack.c.b16 %v6047, %v6039
    %v6608 = vpack.c.b16 %v6048, %v6040
    %v6609 = vpack.c.b16 %v6049, %v6041
    %v6610 = vpack.c.b16 %v6050, %v6042
    %v6611 = vpack.c.b16 %v6059, %v6051
    %v6612 = vpack.c.b16 %v6060, %v6052
    %v6613 = vpack.c.b16 %v6061, %v6053
    %v6614 = vpack.c.b16 %v6062, %v6054
    %v6615 = vpack.c.b16 %v6063, %v6055
    %v6616 = vpack.c.b16 %v6064, %v6056
    %v6617 = vpack.c.b16 %v6065, %v6057
    %v6618 = vpack.c.b16 %v6066, %v6058
    %v6619 = vpack.c.b16 %v6075, %v6067
    %v6620 = vpack.c.b16 %v6076, %v6068
    %v6621 = vpack.c.b16 %v6077, %v6069
    %v6622 = vpack.c.b16 %v6078, %v6070
    %v6623 = vpack.c.b16 %v6079, %v6071
    %v6624 = vpack.c.b16 %v6080, %v6072
    %v6625 = vpack.c.b16 %v6081, %v6073
    %v6626 = vpack.c.b16 %v6082, %v6074
    %v6627 = vpack.c.b16 %v6091, %v6083
    %v6628 = vpack.c.b16 %v6092, %v6084
    %v6629 = vpack.c.b16 %v6093, %v6085
    %v6630 = vpack.c.b16 %v6094, %v6086
    %v6631 = vpack.c.b16 %v6095, %v6087
    %v6632 = vpack.c.b16 %v6096, %v6088
    %v6633 = vpack.c.b16 %v6097, %v6089
    %v6634 = vpack.c.b16 %v6098, %v6090
    %v6635 = vpack.c.b16 %v6107, %v6099
    %v6636 = vpack.c.b16 %v6108, %v6100
    %v6637 = vpack.c.b16 %v6109, %v6101
    %v6638 = vpack.c.b16 %v6110, %v6102
    %v6639 = vpack.c.b16 %v6111, %v6103
    %v6640 = vpack.c.b16 %v6112, %v6104
    %v6641 = vpack.c.b16 %v6113, %v6105
    %v6642 = vpack.c.b16 %v6114, %v6106
    %v6643 = vpack.c.b16 %v6123, %v6115
    %v6644 = vpack.c.b16 %v6124, %v6116
    %v6645 = vpack.c.b16 %v6125, %v6117
    %v6646 = vpack.c.b16 %v6126, %v6118
    %v6647 = vpack.c.b16 %v6127, %v6119
    %v6648 = vpack.c.b16 %v6128, %v6120
    %v6649 = vpack.c.b16 %v6129, %v6121
    %v6650 = vpack.c.b16 %v6130, %v6122
    %v6651 = vpack.c.b16 %v6139, %v6131
    %v6652 = vpack.c.b16 %v6140, %v6132
    %v6653 = vpack.c.b16 %v6141, %v6133
    %v6654 = vpack.c.b16 %v6142, %v6134
    %v6655 = vpack.c.b16 %v6143, %v6135
    %v6656 = vpack.c.b16 %v6144, %v6136
    %v6657 = vpack.c.b16 %v6145, %v6137
    %v6658 = vpack.c.b16 %v6146, %v6138
    %7171 = vmatprep.subr.bf16.mxu0 %v6148
    %7172 = vmatpush1.bf16.msra.mxu0 %v6147
    %7173 = vmatprep.subr.bf16.mxu0 %v6156
    %7174 = vmatpush1.bf16.msra.mxu0 %v6155
    %7175 = vmatprep.subr.bf16.mxu0 %v6164
    %7176 = vmatpush1.bf16.msra.mxu0 %v6163
    %7177 = vmatprep.subr.bf16.mxu0 %v6172
    %7178 = vmatpush1.bf16.msra.mxu0 %v6171
    %7179 = vmatprep.subr.bf16.mxu0 %v6180
    %7180 = vmatpush1.bf16.msra.mxu0 %v6179
    %7181 = vmatprep.subr.bf16.mxu0 %v6188
    %7182 = vmatpush1.bf16.msra.mxu0 %v6187
    %7183 = vmatprep.subr.bf16.mxu0 %v6196
    %7184 = vmatpush1.bf16.msra.mxu0 %v6195
    %7185 = vmatprep.subr.bf16.mxu0 %v6204
    %7186 = vmatpush1.bf16.msra.mxu0 %v6203
    %7187 = vmatprep.subr.bf16.mxu0 %v6212
    %7188 = vmatpush1.bf16.msra.mxu0 %v6211
    %7189 = vmatprep.subr.bf16.mxu0 %v6220
    %7190 = vmatpush1.bf16.msra.mxu0 %v6219
    %7191 = vmatprep.subr.bf16.mxu0 %v6228
    %7192 = vmatpush1.bf16.msra.mxu0 %v6227
    %7193 = vmatprep.subr.bf16.mxu0 %v6236
    %7194 = vmatpush1.bf16.msra.mxu0 %v6235
    %7195 = vmatprep.subr.bf16.mxu0 %v6244
    %7196 = vmatpush1.bf16.msra.mxu0 %v6243
    %7197 = vmatprep.subr.bf16.mxu0 %v6252
    %7198 = vmatpush1.bf16.msra.mxu0 %v6251
    %7199 = vmatprep.subr.bf16.mxu0 %v6260
    %7200 = vmatpush1.bf16.msra.mxu0 %v6259
    %7201 = vmatprep.subr.bf16.mxu0 %v6268
    %7202 = vmatpush1.bf16.msra.mxu0 %v6267
    %7203 = vmatprep.mubr.bf16.mxu0 %v4591
    %7204 = vmatmul.mubr.bf16.gmra.mrb[0].mxu0 %v4577
    %v7205 = vpop.f32.mrb[0].mxu0
    %v7206 = vadd.f32 0.0, %v7205
    %v7207 = vpop.f32.mrb[0].mxu0
    %v7208 = vadd.f32 0.0, %v7207
    %v7209 = vpop.f32.mrb[0].mxu0
    %v7210 = vpop.f32.mrb[0].mxu0
    %7211 = vdwg.mxu0
    %7212 = vmatprep.subr.bf16.mxu0 %v6276
    %7213 = vmatpush1.bf16.msra.mxu0 %v6275
    %7214 = vmatprep.subr.bf16.mxu0 %v6284
    %7215 = vmatpush1.bf16.msra.mxu0 %v6283
    %7216 = vmatprep.subr.bf16.mxu0 %v6292
    %7217 = vmatpush1.bf16.msra.mxu0 %v6291
    %7218 = vmatprep.subr.bf16.mxu0 %v6300
    %7219 = vmatpush1.bf16.msra.mxu0 %v6299
    %7220 = vmatprep.subr.bf16.mxu0 %v6308
    %7221 = vmatpush1.bf16.msra.mxu0 %v6307
    %7222 = vmatprep.subr.bf16.mxu0 %v6316
    %7223 = vmatpush1.bf16.msra.mxu0 %v6315
    %7224 = vmatprep.subr.bf16.mxu0 %v6324
    %7225 = vmatpush1.bf16.msra.mxu0 %v6323
    %7226 = vmatprep.subr.bf16.mxu0 %v6332
    %7227 = vmatpush1.bf16.msra.mxu0 %v6331
    %7228 = vmatprep.subr.bf16.mxu0 %v6340
    %7229 = vmatpush1.bf16.msra.mxu0 %v6339
    %7230 = vmatprep.subr.bf16.mxu0 %v6348
    %7231 = vmatpush1.bf16.msra.mxu0 %v6347
    %7232 = vmatprep.subr.bf16.mxu0 %v6356
    %7233 = vmatpush1.bf16.msra.mxu0 %v6355
    %7234 = vmatprep.subr.bf16.mxu0 %v6364
    %7235 = vmatpush1.bf16.msra.mxu0 %v6363
    %7236 = vmatprep.subr.bf16.mxu0 %v6372
    %7237 = vmatpush1.bf16.msra.mxu0 %v6371
    %7238 = vmatprep.subr.bf16.mxu0 %v6380
    %7239 = vmatpush1.bf16.msra.mxu0 %v6379
    %7240 = vmatprep.subr.bf16.mxu0 %v6388
    %7241 = vmatpush1.bf16.msra.mxu0 %v6387
    %7242 = vmatprep.subr.bf16.mxu0 %v6396
    %7243 = vmatpush1.bf16.msra.mxu0 %v6395
    %7244 = vmatprep.mubr.bf16.mxu0 %v4601
    %7245 = vmatmul.mubr.bf16.gmra.mrb[0].mxu0 %v4599
    %v7246 = vpop.f32.mrb[0].mxu0
    %v7247 = vadd.f32 %v7206, %v7246
    %v7248 = vpop.f32.mrb[0].mxu0
    %v7249 = vadd.f32 %v7208, %v7248
    %v7250 = vpop.f32.mrb[0].mxu0
    %v7251 = vpop.f32.mrb[0].mxu0
    %7252 = vdwg.mxu0
    %7253 = vmatprep.subr.bf16.mxu0 %v6404
    %7254 = vmatpush1.bf16.msra.mxu0 %v6403
    %7255 = vmatprep.subr.bf16.mxu0 %v6412
    %7256 = vmatpush1.bf16.msra.mxu0 %v6411
    %7257 = vmatprep.subr.bf16.mxu0 %v6420
    %7258 = vmatpush1.bf16.msra.mxu0 %v6419
    %7259 = vmatprep.subr.bf16.mxu0 %v6428
    %7260 = vmatpush1.bf16.msra.mxu0 %v6427
    %7261 = vmatprep.subr.bf16.mxu0 %v6436
    %7262 = vmatpush1.bf16.msra.mxu0 %v6435
    %7263 = vmatprep.subr.bf16.mxu0 %v6444
    %7264 = vmatpush1.bf16.msra.mxu0 %v6443
    %7265 = vmatprep.subr.bf16.mxu0 %v6452
    %7266 = vmatpush1.bf16.msra.mxu0 %v6451
    %7267 = vmatprep.subr.bf16.mxu0 %v6460
    %7268 = vmatpush1.bf16.msra.mxu0 %v6459
    %7269 = vmatprep.subr.bf16.mxu0 %v6468
    %7270 = vmatpush1.bf16.msra.mxu0 %v6467
    %7271 = vmatprep.subr.bf16.mxu0 %v6476
    %7272 = vmatpush1.bf16.msra.mxu0 %v6475
    %7273 = vmatprep.subr.bf16.mxu0 %v6484
    %7274 = vmatpush1.bf16.msra.mxu0 %v6483
    %7275 = vmatprep.subr.bf16.mxu0 %v6492
    %7276 = vmatpush1.bf16.msra.mxu0 %v6491
    %7277 = vmatprep.subr.bf16.mxu0 %v6500
    %7278 = vmatpush1.bf16.msra.mxu0 %v6499
    %7279 = vmatprep.subr.bf16.mxu0 %v6508
    %7280 = vmatpush1.bf16.msra.mxu0 %v6507
    %7281 = vmatprep.subr.bf16.mxu0 %v6516
    %7282 = vmatpush1.bf16.msra.mxu0 %v6515
    %7283 = vmatprep.subr.bf16.mxu0 %v6524
    %7284 = vmatpush1.bf16.msra.mxu0 %v6523
    %7285 = vmatprep.mubr.bf16.mxu0 %v4598
    %7286 = vmatmul.mubr.bf16.gmra.mrb[0].mxu0 %v4584
    %v7287 = vpop.f32.mrb[0].mxu0
    %v7288 = vadd.f32 %v7247, %v7287
    %v7289 = vpop.f32.mrb[0].mxu0
    %v7290 = vadd.f32 %v7249, %v7289
    %v7291 = vpop.f32.mrb[0].mxu0
    %v7292 = vpop.f32.mrb[0].mxu0
    %7293 = vdwg.mxu0
    %7294 = vmatprep.subr.bf16.mxu0 %v6532
    %7295 = vmatpush1.bf16.msra.mxu0 %v6531
    %7296 = vmatprep.subr.bf16.mxu0 %v6540
    %7297 = vmatpush1.bf16.msra.mxu0 %v6539
    %7298 = vmatprep.subr.bf16.mxu0 %v6548
    %7299 = vmatpush1.bf16.msra.mxu0 %v6547
    %7300 = vmatprep.subr.bf16.mxu0 %v6556
    %7301 = vmatpush1.bf16.msra.mxu0 %v6555
    %7302 = vmatprep.subr.bf16.mxu0 %v6564
    %7303 = vmatpush1.bf16.msra.mxu0 %v6563
    %7304 = vmatprep.subr.bf16.mxu0 %v6572
    %7305 = vmatpush1.bf16.msra.mxu0 %v6571
    %7306 = vmatprep.subr.bf16.mxu0 %v6580
    %7307 = vmatpush1.bf16.msra.mxu0 %v6579
    %7308 = vmatprep.subr.bf16.mxu0 %v6588
    %7309 = vmatpush1.bf16.msra.mxu0 %v6587
    %7310 = vmatprep.subr.bf16.mxu0 %v6596
    %7311 = vmatpush1.bf16.msra.mxu0 %v6595
    %7312 = vmatprep.subr.bf16.mxu0 %v6604
    %7313 = vmatpush1.bf16.msra.mxu0 %v6603
    %7314 = vmatprep.subr.bf16.mxu0 %v6612
    %7315 = vmatpush1.bf16.msra.mxu0 %v6611
    %7316 = vmatprep.subr.bf16.mxu0 %v6620
    %7317 = vmatpush1.bf16.msra.mxu0 %v6619
    %7318 = vmatprep.subr.bf16.mxu0 %v6628
    %7319 = vmatpush1.bf16.msra.mxu0 %v6627
    %7320 = vmatprep.subr.bf16.mxu0 %v6636
    %7321 = vmatpush1.bf16.msra.mxu0 %v6635
    %7322 = vmatprep.subr.bf16.mxu0 %v6644
    %7323 = vmatpush1.bf16.msra.mxu0 %v6643
    %7324 = vmatprep.subr.bf16.mxu0 %v6652
    %7325 = vmatpush1.bf16.msra.mxu0 %v6651
    %7326 = vmatprep.mubr.bf16.mxu0 %v4602
    %7327 = vmatmul.mubr.bf16.gmra.mrb[0].mxu0 %v4600
    %v7328 = vpop.f32.mrb[0].mxu0
    %v7329 = vadd.f32 %v7288, %v7328
    %v7330 = vpop.f32.mrb[0].mxu0
    %v7331 = vadd.f32 %v7290, %v7330
    %v7332 = vpop.f32.mrb[0].mxu0
    %v7333 = vpop.f32.mrb[0].mxu0
    %7334 = vdwg.mxu0
    %7335 = vmatprep.subr.bf16.mxu0 %v6150
    %7336 = vmatpush1.bf16.msra.mxu0 %v6149
    %7337 = vmatprep.subr.bf16.mxu0 %v6158
    %7338 = vmatpush1.bf16.msra.mxu0 %v6157
    %7339 = vmatprep.subr.bf16.mxu0 %v6166
    %7340 = vmatpush1.bf16.msra.mxu0 %v6165
    %7341 = vmatprep.subr.bf16.mxu0 %v6174
    %7342 = vmatpush1.bf16.msra.mxu0 %v6173
    %7343 = vmatprep.subr.bf16.mxu0 %v6182
    %7344 = vmatpush1.bf16.msra.mxu0 %v6181
    %7345 = vmatprep.subr.bf16.mxu0 %v6190
    %7346 = vmatpush1.bf16.msra.mxu0 %v6189
    %7347 = vmatprep.subr.bf16.mxu0 %v6198
    %7348 = vmatpush1.bf16.msra.mxu0 %v6197
    %7349 = vmatprep.subr.bf16.mxu0 %v6206
    %7350 = vmatpush1.bf16.msra.mxu0 %v6205
    %7351 = vmatprep.subr.bf16.mxu0 %v6214
    %7352 = vmatpush1.bf16.msra.mxu0 %v6213
    %7353 = vmatprep.subr.bf16.mxu0 %v6222
    %7354 = vmatpush1.bf16.msra.mxu0 %v6221
    %7355 = vmatprep.subr.bf16.mxu0 %v6230
    %7356 = vmatpush1.bf16.msra.mxu0 %v6229
    %7357 = vmatprep.subr.bf16.mxu0 %v6238
    %7358 = vmatpush1.bf16.msra.mxu0 %v6237
    %7359 = vmatprep.subr.bf16.mxu0 %v6246
    %7360 = vmatpush1.bf16.msra.mxu0 %v6245
    %7361 = vmatprep.subr.bf16.mxu0 %v6254
    %7362 = vmatpush1.bf16.msra.mxu0 %v6253
    %7363 = vmatprep.subr.bf16.mxu0 %v6262
    %7364 = vmatpush1.bf16.msra.mxu0 %v6261
    %7365 = vmatprep.subr.bf16.mxu0 %v6270
    %7366 = vmatpush1.bf16.msra.mxu0 %v6269
    %7367 = vmatprep.mubr.bf16.mxu0 %v4591
    %7368 = vmatmul.mubr.bf16.gmra.mrb[0].mxu0 %v4577
    %v7369 = vpop.f32.mrb[0].mxu0
    %v7370 = vadd.f32 0.0, %v7369
    %v7371 = vpop.f32.mrb[0].mxu0
    %v7372 = vadd.f32 0.0, %v7371
    %v7373 = vpop.f32.mrb[0].mxu0
    %v7374 = vpop.f32.mrb[0].mxu0
    %7375 = vdwg.mxu0
    %7376 = vmatprep.subr.bf16.mxu0 %v6278
    %7377 = vmatpush1.bf16.msra.mxu0 %v6277
    %7378 = vmatprep.subr.bf16.mxu0 %v6286
    %7379 = vmatpush1.bf16.msra.mxu0 %v6285
    %7380 = vmatprep.subr.bf16.mxu0 %v6294
    %7381 = vmatpush1.bf16.msra.mxu0 %v6293
    %7382 = vmatprep.subr.bf16.mxu0 %v6302
    %7383 = vmatpush1.bf16.msra.mxu0 %v6301
    %7384 = vmatprep.subr.bf16.mxu0 %v6310
    %7385 = vmatpush1.bf16.msra.mxu0 %v6309
    %7386 = vmatprep.subr.bf16.mxu0 %v6318
    %7387 = vmatpush1.bf16.msra.mxu0 %v6317
    %7388 = vmatprep.subr.bf16.mxu0 %v6326
    %7389 = vmatpush1.bf16.msra.mxu0 %v6325
    %7390 = vmatprep.subr.bf16.mxu0 %v6334
    %7391 = vmatpush1.bf16.msra.mxu0 %v6333
    %7392 = vmatprep.subr.bf16.mxu0 %v6342
    %7393 = vmatpush1.bf16.msra.mxu0 %v6341
    %7394 = vmatprep.subr.bf16.mxu0 %v6350
    %7395 = vmatpush1.bf16.msra.mxu0 %v6349
    %7396 = vmatprep.subr.bf16.mxu0 %v6358
    %7397 = vmatpush1.bf16.msra.mxu0 %v6357
    %7398 = vmatprep.subr.bf16.mxu0 %v6366
    %7399 = vmatpush1.bf16.msra.mxu0 %v6365
    %7400 = vmatprep.subr.bf16.mxu0 %v6374
    %7401 = vmatpush1.bf16.msra.mxu0 %v6373
    %7402 = vmatprep.subr.bf16.mxu0 %v6382
    %7403 = vmatpush1.bf16.msra.mxu0 %v6381
    %7404 = vmatprep.subr.bf16.mxu0 %v6390
    %7405 = vmatpush1.bf16.msra.mxu0 %v6389
    %7406 = vmatprep.subr.bf16.mxu0 %v6398
    %7407 = vmatpush1.bf16.msra.mxu0 %v6397
    %7408 = vmatprep.mubr.bf16.mxu0 %v4601
    %7409 = vmatmul.mubr.bf16.gmra.mrb[0].mxu0 %v4599
    %v7410 = vpop.f32.mrb[0].mxu0
    %v7411 = vadd.f32 %v7370, %v7410
    %v7412 = vpop.f32.mrb[0].mxu0
    %v7413 = vadd.f32 %v7372, %v7412
    %v7414 = vpop.f32.mrb[0].mxu0
    %v7415 = vpop.f32.mrb[0].mxu0
    %7416 = vdwg.mxu0
    %7417 = vmatprep.subr.bf16.mxu0 %v6406
    %7418 = vmatpush1.bf16.msra.mxu0 %v6405
    %7419 = vmatprep.subr.bf16.mxu0 %v6414
    %7420 = vmatpush1.bf16.msra.mxu0 %v6413
    %7421 = vmatprep.subr.bf16.mxu0 %v6422
    %7422 = vmatpush1.bf16.msra.mxu0 %v6421
    %7423 = vmatprep.subr.bf16.mxu0 %v6430
    %7424 = vmatpush1.bf16.msra.mxu0 %v6429
    %7425 = vmatprep.subr.bf16.mxu0 %v6438
    %7426 = vmatpush1.bf16.msra.mxu0 %v6437
    %7427 = vmatprep.subr.bf16.mxu0 %v6446
    %7428 = vmatpush1.bf16.msra.mxu0 %v6445
    %7429 = vmatprep.subr.bf16.mxu0 %v6454
    %7430 = vmatpush1.bf16.msra.mxu0 %v6453
    %7431 = vmatprep.subr.bf16.mxu0 %v6462
    %7432 = vmatpush1.bf16.msra.mxu0 %v6461
    %7433 = vmatprep.subr.bf16.mxu0 %v6470
    %7434 = vmatpush1.bf16.msra.mxu0 %v6469
    %7435 = vmatprep.subr.bf16.mxu0 %v6478
    %7436 = vmatpush1.bf16.msra.mxu0 %v6477
    %7437 = vmatprep.subr.bf16.mxu0 %v6486
    %7438 = vmatpush1.bf16.msra.mxu0 %v6485
    %7439 = vmatprep.subr.bf16.mxu0 %v6494
    %7440 = vmatpush1.bf16.msra.mxu0 %v6493
    %7441 = vmatprep.subr.bf16.mxu0 %v6502
    %7442 = vmatpush1.bf16.msra.mxu0 %v6501
    %7443 = vmatprep.subr.bf16.mxu0 %v6510
    %7444 = vmatpush1.bf16.msra.mxu0 %v6509
    %7445 = vmatprep.subr.bf16.mxu0 %v6518
    %7446 = vmatpush1.bf16.msra.mxu0 %v6517
    %7447 = vmatprep.subr.bf16.mxu0 %v6526
    %7448 = vmatpush1.bf16.msra.mxu0 %v6525
    %7449 = vmatprep.mubr.bf16.mxu0 %v4598
    %7450 = vmatmul.mubr.bf16.gmra.mrb[0].mxu0 %v4584
    %v7451 = vpop.f32.mrb[0].mxu0
    %v7452 = vadd.f32 %v7411, %v7451
    %v7453 = vpop.f32.mrb[0].mxu0
    %v7454 = vadd.f32 %v7413, %v7453
    %v7455 = vpop.f32.mrb[0].mxu0
    %v7456 = vpop.f32.mrb[0].mxu0
    %7457 = vdwg.mxu0
    %7458 = vmatprep.subr.bf16.mxu0 %v6534
    %7459 = vmatpush1.bf16.msra.mxu0 %v6533
    %7460 = vmatprep.subr.bf16.mxu0 %v6542
    %7461 = vmatpush1.bf16.msra.mxu0 %v6541
    %7462 = vmatprep.subr.bf16.mxu0 %v6550
    %7463 = vmatpush1.bf16.msra.mxu0 %v6549
    %7464 = vmatprep.subr.bf16.mxu0 %v6558
    %7465 = vmatpush1.bf16.msra.mxu0 %v6557
    %7466 = vmatprep.subr.bf16.mxu0 %v6566
    %7467 = vmatpush1.bf16.msra.mxu0 %v6565
    %7468 = vmatprep.subr.bf16.mxu0 %v6574
    %7469 = vmatpush1.bf16.msra.mxu0 %v6573
    %7470 = vmatprep.subr.bf16.mxu0 %v6582
    %7471 = vmatpush1.bf16.msra.mxu0 %v6581
    %7472 = vmatprep.subr.bf16.mxu0 %v6590
    %7473 = vmatpush1.bf16.msra.mxu0 %v6589
    %7474 = vmatprep.subr.bf16.mxu0 %v6598
    %7475 = vmatpush1.bf16.msra.mxu0 %v6597
    %7476 = vmatprep.subr.bf16.mxu0 %v6606
    %7477 = vmatpush1.bf16.msra.mxu0 %v6605
    %7478 = vmatprep.subr.bf16.mxu0 %v6614
    %7479 = vmatpush1.bf16.msra.mxu0 %v6613
    %7480 = vmatprep.subr.bf16.mxu0 %v6622
    %7481 = vmatpush1.bf16.msra.mxu0 %v6621
    %7482 = vmatprep.subr.bf16.mxu0 %v6630
    %7483 = vmatpush1.bf16.msra.mxu0 %v6629
    %7484 = vmatprep.subr.bf16.mxu0 %v6638
    %7485 = vmatpush1.bf16.msra.mxu0 %v6637
    %7486 = vmatprep.subr.bf16.mxu0 %v6646
    %7487 = vmatpush1.bf16.msra.mxu0 %v6645
    %7488 = vmatprep.subr.bf16.mxu0 %v6654
    %7489 = vmatpush1.bf16.msra.mxu0 %v6653
    %7490 = vmatprep.mubr.bf16.mxu0 %v4602
    %7491 = vmatmul.mubr.bf16.gmra.mrb[0].mxu0 %v4600
    %v7492 = vpop.f32.mrb[0].mxu0
    %v7493 = vadd.f32 %v7452, %v7492
    %v7494 = vpop.f32.mrb[0].mxu0
    %v7495 = vadd.f32 %v7454, %v7494
    %v7496 = vpop.f32.mrb[0].mxu0
    %v7497 = vpop.f32.mrb[0].mxu0
    %7498 = vdwg.mxu0
    %7499 = vmatprep.subr.bf16.mxu0 %v6152
    %7500 = vmatpush1.bf16.msra.mxu0 %v6151
    %7501 = vmatprep.subr.bf16.mxu0 %v6160
    %7502 = vmatpush1.bf16.msra.mxu0 %v6159
    %7503 = vmatprep.subr.bf16.mxu0 %v6168
    %7504 = vmatpush1.bf16.msra.mxu0 %v6167
    %7505 = vmatprep.subr.bf16.mxu0 %v6176
    %7506 = vmatpush1.bf16.msra.mxu0 %v6175
    %7507 = vmatprep.subr.bf16.mxu0 %v6184
    %7508 = vmatpush1.bf16.msra.mxu0 %v6183
    %7509 = vmatprep.subr.bf16.mxu0 %v6192
    %7510 = vmatpush1.bf16.msra.mxu0 %v6191
    %7511 = vmatprep.subr.bf16.mxu0 %v6200
    %7512 = vmatpush1.bf16.msra.mxu0 %v6199
    %7513 = vmatprep.subr.bf16.mxu0 %v6208
    %7514 = vmatpush1.bf16.msra.mxu0 %v6207
    %7515 = vmatprep.subr.bf16.mxu0 %v6216
    %7516 = vmatpush1.bf16.msra.mxu0 %v6215
    %7517 = vmatprep.subr.bf16.mxu0 %v6224
    %7518 = vmatpush1.bf16.msra.mxu0 %v6223
    %7519 = vmatprep.subr.bf16.mxu0 %v6232
    %7520 = vmatpush1.bf16.msra.mxu0 %v6231
    %7521 = vmatprep.subr.bf16.mxu0 %v6240
    %7522 = vmatpush1.bf16.msra.mxu0 %v6239
    %7523 = vmatprep.subr.bf16.mxu0 %v6248
    %7524 = vmatpush1.bf16.msra.mxu0 %v6247
    %7525 = vmatprep.subr.bf16.mxu0 %v6256
    %7526 = vmatpush1.bf16.msra.mxu0 %v6255
    %7527 = vmatprep.subr.bf16.mxu0 %v6264
    %7528 = vmatpush1.bf16.msra.mxu0 %v6263
    %7529 = vmatprep.subr.bf16.mxu0 %v6272
    %7530 = vmatpush1.bf16.msra.mxu0 %v6271
    %7531 = vmatprep.mubr.bf16.mxu0 %v4591
    %7532 = vmatmul.mubr.bf16.gmra.mrb[0].mxu0 %v4577
    %v7533 = vpop.f32.mrb[0].mxu0
    %v7534 = vadd.f32 0.0, %v7533
    %v7535 = vpop.f32.mrb[0].mxu0
    %v7536 = vadd.f32 0.0, %v7535
    %v7537 = vpop.f32.mrb[0].mxu0
    %v7538 = vpop.f32.mrb[0].mxu0
    %7539 = vdwg.mxu0
    %7540 = vmatprep.subr.bf16.mxu0 %v6280
    %7541 = vmatpush1.bf16.msra.mxu0 %v6279
    %7542 = vmatprep.subr.bf16.mxu0 %v6288
    %7543 = vmatpush1.bf16.msra.mxu0 %v6287
    %7544 = vmatprep.subr.bf16.mxu0 %v6296
    %7545 = vmatpush1.bf16.msra.mxu0 %v6295
    %7546 = vmatprep.subr.bf16.mxu0 %v6304
    %7547 = vmatpush1.bf16.msra.mxu0 %v6303
    %7548 = vmatprep.subr.bf16.mxu0 %v6312
    %7549 = vmatpush1.bf16.msra.mxu0 %v6311
    %7550 = vmatprep.subr.bf16.mxu0 %v6320
    %7551 = vmatpush1.bf16.msra.mxu0 %v6319
    %7552 = vmatprep.subr.bf16.mxu0 %v6328
    %7553 = vmatpush1.bf16.msra.mxu0 %v6327
    %7554 = vmatprep.subr.bf16.mxu0 %v6336
    %7555 = vmatpush1.bf16.msra.mxu0 %v6335
    %7556 = vmatprep.subr.bf16.mxu0 %v6344
    %7557 = vmatpush1.bf16.msra.mxu0 %v6343
    %7558 = vmatprep.subr.bf16.mxu0 %v6352
    %7559 = vmatpush1.bf16.msra.mxu0 %v6351
    %7560 = vmatprep.subr.bf16.mxu0 %v6360
    %7561 = vmatpush1.bf16.msra.mxu0 %v6359
    %7562 = vmatprep.subr.bf16.mxu0 %v6368
    %7563 = vmatpush1.bf16.msra.mxu0 %v6367
    %7564 = vmatprep.subr.bf16.mxu0 %v6376
    %7565 = vmatpush1.bf16.msra.mxu0 %v6375
    %7566 = vmatprep.subr.bf16.mxu0 %v6384
    %7567 = vmatpush1.bf16.msra.mxu0 %v6383
    %7568 = vmatprep.subr.bf16.mxu0 %v6392
    %7569 = vmatpush1.bf16.msra.mxu0 %v6391
    %7570 = vmatprep.subr.bf16.mxu0 %v6400
    %7571 = vmatpush1.bf16.msra.mxu0 %v6399
    %7572 = vmatprep.mubr.bf16.mxu0 %v4601
    %7573 = vmatmul.mubr.bf16.gmra.mrb[0].mxu0 %v4599
    %v7574 = vpop.f32.mrb[0].mxu0
    %v7575 = vadd.f32 %v7534, %v7574
    %v7576 = vpop.f32.mrb[0].mxu0
    %v7577 = vadd.f32 %v7536, %v7576
    %v7578 = vpop.f32.mrb[0].mxu0
    %v7579 = vpop.f32.mrb[0].mxu0
    %7580 = vdwg.mxu0
    %7581 = vmatprep.subr.bf16.mxu0 %v6408
    %7582 = vmatpush1.bf16.msra.mxu0 %v6407
    %7583 = vmatprep.subr.bf16.mxu0 %v6416
    %7584 = vmatpush1.bf16.msra.mxu0 %v6415
    %7585 = vmatprep.subr.bf16.mxu0 %v6424
    %7586 = vmatpush1.bf16.msra.mxu0 %v6423
    %7587 = vmatprep.subr.bf16.mxu0 %v6432
    %7588 = vmatpush1.bf16.msra.mxu0 %v6431
    %7589 = vmatprep.subr.bf16.mxu0 %v6440
    %7590 = vmatpush1.bf16.msra.mxu0 %v6439
    %7591 = vmatprep.subr.bf16.mxu0 %v6448
    %7592 = vmatpush1.bf16.msra.mxu0 %v6447
    %7593 = vmatprep.subr.bf16.mxu0 %v6456
    %7594 = vmatpush1.bf16.msra.mxu0 %v6455
    %7595 = vmatprep.subr.bf16.mxu0 %v6464
    %7596 = vmatpush1.bf16.msra.mxu0 %v6463
    %7597 = vmatprep.subr.bf16.mxu0 %v6472
    %7598 = vmatpush1.bf16.msra.mxu0 %v6471
    %7599 = vmatprep.subr.bf16.mxu0 %v6480
    %7600 = vmatpush1.bf16.msra.mxu0 %v6479
    %7601 = vmatprep.subr.bf16.mxu0 %v6488
    %7602 = vmatpush1.bf16.msra.mxu0 %v6487
    %7603 = vmatprep.subr.bf16.mxu0 %v6496
    %7604 = vmatpush1.bf16.msra.mxu0 %v6495
    %7605 = vmatprep.subr.bf16.mxu0 %v6504
    %7606 = vmatpush1.bf16.msra.mxu0 %v6503
    %7607 = vmatprep.subr.bf16.mxu0 %v6512
    %7608 = vmatpush1.bf16.msra.mxu0 %v6511
    %7609 = vmatprep.subr.bf16.mxu0 %v6520
    %7610 = vmatpush1.bf16.msra.mxu0 %v6519
    %7611 = vmatprep.subr.bf16.mxu0 %v6528
    %7612 = vmatpush1.bf16.msra.mxu0 %v6527
    %7613 = vmatprep.mubr.bf16.mxu0 %v4598
    %7614 = vmatmul.mubr.bf16.gmra.mrb[0].mxu0 %v4584
    %v7615 = vpop.f32.mrb[0].mxu0
    %v7616 = vadd.f32 %v7575, %v7615
    %v7617 = vpop.f32.mrb[0].mxu0
    %v7618 = vadd.f32 %v7577, %v7617
    %v7619 = vpop.f32.mrb[0].mxu0
    %v7620 = vpop.f32.mrb[0].mxu0
    %7621 = vdwg.mxu0
    %7622 = vmatprep.subr.bf16.mxu0 %v6536
    %7623 = vmatpush1.bf16.msra.mxu0 %v6535
    %7624 = vmatprep.subr.bf16.mxu0 %v6544
    %7625 = vmatpush1.bf16.msra.mxu0 %v6543
    %7626 = vmatprep.subr.bf16.mxu0 %v6552
    %7627 = vmatpush1.bf16.msra.mxu0 %v6551
    %7628 = vmatprep.subr.bf16.mxu0 %v6560
    %7629 = vmatpush1.bf16.msra.mxu0 %v6559
    %7630 = vmatprep.subr.bf16.mxu0 %v6568
    %7631 = vmatpush1.bf16.msra.mxu0 %v6567
    %7632 = vmatprep.subr.bf16.mxu0 %v6576
    %7633 = vmatpush1.bf16.msra.mxu0 %v6575
    %7634 = vmatprep.subr.bf16.mxu0 %v6584
    %7635 = vmatpush1.bf16.msra.mxu0 %v6583
    %7636 = vmatprep.subr.bf16.mxu0 %v6592
    %7637 = vmatpush1.bf16.msra.mxu0 %v6591
    %7638 = vmatprep.subr.bf16.mxu0 %v6600
    %7639 = vmatpush1.bf16.msra.mxu0 %v6599
    %7640 = vmatprep.subr.bf16.mxu0 %v6608
    %7641 = vmatpush1.bf16.msra.mxu0 %v6607
    %7642 = vmatprep.subr.bf16.mxu0 %v6616
    %7643 = vmatpush1.bf16.msra.mxu0 %v6615
    %7644 = vmatprep.subr.bf16.mxu0 %v6624
    %7645 = vmatpush1.bf16.msra.mxu0 %v6623
    %7646 = vmatprep.subr.bf16.mxu0 %v6632
    %7647 = vmatpush1.bf16.msra.mxu0 %v6631
    %7648 = vmatprep.subr.bf16.mxu0 %v6640
    %7649 = vmatpush1.bf16.msra.mxu0 %v6639
    %7650 = vmatprep.subr.bf16.mxu0 %v6648
    %7651 = vmatpush1.bf16.msra.mxu0 %v6647
    %7652 = vmatprep.subr.bf16.mxu0 %v6656
    %7653 = vmatpush1.bf16.msra.mxu0 %v6655
    %7654 = vmatprep.mubr.bf16.mxu0 %v4602
    %7655 = vmatmul.mubr.bf16.gmra.mrb[0].mxu0 %v4600
    %v7656 = vpop.f32.mrb[0].mxu0
    %v7657 = vadd.f32 %v7616, %v7656
    %v7658 = vpop.f32.mrb[0].mxu0
    %v7659 = vadd.f32 %v7618, %v7658
    %v7660 = vpop.f32.mrb[0].mxu0
    %v7661 = vpop.f32.mrb[0].mxu0
    %7662 = vdwg.mxu0
    %7663 = vmatprep.subr.bf16.mxu0 %v6154
    %7664 = vmatpush1.bf16.msra.mxu0 %v6153
    %7665 = vmatprep.subr.bf16.mxu0 %v6162
    %7666 = vmatpush1.bf16.msra.mxu0 %v6161
    %7667 = vmatprep.subr.bf16.mxu0 %v6170
    %7668 = vmatpush1.bf16.msra.mxu0 %v6169
    %7669 = vmatprep.subr.bf16.mxu0 %v6178
    %7670 = vmatpush1.bf16.msra.mxu0 %v6177
    %7671 = vmatprep.subr.bf16.mxu0 %v6186
    %7672 = vmatpush1.bf16.msra.mxu0 %v6185
    %7673 = vmatprep.subr.bf16.mxu0 %v6194
    %7674 = vmatpush1.bf16.msra.mxu0 %v6193
    %7675 = vmatprep.subr.bf16.mxu0 %v6202
    %7676 = vmatpush1.bf16.msra.mxu0 %v6201
    %7677 = vmatprep.subr.bf16.mxu0 %v6210
    %7678 = vmatpush1.bf16.msra.mxu0 %v6209
    %7679 = vmatprep.subr.bf16.mxu0 %v6218
    %7680 = vmatpush1.bf16.msra.mxu0 %v6217
    %7681 = vmatprep.subr.bf16.mxu0 %v6226
    %7682 = vmatpush1.bf16.msra.mxu0 %v6225
    %7683 = vmatprep.subr.bf16.mxu0 %v6234
    %7684 = vmatpush1.bf16.msra.mxu0 %v6233
    %7685 = vmatprep.subr.bf16.mxu0 %v6242
    %7686 = vmatpush1.bf16.msra.mxu0 %v6241
    %7687 = vmatprep.subr.bf16.mxu0 %v6250
    %7688 = vmatpush1.bf16.msra.mxu0 %v6249
    %7689 = vmatprep.subr.bf16.mxu0 %v6258
    %7690 = vmatpush1.bf16.msra.mxu0 %v6257
    %7691 = vmatprep.subr.bf16.mxu0 %v6266
    %7692 = vmatpush1.bf16.msra.mxu0 %v6265
    %7693 = vmatprep.subr.bf16.mxu0 %v6274
    %7694 = vmatpush1.bf16.msra.mxu0 %v6273
    %7695 = vmatprep.mubr.bf16.mxu0 %v4591
    %7696 = vmatmul.mubr.bf16.gmra.mrb[0].mxu0 %v4577
    %v7697 = vpop.f32.mrb[0].mxu0
    %v7698 = vadd.f32 0.0, %v7697
    %v7699 = vpop.f32.mrb[0].mxu0
    %v7700 = vadd.f32 0.0, %v7699
    %v7701 = vpop.f32.mrb[0].mxu0
    %v7702 = vpop.f32.mrb[0].mxu0
    %7703 = vdwg.mxu0
    %7704 = vmatprep.subr.bf16.mxu0 %v6282
    %7705 = vmatpush1.bf16.msra.mxu0 %v6281
    %7706 = vmatprep.subr.bf16.mxu0 %v6290
    %7707 = vmatpush1.bf16.msra.mxu0 %v6289
    %7708 = vmatprep.subr.bf16.mxu0 %v6298
    %7709 = vmatpush1.bf16.msra.mxu0 %v6297
    %7710 = vmatprep.subr.bf16.mxu0 %v6306
    %7711 = vmatpush1.bf16.msra.mxu0 %v6305
    %7712 = vmatprep.subr.bf16.mxu0 %v6314
    %7713 = vmatpush1.bf16.msra.mxu0 %v6313
    %7714 = vmatprep.subr.bf16.mxu0 %v6322
    %7715 = vmatpush1.bf16.msra.mxu0 %v6321
    %7716 = vmatprep.subr.bf16.mxu0 %v6330
    %7717 = vmatpush1.bf16.msra.mxu0 %v6329
    %7718 = vmatprep.subr.bf16.mxu0 %v6338
    %7719 = vmatpush1.bf16.msra.mxu0 %v6337
    %7720 = vmatprep.subr.bf16.mxu0 %v6346
    %7721 = vmatpush1.bf16.msra.mxu0 %v6345
    %7722 = vmatprep.subr.bf16.mxu0 %v6354
    %7723 = vmatpush1.bf16.msra.mxu0 %v6353
    %7724 = vmatprep.subr.bf16.mxu0 %v6362
    %7725 = vmatpush1.bf16.msra.mxu0 %v6361
    %7726 = vmatprep.subr.bf16.mxu0 %v6370
    %7727 = vmatpush1.bf16.msra.mxu0 %v6369
    %7728 = vmatprep.subr.bf16.mxu0 %v6378
    %7729 = vmatpush1.bf16.msra.mxu0 %v6377
    %7730 = vmatprep.subr.bf16.mxu0 %v6386
    %7731 = vmatpush1.bf16.msra.mxu0 %v6385
    %7732 = vmatprep.subr.bf16.mxu0 %v6394
    %7733 = vmatpush1.bf16.msra.mxu0 %v6393
    %7734 = vmatprep.subr.bf16.mxu0 %v6402
    %7735 = vmatpush1.bf16.msra.mxu0 %v6401
    %7736 = vmatprep.mubr.bf16.mxu0 %v4601
    %7737 = vmatmul.mubr.bf16.gmra.mrb[0].mxu0 %v4599
    %v7738 = vpop.f32.mrb[0].mxu0
    %v7739 = vadd.f32 %v7698, %v7738
    %v7740 = vpop.f32.mrb[0].mxu0
    %v7741 = vadd.f32 %v7700, %v7740
    %v7742 = vpop.f32.mrb[0].mxu0
    %v7743 = vpop.f32.mrb[0].mxu0
    %7744 = vdwg.mxu0
    %7745 = vmatprep.subr.bf16.mxu0 %v6410
    %7746 = vmatpush1.bf16.msra.mxu0 %v6409
    %7747 = vmatprep.subr.bf16.mxu0 %v6418
    %7748 = vmatpush1.bf16.msra.mxu0 %v6417
    %7749 = vmatprep.subr.bf16.mxu0 %v6426
    %7750 = vmatpush1.bf16.msra.mxu0 %v6425
    %7751 = vmatprep.subr.bf16.mxu0 %v6434
    %7752 = vmatpush1.bf16.msra.mxu0 %v6433
    %7753 = vmatprep.subr.bf16.mxu0 %v6442
    %7754 = vmatpush1.bf16.msra.mxu0 %v6441
    %7755 = vmatprep.subr.bf16.mxu0 %v6450
    %7756 = vmatpush1.bf16.msra.mxu0 %v6449
    %7757 = vmatprep.subr.bf16.mxu0 %v6458
    %7758 = vmatpush1.bf16.msra.mxu0 %v6457
    %7759 = vmatprep.subr.bf16.mxu0 %v6466
    %7760 = vmatpush1.bf16.msra.mxu0 %v6465
    %7761 = vmatprep.subr.bf16.mxu0 %v6474
    %7762 = vmatpush1.bf16.msra.mxu0 %v6473
    %7763 = vmatprep.subr.bf16.mxu0 %v6482
    %7764 = vmatpush1.bf16.msra.mxu0 %v6481
    %7765 = vmatprep.subr.bf16.mxu0 %v6490
    %7766 = vmatpush1.bf16.msra.mxu0 %v6489
    %7767 = vmatprep.subr.bf16.mxu0 %v6498
    %7768 = vmatpush1.bf16.msra.mxu0 %v6497
    %7769 = vmatprep.subr.bf16.mxu0 %v6506
    %7770 = vmatpush1.bf16.msra.mxu0 %v6505
    %7771 = vmatprep.subr.bf16.mxu0 %v6514
    %7772 = vmatpush1.bf16.msra.mxu0 %v6513
    %7773 = vmatprep.subr.bf16.mxu0 %v6522
    %7774 = vmatpush1.bf16.msra.mxu0 %v6521
    %7775 = vmatprep.subr.bf16.mxu0 %v6530
    %7776 = vmatpush1.bf16.msra.mxu0 %v6529
    %7777 = vmatprep.mubr.bf16.mxu0 %v4598
    %7778 = vmatmul.mubr.bf16.gmra.mrb[0].mxu0 %v4584
    %v7779 = vpop.f32.mrb[0].mxu0
    %v7780 = vadd.f32 %v7739, %v7779
    %v7781 = vpop.f32.mrb[0].mxu0
    %v7782 = vadd.f32 %v7741, %v7781
    %v7783 = vpop.f32.mrb[0].mxu0
    %v7784 = vpop.f32.mrb[0].mxu0
    %7785 = vdwg.mxu0
    %7786 = vmatprep.subr.bf16.mxu0 %v6538
    %7787 = vmatpush1.bf16.msra.mxu0 %v6537
    %7788 = vmatprep.subr.bf16.mxu0 %v6546
    %7789 = vmatpush1.bf16.msra.mxu0 %v6545
    %7790 = vmatprep.subr.bf16.mxu0 %v6554
    %7791 = vmatpush1.bf16.msra.mxu0 %v6553
    %7792 = vmatprep.subr.bf16.mxu0 %v6562
    %7793 = vmatpush1.bf16.msra.mxu0 %v6561
    %7794 = vmatprep.subr.bf16.mxu0 %v6570
    %7795 = vmatpush1.bf16.msra.mxu0 %v6569
    %7796 = vmatprep.subr.bf16.mxu0 %v6578
    %7797 = vmatpush1.bf16.msra.mxu0 %v6577
    %7798 = vmatprep.subr.bf16.mxu0 %v6586
    %7799 = vmatpush1.bf16.msra.mxu0 %v6585
    %7800 = vmatprep.subr.bf16.mxu0 %v6594
    %7801 = vmatpush1.bf16.msra.mxu0 %v6593
    %7802 = vmatprep.subr.bf16.mxu0 %v6602
    %7803 = vmatpush1.bf16.msra.mxu0 %v6601
    %7804 = vmatprep.subr.bf16.mxu0 %v6610
    %7805 = vmatpush1.bf16.msra.mxu0 %v6609
    %7806 = vmatprep.subr.bf16.mxu0 %v6618
    %7807 = vmatpush1.bf16.msra.mxu0 %v6617
    %7808 = vmatprep.subr.bf16.mxu0 %v6626
    %7809 = vmatpush1.bf16.msra.mxu0 %v6625
    %7810 = vmatprep.subr.bf16.mxu0 %v6634
    %7811 = vmatpush1.bf16.msra.mxu0 %v6633
    %7812 = vmatprep.subr.bf16.mxu0 %v6642
    %7813 = vmatpush1.bf16.msra.mxu0 %v6641
    %7814 = vmatprep.subr.bf16.mxu0 %v6650
    %7815 = vmatpush1.bf16.msra.mxu0 %v6649
    %7816 = vmatprep.subr.bf16.mxu0 %v6658
    %7817 = vmatpush1.bf16.msra.mxu0 %v6657
    %7818 = vmatprep.mubr.bf16.mxu0 %v4602
    %7819 = vmatmul.mubr.bf16.gmra.mrb[0].mxu0 %v4600
    %v7820 = vpop.f32.mrb[0].mxu0
    %v7821 = vadd.f32 %v7780, %v7820
    %v7822 = vpop.f32.mrb[0].mxu0
    %v7823 = vadd.f32 %v7782, %v7822
    %v7824 = vpop.f32.mrb[0].mxu0
    %v7825 = vpop.f32.mrb[0].mxu0
    %7826 = vdwg.mxu0
    %v7835 = vcombine.low %v7329, %v7331
    %v7836 = vcombine.low %v7493, %v7495
    %v7838 = vunpack.c.l.s4 1983009808
    %v7839 = vunpack.c.0.s8 %v7838
    %v7840 = vlaneseq
    %v7841 = vshrl.u32 %v7840, 7
    %v7842 = vsub.s32 %v7839, %v7841
    %v7843 = vrot.slane %v7835, %v7842
    %v7845 = vunpack.c.l.s4 1983009808
    %v7846 = vunpack.c.0.s8 %v7845
    %v7847 = vlaneseq
    %v7848 = vshrl.u32 %v7847, 7
    %v7849 = vsub.s32 %v7846, %v7848
    %v7850 = vrot.slane %v7836, %v7849
    %v7851 = vcombine.low %v7843, %v7850
    %v7852 = vcombine.low %v7657, %v7659
    %v7853 = vcombine.low %v7821, %v7823
    %v7855 = vunpack.c.l.s4 1983009808
    %v7856 = vunpack.c.0.s8 %v7855
    %v7857 = vlaneseq
    %v7858 = vshrl.u32 %v7857, 7
    %v7859 = vsub.s32 %v7856, %v7858
    %v7860 = vrot.slane %v7852, %v7859
    %v7862 = vunpack.c.l.s4 1983009808
    %v7863 = vunpack.c.0.s8 %v7862
    %v7864 = vlaneseq
    %v7865 = vshrl.u32 %v7864, 7
    %v7866 = vsub.s32 %v7863, %v7865
    %v7867 = vrot.slane %v7853, %v7866
    %v7868 = vcombine.low %v7860, %v7867
    %v7871 = vadd.f32 %v4551, %v7851
    %v7872 = vadd.f32 %v4552, %v7868
    %7873 = vst [vmem:[#allocation2 + $0x10] sm:$0xff] %v7871
    %7874 = vst [vmem:[#allocation2 + $0x18] sm:$0xff] %v7872
    // Predicated region
    $region102: #{tpu_custom_call.1} parent=1 // pred_check
      %p7875 = pneg %p190
    $region103: #{tpu_custom_call.1} parent=1 // pred_check_branch
      %7877 = sbr.rel (%p7875) target = $region105
    $region104: #{tpu_custom_call.1} parent=1 // pred_region
      %v7878 = vld [vmem:[#allocation2] sm:$0xff]
      %v7879 = vld [vmem:[#allocation2 + $0x8] sm:$0xff]
      %v7880 = vld [vmem:[#allocation2 + $0x10] sm:$0xff]
      %v7881 = vld [vmem:[#allocation2 + $0x18] sm:$0xff]
      %v7882 = vld [vmem:[#allocation11] sm:$0xff]
      %v7883 = vld [vmem:[#allocation11 + $0x8] sm:$0xff]
      %v7886 = vlaneseq
      %v7887 = vshrl.u32 %v7886, 7
      %v7888 = vsub.s32 0, %v7887
      %v7889 = vrot.slane %v7882, %v7888
      %v7890 = vlaneseq
      %v7891 = vshrl.u32 %v7890, 7
      %v7892 = vsub.s32 1, %v7891
      %v7893 = vrot.slane %v7882, %v7892
      %v7894 = vlaneseq
      %v7895 = vshrl.u32 %v7894, 7
      %v7896 = vsub.s32 2, %v7895
      %v7897 = vrot.slane %v7882, %v7896
      %v7898 = vlaneseq
      %v7899 = vshrl.u32 %v7898, 7
      %v7900 = vsub.s32 3, %v7899
      %v7901 = vrot.slane %v7882, %v7900
      %v7902 = vlaneseq
      %v7903 = vshrl.u32 %v7902, 7
      %v7904 = vsub.s32 4, %v7903
      %v7905 = vrot.slane %v7882, %v7904
      %v7906 = vlaneseq
      %v7907 = vshrl.u32 %v7906, 7
      %v7908 = vsub.s32 5, %v7907
      %v7909 = vrot.slane %v7882, %v7908
      %v7910 = vlaneseq
      %v7911 = vshrl.u32 %v7910, 7
      %v7912 = vsub.s32 6, %v7911
      %v7913 = vrot.slane %v7882, %v7912
      %v7914 = vlaneseq
      %v7915 = vshrl.u32 %v7914, 7
      %v7916 = vsub.s32 7, %v7915
      %v7917 = vrot.slane %v7882, %v7916
      %v7918 = vlaneseq
      %v7919 = vshrl.u32 %v7918, 7
      %v7920 = vsub.s32 0, %v7919
      %v7921 = vrot.slane %v7883, %v7920
      %v7922 = vlaneseq
      %v7923 = vshrl.u32 %v7922, 7
      %v7924 = vsub.s32 1, %v7923
      %v7925 = vrot.slane %v7883, %v7924
      %v7926 = vlaneseq
      %v7927 = vshrl.u32 %v7926, 7
      %v7928 = vsub.s32 2, %v7927
      %v7929 = vrot.slane %v7883, %v7928
      %v7930 = vlaneseq
      %v7931 = vshrl.u32 %v7930, 7
      %v7932 = vsub.s32 3, %v7931
      %v7933 = vrot.slane %v7883, %v7932
      %v7934 = vlaneseq
      %v7935 = vshrl.u32 %v7934, 7
      %v7936 = vsub.s32 4, %v7935
      %v7937 = vrot.slane %v7883, %v7936
      %v7938 = vlaneseq
      %v7939 = vshrl.u32 %v7938, 7
      %v7940 = vsub.s32 5, %v7939
      %v7941 = vrot.slane %v7883, %v7940
      %v7942 = vlaneseq
      %v7943 = vshrl.u32 %v7942, 7
      %v7944 = vsub.s32 6, %v7943
      %v7945 = vrot.slane %v7883, %v7944
      %v7946 = vlaneseq
      %v7947 = vshrl.u32 %v7946, 7
      %v7948 = vsub.s32 7, %v7947
      %v7949 = vrot.slane %v7883, %v7948
      %v7950 = vcombine.low %v7889, %v7893
      %v7951 = vcombine.low %v7897, %v7901
      %v7953 = vunpack.c.l.s4 1983009808
      %v7954 = vunpack.c.0.s8 %v7953
      %v7955 = vlaneseq
      %v7956 = vshrl.u32 %v7955, 7
      %v7957 = vsub.s32 %v7954, %v7956
      %v7958 = vrot.slane %v7950, %v7957
      %v7960 = vunpack.c.l.s4 1983009808
      %v7961 = vunpack.c.0.s8 %v7960
      %v7962 = vlaneseq
      %v7963 = vshrl.u32 %v7962, 7
      %v7964 = vsub.s32 %v7961, %v7963
      %v7965 = vrot.slane %v7951, %v7964
      %v7966 = vcombine.low %v7958, %v7965
      %v7967 = vcombine.low %v7905, %v7909
      %v7968 = vcombine.low %v7913, %v7917
      %v7970 = vunpack.c.l.s4 1983009808
      %v7971 = vunpack.c.0.s8 %v7970
      %v7972 = vlaneseq
      %v7973 = vshrl.u32 %v7972, 7
      %v7974 = vsub.s32 %v7971, %v7973
      %v7975 = vrot.slane %v7967, %v7974
      %v7977 = vunpack.c.l.s4 1983009808
      %v7978 = vunpack.c.0.s8 %v7977
      %v7979 = vlaneseq
      %v7980 = vshrl.u32 %v7979, 7
      %v7981 = vsub.s32 %v7978, %v7980
      %v7982 = vrot.slane %v7968, %v7981
      %v7983 = vcombine.low %v7975, %v7982
      %v7984 = vcombine.low %v7921, %v7925
      %v7985 = vcombine.low %v7929, %v7933
      %v7987 = vunpack.c.l.s4 1983009808
      %v7988 = vunpack.c.0.s8 %v7987
      %v7989 = vlaneseq
      %v7990 = vshrl.u32 %v7989, 7
      %v7991 = vsub.s32 %v7988, %v7990
      %v7992 = vrot.slane %v7984, %v7991
      %v7994 = vunpack.c.l.s4 1983009808
      %v7995 = vunpack.c.0.s8 %v7994
      %v7996 = vlaneseq
      %v7997 = vshrl.u32 %v7996, 7
      %v7998 = vsub.s32 %v7995, %v7997
      %v7999 = vrot.slane %v7985, %v7998
      %v8000 = vcombine.low %v7992, %v7999
      %v8001 = vcombine.low %v7937, %v7941
      %v8002 = vcombine.low %v7945, %v7949
      %v8004 = vunpack.c.l.s4 1983009808
      %v8005 = vunpack.c.0.s8 %v8004
      %v8006 = vlaneseq
      %v8007 = vshrl.u32 %v8006, 7
      %v8008 = vsub.s32 %v8005, %v8007
      %v8009 = vrot.slane %v8001, %v8008
      %v8011 = vunpack.c.l.s4 1983009808
      %v8012 = vunpack.c.0.s8 %v8011
      %v8013 = vlaneseq
      %v8014 = vshrl.u32 %v8013, 7
      %v8015 = vsub.s32 %v8012, %v8014
      %v8016 = vrot.slane %v8002, %v8015
      %v8017 = vcombine.low %v8009, %v8016
      %v8022 = vadd.f32 %v7878, %v7966
      %v8023 = vadd.f32 %v7879, %v7983
      %v8024 = vadd.f32 %v7880, %v8000
      %v8025 = vadd.f32 %v7881, %v8017
      %v8026 = vmax.f32 %v8022, 0.0
      %v8027 = vmax.f32 %v8023, 0.0
      %v8028 = vmax.f32 %v8024, 0.0
      %v8029 = vmax.f32 %v8025, 0.0
      %v8034 = vcombine.high %v8026, %v8026
      %v8036 = vunpack.c.l.s4 1983009808
      %v8037 = vunpack.c.0.s8 %v8036
      %v8038 = vlaneseq
      %v8039 = vshrl.u32 %v8038, 7
      %v8040 = vsub.s32 %v8037, %v8039
      %v8041 = vrot.slane %v8026, %v8040
      %v8043 = vunpack.c.l.s4 1983009808
      %v8044 = vunpack.c.0.s8 %v8043
      %v8045 = vlaneseq
      %v8046 = vshrl.u32 %v8045, 7
      %v8047 = vsub.s32 %v8044, %v8046
      %v8048 = vrot.slane %v8034, %v8047
      %v8049 = vcombine.high %v8041, %v8041
      %v8050 = vcombine.high %v8048, %v8048
      %v8051 = vcombine.high %v8027, %v8027
      %v8053 = vunpack.c.l.s4 1983009808
      %v8054 = vunpack.c.0.s8 %v8053
      %v8055 = vlaneseq
      %v8056 = vshrl.u32 %v8055, 7
      %v8057 = vsub.s32 %v8054, %v8056
      %v8058 = vrot.slane %v8027, %v8057
      %v8060 = vunpack.c.l.s4 1983009808
      %v8061 = vunpack.c.0.s8 %v8060
      %v8062 = vlaneseq
      %v8063 = vshrl.u32 %v8062, 7
      %v8064 = vsub.s32 %v8061, %v8063
      %v8065 = vrot.slane %v8051, %v8064
      %v8066 = vcombine.high %v8058, %v8058
      %v8067 = vcombine.high %v8065, %v8065
      %v8068 = vcombine.high %v8028, %v8028
      %v8070 = vunpack.c.l.s4 1983009808
      %v8071 = vunpack.c.0.s8 %v8070
      %v8072 = vlaneseq
      %v8073 = vshrl.u32 %v8072, 7
      %v8074 = vsub.s32 %v8071, %v8073
      %v8075 = vrot.slane %v8028, %v8074
      %v8077 = vunpack.c.l.s4 1983009808
      %v8078 = vunpack.c.0.s8 %v8077
      %v8079 = vlaneseq
      %v8080 = vshrl.u32 %v8079, 7
      %v8081 = vsub.s32 %v8078, %v8080
      %v8082 = vrot.slane %v8068, %v8081
      %v8083 = vcombine.high %v8075, %v8075
      %v8084 = vcombine.high %v8082, %v8082
      %v8085 = vcombine.high %v8029, %v8029
      %v8087 = vunpack.c.l.s4 1983009808
      %v8088 = vunpack.c.0.s8 %v8087
      %v8089 = vlaneseq
      %v8090 = vshrl.u32 %v8089, 7
      %v8091 = vsub.s32 %v8088, %v8090
      %v8092 = vrot.slane %v8029, %v8091
      %v8094 = vunpack.c.l.s4 1983009808
      %v8095 = vunpack.c.0.s8 %v8094
      %v8096 = vlaneseq
      %v8097 = vshrl.u32 %v8096, 7
      %v8098 = vsub.s32 %v8095, %v8097
      %v8099 = vrot.slane %v8085, %v8098
      %v8100 = vcombine.high %v8092, %v8092
      %v8101 = vcombine.high %v8099, %v8099
      %v8118 = vpack.c.bf16 %v8041, %v8041
      %v8119 = vpack.c.bf16 %v8049, %v8049
      %v8120 = vpack.c.bf16 %v8048, %v8048
      %v8121 = vpack.c.bf16 %v8050, %v8050
      %v8122 = vpack.c.bf16 %v8058, %v8058
      %v8123 = vpack.c.bf16 %v8066, %v8066
      %v8124 = vpack.c.bf16 %v8065, %v8065
      %v8125 = vpack.c.bf16 %v8067, %v8067
      %v8126 = vpack.c.bf16 %v8075, %v8075
      %v8127 = vpack.c.bf16 %v8083, %v8083
      %v8128 = vpack.c.bf16 %v8082, %v8082
      %v8129 = vpack.c.bf16 %v8084, %v8084
      %v8130 = vpack.c.bf16 %v8092, %v8092
      %v8131 = vpack.c.bf16 %v8100, %v8100
      %v8132 = vpack.c.bf16 %v8099, %v8099
      %v8133 = vpack.c.bf16 %v8101, %v8101
      %v8134 = vld [vmem:[#allocation12] sm:$0xff]
      %v8135 = vld [vmem:[#allocation12 + $0x8] sm:$0xff]
      %v8136 = vld [vmem:[#allocation12 + $0x10] sm:$0xff]
      %v8137 = vld [vmem:[#allocation12 + $0x18] sm:$0xff]
      %v8138 = vld [vmem:[#allocation12 + $0x20] sm:$0xff]
      %v8139 = vld [vmem:[#allocation12 + $0x28] sm:$0xff]
      %v8140 = vld [vmem:[#allocation12 + $0x30] sm:$0xff]
      %v8141 = vld [vmem:[#allocation12 + $0x38] sm:$0xff]
      %v8142 = vld [vmem:[#allocation12 + $0x40] sm:$0xff]
      %v8143 = vld [vmem:[#allocation12 + $0x48] sm:$0xff]
      %v8144 = vld [vmem:[#allocation12 + $0x50] sm:$0xff]
      %v8145 = vld [vmem:[#allocation12 + $0x58] sm:$0xff]
      %v8146 = vld [vmem:[#allocation12 + $0x60] sm:$0xff]
      %v8147 = vld [vmem:[#allocation12 + $0x68] sm:$0xff]
      %v8148 = vld [vmem:[#allocation12 + $0x70] sm:$0xff]
      %v8149 = vld [vmem:[#allocation12 + $0x78] sm:$0xff]
      %v8150 = vld [vmem:[#allocation12 + $0x80] sm:$0xff]
      %v8151 = vld [vmem:[#allocation12 + $0x88] sm:$0xff]
      %v8152 = vld [vmem:[#allocation12 + $0x90] sm:$0xff]
      %v8153 = vld [vmem:[#allocation12 + $0x98] sm:$0xff]
      %v8154 = vld [vmem:[#allocation12 + $0xa0] sm:$0xff]
      %v8155 = vld [vmem:[#allocation12 + $0xa8] sm:$0xff]
      %v8156 = vld [vmem:[#allocation12 + $0xb0] sm:$0xff]
      %v8157 = vld [vmem:[#allocation12 + $0xb8] sm:$0xff]
      %v8158 = vld [vmem:[#allocation12 + $0xc0] sm:$0xff]
      %v8159 = vld [vmem:[#allocation12 + $0xc8] sm:$0xff]
      %v8160 = vld [vmem:[#allocation12 + $0xd0] sm:$0xff]
      %v8161 = vld [vmem:[#allocation12 + $0xd8] sm:$0xff]
      %v8162 = vld [vmem:[#allocation12 + $0xe0] sm:$0xff]
      %v8163 = vld [vmem:[#allocation12 + $0xe8] sm:$0xff]
      %v8164 = vld [vmem:[#allocation12 + $0xf0] sm:$0xff]
      %v8165 = vld [vmem:[#allocation12 + $0xf8] sm:$0xff]
      %v8166 = vld [vmem:[#allocation12 + $0x100] sm:$0xff]
      %v8167 = vld [vmem:[#allocation12 + $0x108] sm:$0xff]
      %v8168 = vld [vmem:[#allocation12 + $0x110] sm:$0xff]
      %v8169 = vld [vmem:[#allocation12 + $0x118] sm:$0xff]
      %v8170 = vld [vmem:[#allocation12 + $0x120] sm:$0xff]
      %v8171 = vld [vmem:[#allocation12 + $0x128] sm:$0xff]
      %v8172 = vld [vmem:[#allocation12 + $0x130] sm:$0xff]
      %v8173 = vld [vmem:[#allocation12 + $0x138] sm:$0xff]
      %v8174 = vld [vmem:[#allocation12 + $0x140] sm:$0xff]
      %v8175 = vld [vmem:[#allocation12 + $0x148] sm:$0xff]
      %v8176 = vld [vmem:[#allocation12 + $0x150] sm:$0xff]
      %v8177 = vld [vmem:[#allocation12 + $0x158] sm:$0xff]
      %v8178 = vld [vmem:[#allocation12 + $0x160] sm:$0xff]
      %v8179 = vld [vmem:[#allocation12 + $0x168] sm:$0xff]
      %v8180 = vld [vmem:[#allocation12 + $0x170] sm:$0xff]
      %v8181 = vld [vmem:[#allocation12 + $0x178] sm:$0xff]
      %v8182 = vld [vmem:[#allocation12 + $0x180] sm:$0xff]
      %v8183 = vld [vmem:[#allocation12 + $0x188] sm:$0xff]
      %v8184 = vld [vmem:[#allocation12 + $0x190] sm:$0xff]
      %v8185 = vld [vmem:[#allocation12 + $0x198] sm:$0xff]
      %v8186 = vld [vmem:[#allocation12 + $0x1a0] sm:$0xff]
      %v8187 = vld [vmem:[#allocation12 + $0x1a8] sm:$0xff]
      %v8188 = vld [vmem:[#allocation12 + $0x1b0] sm:$0xff]
      %v8189 = vld [vmem:[#allocation12 + $0x1b8] sm:$0xff]
      %v8190 = vld [vmem:[#allocation12 + $0x1c0] sm:$0xff]
      %v8191 = vld [vmem:[#allocation12 + $0x1c8] sm:$0xff]
      %v8192 = vld [vmem:[#allocation12 + $0x1d0] sm:$0xff]
      %v8193 = vld [vmem:[#allocation12 + $0x1d8] sm:$0xff]
      %v8194 = vld [vmem:[#allocation12 + $0x1e0] sm:$0xff]
      %v8195 = vld [vmem:[#allocation12 + $0x1e8] sm:$0xff]
      %v8196 = vld [vmem:[#allocation12 + $0x1f0] sm:$0xff]
      %v8197 = vld [vmem:[#allocation12 + $0x1f8] sm:$0xff]
      %v8198 = vld [vmem:[#allocation12 + $0x200] sm:$0xff]
      %v8199 = vld [vmem:[#allocation12 + $0x208] sm:$0xff]
      %v8200 = vld [vmem:[#allocation12 + $0x210] sm:$0xff]
      %v8201 = vld [vmem:[#allocation12 + $0x218] sm:$0xff]
      %v8202 = vld [vmem:[#allocation12 + $0x220] sm:$0xff]
      %v8203 = vld [vmem:[#allocation12 + $0x228] sm:$0xff]
      %v8204 = vld [vmem:[#allocation12 + $0x230] sm:$0xff]
      %v8205 = vld [vmem:[#allocation12 + $0x238] sm:$0xff]
      %v8206 = vld [vmem:[#allocation12 + $0x240] sm:$0xff]
      %v8207 = vld [vmem:[#allocation12 + $0x248] sm:$0xff]
      %v8208 = vld [vmem:[#allocation12 + $0x250] sm:$0xff]
      %v8209 = vld [vmem:[#allocation12 + $0x258] sm:$0xff]
      %v8210 = vld [vmem:[#allocation12 + $0x260] sm:$0xff]
      %v8211 = vld [vmem:[#allocation12 + $0x268] sm:$0xff]
      %v8212 = vld [vmem:[#allocation12 + $0x270] sm:$0xff]
      %v8213 = vld [vmem:[#allocation12 + $0x278] sm:$0xff]
      %v8214 = vld [vmem:[#allocation12 + $0x280] sm:$0xff]
      %v8215 = vld [vmem:[#allocation12 + $0x288] sm:$0xff]
      %v8216 = vld [vmem:[#allocation12 + $0x290] sm:$0xff]
      %v8217 = vld [vmem:[#allocation12 + $0x298] sm:$0xff]
      %v8218 = vld [vmem:[#allocation12 + $0x2a0] sm:$0xff]
      %v8219 = vld [vmem:[#allocation12 + $0x2a8] sm:$0xff]
      %v8220 = vld [vmem:[#allocation12 + $0x2b0] sm:$0xff]
      %v8221 = vld [vmem:[#allocation12 + $0x2b8] sm:$0xff]
      %v8222 = vld [vmem:[#allocation12 + $0x2c0] sm:$0xff]
      %v8223 = vld [vmem:[#allocation12 + $0x2c8] sm:$0xff]
      %v8224 = vld [vmem:[#allocation12 + $0x2d0] sm:$0xff]
      %v8225 = vld [vmem:[#allocation12 + $0x2d8] sm:$0xff]
      %v8226 = vld [vmem:[#allocation12 + $0x2e0] sm:$0xff]
      %v8227 = vld [vmem:[#allocation12 + $0x2e8] sm:$0xff]
      %v8228 = vld [vmem:[#allocation12 + $0x2f0] sm:$0xff]
      %v8229 = vld [vmem:[#allocation12 + $0x2f8] sm:$0xff]
      %v8230 = vld [vmem:[#allocation12 + $0x300] sm:$0xff]
      %v8231 = vld [vmem:[#allocation12 + $0x308] sm:$0xff]
      %v8232 = vld [vmem:[#allocation12 + $0x310] sm:$0xff]
      %v8233 = vld [vmem:[#allocation12 + $0x318] sm:$0xff]
      %v8234 = vld [vmem:[#allocation12 + $0x320] sm:$0xff]
      %v8235 = vld [vmem:[#allocation12 + $0x328] sm:$0xff]
      %v8236 = vld [vmem:[#allocation12 + $0x330] sm:$0xff]
      %v8237 = vld [vmem:[#allocation12 + $0x338] sm:$0xff]
      %v8238 = vld [vmem:[#allocation12 + $0x340] sm:$0xff]
      %v8239 = vld [vmem:[#allocation12 + $0x348] sm:$0xff]
      %v8240 = vld [vmem:[#allocation12 + $0x350] sm:$0xff]
      %v8241 = vld [vmem:[#allocation12 + $0x358] sm:$0xff]
      %v8242 = vld [vmem:[#allocation12 + $0x360] sm:$0xff]
      %v8243 = vld [vmem:[#allocation12 + $0x368] sm:$0xff]
      %v8244 = vld [vmem:[#allocation12 + $0x370] sm:$0xff]
      %v8245 = vld [vmem:[#allocation12 + $0x378] sm:$0xff]
      %v8246 = vld [vmem:[#allocation12 + $0x380] sm:$0xff]
      %v8247 = vld [vmem:[#allocation12 + $0x388] sm:$0xff]
      %v8248 = vld [vmem:[#allocation12 + $0x390] sm:$0xff]
      %v8249 = vld [vmem:[#allocation12 + $0x398] sm:$0xff]
      %v8250 = vld [vmem:[#allocation12 + $0x3a0] sm:$0xff]
      %v8251 = vld [vmem:[#allocation12 + $0x3a8] sm:$0xff]
      %v8252 = vld [vmem:[#allocation12 + $0x3b0] sm:$0xff]
      %v8253 = vld [vmem:[#allocation12 + $0x3b8] sm:$0xff]
      %v8254 = vld [vmem:[#allocation12 + $0x3c0] sm:$0xff]
      %v8255 = vld [vmem:[#allocation12 + $0x3c8] sm:$0xff]
      %v8256 = vld [vmem:[#allocation12 + $0x3d0] sm:$0xff]
      %v8257 = vld [vmem:[#allocation12 + $0x3d8] sm:$0xff]
      %v8258 = vld [vmem:[#allocation12 + $0x3e0] sm:$0xff]
      %v8259 = vld [vmem:[#allocation12 + $0x3e8] sm:$0xff]
      %v8260 = vld [vmem:[#allocation12 + $0x3f0] sm:$0xff]
      %v8261 = vld [vmem:[#allocation12 + $0x3f8] sm:$0xff]
      %v8262 = vld [vmem:[#allocation12 + $0x400] sm:$0xff]
      %v8263 = vld [vmem:[#allocation12 + $0x408] sm:$0xff]
      %v8264 = vld [vmem:[#allocation12 + $0x410] sm:$0xff]
      %v8265 = vld [vmem:[#allocation12 + $0x418] sm:$0xff]
      %v8266 = vld [vmem:[#allocation12 + $0x420] sm:$0xff]
      %v8267 = vld [vmem:[#allocation12 + $0x428] sm:$0xff]
      %v8268 = vld [vmem:[#allocation12 + $0x430] sm:$0xff]
      %v8269 = vld [vmem:[#allocation12 + $0x438] sm:$0xff]
      %v8270 = vld [vmem:[#allocation12 + $0x440] sm:$0xff]
      %v8271 = vld [vmem:[#allocation12 + $0x448] sm:$0xff]
      %v8272 = vld [vmem:[#allocation12 + $0x450] sm:$0xff]
      %v8273 = vld [vmem:[#allocation12 + $0x458] sm:$0xff]
      %v8274 = vld [vmem:[#allocation12 + $0x460] sm:$0xff]
      %v8275 = vld [vmem:[#allocation12 + $0x468] sm:$0xff]
      %v8276 = vld [vmem:[#allocation12 + $0x470] sm:$0xff]
      %v8277 = vld [vmem:[#allocation12 + $0x478] sm:$0xff]
      %v8278 = vld [vmem:[#allocation12 + $0x480] sm:$0xff]
      %v8279 = vld [vmem:[#allocation12 + $0x488] sm:$0xff]
      %v8280 = vld [vmem:[#allocation12 + $0x490] sm:$0xff]
      %v8281 = vld [vmem:[#allocation12 + $0x498] sm:$0xff]
      %v8282 = vld [vmem:[#allocation12 + $0x4a0] sm:$0xff]
      %v8283 = vld [vmem:[#allocation12 + $0x4a8] sm:$0xff]
      %v8284 = vld [vmem:[#allocation12 + $0x4b0] sm:$0xff]
      %v8285 = vld [vmem:[#allocation12 + $0x4b8] sm:$0xff]
      %v8286 = vld [vmem:[#allocation12 + $0x4c0] sm:$0xff]
      %v8287 = vld [vmem:[#allocation12 + $0x4c8] sm:$0xff]
      %v8288 = vld [vmem:[#allocation12 + $0x4d0] sm:$0xff]
      %v8289 = vld [vmem:[#allocation12 + $0x4d8] sm:$0xff]
      %v8290 = vld [vmem:[#allocation12 + $0x4e0] sm:$0xff]
      %v8291 = vld [vmem:[#allocation12 + $0x4e8] sm:$0xff]
      %v8292 = vld [vmem:[#allocation12 + $0x4f0] sm:$0xff]
      %v8293 = vld [vmem:[#allocation12 + $0x4f8] sm:$0xff]
      %v8294 = vld [vmem:[#allocation12 + $0x500] sm:$0xff]
      %v8295 = vld [vmem:[#allocation12 + $0x508] sm:$0xff]
      %v8296 = vld [vmem:[#allocation12 + $0x510] sm:$0xff]
      %v8297 = vld [vmem:[#allocation12 + $0x518] sm:$0xff]
      %v8298 = vld [vmem:[#allocation12 + $0x520] sm:$0xff]
      %v8299 = vld [vmem:[#allocation12 + $0x528] sm:$0xff]
      %v8300 = vld [vmem:[#allocation12 + $0x530] sm:$0xff]
      %v8301 = vld [vmem:[#allocation12 + $0x538] sm:$0xff]
      %v8302 = vld [vmem:[#allocation12 + $0x540] sm:$0xff]
      %v8303 = vld [vmem:[#allocation12 + $0x548] sm:$0xff]
      %v8304 = vld [vmem:[#allocation12 + $0x550] sm:$0xff]
      %v8305 = vld [vmem:[#allocation12 + $0x558] sm:$0xff]
      %v8306 = vld [vmem:[#allocation12 + $0x560] sm:$0xff]
      %v8307 = vld [vmem:[#allocation12 + $0x568] sm:$0xff]
      %v8308 = vld [vmem:[#allocation12 + $0x570] sm:$0xff]
      %v8309 = vld [vmem:[#allocation12 + $0x578] sm:$0xff]
      %v8310 = vld [vmem:[#allocation12 + $0x580] sm:$0xff]
      %v8311 = vld [vmem:[#allocation12 + $0x588] sm:$0xff]
      %v8312 = vld [vmem:[#allocation12 + $0x590] sm:$0xff]
      %v8313 = vld [vmem:[#allocation12 + $0x598] sm:$0xff]
      %v8314 = vld [vmem:[#allocation12 + $0x5a0] sm:$0xff]
      %v8315 = vld [vmem:[#allocation12 + $0x5a8] sm:$0xff]
      %v8316 = vld [vmem:[#allocation12 + $0x5b0] sm:$0xff]
      %v8317 = vld [vmem:[#allocation12 + $0x5b8] sm:$0xff]
      %v8318 = vld [vmem:[#allocation12 + $0x5c0] sm:$0xff]
      %v8319 = vld [vmem:[#allocation12 + $0x5c8] sm:$0xff]
      %v8320 = vld [vmem:[#allocation12 + $0x5d0] sm:$0xff]
      %v8321 = vld [vmem:[#allocation12 + $0x5d8] sm:$0xff]
      %v8322 = vld [vmem:[#allocation12 + $0x5e0] sm:$0xff]
      %v8323 = vld [vmem:[#allocation12 + $0x5e8] sm:$0xff]
      %v8324 = vld [vmem:[#allocation12 + $0x5f0] sm:$0xff]
      %v8325 = vld [vmem:[#allocation12 + $0x5f8] sm:$0xff]
      %v8326 = vld [vmem:[#allocation12 + $0x600] sm:$0xff]
      %v8327 = vld [vmem:[#allocation12 + $0x608] sm:$0xff]
      %v8328 = vld [vmem:[#allocation12 + $0x610] sm:$0xff]
      %v8329 = vld [vmem:[#allocation12 + $0x618] sm:$0xff]
      %v8330 = vld [vmem:[#allocation12 + $0x620] sm:$0xff]
      %v8331 = vld [vmem:[#allocation12 + $0x628] sm:$0xff]
      %v8332 = vld [vmem:[#allocation12 + $0x630] sm:$0xff]
      %v8333 = vld [vmem:[#allocation12 + $0x638] sm:$0xff]
      %v8334 = vld [vmem:[#allocation12 + $0x640] sm:$0xff]
      %v8335 = vld [vmem:[#allocation12 + $0x648] sm:$0xff]
      %v8336 = vld [vmem:[#allocation12 + $0x650] sm:$0xff]
      %v8337 = vld [vmem:[#allocation12 + $0x658] sm:$0xff]
      %v8338 = vld [vmem:[#allocation12 + $0x660] sm:$0xff]
      %v8339 = vld [vmem:[#allocation12 + $0x668] sm:$0xff]
      %v8340 = vld [vmem:[#allocation12 + $0x670] sm:$0xff]
      %v8341 = vld [vmem:[#allocation12 + $0x678] sm:$0xff]
      %v8342 = vld [vmem:[#allocation12 + $0x680] sm:$0xff]
      %v8343 = vld [vmem:[#allocation12 + $0x688] sm:$0xff]
      %v8344 = vld [vmem:[#allocation12 + $0x690] sm:$0xff]
      %v8345 = vld [vmem:[#allocation12 + $0x698] sm:$0xff]
      %v8346 = vld [vmem:[#allocation12 + $0x6a0] sm:$0xff]
      %v8347 = vld [vmem:[#allocation12 + $0x6a8] sm:$0xff]
      %v8348 = vld [vmem:[#allocation12 + $0x6b0] sm:$0xff]
      %v8349 = vld [vmem:[#allocation12 + $0x6b8] sm:$0xff]
      %v8350 = vld [vmem:[#allocation12 + $0x6c0] sm:$0xff]
      %v8351 = vld [vmem:[#allocation12 + $0x6c8] sm:$0xff]
      %v8352 = vld [vmem:[#allocation12 + $0x6d0] sm:$0xff]
      %v8353 = vld [vmem:[#allocation12 + $0x6d8] sm:$0xff]
      %v8354 = vld [vmem:[#allocation12 + $0x6e0] sm:$0xff]
      %v8355 = vld [vmem:[#allocation12 + $0x6e8] sm:$0xff]
      %v8356 = vld [vmem:[#allocation12 + $0x6f0] sm:$0xff]
      %v8357 = vld [vmem:[#allocation12 + $0x6f8] sm:$0xff]
      %v8358 = vld [vmem:[#allocation12 + $0x700] sm:$0xff]
      %v8359 = vld [vmem:[#allocation12 + $0x708] sm:$0xff]
      %v8360 = vld [vmem:[#allocation12 + $0x710] sm:$0xff]
      %v8361 = vld [vmem:[#allocation12 + $0x718] sm:$0xff]
      %v8362 = vld [vmem:[#allocation12 + $0x720] sm:$0xff]
      %v8363 = vld [vmem:[#allocation12 + $0x728] sm:$0xff]
      %v8364 = vld [vmem:[#allocation12 + $0x730] sm:$0xff]
      %v8365 = vld [vmem:[#allocation12 + $0x738] sm:$0xff]
      %v8366 = vld [vmem:[#allocation12 + $0x740] sm:$0xff]
      %v8367 = vld [vmem:[#allocation12 + $0x748] sm:$0xff]
      %v8368 = vld [vmem:[#allocation12 + $0x750] sm:$0xff]
      %v8369 = vld [vmem:[#allocation12 + $0x758] sm:$0xff]
      %v8370 = vld [vmem:[#allocation12 + $0x760] sm:$0xff]
      %v8371 = vld [vmem:[#allocation12 + $0x768] sm:$0xff]
      %v8372 = vld [vmem:[#allocation12 + $0x770] sm:$0xff]
      %v8373 = vld [vmem:[#allocation12 + $0x778] sm:$0xff]
      %v8374 = vld [vmem:[#allocation12 + $0x780] sm:$0xff]
      %v8375 = vld [vmem:[#allocation12 + $0x788] sm:$0xff]
      %v8376 = vld [vmem:[#allocation12 + $0x790] sm:$0xff]
      %v8377 = vld [vmem:[#allocation12 + $0x798] sm:$0xff]
      %v8378 = vld [vmem:[#allocation12 + $0x7a0] sm:$0xff]
      %v8379 = vld [vmem:[#allocation12 + $0x7a8] sm:$0xff]
      %v8380 = vld [vmem:[#allocation12 + $0x7b0] sm:$0xff]
      %v8381 = vld [vmem:[#allocation12 + $0x7b8] sm:$0xff]
      %v8382 = vld [vmem:[#allocation12 + $0x7c0] sm:$0xff]
      %v8383 = vld [vmem:[#allocation12 + $0x7c8] sm:$0xff]
      %v8384 = vld [vmem:[#allocation12 + $0x7d0] sm:$0xff]
      %v8385 = vld [vmem:[#allocation12 + $0x7d8] sm:$0xff]
      %v8386 = vld [vmem:[#allocation12 + $0x7e0] sm:$0xff]
      %v8387 = vld [vmem:[#allocation12 + $0x7e8] sm:$0xff]
      %v8388 = vld [vmem:[#allocation12 + $0x7f0] sm:$0xff]
      %v8389 = vld [vmem:[#allocation12 + $0x7f8] sm:$0xff]
      %v8390 = vld [vmem:[#allocation12 + $0x800] sm:$0xff]
      %v8391 = vld [vmem:[#allocation12 + $0x808] sm:$0xff]
      %v8392 = vld [vmem:[#allocation12 + $0x810] sm:$0xff]
      %v8393 = vld [vmem:[#allocation12 + $0x818] sm:$0xff]
      %v8394 = vld [vmem:[#allocation12 + $0x820] sm:$0xff]
      %v8395 = vld [vmem:[#allocation12 + $0x828] sm:$0xff]
      %v8396 = vld [vmem:[#allocation12 + $0x830] sm:$0xff]
      %v8397 = vld [vmem:[#allocation12 + $0x838] sm:$0xff]
      %v8398 = vld [vmem:[#allocation12 + $0x840] sm:$0xff]
      %v8399 = vld [vmem:[#allocation12 + $0x848] sm:$0xff]
      %v8400 = vld [vmem:[#allocation12 + $0x850] sm:$0xff]
      %v8401 = vld [vmem:[#allocation12 + $0x858] sm:$0xff]
      %v8402 = vld [vmem:[#allocation12 + $0x860] sm:$0xff]
      %v8403 = vld [vmem:[#allocation12 + $0x868] sm:$0xff]
      %v8404 = vld [vmem:[#allocation12 + $0x870] sm:$0xff]
      %v8405 = vld [vmem:[#allocation12 + $0x878] sm:$0xff]
      %v8406 = vld [vmem:[#allocation12 + $0x880] sm:$0xff]
      %v8407 = vld [vmem:[#allocation12 + $0x888] sm:$0xff]
      %v8408 = vld [vmem:[#allocation12 + $0x890] sm:$0xff]
      %v8409 = vld [vmem:[#allocation12 + $0x898] sm:$0xff]
      %v8410 = vld [vmem:[#allocation12 + $0x8a0] sm:$0xff]
      %v8411 = vld [vmem:[#allocation12 + $0x8a8] sm:$0xff]
      %v8412 = vld [vmem:[#allocation12 + $0x8b0] sm:$0xff]
      %v8413 = vld [vmem:[#allocation12 + $0x8b8] sm:$0xff]
      %v8414 = vld [vmem:[#allocation12 + $0x8c0] sm:$0xff]
      %v8415 = vld [vmem:[#allocation12 + $0x8c8] sm:$0xff]
      %v8416 = vld [vmem:[#allocation12 + $0x8d0] sm:$0xff]
      %v8417 = vld [vmem:[#allocation12 + $0x8d8] sm:$0xff]
      %v8418 = vld [vmem:[#allocation12 + $0x8e0] sm:$0xff]
      %v8419 = vld [vmem:[#allocation12 + $0x8e8] sm:$0xff]
      %v8420 = vld [vmem:[#allocation12 + $0x8f0] sm:$0xff]
      %v8421 = vld [vmem:[#allocation12 + $0x8f8] sm:$0xff]
      %v8422 = vld [vmem:[#allocation12 + $0x900] sm:$0xff]
      %v8423 = vld [vmem:[#allocation12 + $0x908] sm:$0xff]
      %v8424 = vld [vmem:[#allocation12 + $0x910] sm:$0xff]
      %v8425 = vld [vmem:[#allocation12 + $0x918] sm:$0xff]
      %v8426 = vld [vmem:[#allocation12 + $0x920] sm:$0xff]
      %v8427 = vld [vmem:[#allocation12 + $0x928] sm:$0xff]
      %v8428 = vld [vmem:[#allocation12 + $0x930] sm:$0xff]
      %v8429 = vld [vmem:[#allocation12 + $0x938] sm:$0xff]
      %v8430 = vld [vmem:[#allocation12 + $0x940] sm:$0xff]
      %v8431 = vld [vmem:[#allocation12 + $0x948] sm:$0xff]
      %v8432 = vld [vmem:[#allocation12 + $0x950] sm:$0xff]
      %v8433 = vld [vmem:[#allocation12 + $0x958] sm:$0xff]
      %v8434 = vld [vmem:[#allocation12 + $0x960] sm:$0xff]
      %v8435 = vld [vmem:[#allocation12 + $0x968] sm:$0xff]
      %v8436 = vld [vmem:[#allocation12 + $0x970] sm:$0xff]
      %v8437 = vld [vmem:[#allocation12 + $0x978] sm:$0xff]
      %v8438 = vld [vmem:[#allocation12 + $0x980] sm:$0xff]
      %v8439 = vld [vmem:[#allocation12 + $0x988] sm:$0xff]
      %v8440 = vld [vmem:[#allocation12 + $0x990] sm:$0xff]
      %v8441 = vld [vmem:[#allocation12 + $0x998] sm:$0xff]
      %v8442 = vld [vmem:[#allocation12 + $0x9a0] sm:$0xff]
      %v8443 = vld [vmem:[#allocation12 + $0x9a8] sm:$0xff]
      %v8444 = vld [vmem:[#allocation12 + $0x9b0] sm:$0xff]
      %v8445 = vld [vmem:[#allocation12 + $0x9b8] sm:$0xff]
      %v8446 = vld [vmem:[#allocation12 + $0x9c0] sm:$0xff]
      %v8447 = vld [vmem:[#allocation12 + $0x9c8] sm:$0xff]
      %v8448 = vld [vmem:[#allocation12 + $0x9d0] sm:$0xff]
      %v8449 = vld [vmem:[#allocation12 + $0x9d8] sm:$0xff]
      %v8450 = vld [vmem:[#allocation12 + $0x9e0] sm:$0xff]
      %v8451 = vld [vmem:[#allocation12 + $0x9e8] sm:$0xff]
      %v8452 = vld [vmem:[#allocation12 + $0x9f0] sm:$0xff]
      %v8453 = vld [vmem:[#allocation12 + $0x9f8] sm:$0xff]
      %v8454 = vld [vmem:[#allocation12 + $0xa00] sm:$0xff]
      %v8455 = vld [vmem:[#allocation12 + $0xa08] sm:$0xff]
      %v8456 = vld [vmem:[#allocation12 + $0xa10] sm:$0xff]
      %v8457 = vld [vmem:[#allocation12 + $0xa18] sm:$0xff]
      %v8458 = vld [vmem:[#allocation12 + $0xa20] sm:$0xff]
      %v8459 = vld [vmem:[#allocation12 + $0xa28] sm:$0xff]
      %v8460 = vld [vmem:[#allocation12 + $0xa30] sm:$0xff]
      %v8461 = vld [vmem:[#allocation12 + $0xa38] sm:$0xff]
      %v8462 = vld [vmem:[#allocation12 + $0xa40] sm:$0xff]
      %v8463 = vld [vmem:[#allocation12 + $0xa48] sm:$0xff]
      %v8464 = vld [vmem:[#allocation12 + $0xa50] sm:$0xff]
      %v8465 = vld [vmem:[#allocation12 + $0xa58] sm:$0xff]
      %v8466 = vld [vmem:[#allocation12 + $0xa60] sm:$0xff]
      %v8467 = vld [vmem:[#allocation12 + $0xa68] sm:$0xff]
      %v8468 = vld [vmem:[#allocation12 + $0xa70] sm:$0xff]
      %v8469 = vld [vmem:[#allocation12 + $0xa78] sm:$0xff]
      %v8470 = vld [vmem:[#allocation12 + $0xa80] sm:$0xff]
      %v8471 = vld [vmem:[#allocation12 + $0xa88] sm:$0xff]
      %v8472 = vld [vmem:[#allocation12 + $0xa90] sm:$0xff]
      %v8473 = vld [vmem:[#allocation12 + $0xa98] sm:$0xff]
      %v8474 = vld [vmem:[#allocation12 + $0xaa0] sm:$0xff]
      %v8475 = vld [vmem:[#allocation12 + $0xaa8] sm:$0xff]
      %v8476 = vld [vmem:[#allocation12 + $0xab0] sm:$0xff]
      %v8477 = vld [vmem:[#allocation12 + $0xab8] sm:$0xff]
      %v8478 = vld [vmem:[#allocation12 + $0xac0] sm:$0xff]
      %v8479 = vld [vmem:[#allocation12 + $0xac8] sm:$0xff]
      %v8480 = vld [vmem:[#allocation12 + $0xad0] sm:$0xff]
      %v8481 = vld [vmem:[#allocation12 + $0xad8] sm:$0xff]
      %v8482 = vld [vmem:[#allocation12 + $0xae0] sm:$0xff]
      %v8483 = vld [vmem:[#allocation12 + $0xae8] sm:$0xff]
      %v8484 = vld [vmem:[#allocation12 + $0xaf0] sm:$0xff]
      %v8485 = vld [vmem:[#allocation12 + $0xaf8] sm:$0xff]
      %v8486 = vld [vmem:[#allocation12 + $0xb00] sm:$0xff]
      %v8487 = vld [vmem:[#allocation12 + $0xb08] sm:$0xff]
      %v8488 = vld [vmem:[#allocation12 + $0xb10] sm:$0xff]
      %v8489 = vld [vmem:[#allocation12 + $0xb18] sm:$0xff]
      %v8490 = vld [vmem:[#allocation12 + $0xb20] sm:$0xff]
      %v8491 = vld [vmem:[#allocation12 + $0xb28] sm:$0xff]
      %v8492 = vld [vmem:[#allocation12 + $0xb30] sm:$0xff]
      %v8493 = vld [vmem:[#allocation12 + $0xb38] sm:$0xff]
      %v8494 = vld [vmem:[#allocation12 + $0xb40] sm:$0xff]
      %v8495 = vld [vmem:[#allocation12 + $0xb48] sm:$0xff]
      %v8496 = vld [vmem:[#allocation12 + $0xb50] sm:$0xff]
      %v8497 = vld [vmem:[#allocation12 + $0xb58] sm:$0xff]
      %v8498 = vld [vmem:[#allocation12 + $0xb60] sm:$0xff]
      %v8499 = vld [vmem:[#allocation12 + $0xb68] sm:$0xff]
      %v8500 = vld [vmem:[#allocation12 + $0xb70] sm:$0xff]
      %v8501 = vld [vmem:[#allocation12 + $0xb78] sm:$0xff]
      %v8502 = vld [vmem:[#allocation12 + $0xb80] sm:$0xff]
      %v8503 = vld [vmem:[#allocation12 + $0xb88] sm:$0xff]
      %v8504 = vld [vmem:[#allocation12 + $0xb90] sm:$0xff]
      %v8505 = vld [vmem:[#allocation12 + $0xb98] sm:$0xff]
      %v8506 = vld [vmem:[#allocation12 + $0xba0] sm:$0xff]
      %v8507 = vld [vmem:[#allocation12 + $0xba8] sm:$0xff]
      %v8508 = vld [vmem:[#allocation12 + $0xbb0] sm:$0xff]
      %v8509 = vld [vmem:[#allocation12 + $0xbb8] sm:$0xff]
      %v8510 = vld [vmem:[#allocation12 + $0xbc0] sm:$0xff]
      %v8511 = vld [vmem:[#allocation12 + $0xbc8] sm:$0xff]
      %v8512 = vld [vmem:[#allocation12 + $0xbd0] sm:$0xff]
      %v8513 = vld [vmem:[#allocation12 + $0xbd8] sm:$0xff]
      %v8514 = vld [vmem:[#allocation12 + $0xbe0] sm:$0xff]
      %v8515 = vld [vmem:[#allocation12 + $0xbe8] sm:$0xff]
      %v8516 = vld [vmem:[#allocation12 + $0xbf0] sm:$0xff]
      %v8517 = vld [vmem:[#allocation12 + $0xbf8] sm:$0xff]
      %v8518 = vld [vmem:[#allocation12 + $0xc00] sm:$0xff]
      %v8519 = vld [vmem:[#allocation12 + $0xc08] sm:$0xff]
      %v8520 = vld [vmem:[#allocation12 + $0xc10] sm:$0xff]
      %v8521 = vld [vmem:[#allocation12 + $0xc18] sm:$0xff]
      %v8522 = vld [vmem:[#allocation12 + $0xc20] sm:$0xff]
      %v8523 = vld [vmem:[#allocation12 + $0xc28] sm:$0xff]
      %v8524 = vld [vmem:[#allocation12 + $0xc30] sm:$0xff]
      %v8525 = vld [vmem:[#allocation12 + $0xc38] sm:$0xff]
      %v8526 = vld [vmem:[#allocation12 + $0xc40] sm:$0xff]
      %v8527 = vld [vmem:[#allocation12 + $0xc48] sm:$0xff]
      %v8528 = vld [vmem:[#allocation12 + $0xc50] sm:$0xff]
      %v8529 = vld [vmem:[#allocation12 + $0xc58] sm:$0xff]
      %v8530 = vld [vmem:[#allocation12 + $0xc60] sm:$0xff]
      %v8531 = vld [vmem:[#allocation12 + $0xc68] sm:$0xff]
      %v8532 = vld [vmem:[#allocation12 + $0xc70] sm:$0xff]
      %v8533 = vld [vmem:[#allocation12 + $0xc78] sm:$0xff]
      %v8534 = vld [vmem:[#allocation12 + $0xc80] sm:$0xff]
      %v8535 = vld [vmem:[#allocation12 + $0xc88] sm:$0xff]
      %v8536 = vld [vmem:[#allocation12 + $0xc90] sm:$0xff]
      %v8537 = vld [vmem:[#allocation12 + $0xc98] sm:$0xff]
      %v8538 = vld [vmem:[#allocation12 + $0xca0] sm:$0xff]
      %v8539 = vld [vmem:[#allocation12 + $0xca8] sm:$0xff]
      %v8540 = vld [vmem:[#allocation12 + $0xcb0] sm:$0xff]
      %v8541 = vld [vmem:[#allocation12 + $0xcb8] sm:$0xff]
      %v8542 = vld [vmem:[#allocation12 + $0xcc0] sm:$0xff]
      %v8543 = vld [vmem:[#allocation12 + $0xcc8] sm:$0xff]
      %v8544 = vld [vmem:[#allocation12 + $0xcd0] sm:$0xff]
      %v8545 = vld [vmem:[#allocation12 + $0xcd8] sm:$0xff]
      %v8546 = vld [vmem:[#allocation12 + $0xce0] sm:$0xff]
      %v8547 = vld [vmem:[#allocation12 + $0xce8] sm:$0xff]
      %v8548 = vld [vmem:[#allocation12 + $0xcf0] sm:$0xff]
      %v8549 = vld [vmem:[#allocation12 + $0xcf8] sm:$0xff]
      %v8550 = vld [vmem:[#allocation12 + $0xd00] sm:$0xff]
      %v8551 = vld [vmem:[#allocation12 + $0xd08] sm:$0xff]
      %v8552 = vld [vmem:[#allocation12 + $0xd10] sm:$0xff]
      %v8553 = vld [vmem:[#allocation12 + $0xd18] sm:$0xff]
      %v8554 = vld [vmem:[#allocation12 + $0xd20] sm:$0xff]
      %v8555 = vld [vmem:[#allocation12 + $0xd28] sm:$0xff]
      %v8556 = vld [vmem:[#allocation12 + $0xd30] sm:$0xff]
      %v8557 = vld [vmem:[#allocation12 + $0xd38] sm:$0xff]
      %v8558 = vld [vmem:[#allocation12 + $0xd40] sm:$0xff]
      %v8559 = vld [vmem:[#allocation12 + $0xd48] sm:$0xff]
      %v8560 = vld [vmem:[#allocation12 + $0xd50] sm:$0xff]
      %v8561 = vld [vmem:[#allocation12 + $0xd58] sm:$0xff]
      %v8562 = vld [vmem:[#allocation12 + $0xd60] sm:$0xff]
      %v8563 = vld [vmem:[#allocation12 + $0xd68] sm:$0xff]
      %v8564 = vld [vmem:[#allocation12 + $0xd70] sm:$0xff]
      %v8565 = vld [vmem:[#allocation12 + $0xd78] sm:$0xff]
      %v8566 = vld [vmem:[#allocation12 + $0xd80] sm:$0xff]
      %v8567 = vld [vmem:[#allocation12 + $0xd88] sm:$0xff]
      %v8568 = vld [vmem:[#allocation12 + $0xd90] sm:$0xff]
      %v8569 = vld [vmem:[#allocation12 + $0xd98] sm:$0xff]
      %v8570 = vld [vmem:[#allocation12 + $0xda0] sm:$0xff]
      %v8571 = vld [vmem:[#allocation12 + $0xda8] sm:$0xff]
      %v8572 = vld [vmem:[#allocation12 + $0xdb0] sm:$0xff]
      %v8573 = vld [vmem:[#allocation12 + $0xdb8] sm:$0xff]
      %v8574 = vld [vmem:[#allocation12 + $0xdc0] sm:$0xff]
      %v8575 = vld [vmem:[#allocation12 + $0xdc8] sm:$0xff]
      %v8576 = vld [vmem:[#allocation12 + $0xdd0] sm:$0xff]
      %v8577 = vld [vmem:[#allocation12 + $0xdd8] sm:$0xff]
      %v8578 = vld [vmem:[#allocation12 + $0xde0] sm:$0xff]
      %v8579 = vld [vmem:[#allocation12 + $0xde8] sm:$0xff]
      %v8580 = vld [vmem:[#allocation12 + $0xdf0] sm:$0xff]
      %v8581 = vld [vmem:[#allocation12 + $0xdf8] sm:$0xff]
      %v8582 = vld [vmem:[#allocation12 + $0xe00] sm:$0xff]
      %v8583 = vld [vmem:[#allocation12 + $0xe08] sm:$0xff]
      %v8584 = vld [vmem:[#allocation12 + $0xe10] sm:$0xff]
      %v8585 = vld [vmem:[#allocation12 + $0xe18] sm:$0xff]
      %v8586 = vld [vmem:[#allocation12 + $0xe20] sm:$0xff]
      %v8587 = vld [vmem:[#allocation12 + $0xe28] sm:$0xff]
      %v8588 = vld [vmem:[#allocation12 + $0xe30] sm:$0xff]
      %v8589 = vld [vmem:[#allocation12 + $0xe38] sm:$0xff]
      %v8590 = vld [vmem:[#allocation12 + $0xe40] sm:$0xff]
      %v8591 = vld [vmem:[#allocation12 + $0xe48] sm:$0xff]
      %v8592 = vld [vmem:[#allocation12 + $0xe50] sm:$0xff]
      %v8593 = vld [vmem:[#allocation12 + $0xe58] sm:$0xff]
      %v8594 = vld [vmem:[#allocation12 + $0xe60] sm:$0xff]
      %v8595 = vld [vmem:[#allocation12 + $0xe68] sm:$0xff]
      %v8596 = vld [vmem:[#allocation12 + $0xe70] sm:$0xff]
      %v8597 = vld [vmem:[#allocation12 + $0xe78] sm:$0xff]
      %v8598 = vld [vmem:[#allocation12 + $0xe80] sm:$0xff]
      %v8599 = vld [vmem:[#allocation12 + $0xe88] sm:$0xff]
      %v8600 = vld [vmem:[#allocation12 + $0xe90] sm:$0xff]
      %v8601 = vld [vmem:[#allocation12 + $0xe98] sm:$0xff]
      %v8602 = vld [vmem:[#allocation12 + $0xea0] sm:$0xff]
      %v8603 = vld [vmem:[#allocation12 + $0xea8] sm:$0xff]
      %v8604 = vld [vmem:[#allocation12 + $0xeb0] sm:$0xff]
      %v8605 = vld [vmem:[#allocation12 + $0xeb8] sm:$0xff]
      %v8606 = vld [vmem:[#allocation12 + $0xec0] sm:$0xff]
      %v8607 = vld [vmem:[#allocation12 + $0xec8] sm:$0xff]
      %v8608 = vld [vmem:[#allocation12 + $0xed0] sm:$0xff]
      %v8609 = vld [vmem:[#allocation12 + $0xed8] sm:$0xff]
      %v8610 = vld [vmem:[#allocation12 + $0xee0] sm:$0xff]
      %v8611 = vld [vmem:[#allocation12 + $0xee8] sm:$0xff]
      %v8612 = vld [vmem:[#allocation12 + $0xef0] sm:$0xff]
      %v8613 = vld [vmem:[#allocation12 + $0xef8] sm:$0xff]
      %v8614 = vld [vmem:[#allocation12 + $0xf00] sm:$0xff]
      %v8615 = vld [vmem:[#allocation12 + $0xf08] sm:$0xff]
      %v8616 = vld [vmem:[#allocation12 + $0xf10] sm:$0xff]
      %v8617 = vld [vmem:[#allocation12 + $0xf18] sm:$0xff]
      %v8618 = vld [vmem:[#allocation12 + $0xf20] sm:$0xff]
      %v8619 = vld [vmem:[#allocation12 + $0xf28] sm:$0xff]
      %v8620 = vld [vmem:[#allocation12 + $0xf30] sm:$0xff]
      %v8621 = vld [vmem:[#allocation12 + $0xf38] sm:$0xff]
      %v8622 = vld [vmem:[#allocation12 + $0xf40] sm:$0xff]
      %v8623 = vld [vmem:[#allocation12 + $0xf48] sm:$0xff]
      %v8624 = vld [vmem:[#allocation12 + $0xf50] sm:$0xff]
      %v8625 = vld [vmem:[#allocation12 + $0xf58] sm:$0xff]
      %v8626 = vld [vmem:[#allocation12 + $0xf60] sm:$0xff]
      %v8627 = vld [vmem:[#allocation12 + $0xf68] sm:$0xff]
      %v8628 = vld [vmem:[#allocation12 + $0xf70] sm:$0xff]
      %v8629 = vld [vmem:[#allocation12 + $0xf78] sm:$0xff]
      %v8630 = vld [vmem:[#allocation12 + $0xf80] sm:$0xff]
      %v8631 = vld [vmem:[#allocation12 + $0xf88] sm:$0xff]
      %v8632 = vld [vmem:[#allocation12 + $0xf90] sm:$0xff]
      %v8633 = vld [vmem:[#allocation12 + $0xf98] sm:$0xff]
      %v8634 = vld [vmem:[#allocation12 + $0xfa0] sm:$0xff]
      %v8635 = vld [vmem:[#allocation12 + $0xfa8] sm:$0xff]
      %v8636 = vld [vmem:[#allocation12 + $0xfb0] sm:$0xff]
      %v8637 = vld [vmem:[#allocation12 + $0xfb8] sm:$0xff]
      %v8638 = vld [vmem:[#allocation12 + $0xfc0] sm:$0xff]
      %v8639 = vld [vmem:[#allocation12 + $0xfc8] sm:$0xff]
      %v8640 = vld [vmem:[#allocation12 + $0xfd0] sm:$0xff]
      %v8641 = vld [vmem:[#allocation12 + $0xfd8] sm:$0xff]
      %v8642 = vld [vmem:[#allocation12 + $0xfe0] sm:$0xff]
      %v8643 = vld [vmem:[#allocation12 + $0xfe8] sm:$0xff]
      %v8644 = vld [vmem:[#allocation12 + $0xff0] sm:$0xff]
      %v8645 = vld [vmem:[#allocation12 + $0xff8] sm:$0xff]
      %v8646 = vld [vmem:[#allocation14] sm:$0xf]
      %v8648 = vlaneseq
      %v8649 = vshrl.u32 %v8648, 7
      %v8650 = vsub.s32 0, %v8649
      %v8651 = vrot.slane %v8646, %v8650
      %v8652 = vlaneseq
      %v8653 = vshrl.u32 %v8652, 7
      %v8654 = vsub.s32 1, %v8653
      %v8655 = vrot.slane %v8646, %v8654
      %v8656 = vlaneseq
      %v8657 = vshrl.u32 %v8656, 7
      %v8658 = vsub.s32 2, %v8657
      %v8659 = vrot.slane %v8646, %v8658
      %v8660 = vlaneseq
      %v8661 = vshrl.u32 %v8660, 7
      %v8662 = vsub.s32 3, %v8661
      %v8663 = vrot.slane %v8646, %v8662
      %v9180 = vunpack.c.l.b16 %v8134
      %v9181 = vunpack.c.h.b16 %v8134
      %v9182 = vunpack.c.l.b16 %v8135
      %v9183 = vunpack.c.h.b16 %v8135
      %v9184 = vunpack.c.l.b16 %v8136
      %v9185 = vunpack.c.h.b16 %v8136
      %v9186 = vunpack.c.l.b16 %v8137
      %v9187 = vunpack.c.h.b16 %v8137
      %v9188 = vunpack.c.l.b16 %v8138
      %v9189 = vunpack.c.h.b16 %v8138
      %v9190 = vunpack.c.l.b16 %v8139
      %v9191 = vunpack.c.h.b16 %v8139
      %v9192 = vunpack.c.l.b16 %v8140
      %v9193 = vunpack.c.h.b16 %v8140
      %v9194 = vunpack.c.l.b16 %v8141
      %v9195 = vunpack.c.h.b16 %v8141
      %v9196 = vunpack.c.l.b16 %v8142
      %v9197 = vunpack.c.h.b16 %v8142
      %v9198 = vunpack.c.l.b16 %v8143
      %v9199 = vunpack.c.h.b16 %v8143
      %v9200 = vunpack.c.l.b16 %v8144
      %v9201 = vunpack.c.h.b16 %v8144
      %v9202 = vunpack.c.l.b16 %v8145
      %v9203 = vunpack.c.h.b16 %v8145
      %v9204 = vunpack.c.l.b16 %v8146
      %v9205 = vunpack.c.h.b16 %v8146
      %v9206 = vunpack.c.l.b16 %v8147
      %v9207 = vunpack.c.h.b16 %v8147
      %v9208 = vunpack.c.l.b16 %v8148
      %v9209 = vunpack.c.h.b16 %v8148
      %v9210 = vunpack.c.l.b16 %v8149
      %v9211 = vunpack.c.h.b16 %v8149
      %v9212 = vunpack.c.l.b16 %v8150
      %v9213 = vunpack.c.h.b16 %v8150
      %v9214 = vunpack.c.l.b16 %v8151
      %v9215 = vunpack.c.h.b16 %v8151
      %v9216 = vunpack.c.l.b16 %v8152
      %v9217 = vunpack.c.h.b16 %v8152
      %v9218 = vunpack.c.l.b16 %v8153
      %v9219 = vunpack.c.h.b16 %v8153
      %v9220 = vunpack.c.l.b16 %v8154
      %v9221 = vunpack.c.h.b16 %v8154
      %v9222 = vunpack.c.l.b16 %v8155
      %v9223 = vunpack.c.h.b16 %v8155
      %v9224 = vunpack.c.l.b16 %v8156
      %v9225 = vunpack.c.h.b16 %v8156
      %v9226 = vunpack.c.l.b16 %v8157
      %v9227 = vunpack.c.h.b16 %v8157
      %v9228 = vunpack.c.l.b16 %v8158
      %v9229 = vunpack.c.h.b16 %v8158
      %v9230 = vunpack.c.l.b16 %v8159
      %v9231 = vunpack.c.h.b16 %v8159
      %v9232 = vunpack.c.l.b16 %v8160
      %v9233 = vunpack.c.h.b16 %v8160
      %v9234 = vunpack.c.l.b16 %v8161
      %v9235 = vunpack.c.h.b16 %v8161
      %v9236 = vunpack.c.l.b16 %v8162
      %v9237 = vunpack.c.h.b16 %v8162
      %v9238 = vunpack.c.l.b16 %v8163
      %v9239 = vunpack.c.h.b16 %v8163
      %v9240 = vunpack.c.l.b16 %v8164
      %v9241 = vunpack.c.h.b16 %v8164
      %v9242 = vunpack.c.l.b16 %v8165
      %v9243 = vunpack.c.h.b16 %v8165
      %v9244 = vunpack.c.l.b16 %v8166
      %v9245 = vunpack.c.h.b16 %v8166
      %v9246 = vunpack.c.l.b16 %v8167
      %v9247 = vunpack.c.h.b16 %v8167
      %v9248 = vunpack.c.l.b16 %v8168
      %v9249 = vunpack.c.h.b16 %v8168
      %v9250 = vunpack.c.l.b16 %v8169
      %v9251 = vunpack.c.h.b16 %v8169
      %v9252 = vunpack.c.l.b16 %v8170
      %v9253 = vunpack.c.h.b16 %v8170
      %v9254 = vunpack.c.l.b16 %v8171
      %v9255 = vunpack.c.h.b16 %v8171
      %v9256 = vunpack.c.l.b16 %v8172
      %v9257 = vunpack.c.h.b16 %v8172
      %v9258 = vunpack.c.l.b16 %v8173
      %v9259 = vunpack.c.h.b16 %v8173
      %v9260 = vunpack.c.l.b16 %v8174
      %v9261 = vunpack.c.h.b16 %v8174
      %v9262 = vunpack.c.l.b16 %v8175
      %v9263 = vunpack.c.h.b16 %v8175
      %v9264 = vunpack.c.l.b16 %v8176
      %v9265 = vunpack.c.h.b16 %v8176
      %v9266 = vunpack.c.l.b16 %v8177
      %v9267 = vunpack.c.h.b16 %v8177
      %v9268 = vunpack.c.l.b16 %v8178
      %v9269 = vunpack.c.h.b16 %v8178
      %v9270 = vunpack.c.l.b16 %v8179
      %v9271 = vunpack.c.h.b16 %v8179
      %v9272 = vunpack.c.l.b16 %v8180
      %v9273 = vunpack.c.h.b16 %v8180
      %v9274 = vunpack.c.l.b16 %v8181
      %v9275 = vunpack.c.h.b16 %v8181
      %v9276 = vunpack.c.l.b16 %v8182
      %v9277 = vunpack.c.h.b16 %v8182
      %v9278 = vunpack.c.l.b16 %v8183
      %v9279 = vunpack.c.h.b16 %v8183
      %v9280 = vunpack.c.l.b16 %v8184
      %v9281 = vunpack.c.h.b16 %v8184
      %v9282 = vunpack.c.l.b16 %v8185
      %v9283 = vunpack.c.h.b16 %v8185
      %v9284 = vunpack.c.l.b16 %v8186
      %v9285 = vunpack.c.h.b16 %v8186
      %v9286 = vunpack.c.l.b16 %v8187
      %v9287 = vunpack.c.h.b16 %v8187
      %v9288 = vunpack.c.l.b16 %v8188
      %v9289 = vunpack.c.h.b16 %v8188
      %v9290 = vunpack.c.l.b16 %v8189
      %v9291 = vunpack.c.h.b16 %v8189
      %v9292 = vunpack.c.l.b16 %v8190
      %v9293 = vunpack.c.h.b16 %v8190
      %v9294 = vunpack.c.l.b16 %v8191
      %v9295 = vunpack.c.h.b16 %v8191
      %v9296 = vunpack.c.l.b16 %v8192
      %v9297 = vunpack.c.h.b16 %v8192
      %v9298 = vunpack.c.l.b16 %v8193
      %v9299 = vunpack.c.h.b16 %v8193
      %v9300 = vunpack.c.l.b16 %v8194
      %v9301 = vunpack.c.h.b16 %v8194
      %v9302 = vunpack.c.l.b16 %v8195
      %v9303 = vunpack.c.h.b16 %v8195
      %v9304 = vunpack.c.l.b16 %v8196
      %v9305 = vunpack.c.h.b16 %v8196
      %v9306 = vunpack.c.l.b16 %v8197
      %v9307 = vunpack.c.h.b16 %v8197
      %v9308 = vunpack.c.l.b16 %v8198
      %v9309 = vunpack.c.h.b16 %v8198
      %v9310 = vunpack.c.l.b16 %v8199
      %v9311 = vunpack.c.h.b16 %v8199
      %v9312 = vunpack.c.l.b16 %v8200
      %v9313 = vunpack.c.h.b16 %v8200
      %v9314 = vunpack.c.l.b16 %v8201
      %v9315 = vunpack.c.h.b16 %v8201
      %v9316 = vunpack.c.l.b16 %v8202
      %v9317 = vunpack.c.h.b16 %v8202
      %v9318 = vunpack.c.l.b16 %v8203
      %v9319 = vunpack.c.h.b16 %v8203
      %v9320 = vunpack.c.l.b16 %v8204
      %v9321 = vunpack.c.h.b16 %v8204
      %v9322 = vunpack.c.l.b16 %v8205
      %v9323 = vunpack.c.h.b16 %v8205
      %v9324 = vunpack.c.l.b16 %v8206
      %v9325 = vunpack.c.h.b16 %v8206
      %v9326 = vunpack.c.l.b16 %v8207
      %v9327 = vunpack.c.h.b16 %v8207
      %v9328 = vunpack.c.l.b16 %v8208
      %v9329 = vunpack.c.h.b16 %v8208
      %v9330 = vunpack.c.l.b16 %v8209
      %v9331 = vunpack.c.h.b16 %v8209
      %v9332 = vunpack.c.l.b16 %v8210
      %v9333 = vunpack.c.h.b16 %v8210
      %v9334 = vunpack.c.l.b16 %v8211
      %v9335 = vunpack.c.h.b16 %v8211
      %v9336 = vunpack.c.l.b16 %v8212
      %v9337 = vunpack.c.h.b16 %v8212
      %v9338 = vunpack.c.l.b16 %v8213
      %v9339 = vunpack.c.h.b16 %v8213
      %v9340 = vunpack.c.l.b16 %v8214
      %v9341 = vunpack.c.h.b16 %v8214
      %v9342 = vunpack.c.l.b16 %v8215
      %v9343 = vunpack.c.h.b16 %v8215
      %v9344 = vunpack.c.l.b16 %v8216
      %v9345 = vunpack.c.h.b16 %v8216
      %v9346 = vunpack.c.l.b16 %v8217
      %v9347 = vunpack.c.h.b16 %v8217
      %v9348 = vunpack.c.l.b16 %v8218
      %v9349 = vunpack.c.h.b16 %v8218
      %v9350 = vunpack.c.l.b16 %v8219
      %v9351 = vunpack.c.h.b16 %v8219
      %v9352 = vunpack.c.l.b16 %v8220
      %v9353 = vunpack.c.h.b16 %v8220
      %v9354 = vunpack.c.l.b16 %v8221
      %v9355 = vunpack.c.h.b16 %v8221
      %v9356 = vunpack.c.l.b16 %v8222
      %v9357 = vunpack.c.h.b16 %v8222
      %v9358 = vunpack.c.l.b16 %v8223
      %v9359 = vunpack.c.h.b16 %v8223
      %v9360 = vunpack.c.l.b16 %v8224
      %v9361 = vunpack.c.h.b16 %v8224
      %v9362 = vunpack.c.l.b16 %v8225
      %v9363 = vunpack.c.h.b16 %v8225
      %v9364 = vunpack.c.l.b16 %v8226
      %v9365 = vunpack.c.h.b16 %v8226
      %v9366 = vunpack.c.l.b16 %v8227
      %v9367 = vunpack.c.h.b16 %v8227
      %v9368 = vunpack.c.l.b16 %v8228
      %v9369 = vunpack.c.h.b16 %v8228
      %v9370 = vunpack.c.l.b16 %v8229
      %v9371 = vunpack.c.h.b16 %v8229
      %v9372 = vunpack.c.l.b16 %v8230
      %v9373 = vunpack.c.h.b16 %v8230
      %v9374 = vunpack.c.l.b16 %v8231
      %v9375 = vunpack.c.h.b16 %v8231
      %v9376 = vunpack.c.l.b16 %v8232
      %v9377 = vunpack.c.h.b16 %v8232
      %v9378 = vunpack.c.l.b16 %v8233
      %v9379 = vunpack.c.h.b16 %v8233
      %v9380 = vunpack.c.l.b16 %v8234
      %v9381 = vunpack.c.h.b16 %v8234
      %v9382 = vunpack.c.l.b16 %v8235
      %v9383 = vunpack.c.h.b16 %v8235
      %v9384 = vunpack.c.l.b16 %v8236
      %v9385 = vunpack.c.h.b16 %v8236
      %v9386 = vunpack.c.l.b16 %v8237
      %v9387 = vunpack.c.h.b16 %v8237
      %v9388 = vunpack.c.l.b16 %v8238
      %v9389 = vunpack.c.h.b16 %v8238
      %v9390 = vunpack.c.l.b16 %v8239
      %v9391 = vunpack.c.h.b16 %v8239
      %v9392 = vunpack.c.l.b16 %v8240
      %v9393 = vunpack.c.h.b16 %v8240
      %v9394 = vunpack.c.l.b16 %v8241
      %v9395 = vunpack.c.h.b16 %v8241
      %v9396 = vunpack.c.l.b16 %v8242
      %v9397 = vunpack.c.h.b16 %v8242
      %v9398 = vunpack.c.l.b16 %v8243
      %v9399 = vunpack.c.h.b16 %v8243
      %v9400 = vunpack.c.l.b16 %v8244
      %v9401 = vunpack.c.h.b16 %v8244
      %v9402 = vunpack.c.l.b16 %v8245
      %v9403 = vunpack.c.h.b16 %v8245
      %v9404 = vunpack.c.l.b16 %v8246
      %v9405 = vunpack.c.h.b16 %v8246
      %v9406 = vunpack.c.l.b16 %v8247
      %v9407 = vunpack.c.h.b16 %v8247
      %v9408 = vunpack.c.l.b16 %v8248
      %v9409 = vunpack.c.h.b16 %v8248
      %v9410 = vunpack.c.l.b16 %v8249
      %v9411 = vunpack.c.h.b16 %v8249
      %v9412 = vunpack.c.l.b16 %v8250
      %v9413 = vunpack.c.h.b16 %v8250
      %v9414 = vunpack.c.l.b16 %v8251
      %v9415 = vunpack.c.h.b16 %v8251
      %v9416 = vunpack.c.l.b16 %v8252
      %v9417 = vunpack.c.h.b16 %v8252
      %v9418 = vunpack.c.l.b16 %v8253
      %v9419 = vunpack.c.h.b16 %v8253
      %v9420 = vunpack.c.l.b16 %v8254
      %v9421 = vunpack.c.h.b16 %v8254
      %v9422 = vunpack.c.l.b16 %v8255
      %v9423 = vunpack.c.h.b16 %v8255
      %v9424 = vunpack.c.l.b16 %v8256
      %v9425 = vunpack.c.h.b16 %v8256
      %v9426 = vunpack.c.l.b16 %v8257
      %v9427 = vunpack.c.h.b16 %v8257
      %v9428 = vunpack.c.l.b16 %v8258
      %v9429 = vunpack.c.h.b16 %v8258
      %v9430 = vunpack.c.l.b16 %v8259
      %v9431 = vunpack.c.h.b16 %v8259
      %v9432 = vunpack.c.l.b16 %v8260
      %v9433 = vunpack.c.h.b16 %v8260
      %v9434 = vunpack.c.l.b16 %v8261
      %v9435 = vunpack.c.h.b16 %v8261
      %v9436 = vunpack.c.l.b16 %v8262
      %v9437 = vunpack.c.h.b16 %v8262
      %v9438 = vunpack.c.l.b16 %v8263
      %v9439 = vunpack.c.h.b16 %v8263
      %v9440 = vunpack.c.l.b16 %v8264
      %v9441 = vunpack.c.h.b16 %v8264
      %v9442 = vunpack.c.l.b16 %v8265
      %v9443 = vunpack.c.h.b16 %v8265
      %v9444 = vunpack.c.l.b16 %v8266
      %v9445 = vunpack.c.h.b16 %v8266
      %v9446 = vunpack.c.l.b16 %v8267
      %v9447 = vunpack.c.h.b16 %v8267
      %v9448 = vunpack.c.l.b16 %v8268
      %v9449 = vunpack.c.h.b16 %v8268
      %v9450 = vunpack.c.l.b16 %v8269
      %v9451 = vunpack.c.h.b16 %v8269
      %v9452 = vunpack.c.l.b16 %v8270
      %v9453 = vunpack.c.h.b16 %v8270
      %v9454 = vunpack.c.l.b16 %v8271
      %v9455 = vunpack.c.h.b16 %v8271
      %v9456 = vunpack.c.l.b16 %v8272
      %v9457 = vunpack.c.h.b16 %v8272
      %v9458 = vunpack.c.l.b16 %v8273
      %v9459 = vunpack.c.h.b16 %v8273
      %v9460 = vunpack.c.l.b16 %v8274
      %v9461 = vunpack.c.h.b16 %v8274
      %v9462 = vunpack.c.l.b16 %v8275
      %v9463 = vunpack.c.h.b16 %v8275
      %v9464 = vunpack.c.l.b16 %v8276
      %v9465 = vunpack.c.h.b16 %v8276
      %v9466 = vunpack.c.l.b16 %v8277
      %v9467 = vunpack.c.h.b16 %v8277
      %v9468 = vunpack.c.l.b16 %v8278
      %v9469 = vunpack.c.h.b16 %v8278
      %v9470 = vunpack.c.l.b16 %v8279
      %v9471 = vunpack.c.h.b16 %v8279
      %v9472 = vunpack.c.l.b16 %v8280
      %v9473 = vunpack.c.h.b16 %v8280
      %v9474 = vunpack.c.l.b16 %v8281
      %v9475 = vunpack.c.h.b16 %v8281
      %v9476 = vunpack.c.l.b16 %v8282
      %v9477 = vunpack.c.h.b16 %v8282
      %v9478 = vunpack.c.l.b16 %v8283
      %v9479 = vunpack.c.h.b16 %v8283
      %v9480 = vunpack.c.l.b16 %v8284
      %v9481 = vunpack.c.h.b16 %v8284
      %v9482 = vunpack.c.l.b16 %v8285
      %v9483 = vunpack.c.h.b16 %v8285
      %v9484 = vunpack.c.l.b16 %v8286
      %v9485 = vunpack.c.h.b16 %v8286
      %v9486 = vunpack.c.l.b16 %v8287
      %v9487 = vunpack.c.h.b16 %v8287
      %v9488 = vunpack.c.l.b16 %v8288
      %v9489 = vunpack.c.h.b16 %v8288
      %v9490 = vunpack.c.l.b16 %v8289
      %v9491 = vunpack.c.h.b16 %v8289
      %v9492 = vunpack.c.l.b16 %v8290
      %v9493 = vunpack.c.h.b16 %v8290
      %v9494 = vunpack.c.l.b16 %v8291
      %v9495 = vunpack.c.h.b16 %v8291
      %v9496 = vunpack.c.l.b16 %v8292
      %v9497 = vunpack.c.h.b16 %v8292
      %v9498 = vunpack.c.l.b16 %v8293
      %v9499 = vunpack.c.h.b16 %v8293
      %v9500 = vunpack.c.l.b16 %v8294
      %v9501 = vunpack.c.h.b16 %v8294
      %v9502 = vunpack.c.l.b16 %v8295
      %v9503 = vunpack.c.h.b16 %v8295
      %v9504 = vunpack.c.l.b16 %v8296
      %v9505 = vunpack.c.h.b16 %v8296
      %v9506 = vunpack.c.l.b16 %v8297
      %v9507 = vunpack.c.h.b16 %v8297
      %v9508 = vunpack.c.l.b16 %v8298
      %v9509 = vunpack.c.h.b16 %v8298
      %v9510 = vunpack.c.l.b16 %v8299
      %v9511 = vunpack.c.h.b16 %v8299
      %v9512 = vunpack.c.l.b16 %v8300
      %v9513 = vunpack.c.h.b16 %v8300
      %v9514 = vunpack.c.l.b16 %v8301
      %v9515 = vunpack.c.h.b16 %v8301
      %v9516 = vunpack.c.l.b16 %v8302
      %v9517 = vunpack.c.h.b16 %v8302
      %v9518 = vunpack.c.l.b16 %v8303
      %v9519 = vunpack.c.h.b16 %v8303
      %v9520 = vunpack.c.l.b16 %v8304
      %v9521 = vunpack.c.h.b16 %v8304
      %v9522 = vunpack.c.l.b16 %v8305
      %v9523 = vunpack.c.h.b16 %v8305
      %v9524 = vunpack.c.l.b16 %v8306
      %v9525 = vunpack.c.h.b16 %v8306
      %v9526 = vunpack.c.l.b16 %v8307
      %v9527 = vunpack.c.h.b16 %v8307
      %v9528 = vunpack.c.l.b16 %v8308
      %v9529 = vunpack.c.h.b16 %v8308
      %v9530 = vunpack.c.l.b16 %v8309
      %v9531 = vunpack.c.h.b16 %v8309
      %v9532 = vunpack.c.l.b16 %v8310
      %v9533 = vunpack.c.h.b16 %v8310
      %v9534 = vunpack.c.l.b16 %v8311
      %v9535 = vunpack.c.h.b16 %v8311
      %v9536 = vunpack.c.l.b16 %v8312
      %v9537 = vunpack.c.h.b16 %v8312
      %v9538 = vunpack.c.l.b16 %v8313
      %v9539 = vunpack.c.h.b16 %v8313
      %v9540 = vunpack.c.l.b16 %v8314
      %v9541 = vunpack.c.h.b16 %v8314
      %v9542 = vunpack.c.l.b16 %v8315
      %v9543 = vunpack.c.h.b16 %v8315
      %v9544 = vunpack.c.l.b16 %v8316
      %v9545 = vunpack.c.h.b16 %v8316
      %v9546 = vunpack.c.l.b16 %v8317
      %v9547 = vunpack.c.h.b16 %v8317
      %v9548 = vunpack.c.l.b16 %v8318
      %v9549 = vunpack.c.h.b16 %v8318
      %v9550 = vunpack.c.l.b16 %v8319
      %v9551 = vunpack.c.h.b16 %v8319
      %v9552 = vunpack.c.l.b16 %v8320
      %v9553 = vunpack.c.h.b16 %v8320
      %v9554 = vunpack.c.l.b16 %v8321
      %v9555 = vunpack.c.h.b16 %v8321
      %v9556 = vunpack.c.l.b16 %v8322
      %v9557 = vunpack.c.h.b16 %v8322
      %v9558 = vunpack.c.l.b16 %v8323
      %v9559 = vunpack.c.h.b16 %v8323
      %v9560 = vunpack.c.l.b16 %v8324
      %v9561 = vunpack.c.h.b16 %v8324
      %v9562 = vunpack.c.l.b16 %v8325
      %v9563 = vunpack.c.h.b16 %v8325
      %v9564 = vunpack.c.l.b16 %v8326
      %v9565 = vunpack.c.h.b16 %v8326
      %v9566 = vunpack.c.l.b16 %v8327
      %v9567 = vunpack.c.h.b16 %v8327
      %v9568 = vunpack.c.l.b16 %v8328
      %v9569 = vunpack.c.h.b16 %v8328
      %v9570 = vunpack.c.l.b16 %v8329
      %v9571 = vunpack.c.h.b16 %v8329
      %v9572 = vunpack.c.l.b16 %v8330
      %v9573 = vunpack.c.h.b16 %v8330
      %v9574 = vunpack.c.l.b16 %v8331
      %v9575 = vunpack.c.h.b16 %v8331
      %v9576 = vunpack.c.l.b16 %v8332
      %v9577 = vunpack.c.h.b16 %v8332
      %v9578 = vunpack.c.l.b16 %v8333
      %v9579 = vunpack.c.h.b16 %v8333
      %v9580 = vunpack.c.l.b16 %v8334
      %v9581 = vunpack.c.h.b16 %v8334
      %v9582 = vunpack.c.l.b16 %v8335
      %v9583 = vunpack.c.h.b16 %v8335
      %v9584 = vunpack.c.l.b16 %v8336
      %v9585 = vunpack.c.h.b16 %v8336
      %v9586 = vunpack.c.l.b16 %v8337
      %v9587 = vunpack.c.h.b16 %v8337
      %v9588 = vunpack.c.l.b16 %v8338
      %v9589 = vunpack.c.h.b16 %v8338
      %v9590 = vunpack.c.l.b16 %v8339
      %v9591 = vunpack.c.h.b16 %v8339
      %v9592 = vunpack.c.l.b16 %v8340
      %v9593 = vunpack.c.h.b16 %v8340
      %v9594 = vunpack.c.l.b16 %v8341
      %v9595 = vunpack.c.h.b16 %v8341
      %v9596 = vunpack.c.l.b16 %v8342
      %v9597 = vunpack.c.h.b16 %v8342
      %v9598 = vunpack.c.l.b16 %v8343
      %v9599 = vunpack.c.h.b16 %v8343
      %v9600 = vunpack.c.l.b16 %v8344
      %v9601 = vunpack.c.h.b16 %v8344
      %v9602 = vunpack.c.l.b16 %v8345
      %v9603 = vunpack.c.h.b16 %v8345
      %v9604 = vunpack.c.l.b16 %v8346
      %v9605 = vunpack.c.h.b16 %v8346
      %v9606 = vunpack.c.l.b16 %v8347
      %v9607 = vunpack.c.h.b16 %v8347
      %v9608 = vunpack.c.l.b16 %v8348
      %v9609 = vunpack.c.h.b16 %v8348
      %v9610 = vunpack.c.l.b16 %v8349
      %v9611 = vunpack.c.h.b16 %v8349
      %v9612 = vunpack.c.l.b16 %v8350
      %v9613 = vunpack.c.h.b16 %v8350
      %v9614 = vunpack.c.l.b16 %v8351
      %v9615 = vunpack.c.h.b16 %v8351
      %v9616 = vunpack.c.l.b16 %v8352
      %v9617 = vunpack.c.h.b16 %v8352
      %v9618 = vunpack.c.l.b16 %v8353
      %v9619 = vunpack.c.h.b16 %v8353
      %v9620 = vunpack.c.l.b16 %v8354
      %v9621 = vunpack.c.h.b16 %v8354
      %v9622 = vunpack.c.l.b16 %v8355
      %v9623 = vunpack.c.h.b16 %v8355
      %v9624 = vunpack.c.l.b16 %v8356
      %v9625 = vunpack.c.h.b16 %v8356
      %v9626 = vunpack.c.l.b16 %v8357
      %v9627 = vunpack.c.h.b16 %v8357
      %v9628 = vunpack.c.l.b16 %v8358
      %v9629 = vunpack.c.h.b16 %v8358
      %v9630 = vunpack.c.l.b16 %v8359
      %v9631 = vunpack.c.h.b16 %v8359
      %v9632 = vunpack.c.l.b16 %v8360
      %v9633 = vunpack.c.h.b16 %v8360
      %v9634 = vunpack.c.l.b16 %v8361
      %v9635 = vunpack.c.h.b16 %v8361
      %v9636 = vunpack.c.l.b16 %v8362
      %v9637 = vunpack.c.h.b16 %v8362
      %v9638 = vunpack.c.l.b16 %v8363
      %v9639 = vunpack.c.h.b16 %v8363
      %v9640 = vunpack.c.l.b16 %v8364
      %v9641 = vunpack.c.h.b16 %v8364
      %v9642 = vunpack.c.l.b16 %v8365
      %v9643 = vunpack.c.h.b16 %v8365
      %v9644 = vunpack.c.l.b16 %v8366
      %v9645 = vunpack.c.h.b16 %v8366
      %v9646 = vunpack.c.l.b16 %v8367
      %v9647 = vunpack.c.h.b16 %v8367
      %v9648 = vunpack.c.l.b16 %v8368
      %v9649 = vunpack.c.h.b16 %v8368
      %v9650 = vunpack.c.l.b16 %v8369
      %v9651 = vunpack.c.h.b16 %v8369
      %v9652 = vunpack.c.l.b16 %v8370
      %v9653 = vunpack.c.h.b16 %v8370
      %v9654 = vunpack.c.l.b16 %v8371
      %v9655 = vunpack.c.h.b16 %v8371
      %v9656 = vunpack.c.l.b16 %v8372
      %v9657 = vunpack.c.h.b16 %v8372
      %v9658 = vunpack.c.l.b16 %v8373
      %v9659 = vunpack.c.h.b16 %v8373
      %v9660 = vunpack.c.l.b16 %v8374
      %v9661 = vunpack.c.h.b16 %v8374
      %v9662 = vunpack.c.l.b16 %v8375
      %v9663 = vunpack.c.h.b16 %v8375
      %v9664 = vunpack.c.l.b16 %v8376
      %v9665 = vunpack.c.h.b16 %v8376
      %v9666 = vunpack.c.l.b16 %v8377
      %v9667 = vunpack.c.h.b16 %v8377
      %v9668 = vunpack.c.l.b16 %v8378
      %v9669 = vunpack.c.h.b16 %v8378
      %v9670 = vunpack.c.l.b16 %v8379
      %v9671 = vunpack.c.h.b16 %v8379
      %v9672 = vunpack.c.l.b16 %v8380
      %v9673 = vunpack.c.h.b16 %v8380
      %v9674 = vunpack.c.l.b16 %v8381
      %v9675 = vunpack.c.h.b16 %v8381
      %v9676 = vunpack.c.l.b16 %v8382
      %v9677 = vunpack.c.h.b16 %v8382
      %v9678 = vunpack.c.l.b16 %v8383
      %v9679 = vunpack.c.h.b16 %v8383
      %v9680 = vunpack.c.l.b16 %v8384
      %v9681 = vunpack.c.h.b16 %v8384
      %v9682 = vunpack.c.l.b16 %v8385
      %v9683 = vunpack.c.h.b16 %v8385
      %v9684 = vunpack.c.l.b16 %v8386
      %v9685 = vunpack.c.h.b16 %v8386
      %v9686 = vunpack.c.l.b16 %v8387
      %v9687 = vunpack.c.h.b16 %v8387
      %v9688 = vunpack.c.l.b16 %v8388
      %v9689 = vunpack.c.h.b16 %v8388
      %v9690 = vunpack.c.l.b16 %v8389
      %v9691 = vunpack.c.h.b16 %v8389
      %v9692 = vunpack.c.l.b16 %v8390
      %v9693 = vunpack.c.h.b16 %v8390
      %v9694 = vunpack.c.l.b16 %v8391
      %v9695 = vunpack.c.h.b16 %v8391
      %v9696 = vunpack.c.l.b16 %v8392
      %v9697 = vunpack.c.h.b16 %v8392
      %v9698 = vunpack.c.l.b16 %v8393
      %v9699 = vunpack.c.h.b16 %v8393
      %v9700 = vunpack.c.l.b16 %v8394
      %v9701 = vunpack.c.h.b16 %v8394
      %v9702 = vunpack.c.l.b16 %v8395
      %v9703 = vunpack.c.h.b16 %v8395
      %v9704 = vunpack.c.l.b16 %v8396
      %v9705 = vunpack.c.h.b16 %v8396
      %v9706 = vunpack.c.l.b16 %v8397
      %v9707 = vunpack.c.h.b16 %v8397
      %v9708 = vunpack.c.l.b16 %v8398
      %v9709 = vunpack.c.h.b16 %v8398
      %v9710 = vunpack.c.l.b16 %v8399
      %v9711 = vunpack.c.h.b16 %v8399
      %v9712 = vunpack.c.l.b16 %v8400
      %v9713 = vunpack.c.h.b16 %v8400
      %v9714 = vunpack.c.l.b16 %v8401
      %v9715 = vunpack.c.h.b16 %v8401
      %v9716 = vunpack.c.l.b16 %v8402
      %v9717 = vunpack.c.h.b16 %v8402
      %v9718 = vunpack.c.l.b16 %v8403
      %v9719 = vunpack.c.h.b16 %v8403
      %v9720 = vunpack.c.l.b16 %v8404
      %v9721 = vunpack.c.h.b16 %v8404
      %v9722 = vunpack.c.l.b16 %v8405
      %v9723 = vunpack.c.h.b16 %v8405
      %v9724 = vunpack.c.l.b16 %v8406
      %v9725 = vunpack.c.h.b16 %v8406
      %v9726 = vunpack.c.l.b16 %v8407
      %v9727 = vunpack.c.h.b16 %v8407
      %v9728 = vunpack.c.l.b16 %v8408
      %v9729 = vunpack.c.h.b16 %v8408
      %v9730 = vunpack.c.l.b16 %v8409
      %v9731 = vunpack.c.h.b16 %v8409
      %v9732 = vunpack.c.l.b16 %v8410
      %v9733 = vunpack.c.h.b16 %v8410
      %v9734 = vunpack.c.l.b16 %v8411
      %v9735 = vunpack.c.h.b16 %v8411
      %v9736 = vunpack.c.l.b16 %v8412
      %v9737 = vunpack.c.h.b16 %v8412
      %v9738 = vunpack.c.l.b16 %v8413
      %v9739 = vunpack.c.h.b16 %v8413
      %v9740 = vunpack.c.l.b16 %v8414
      %v9741 = vunpack.c.h.b16 %v8414
      %v9742 = vunpack.c.l.b16 %v8415
      %v9743 = vunpack.c.h.b16 %v8415
      %v9744 = vunpack.c.l.b16 %v8416
      %v9745 = vunpack.c.h.b16 %v8416
      %v9746 = vunpack.c.l.b16 %v8417
      %v9747 = vunpack.c.h.b16 %v8417
      %v9748 = vunpack.c.l.b16 %v8418
      %v9749 = vunpack.c.h.b16 %v8418
      %v9750 = vunpack.c.l.b16 %v8419
      %v9751 = vunpack.c.h.b16 %v8419
      %v9752 = vunpack.c.l.b16 %v8420
      %v9753 = vunpack.c.h.b16 %v8420
      %v9754 = vunpack.c.l.b16 %v8421
      %v9755 = vunpack.c.h.b16 %v8421
      %v9756 = vunpack.c.l.b16 %v8422
      %v9757 = vunpack.c.h.b16 %v8422
      %v9758 = vunpack.c.l.b16 %v8423
      %v9759 = vunpack.c.h.b16 %v8423
      %v9760 = vunpack.c.l.b16 %v8424
      %v9761 = vunpack.c.h.b16 %v8424
      %v9762 = vunpack.c.l.b16 %v8425
      %v9763 = vunpack.c.h.b16 %v8425
      %v9764 = vunpack.c.l.b16 %v8426
      %v9765 = vunpack.c.h.b16 %v8426
      %v9766 = vunpack.c.l.b16 %v8427
      %v9767 = vunpack.c.h.b16 %v8427
      %v9768 = vunpack.c.l.b16 %v8428
      %v9769 = vunpack.c.h.b16 %v8428
      %v9770 = vunpack.c.l.b16 %v8429
      %v9771 = vunpack.c.h.b16 %v8429
      %v9772 = vunpack.c.l.b16 %v8430
      %v9773 = vunpack.c.h.b16 %v8430
      %v9774 = vunpack.c.l.b16 %v8431
      %v9775 = vunpack.c.h.b16 %v8431
      %v9776 = vunpack.c.l.b16 %v8432
      %v9777 = vunpack.c.h.b16 %v8432
      %v9778 = vunpack.c.l.b16 %v8433
      %v9779 = vunpack.c.h.b16 %v8433
      %v9780 = vunpack.c.l.b16 %v8434
      %v9781 = vunpack.c.h.b16 %v8434
      %v9782 = vunpack.c.l.b16 %v8435
      %v9783 = vunpack.c.h.b16 %v8435
      %v9784 = vunpack.c.l.b16 %v8436
      %v9785 = vunpack.c.h.b16 %v8436
      %v9786 = vunpack.c.l.b16 %v8437
      %v9787 = vunpack.c.h.b16 %v8437
      %v9788 = vunpack.c.l.b16 %v8438
      %v9789 = vunpack.c.h.b16 %v8438
      %v9790 = vunpack.c.l.b16 %v8439
      %v9791 = vunpack.c.h.b16 %v8439
      %v9792 = vunpack.c.l.b16 %v8440
      %v9793 = vunpack.c.h.b16 %v8440
      %v9794 = vunpack.c.l.b16 %v8441
      %v9795 = vunpack.c.h.b16 %v8441
      %v9796 = vunpack.c.l.b16 %v8442
      %v9797 = vunpack.c.h.b16 %v8442
      %v9798 = vunpack.c.l.b16 %v8443
      %v9799 = vunpack.c.h.b16 %v8443
      %v9800 = vunpack.c.l.b16 %v8444
      %v9801 = vunpack.c.h.b16 %v8444
      %v9802 = vunpack.c.l.b16 %v8445
      %v9803 = vunpack.c.h.b16 %v8445
      %v9804 = vunpack.c.l.b16 %v8446
      %v9805 = vunpack.c.h.b16 %v8446
      %v9806 = vunpack.c.l.b16 %v8447
      %v9807 = vunpack.c.h.b16 %v8447
      %v9808 = vunpack.c.l.b16 %v8448
      %v9809 = vunpack.c.h.b16 %v8448
      %v9810 = vunpack.c.l.b16 %v8449
      %v9811 = vunpack.c.h.b16 %v8449
      %v9812 = vunpack.c.l.b16 %v8450
      %v9813 = vunpack.c.h.b16 %v8450
      %v9814 = vunpack.c.l.b16 %v8451
      %v9815 = vunpack.c.h.b16 %v8451
      %v9816 = vunpack.c.l.b16 %v8452
      %v9817 = vunpack.c.h.b16 %v8452
      %v9818 = vunpack.c.l.b16 %v8453
      %v9819 = vunpack.c.h.b16 %v8453
      %v9820 = vunpack.c.l.b16 %v8454
      %v9821 = vunpack.c.h.b16 %v8454
      %v9822 = vunpack.c.l.b16 %v8455
      %v9823 = vunpack.c.h.b16 %v8455
      %v9824 = vunpack.c.l.b16 %v8456
      %v9825 = vunpack.c.h.b16 %v8456
      %v9826 = vunpack.c.l.b16 %v8457
      %v9827 = vunpack.c.h.b16 %v8457
      %v9828 = vunpack.c.l.b16 %v8458
      %v9829 = vunpack.c.h.b16 %v8458
      %v9830 = vunpack.c.l.b16 %v8459
      %v9831 = vunpack.c.h.b16 %v8459
      %v9832 = vunpack.c.l.b16 %v8460
      %v9833 = vunpack.c.h.b16 %v8460
      %v9834 = vunpack.c.l.b16 %v8461
      %v9835 = vunpack.c.h.b16 %v8461
      %v9836 = vunpack.c.l.b16 %v8462
      %v9837 = vunpack.c.h.b16 %v8462
      %v9838 = vunpack.c.l.b16 %v8463
      %v9839 = vunpack.c.h.b16 %v8463
      %v9840 = vunpack.c.l.b16 %v8464
      %v9841 = vunpack.c.h.b16 %v8464
      %v9842 = vunpack.c.l.b16 %v8465
      %v9843 = vunpack.c.h.b16 %v8465
      %v9844 = vunpack.c.l.b16 %v8466
      %v9845 = vunpack.c.h.b16 %v8466
      %v9846 = vunpack.c.l.b16 %v8467
      %v9847 = vunpack.c.h.b16 %v8467
      %v9848 = vunpack.c.l.b16 %v8468
      %v9849 = vunpack.c.h.b16 %v8468
      %v9850 = vunpack.c.l.b16 %v8469
      %v9851 = vunpack.c.h.b16 %v8469
      %v9852 = vunpack.c.l.b16 %v8470
      %v9853 = vunpack.c.h.b16 %v8470
      %v9854 = vunpack.c.l.b16 %v8471
      %v9855 = vunpack.c.h.b16 %v8471
      %v9856 = vunpack.c.l.b16 %v8472
      %v9857 = vunpack.c.h.b16 %v8472
      %v9858 = vunpack.c.l.b16 %v8473
      %v9859 = vunpack.c.h.b16 %v8473
      %v9860 = vunpack.c.l.b16 %v8474
      %v9861 = vunpack.c.h.b16 %v8474
      %v9862 = vunpack.c.l.b16 %v8475
      %v9863 = vunpack.c.h.b16 %v8475
      %v9864 = vunpack.c.l.b16 %v8476
      %v9865 = vunpack.c.h.b16 %v8476
      %v9866 = vunpack.c.l.b16 %v8477
      %v9867 = vunpack.c.h.b16 %v8477
      %v9868 = vunpack.c.l.b16 %v8478
      %v9869 = vunpack.c.h.b16 %v8478
      %v9870 = vunpack.c.l.b16 %v8479
      %v9871 = vunpack.c.h.b16 %v8479
      %v9872 = vunpack.c.l.b16 %v8480
      %v9873 = vunpack.c.h.b16 %v8480
      %v9874 = vunpack.c.l.b16 %v8481
      %v9875 = vunpack.c.h.b16 %v8481
      %v9876 = vunpack.c.l.b16 %v8482
      %v9877 = vunpack.c.h.b16 %v8482
      %v9878 = vunpack.c.l.b16 %v8483
      %v9879 = vunpack.c.h.b16 %v8483
      %v9880 = vunpack.c.l.b16 %v8484
      %v9881 = vunpack.c.h.b16 %v8484
      %v9882 = vunpack.c.l.b16 %v8485
      %v9883 = vunpack.c.h.b16 %v8485
      %v9884 = vunpack.c.l.b16 %v8486
      %v9885 = vunpack.c.h.b16 %v8486
      %v9886 = vunpack.c.l.b16 %v8487
      %v9887 = vunpack.c.h.b16 %v8487
      %v9888 = vunpack.c.l.b16 %v8488
      %v9889 = vunpack.c.h.b16 %v8488
      %v9890 = vunpack.c.l.b16 %v8489
      %v9891 = vunpack.c.h.b16 %v8489
      %v9892 = vunpack.c.l.b16 %v8490
      %v9893 = vunpack.c.h.b16 %v8490
      %v9894 = vunpack.c.l.b16 %v8491
      %v9895 = vunpack.c.h.b16 %v8491
      %v9896 = vunpack.c.l.b16 %v8492
      %v9897 = vunpack.c.h.b16 %v8492
      %v9898 = vunpack.c.l.b16 %v8493
      %v9899 = vunpack.c.h.b16 %v8493
      %v9900 = vunpack.c.l.b16 %v8494
      %v9901 = vunpack.c.h.b16 %v8494
      %v9902 = vunpack.c.l.b16 %v8495
      %v9903 = vunpack.c.h.b16 %v8495
      %v9904 = vunpack.c.l.b16 %v8496
      %v9905 = vunpack.c.h.b16 %v8496
      %v9906 = vunpack.c.l.b16 %v8497
      %v9907 = vunpack.c.h.b16 %v8497
      %v9908 = vunpack.c.l.b16 %v8498
      %v9909 = vunpack.c.h.b16 %v8498
      %v9910 = vunpack.c.l.b16 %v8499
      %v9911 = vunpack.c.h.b16 %v8499
      %v9912 = vunpack.c.l.b16 %v8500
      %v9913 = vunpack.c.h.b16 %v8500
      %v9914 = vunpack.c.l.b16 %v8501
      %v9915 = vunpack.c.h.b16 %v8501
      %v9916 = vunpack.c.l.b16 %v8502
      %v9917 = vunpack.c.h.b16 %v8502
      %v9918 = vunpack.c.l.b16 %v8503
      %v9919 = vunpack.c.h.b16 %v8503
      %v9920 = vunpack.c.l.b16 %v8504
      %v9921 = vunpack.c.h.b16 %v8504
      %v9922 = vunpack.c.l.b16 %v8505
      %v9923 = vunpack.c.h.b16 %v8505
      %v9924 = vunpack.c.l.b16 %v8506
      %v9925 = vunpack.c.h.b16 %v8506
      %v9926 = vunpack.c.l.b16 %v8507
      %v9927 = vunpack.c.h.b16 %v8507
      %v9928 = vunpack.c.l.b16 %v8508
      %v9929 = vunpack.c.h.b16 %v8508
      %v9930 = vunpack.c.l.b16 %v8509
      %v9931 = vunpack.c.h.b16 %v8509
      %v9932 = vunpack.c.l.b16 %v8510
      %v9933 = vunpack.c.h.b16 %v8510
      %v9934 = vunpack.c.l.b16 %v8511
      %v9935 = vunpack.c.h.b16 %v8511
      %v9936 = vunpack.c.l.b16 %v8512
      %v9937 = vunpack.c.h.b16 %v8512
      %v9938 = vunpack.c.l.b16 %v8513
      %v9939 = vunpack.c.h.b16 %v8513
      %v9940 = vunpack.c.l.b16 %v8514
      %v9941 = vunpack.c.h.b16 %v8514
      %v9942 = vunpack.c.l.b16 %v8515
      %v9943 = vunpack.c.h.b16 %v8515
      %v9944 = vunpack.c.l.b16 %v8516
      %v9945 = vunpack.c.h.b16 %v8516
      %v9946 = vunpack.c.l.b16 %v8517
      %v9947 = vunpack.c.h.b16 %v8517
      %v9948 = vunpack.c.l.b16 %v8518
      %v9949 = vunpack.c.h.b16 %v8518
      %v9950 = vunpack.c.l.b16 %v8519
      %v9951 = vunpack.c.h.b16 %v8519
      %v9952 = vunpack.c.l.b16 %v8520
      %v9953 = vunpack.c.h.b16 %v8520
      %v9954 = vunpack.c.l.b16 %v8521
      %v9955 = vunpack.c.h.b16 %v8521
      %v9956 = vunpack.c.l.b16 %v8522
      %v9957 = vunpack.c.h.b16 %v8522
      %v9958 = vunpack.c.l.b16 %v8523
      %v9959 = vunpack.c.h.b16 %v8523
      %v9960 = vunpack.c.l.b16 %v8524
      %v9961 = vunpack.c.h.b16 %v8524
      %v9962 = vunpack.c.l.b16 %v8525
      %v9963 = vunpack.c.h.b16 %v8525
      %v9964 = vunpack.c.l.b16 %v8526
      %v9965 = vunpack.c.h.b16 %v8526
      %v9966 = vunpack.c.l.b16 %v8527
      %v9967 = vunpack.c.h.b16 %v8527
      %v9968 = vunpack.c.l.b16 %v8528
      %v9969 = vunpack.c.h.b16 %v8528
      %v9970 = vunpack.c.l.b16 %v8529
      %v9971 = vunpack.c.h.b16 %v8529
      %v9972 = vunpack.c.l.b16 %v8530
      %v9973 = vunpack.c.h.b16 %v8530
      %v9974 = vunpack.c.l.b16 %v8531
      %v9975 = vunpack.c.h.b16 %v8531
      %v9976 = vunpack.c.l.b16 %v8532
      %v9977 = vunpack.c.h.b16 %v8532
      %v9978 = vunpack.c.l.b16 %v8533
      %v9979 = vunpack.c.h.b16 %v8533
      %v9980 = vunpack.c.l.b16 %v8534
      %v9981 = vunpack.c.h.b16 %v8534
      %v9982 = vunpack.c.l.b16 %v8535
      %v9983 = vunpack.c.h.b16 %v8535
      %v9984 = vunpack.c.l.b16 %v8536
      %v9985 = vunpack.c.h.b16 %v8536
      %v9986 = vunpack.c.l.b16 %v8537
      %v9987 = vunpack.c.h.b16 %v8537
      %v9988 = vunpack.c.l.b16 %v8538
      %v9989 = vunpack.c.h.b16 %v8538
      %v9990 = vunpack.c.l.b16 %v8539
      %v9991 = vunpack.c.h.b16 %v8539
      %v9992 = vunpack.c.l.b16 %v8540
      %v9993 = vunpack.c.h.b16 %v8540
      %v9994 = vunpack.c.l.b16 %v8541
      %v9995 = vunpack.c.h.b16 %v8541
      %v9996 = vunpack.c.l.b16 %v8542
      %v9997 = vunpack.c.h.b16 %v8542
      %v9998 = vunpack.c.l.b16 %v8543
      %v9999 = vunpack.c.h.b16 %v8543
      %v10000 = vunpack.c.l.b16 %v8544
      %v10001 = vunpack.c.h.b16 %v8544
      %v10002 = vunpack.c.l.b16 %v8545
      %v10003 = vunpack.c.h.b16 %v8545
      %v10004 = vunpack.c.l.b16 %v8546
      %v10005 = vunpack.c.h.b16 %v8546
      %v10006 = vunpack.c.l.b16 %v8547
      %v10007 = vunpack.c.h.b16 %v8547
      %v10008 = vunpack.c.l.b16 %v8548
      %v10009 = vunpack.c.h.b16 %v8548
      %v10010 = vunpack.c.l.b16 %v8549
      %v10011 = vunpack.c.h.b16 %v8549
      %v10012 = vunpack.c.l.b16 %v8550
      %v10013 = vunpack.c.h.b16 %v8550
      %v10014 = vunpack.c.l.b16 %v8551
      %v10015 = vunpack.c.h.b16 %v8551
      %v10016 = vunpack.c.l.b16 %v8552
      %v10017 = vunpack.c.h.b16 %v8552
      %v10018 = vunpack.c.l.b16 %v8553
      %v10019 = vunpack.c.h.b16 %v8553
      %v10020 = vunpack.c.l.b16 %v8554
      %v10021 = vunpack.c.h.b16 %v8554
      %v10022 = vunpack.c.l.b16 %v8555
      %v10023 = vunpack.c.h.b16 %v8555
      %v10024 = vunpack.c.l.b16 %v8556
      %v10025 = vunpack.c.h.b16 %v8556
      %v10026 = vunpack.c.l.b16 %v8557
      %v10027 = vunpack.c.h.b16 %v8557
      %v10028 = vunpack.c.l.b16 %v8558
      %v10029 = vunpack.c.h.b16 %v8558
      %v10030 = vunpack.c.l.b16 %v8559
      %v10031 = vunpack.c.h.b16 %v8559
      %v10032 = vunpack.c.l.b16 %v8560
      %v10033 = vunpack.c.h.b16 %v8560
      %v10034 = vunpack.c.l.b16 %v8561
      %v10035 = vunpack.c.h.b16 %v8561
      %v10036 = vunpack.c.l.b16 %v8562
      %v10037 = vunpack.c.h.b16 %v8562
      %v10038 = vunpack.c.l.b16 %v8563
      %v10039 = vunpack.c.h.b16 %v8563
      %v10040 = vunpack.c.l.b16 %v8564
      %v10041 = vunpack.c.h.b16 %v8564
      %v10042 = vunpack.c.l.b16 %v8565
      %v10043 = vunpack.c.h.b16 %v8565
      %v10044 = vunpack.c.l.b16 %v8566
      %v10045 = vunpack.c.h.b16 %v8566
      %v10046 = vunpack.c.l.b16 %v8567
      %v10047 = vunpack.c.h.b16 %v8567
      %v10048 = vunpack.c.l.b16 %v8568
      %v10049 = vunpack.c.h.b16 %v8568
      %v10050 = vunpack.c.l.b16 %v8569
      %v10051 = vunpack.c.h.b16 %v8569
      %v10052 = vunpack.c.l.b16 %v8570
      %v10053 = vunpack.c.h.b16 %v8570
      %v10054 = vunpack.c.l.b16 %v8571
      %v10055 = vunpack.c.h.b16 %v8571
      %v10056 = vunpack.c.l.b16 %v8572
      %v10057 = vunpack.c.h.b16 %v8572
      %v10058 = vunpack.c.l.b16 %v8573
      %v10059 = vunpack.c.h.b16 %v8573
      %v10060 = vunpack.c.l.b16 %v8574
      %v10061 = vunpack.c.h.b16 %v8574
      %v10062 = vunpack.c.l.b16 %v8575
      %v10063 = vunpack.c.h.b16 %v8575
      %v10064 = vunpack.c.l.b16 %v8576
      %v10065 = vunpack.c.h.b16 %v8576
      %v10066 = vunpack.c.l.b16 %v8577
      %v10067 = vunpack.c.h.b16 %v8577
      %v10068 = vunpack.c.l.b16 %v8578
      %v10069 = vunpack.c.h.b16 %v8578
      %v10070 = vunpack.c.l.b16 %v8579
      %v10071 = vunpack.c.h.b16 %v8579
      %v10072 = vunpack.c.l.b16 %v8580
      %v10073 = vunpack.c.h.b16 %v8580
      %v10074 = vunpack.c.l.b16 %v8581
      %v10075 = vunpack.c.h.b16 %v8581
      %v10076 = vunpack.c.l.b16 %v8582
      %v10077 = vunpack.c.h.b16 %v8582
      %v10078 = vunpack.c.l.b16 %v8583
      %v10079 = vunpack.c.h.b16 %v8583
      %v10080 = vunpack.c.l.b16 %v8584
      %v10081 = vunpack.c.h.b16 %v8584
      %v10082 = vunpack.c.l.b16 %v8585
      %v10083 = vunpack.c.h.b16 %v8585
      %v10084 = vunpack.c.l.b16 %v8586
      %v10085 = vunpack.c.h.b16 %v8586
      %v10086 = vunpack.c.l.b16 %v8587
      %v10087 = vunpack.c.h.b16 %v8587
      %v10088 = vunpack.c.l.b16 %v8588
      %v10089 = vunpack.c.h.b16 %v8588
      %v10090 = vunpack.c.l.b16 %v8589
      %v10091 = vunpack.c.h.b16 %v8589
      %v10092 = vunpack.c.l.b16 %v8590
      %v10093 = vunpack.c.h.b16 %v8590
      %v10094 = vunpack.c.l.b16 %v8591
      %v10095 = vunpack.c.h.b16 %v8591
      %v10096 = vunpack.c.l.b16 %v8592
      %v10097 = vunpack.c.h.b16 %v8592
      %v10098 = vunpack.c.l.b16 %v8593
      %v10099 = vunpack.c.h.b16 %v8593
      %v10100 = vunpack.c.l.b16 %v8594
      %v10101 = vunpack.c.h.b16 %v8594
      %v10102 = vunpack.c.l.b16 %v8595
      %v10103 = vunpack.c.h.b16 %v8595
      %v10104 = vunpack.c.l.b16 %v8596
      %v10105 = vunpack.c.h.b16 %v8596
      %v10106 = vunpack.c.l.b16 %v8597
      %v10107 = vunpack.c.h.b16 %v8597
      %v10108 = vunpack.c.l.b16 %v8598
      %v10109 = vunpack.c.h.b16 %v8598
      %v10110 = vunpack.c.l.b16 %v8599
      %v10111 = vunpack.c.h.b16 %v8599
      %v10112 = vunpack.c.l.b16 %v8600
      %v10113 = vunpack.c.h.b16 %v8600
      %v10114 = vunpack.c.l.b16 %v8601
      %v10115 = vunpack.c.h.b16 %v8601
      %v10116 = vunpack.c.l.b16 %v8602
      %v10117 = vunpack.c.h.b16 %v8602
      %v10118 = vunpack.c.l.b16 %v8603
      %v10119 = vunpack.c.h.b16 %v8603
      %v10120 = vunpack.c.l.b16 %v8604
      %v10121 = vunpack.c.h.b16 %v8604
      %v10122 = vunpack.c.l.b16 %v8605
      %v10123 = vunpack.c.h.b16 %v8605
      %v10124 = vunpack.c.l.b16 %v8606
      %v10125 = vunpack.c.h.b16 %v8606
      %v10126 = vunpack.c.l.b16 %v8607
      %v10127 = vunpack.c.h.b16 %v8607
      %v10128 = vunpack.c.l.b16 %v8608
      %v10129 = vunpack.c.h.b16 %v8608
      %v10130 = vunpack.c.l.b16 %v8609
      %v10131 = vunpack.c.h.b16 %v8609
      %v10132 = vunpack.c.l.b16 %v8610
      %v10133 = vunpack.c.h.b16 %v8610
      %v10134 = vunpack.c.l.b16 %v8611
      %v10135 = vunpack.c.h.b16 %v8611
      %v10136 = vunpack.c.l.b16 %v8612
      %v10137 = vunpack.c.h.b16 %v8612
      %v10138 = vunpack.c.l.b16 %v8613
      %v10139 = vunpack.c.h.b16 %v8613
      %v10140 = vunpack.c.l.b16 %v8614
      %v10141 = vunpack.c.h.b16 %v8614
      %v10142 = vunpack.c.l.b16 %v8615
      %v10143 = vunpack.c.h.b16 %v8615
      %v10144 = vunpack.c.l.b16 %v8616
      %v10145 = vunpack.c.h.b16 %v8616
      %v10146 = vunpack.c.l.b16 %v8617
      %v10147 = vunpack.c.h.b16 %v8617
      %v10148 = vunpack.c.l.b16 %v8618
      %v10149 = vunpack.c.h.b16 %v8618
      %v10150 = vunpack.c.l.b16 %v8619
      %v10151 = vunpack.c.h.b16 %v8619
      %v10152 = vunpack.c.l.b16 %v8620
      %v10153 = vunpack.c.h.b16 %v8620
      %v10154 = vunpack.c.l.b16 %v8621
      %v10155 = vunpack.c.h.b16 %v8621
      %v10156 = vunpack.c.l.b16 %v8622
      %v10157 = vunpack.c.h.b16 %v8622
      %v10158 = vunpack.c.l.b16 %v8623
      %v10159 = vunpack.c.h.b16 %v8623
      %v10160 = vunpack.c.l.b16 %v8624
      %v10161 = vunpack.c.h.b16 %v8624
      %v10162 = vunpack.c.l.b16 %v8625
      %v10163 = vunpack.c.h.b16 %v8625
      %v10164 = vunpack.c.l.b16 %v8626
      %v10165 = vunpack.c.h.b16 %v8626
      %v10166 = vunpack.c.l.b16 %v8627
      %v10167 = vunpack.c.h.b16 %v8627
      %v10168 = vunpack.c.l.b16 %v8628
      %v10169 = vunpack.c.h.b16 %v8628
      %v10170 = vunpack.c.l.b16 %v8629
      %v10171 = vunpack.c.h.b16 %v8629
      %v10172 = vunpack.c.l.b16 %v8630
      %v10173 = vunpack.c.h.b16 %v8630
      %v10174 = vunpack.c.l.b16 %v8631
      %v10175 = vunpack.c.h.b16 %v8631
      %v10176 = vunpack.c.l.b16 %v8632
      %v10177 = vunpack.c.h.b16 %v8632
      %v10178 = vunpack.c.l.b16 %v8633
      %v10179 = vunpack.c.h.b16 %v8633
      %v10180 = vunpack.c.l.b16 %v8634
      %v10181 = vunpack.c.h.b16 %v8634
      %v10182 = vunpack.c.l.b16 %v8635
      %v10183 = vunpack.c.h.b16 %v8635
      %v10184 = vunpack.c.l.b16 %v8636
      %v10185 = vunpack.c.h.b16 %v8636
      %v10186 = vunpack.c.l.b16 %v8637
      %v10187 = vunpack.c.h.b16 %v8637
      %v10188 = vunpack.c.l.b16 %v8638
      %v10189 = vunpack.c.h.b16 %v8638
      %v10190 = vunpack.c.l.b16 %v8639
      %v10191 = vunpack.c.h.b16 %v8639
      %v10192 = vunpack.c.l.b16 %v8640
      %v10193 = vunpack.c.h.b16 %v8640
      %v10194 = vunpack.c.l.b16 %v8641
      %v10195 = vunpack.c.h.b16 %v8641
      %v10196 = vunpack.c.l.b16 %v8642
      %v10197 = vunpack.c.h.b16 %v8642
      %v10198 = vunpack.c.l.b16 %v8643
      %v10199 = vunpack.c.h.b16 %v8643
      %v10200 = vunpack.c.l.b16 %v8644
      %v10201 = vunpack.c.h.b16 %v8644
      %v10202 = vunpack.c.l.b16 %v8645
      %v10203 = vunpack.c.h.b16 %v8645
      %v10204 = vpack.c.b16 %v9184, %v9180
      %v10205 = vpack.c.b16 %v9185, %v9181
      %v10206 = vpack.c.b16 %v9186, %v9182
      %v10207 = vpack.c.b16 %v9187, %v9183
      %v10208 = vpack.c.b16 %v9192, %v9188
      %v10209 = vpack.c.b16 %v9193, %v9189
      %v10210 = vpack.c.b16 %v9194, %v9190
      %v10211 = vpack.c.b16 %v9195, %v9191
      %v10212 = vpack.c.b16 %v9200, %v9196
      %v10213 = vpack.c.b16 %v9201, %v9197
      %v10214 = vpack.c.b16 %v9202, %v9198
      %v10215 = vpack.c.b16 %v9203, %v9199
      %v10216 = vpack.c.b16 %v9208, %v9204
      %v10217 = vpack.c.b16 %v9209, %v9205
      %v10218 = vpack.c.b16 %v9210, %v9206
      %v10219 = vpack.c.b16 %v9211, %v9207
      %v10220 = vpack.c.b16 %v9216, %v9212
      %v10221 = vpack.c.b16 %v9217, %v9213
      %v10222 = vpack.c.b16 %v9218, %v9214
      %v10223 = vpack.c.b16 %v9219, %v9215
      %v10224 = vpack.c.b16 %v9224, %v9220
      %v10225 = vpack.c.b16 %v9225, %v9221
      %v10226 = vpack.c.b16 %v9226, %v9222
      %v10227 = vpack.c.b16 %v9227, %v9223
      %v10228 = vpack.c.b16 %v9232, %v9228
      %v10229 = vpack.c.b16 %v9233, %v9229
      %v10230 = vpack.c.b16 %v9234, %v9230
      %v10231 = vpack.c.b16 %v9235, %v9231
      %v10232 = vpack.c.b16 %v9240, %v9236
      %v10233 = vpack.c.b16 %v9241, %v9237
      %v10234 = vpack.c.b16 %v9242, %v9238
      %v10235 = vpack.c.b16 %v9243, %v9239
      %v10236 = vpack.c.b16 %v9248, %v9244
      %v10237 = vpack.c.b16 %v9249, %v9245
      %v10238 = vpack.c.b16 %v9250, %v9246
      %v10239 = vpack.c.b16 %v9251, %v9247
      %v10240 = vpack.c.b16 %v9256, %v9252
      %v10241 = vpack.c.b16 %v9257, %v9253
      %v10242 = vpack.c.b16 %v9258, %v9254
      %v10243 = vpack.c.b16 %v9259, %v9255
      %v10244 = vpack.c.b16 %v9264, %v9260
      %v10245 = vpack.c.b16 %v9265, %v9261
      %v10246 = vpack.c.b16 %v9266, %v9262
      %v10247 = vpack.c.b16 %v9267, %v9263
      %v10248 = vpack.c.b16 %v9272, %v9268
      %v10249 = vpack.c.b16 %v9273, %v9269
      %v10250 = vpack.c.b16 %v9274, %v9270
      %v10251 = vpack.c.b16 %v9275, %v9271
      %v10252 = vpack.c.b16 %v9280, %v9276
      %v10253 = vpack.c.b16 %v9281, %v9277
      %v10254 = vpack.c.b16 %v9282, %v9278
      %v10255 = vpack.c.b16 %v9283, %v9279
      %v10256 = vpack.c.b16 %v9288, %v9284
      %v10257 = vpack.c.b16 %v9289, %v9285
      %v10258 = vpack.c.b16 %v9290, %v9286
      %v10259 = vpack.c.b16 %v9291, %v9287
      %v10260 = vpack.c.b16 %v9296, %v9292
      %v10261 = vpack.c.b16 %v9297, %v9293
      %v10262 = vpack.c.b16 %v9298, %v9294
      %v10263 = vpack.c.b16 %v9299, %v9295
      %v10264 = vpack.c.b16 %v9304, %v9300
      %v10265 = vpack.c.b16 %v9305, %v9301
      %v10266 = vpack.c.b16 %v9306, %v9302
      %v10267 = vpack.c.b16 %v9307, %v9303
      %v10268 = vpack.c.b16 %v9312, %v9308
      %v10269 = vpack.c.b16 %v9313, %v9309
      %v10270 = vpack.c.b16 %v9314, %v9310
      %v10271 = vpack.c.b16 %v9315, %v9311
      %v10272 = vpack.c.b16 %v9320, %v9316
      %v10273 = vpack.c.b16 %v9321, %v9317
      %v10274 = vpack.c.b16 %v9322, %v9318
      %v10275 = vpack.c.b16 %v9323, %v9319
      %v10276 = vpack.c.b16 %v9328, %v9324
      %v10277 = vpack.c.b16 %v9329, %v9325
      %v10278 = vpack.c.b16 %v9330, %v9326
      %v10279 = vpack.c.b16 %v9331, %v9327
      %v10280 = vpack.c.b16 %v9336, %v9332
      %v10281 = vpack.c.b16 %v9337, %v9333
      %v10282 = vpack.c.b16 %v9338, %v9334
      %v10283 = vpack.c.b16 %v9339, %v9335
      %v10284 = vpack.c.b16 %v9344, %v9340
      %v10285 = vpack.c.b16 %v9345, %v9341
      %v10286 = vpack.c.b16 %v9346, %v9342
      %v10287 = vpack.c.b16 %v9347, %v9343
      %v10288 = vpack.c.b16 %v9352, %v9348
      %v10289 = vpack.c.b16 %v9353, %v9349
      %v10290 = vpack.c.b16 %v9354, %v9350
      %v10291 = vpack.c.b16 %v9355, %v9351
      %v10292 = vpack.c.b16 %v9360, %v9356
      %v10293 = vpack.c.b16 %v9361, %v9357
      %v10294 = vpack.c.b16 %v9362, %v9358
      %v10295 = vpack.c.b16 %v9363, %v9359
      %v10296 = vpack.c.b16 %v9368, %v9364
      %v10297 = vpack.c.b16 %v9369, %v9365
      %v10298 = vpack.c.b16 %v9370, %v9366
      %v10299 = vpack.c.b16 %v9371, %v9367
      %v10300 = vpack.c.b16 %v9376, %v9372
      %v10301 = vpack.c.b16 %v9377, %v9373
      %v10302 = vpack.c.b16 %v9378, %v9374
      %v10303 = vpack.c.b16 %v9379, %v9375
      %v10304 = vpack.c.b16 %v9384, %v9380
      %v10305 = vpack.c.b16 %v9385, %v9381
      %v10306 = vpack.c.b16 %v9386, %v9382
      %v10307 = vpack.c.b16 %v9387, %v9383
      %v10308 = vpack.c.b16 %v9392, %v9388
      %v10309 = vpack.c.b16 %v9393, %v9389
      %v10310 = vpack.c.b16 %v9394, %v9390
      %v10311 = vpack.c.b16 %v9395, %v9391
      %v10312 = vpack.c.b16 %v9400, %v9396
      %v10313 = vpack.c.b16 %v9401, %v9397
      %v10314 = vpack.c.b16 %v9402, %v9398
      %v10315 = vpack.c.b16 %v9403, %v9399
      %v10316 = vpack.c.b16 %v9408, %v9404
      %v10317 = vpack.c.b16 %v9409, %v9405
      %v10318 = vpack.c.b16 %v9410, %v9406
      %v10319 = vpack.c.b16 %v9411, %v9407
      %v10320 = vpack.c.b16 %v9416, %v9412
      %v10321 = vpack.c.b16 %v9417, %v9413
      %v10322 = vpack.c.b16 %v9418, %v9414
      %v10323 = vpack.c.b16 %v9419, %v9415
      %v10324 = vpack.c.b16 %v9424, %v9420
      %v10325 = vpack.c.b16 %v9425, %v9421
      %v10326 = vpack.c.b16 %v9426, %v9422
      %v10327 = vpack.c.b16 %v9427, %v9423
      %v10328 = vpack.c.b16 %v9432, %v9428
      %v10329 = vpack.c.b16 %v9433, %v9429
      %v10330 = vpack.c.b16 %v9434, %v9430
      %v10331 = vpack.c.b16 %v9435, %v9431
      %v10332 = vpack.c.b16 %v9440, %v9436
      %v10333 = vpack.c.b16 %v9441, %v9437
      %v10334 = vpack.c.b16 %v9442, %v9438
      %v10335 = vpack.c.b16 %v9443, %v9439
      %v10336 = vpack.c.b16 %v9448, %v9444
      %v10337 = vpack.c.b16 %v9449, %v9445
      %v10338 = vpack.c.b16 %v9450, %v9446
      %v10339 = vpack.c.b16 %v9451, %v9447
      %v10340 = vpack.c.b16 %v9456, %v9452
      %v10341 = vpack.c.b16 %v9457, %v9453
      %v10342 = vpack.c.b16 %v9458, %v9454
      %v10343 = vpack.c.b16 %v9459, %v9455
      %v10344 = vpack.c.b16 %v9464, %v9460
      %v10345 = vpack.c.b16 %v9465, %v9461
      %v10346 = vpack.c.b16 %v9466, %v9462
      %v10347 = vpack.c.b16 %v9467, %v9463
      %v10348 = vpack.c.b16 %v9472, %v9468
      %v10349 = vpack.c.b16 %v9473, %v9469
      %v10350 = vpack.c.b16 %v9474, %v9470
      %v10351 = vpack.c.b16 %v9475, %v9471
      %v10352 = vpack.c.b16 %v9480, %v9476
      %v10353 = vpack.c.b16 %v9481, %v9477
      %v10354 = vpack.c.b16 %v9482, %v9478
      %v10355 = vpack.c.b16 %v9483, %v9479
      %v10356 = vpack.c.b16 %v9488, %v9484
      %v10357 = vpack.c.b16 %v9489, %v9485
      %v10358 = vpack.c.b16 %v9490, %v9486
      %v10359 = vpack.c.b16 %v9491, %v9487
      %v10360 = vpack.c.b16 %v9496, %v9492
      %v10361 = vpack.c.b16 %v9497, %v9493
      %v10362 = vpack.c.b16 %v9498, %v9494
      %v10363 = vpack.c.b16 %v9499, %v9495
      %v10364 = vpack.c.b16 %v9504, %v9500
      %v10365 = vpack.c.b16 %v9505, %v9501
      %v10366 = vpack.c.b16 %v9506, %v9502
      %v10367 = vpack.c.b16 %v9507, %v9503
      %v10368 = vpack.c.b16 %v9512, %v9508
      %v10369 = vpack.c.b16 %v9513, %v9509
      %v10370 = vpack.c.b16 %v9514, %v9510
      %v10371 = vpack.c.b16 %v9515, %v9511
      %v10372 = vpack.c.b16 %v9520, %v9516
      %v10373 = vpack.c.b16 %v9521, %v9517
      %v10374 = vpack.c.b16 %v9522, %v9518
      %v10375 = vpack.c.b16 %v9523, %v9519
      %v10376 = vpack.c.b16 %v9528, %v9524
      %v10377 = vpack.c.b16 %v9529, %v9525
      %v10378 = vpack.c.b16 %v9530, %v9526
      %v10379 = vpack.c.b16 %v9531, %v9527
      %v10380 = vpack.c.b16 %v9536, %v9532
      %v10381 = vpack.c.b16 %v9537, %v9533
      %v10382 = vpack.c.b16 %v9538, %v9534
      %v10383 = vpack.c.b16 %v9539, %v9535
      %v10384 = vpack.c.b16 %v9544, %v9540
      %v10385 = vpack.c.b16 %v9545, %v9541
      %v10386 = vpack.c.b16 %v9546, %v9542
      %v10387 = vpack.c.b16 %v9547, %v9543
      %v10388 = vpack.c.b16 %v9552, %v9548
      %v10389 = vpack.c.b16 %v9553, %v9549
      %v10390 = vpack.c.b16 %v9554, %v9550
      %v10391 = vpack.c.b16 %v9555, %v9551
      %v10392 = vpack.c.b16 %v9560, %v9556
      %v10393 = vpack.c.b16 %v9561, %v9557
      %v10394 = vpack.c.b16 %v9562, %v9558
      %v10395 = vpack.c.b16 %v9563, %v9559
      %v10396 = vpack.c.b16 %v9568, %v9564
      %v10397 = vpack.c.b16 %v9569, %v9565
      %v10398 = vpack.c.b16 %v9570, %v9566
      %v10399 = vpack.c.b16 %v9571, %v9567
      %v10400 = vpack.c.b16 %v9576, %v9572
      %v10401 = vpack.c.b16 %v9577, %v9573
      %v10402 = vpack.c.b16 %v9578, %v9574
      %v10403 = vpack.c.b16 %v9579, %v9575
      %v10404 = vpack.c.b16 %v9584, %v9580
      %v10405 = vpack.c.b16 %v9585, %v9581
      %v10406 = vpack.c.b16 %v9586, %v9582
      %v10407 = vpack.c.b16 %v9587, %v9583
      %v10408 = vpack.c.b16 %v9592, %v9588
      %v10409 = vpack.c.b16 %v9593, %v9589
      %v10410 = vpack.c.b16 %v9594, %v9590
      %v10411 = vpack.c.b16 %v9595, %v9591
      %v10412 = vpack.c.b16 %v9600, %v9596
      %v10413 = vpack.c.b16 %v9601, %v9597
      %v10414 = vpack.c.b16 %v9602, %v9598
      %v10415 = vpack.c.b16 %v9603, %v9599
      %v10416 = vpack.c.b16 %v9608, %v9604
      %v10417 = vpack.c.b16 %v9609, %v9605
      %v10418 = vpack.c.b16 %v9610, %v9606
      %v10419 = vpack.c.b16 %v9611, %v9607
      %v10420 = vpack.c.b16 %v9616, %v9612
      %v10421 = vpack.c.b16 %v9617, %v9613
      %v10422 = vpack.c.b16 %v9618, %v9614
      %v10423 = vpack.c.b16 %v9619, %v9615
      %v10424 = vpack.c.b16 %v9624, %v9620
      %v10425 = vpack.c.b16 %v9625, %v9621
      %v10426 = vpack.c.b16 %v9626, %v9622
      %v10427 = vpack.c.b16 %v9627, %v9623
      %v10428 = vpack.c.b16 %v9632, %v9628
      %v10429 = vpack.c.b16 %v9633, %v9629
      %v10430 = vpack.c.b16 %v9634, %v9630
      %v10431 = vpack.c.b16 %v9635, %v9631
      %v10432 = vpack.c.b16 %v9640, %v9636
      %v10433 = vpack.c.b16 %v9641, %v9637
      %v10434 = vpack.c.b16 %v9642, %v9638
      %v10435 = vpack.c.b16 %v9643, %v9639
      %v10436 = vpack.c.b16 %v9648, %v9644
      %v10437 = vpack.c.b16 %v9649, %v9645
      %v10438 = vpack.c.b16 %v9650, %v9646
      %v10439 = vpack.c.b16 %v9651, %v9647
      %v10440 = vpack.c.b16 %v9656, %v9652
      %v10441 = vpack.c.b16 %v9657, %v9653
      %v10442 = vpack.c.b16 %v9658, %v9654
      %v10443 = vpack.c.b16 %v9659, %v9655
      %v10444 = vpack.c.b16 %v9664, %v9660
      %v10445 = vpack.c.b16 %v9665, %v9661
      %v10446 = vpack.c.b16 %v9666, %v9662
      %v10447 = vpack.c.b16 %v9667, %v9663
      %v10448 = vpack.c.b16 %v9672, %v9668
      %v10449 = vpack.c.b16 %v9673, %v9669
      %v10450 = vpack.c.b16 %v9674, %v9670
      %v10451 = vpack.c.b16 %v9675, %v9671
      %v10452 = vpack.c.b16 %v9680, %v9676
      %v10453 = vpack.c.b16 %v9681, %v9677
      %v10454 = vpack.c.b16 %v9682, %v9678
      %v10455 = vpack.c.b16 %v9683, %v9679
      %v10456 = vpack.c.b16 %v9688, %v9684
      %v10457 = vpack.c.b16 %v9689, %v9685
      %v10458 = vpack.c.b16 %v9690, %v9686
      %v10459 = vpack.c.b16 %v9691, %v9687
      %v10460 = vpack.c.b16 %v9696, %v9692
      %v10461 = vpack.c.b16 %v9697, %v9693
      %v10462 = vpack.c.b16 %v9698, %v9694
      %v10463 = vpack.c.b16 %v9699, %v9695
      %v10464 = vpack.c.b16 %v9704, %v9700
      %v10465 = vpack.c.b16 %v9705, %v9701
      %v10466 = vpack.c.b16 %v9706, %v9702
      %v10467 = vpack.c.b16 %v9707, %v9703
      %v10468 = vpack.c.b16 %v9712, %v9708
      %v10469 = vpack.c.b16 %v9713, %v9709
      %v10470 = vpack.c.b16 %v9714, %v9710
      %v10471 = vpack.c.b16 %v9715, %v9711
      %v10472 = vpack.c.b16 %v9720, %v9716
      %v10473 = vpack.c.b16 %v9721, %v9717
      %v10474 = vpack.c.b16 %v9722, %v9718
      %v10475 = vpack.c.b16 %v9723, %v9719
      %v10476 = vpack.c.b16 %v9728, %v9724
      %v10477 = vpack.c.b16 %v9729, %v9725
      %v10478 = vpack.c.b16 %v9730, %v9726
      %v10479 = vpack.c.b16 %v9731, %v9727
      %v10480 = vpack.c.b16 %v9736, %v9732
      %v10481 = vpack.c.b16 %v9737, %v9733
      %v10482 = vpack.c.b16 %v9738, %v9734
      %v10483 = vpack.c.b16 %v9739, %v9735
      %v10484 = vpack.c.b16 %v9744, %v9740
      %v10485 = vpack.c.b16 %v9745, %v9741
      %v10486 = vpack.c.b16 %v9746, %v9742
      %v10487 = vpack.c.b16 %v9747, %v9743
      %v10488 = vpack.c.b16 %v9752, %v9748
      %v10489 = vpack.c.b16 %v9753, %v9749
      %v10490 = vpack.c.b16 %v9754, %v9750
      %v10491 = vpack.c.b16 %v9755, %v9751
      %v10492 = vpack.c.b16 %v9760, %v9756
      %v10493 = vpack.c.b16 %v9761, %v9757
      %v10494 = vpack.c.b16 %v9762, %v9758
      %v10495 = vpack.c.b16 %v9763, %v9759
      %v10496 = vpack.c.b16 %v9768, %v9764
      %v10497 = vpack.c.b16 %v9769, %v9765
      %v10498 = vpack.c.b16 %v9770, %v9766
      %v10499 = vpack.c.b16 %v9771, %v9767
      %v10500 = vpack.c.b16 %v9776, %v9772
      %v10501 = vpack.c.b16 %v9777, %v9773
      %v10502 = vpack.c.b16 %v9778, %v9774
      %v10503 = vpack.c.b16 %v9779, %v9775
      %v10504 = vpack.c.b16 %v9784, %v9780
      %v10505 = vpack.c.b16 %v9785, %v9781
      %v10506 = vpack.c.b16 %v9786, %v9782
      %v10507 = vpack.c.b16 %v9787, %v9783
      %v10508 = vpack.c.b16 %v9792, %v9788
      %v10509 = vpack.c.b16 %v9793, %v9789
      %v10510 = vpack.c.b16 %v9794, %v9790
      %v10511 = vpack.c.b16 %v9795, %v9791
      %v10512 = vpack.c.b16 %v9800, %v9796
      %v10513 = vpack.c.b16 %v9801, %v9797
      %v10514 = vpack.c.b16 %v9802, %v9798
      %v10515 = vpack.c.b16 %v9803, %v9799
      %v10516 = vpack.c.b16 %v9808, %v9804
      %v10517 = vpack.c.b16 %v9809, %v9805
      %v10518 = vpack.c.b16 %v9810, %v9806
      %v10519 = vpack.c.b16 %v9811, %v9807
      %v10520 = vpack.c.b16 %v9816, %v9812
      %v10521 = vpack.c.b16 %v9817, %v9813
      %v10522 = vpack.c.b16 %v9818, %v9814
      %v10523 = vpack.c.b16 %v9819, %v9815
      %v10524 = vpack.c.b16 %v9824, %v9820
      %v10525 = vpack.c.b16 %v9825, %v9821
      %v10526 = vpack.c.b16 %v9826, %v9822
      %v10527 = vpack.c.b16 %v9827, %v9823
      %v10528 = vpack.c.b16 %v9832, %v9828
      %v10529 = vpack.c.b16 %v9833, %v9829
      %v10530 = vpack.c.b16 %v9834, %v9830
      %v10531 = vpack.c.b16 %v9835, %v9831
      %v10532 = vpack.c.b16 %v9840, %v9836
      %v10533 = vpack.c.b16 %v9841, %v9837
      %v10534 = vpack.c.b16 %v9842, %v9838
      %v10535 = vpack.c.b16 %v9843, %v9839
      %v10536 = vpack.c.b16 %v9848, %v9844
      %v10537 = vpack.c.b16 %v9849, %v9845
      %v10538 = vpack.c.b16 %v9850, %v9846
      %v10539 = vpack.c.b16 %v9851, %v9847
      %v10540 = vpack.c.b16 %v9856, %v9852
      %v10541 = vpack.c.b16 %v9857, %v9853
      %v10542 = vpack.c.b16 %v9858, %v9854
      %v10543 = vpack.c.b16 %v9859, %v9855
      %v10544 = vpack.c.b16 %v9864, %v9860
      %v10545 = vpack.c.b16 %v9865, %v9861
      %v10546 = vpack.c.b16 %v9866, %v9862
      %v10547 = vpack.c.b16 %v9867, %v9863
      %v10548 = vpack.c.b16 %v9872, %v9868
      %v10549 = vpack.c.b16 %v9873, %v9869
      %v10550 = vpack.c.b16 %v9874, %v9870
      %v10551 = vpack.c.b16 %v9875, %v9871
      %v10552 = vpack.c.b16 %v9880, %v9876
      %v10553 = vpack.c.b16 %v9881, %v9877
      %v10554 = vpack.c.b16 %v9882, %v9878
      %v10555 = vpack.c.b16 %v9883, %v9879
      %v10556 = vpack.c.b16 %v9888, %v9884
      %v10557 = vpack.c.b16 %v9889, %v9885
      %v10558 = vpack.c.b16 %v9890, %v9886
      %v10559 = vpack.c.b16 %v9891, %v9887
      %v10560 = vpack.c.b16 %v9896, %v9892
      %v10561 = vpack.c.b16 %v9897, %v9893
      %v10562 = vpack.c.b16 %v9898, %v9894
      %v10563 = vpack.c.b16 %v9899, %v9895
      %v10564 = vpack.c.b16 %v9904, %v9900
      %v10565 = vpack.c.b16 %v9905, %v9901
      %v10566 = vpack.c.b16 %v9906, %v9902
      %v10567 = vpack.c.b16 %v9907, %v9903
      %v10568 = vpack.c.b16 %v9912, %v9908
      %v10569 = vpack.c.b16 %v9913, %v9909
      %v10570 = vpack.c.b16 %v9914, %v9910
      %v10571 = vpack.c.b16 %v9915, %v9911
      %v10572 = vpack.c.b16 %v9920, %v9916
      %v10573 = vpack.c.b16 %v9921, %v9917
      %v10574 = vpack.c.b16 %v9922, %v9918
      %v10575 = vpack.c.b16 %v9923, %v9919
      %v10576 = vpack.c.b16 %v9928, %v9924
      %v10577 = vpack.c.b16 %v9929, %v9925
      %v10578 = vpack.c.b16 %v9930, %v9926
      %v10579 = vpack.c.b16 %v9931, %v9927
      %v10580 = vpack.c.b16 %v9936, %v9932
      %v10581 = vpack.c.b16 %v9937, %v9933
      %v10582 = vpack.c.b16 %v9938, %v9934
      %v10583 = vpack.c.b16 %v9939, %v9935
      %v10584 = vpack.c.b16 %v9944, %v9940
      %v10585 = vpack.c.b16 %v9945, %v9941
      %v10586 = vpack.c.b16 %v9946, %v9942
      %v10587 = vpack.c.b16 %v9947, %v9943
      %v10588 = vpack.c.b16 %v9952, %v9948
      %v10589 = vpack.c.b16 %v9953, %v9949
      %v10590 = vpack.c.b16 %v9954, %v9950
      %v10591 = vpack.c.b16 %v9955, %v9951
      %v10592 = vpack.c.b16 %v9960, %v9956
      %v10593 = vpack.c.b16 %v9961, %v9957
      %v10594 = vpack.c.b16 %v9962, %v9958
      %v10595 = vpack.c.b16 %v9963, %v9959
      %v10596 = vpack.c.b16 %v9968, %v9964
      %v10597 = vpack.c.b16 %v9969, %v9965
      %v10598 = vpack.c.b16 %v9970, %v9966
      %v10599 = vpack.c.b16 %v9971, %v9967
      %v10600 = vpack.c.b16 %v9976, %v9972
      %v10601 = vpack.c.b16 %v9977, %v9973
      %v10602 = vpack.c.b16 %v9978, %v9974
      %v10603 = vpack.c.b16 %v9979, %v9975
      %v10604 = vpack.c.b16 %v9984, %v9980
      %v10605 = vpack.c.b16 %v9985, %v9981
      %v10606 = vpack.c.b16 %v9986, %v9982
      %v10607 = vpack.c.b16 %v9987, %v9983
      %v10608 = vpack.c.b16 %v9992, %v9988
      %v10609 = vpack.c.b16 %v9993, %v9989
      %v10610 = vpack.c.b16 %v9994, %v9990
      %v10611 = vpack.c.b16 %v9995, %v9991
      %v10612 = vpack.c.b16 %v10000, %v9996
      %v10613 = vpack.c.b16 %v10001, %v9997
      %v10614 = vpack.c.b16 %v10002, %v9998
      %v10615 = vpack.c.b16 %v10003, %v9999
      %v10616 = vpack.c.b16 %v10008, %v10004
      %v10617 = vpack.c.b16 %v10009, %v10005
      %v10618 = vpack.c.b16 %v10010, %v10006
      %v10619 = vpack.c.b16 %v10011, %v10007
      %v10620 = vpack.c.b16 %v10016, %v10012
      %v10621 = vpack.c.b16 %v10017, %v10013
      %v10622 = vpack.c.b16 %v10018, %v10014
      %v10623 = vpack.c.b16 %v10019, %v10015
      %v10624 = vpack.c.b16 %v10024, %v10020
      %v10625 = vpack.c.b16 %v10025, %v10021
      %v10626 = vpack.c.b16 %v10026, %v10022
      %v10627 = vpack.c.b16 %v10027, %v10023
      %v10628 = vpack.c.b16 %v10032, %v10028
      %v10629 = vpack.c.b16 %v10033, %v10029
      %v10630 = vpack.c.b16 %v10034, %v10030
      %v10631 = vpack.c.b16 %v10035, %v10031
      %v10632 = vpack.c.b16 %v10040, %v10036
      %v10633 = vpack.c.b16 %v10041, %v10037
      %v10634 = vpack.c.b16 %v10042, %v10038
      %v10635 = vpack.c.b16 %v10043, %v10039
      %v10636 = vpack.c.b16 %v10048, %v10044
      %v10637 = vpack.c.b16 %v10049, %v10045
      %v10638 = vpack.c.b16 %v10050, %v10046
      %v10639 = vpack.c.b16 %v10051, %v10047
      %v10640 = vpack.c.b16 %v10056, %v10052
      %v10641 = vpack.c.b16 %v10057, %v10053
      %v10642 = vpack.c.b16 %v10058, %v10054
      %v10643 = vpack.c.b16 %v10059, %v10055
      %v10644 = vpack.c.b16 %v10064, %v10060
      %v10645 = vpack.c.b16 %v10065, %v10061
      %v10646 = vpack.c.b16 %v10066, %v10062
      %v10647 = vpack.c.b16 %v10067, %v10063
      %v10648 = vpack.c.b16 %v10072, %v10068
      %v10649 = vpack.c.b16 %v10073, %v10069
      %v10650 = vpack.c.b16 %v10074, %v10070
      %v10651 = vpack.c.b16 %v10075, %v10071
      %v10652 = vpack.c.b16 %v10080, %v10076
      %v10653 = vpack.c.b16 %v10081, %v10077
      %v10654 = vpack.c.b16 %v10082, %v10078
      %v10655 = vpack.c.b16 %v10083, %v10079
      %v10656 = vpack.c.b16 %v10088, %v10084
      %v10657 = vpack.c.b16 %v10089, %v10085
      %v10658 = vpack.c.b16 %v10090, %v10086
      %v10659 = vpack.c.b16 %v10091, %v10087
      %v10660 = vpack.c.b16 %v10096, %v10092
      %v10661 = vpack.c.b16 %v10097, %v10093
      %v10662 = vpack.c.b16 %v10098, %v10094
      %v10663 = vpack.c.b16 %v10099, %v10095
      %v10664 = vpack.c.b16 %v10104, %v10100
      %v10665 = vpack.c.b16 %v10105, %v10101
      %v10666 = vpack.c.b16 %v10106, %v10102
      %v10667 = vpack.c.b16 %v10107, %v10103
      %v10668 = vpack.c.b16 %v10112, %v10108
      %v10669 = vpack.c.b16 %v10113, %v10109
      %v10670 = vpack.c.b16 %v10114, %v10110
      %v10671 = vpack.c.b16 %v10115, %v10111
      %v10672 = vpack.c.b16 %v10120, %v10116
      %v10673 = vpack.c.b16 %v10121, %v10117
      %v10674 = vpack.c.b16 %v10122, %v10118
      %v10675 = vpack.c.b16 %v10123, %v10119
      %v10676 = vpack.c.b16 %v10128, %v10124
      %v10677 = vpack.c.b16 %v10129, %v10125
      %v10678 = vpack.c.b16 %v10130, %v10126
      %v10679 = vpack.c.b16 %v10131, %v10127
      %v10680 = vpack.c.b16 %v10136, %v10132
      %v10681 = vpack.c.b16 %v10137, %v10133
      %v10682 = vpack.c.b16 %v10138, %v10134
      %v10683 = vpack.c.b16 %v10139, %v10135
      %v10684 = vpack.c.b16 %v10144, %v10140
      %v10685 = vpack.c.b16 %v10145, %v10141
      %v10686 = vpack.c.b16 %v10146, %v10142
      %v10687 = vpack.c.b16 %v10147, %v10143
      %v10688 = vpack.c.b16 %v10152, %v10148
      %v10689 = vpack.c.b16 %v10153, %v10149
      %v10690 = vpack.c.b16 %v10154, %v10150
      %v10691 = vpack.c.b16 %v10155, %v10151
      %v10692 = vpack.c.b16 %v10160, %v10156
      %v10693 = vpack.c.b16 %v10161, %v10157
      %v10694 = vpack.c.b16 %v10162, %v10158
      %v10695 = vpack.c.b16 %v10163, %v10159
      %v10696 = vpack.c.b16 %v10168, %v10164
      %v10697 = vpack.c.b16 %v10169, %v10165
      %v10698 = vpack.c.b16 %v10170, %v10166
      %v10699 = vpack.c.b16 %v10171, %v10167
      %v10700 = vpack.c.b16 %v10176, %v10172
      %v10701 = vpack.c.b16 %v10177, %v10173
      %v10702 = vpack.c.b16 %v10178, %v10174
      %v10703 = vpack.c.b16 %v10179, %v10175
      %v10704 = vpack.c.b16 %v10184, %v10180
      %v10705 = vpack.c.b16 %v10185, %v10181
      %v10706 = vpack.c.b16 %v10186, %v10182
      %v10707 = vpack.c.b16 %v10187, %v10183
      %v10708 = vpack.c.b16 %v10192, %v10188
      %v10709 = vpack.c.b16 %v10193, %v10189
      %v10710 = vpack.c.b16 %v10194, %v10190
      %v10711 = vpack.c.b16 %v10195, %v10191
      %v10712 = vpack.c.b16 %v10200, %v10196
      %v10713 = vpack.c.b16 %v10201, %v10197
      %v10714 = vpack.c.b16 %v10202, %v10198
      %v10715 = vpack.c.b16 %v10203, %v10199
      %11228 = vmatprep.subr.bf16.mxu0 %v10205
      %11229 = vmatpush1.bf16.msra.mxu0 %v10204
      %11230 = vmatprep.subr.bf16.mxu0 %v10209
      %11231 = vmatpush1.bf16.msra.mxu0 %v10208
      %11232 = vmatprep.subr.bf16.mxu0 %v10213
      %11233 = vmatpush1.bf16.msra.mxu0 %v10212
      %11234 = vmatprep.subr.bf16.mxu0 %v10217
      %11235 = vmatpush1.bf16.msra.mxu0 %v10216
      %11236 = vmatprep.subr.bf16.mxu0 %v10221
      %11237 = vmatpush1.bf16.msra.mxu0 %v10220
      %11238 = vmatprep.subr.bf16.mxu0 %v10225
      %11239 = vmatpush1.bf16.msra.mxu0 %v10224
      %11240 = vmatprep.subr.bf16.mxu0 %v10229
      %11241 = vmatpush1.bf16.msra.mxu0 %v10228
      %11242 = vmatprep.subr.bf16.mxu0 %v10233
      %11243 = vmatpush1.bf16.msra.mxu0 %v10232
      %11244 = vmatprep.subr.bf16.mxu0 %v10237
      %11245 = vmatpush1.bf16.msra.mxu0 %v10236
      %11246 = vmatprep.subr.bf16.mxu0 %v10241
      %11247 = vmatpush1.bf16.msra.mxu0 %v10240
      %11248 = vmatprep.subr.bf16.mxu0 %v10245
      %11249 = vmatpush1.bf16.msra.mxu0 %v10244
      %11250 = vmatprep.subr.bf16.mxu0 %v10249
      %11251 = vmatpush1.bf16.msra.mxu0 %v10248
      %11252 = vmatprep.subr.bf16.mxu0 %v10253
      %11253 = vmatpush1.bf16.msra.mxu0 %v10252
      %11254 = vmatprep.subr.bf16.mxu0 %v10257
      %11255 = vmatpush1.bf16.msra.mxu0 %v10256
      %11256 = vmatprep.subr.bf16.mxu0 %v10261
      %11257 = vmatpush1.bf16.msra.mxu0 %v10260
      %11258 = vmatprep.subr.bf16.mxu0 %v10265
      %11259 = vmatpush1.bf16.msra.mxu0 %v10264
      %11260 = vmatprep.mubr.bf16.mxu0 %v8119
      %11261 = vmatmul.mubr.bf16.gmra.mrb[0].mxu0 %v8118
      %v11262 = vpop.f32.mrb[0].mxu0
      %v11263 = vadd.f32 %v8651, %v11262
      %v11264 = vpop.f32.mrb[0].mxu0
      %v11265 = vadd.f32 %v8655, %v11264
      %v11266 = vpop.f32.mrb[0].mxu0
      %v11267 = vpop.f32.mrb[0].mxu0
      %11268 = vdwg.mxu0
      %11269 = vmatprep.subr.bf16.mxu0 %v10269
      %11270 = vmatpush1.bf16.msra.mxu0 %v10268
      %11271 = vmatprep.subr.bf16.mxu0 %v10273
      %11272 = vmatpush1.bf16.msra.mxu0 %v10272
      %11273 = vmatprep.subr.bf16.mxu0 %v10277
      %11274 = vmatpush1.bf16.msra.mxu0 %v10276
      %11275 = vmatprep.subr.bf16.mxu0 %v10281
      %11276 = vmatpush1.bf16.msra.mxu0 %v10280
      %11277 = vmatprep.subr.bf16.mxu0 %v10285
      %11278 = vmatpush1.bf16.msra.mxu0 %v10284
      %11279 = vmatprep.subr.bf16.mxu0 %v10289
      %11280 = vmatpush1.bf16.msra.mxu0 %v10288
      %11281 = vmatprep.subr.bf16.mxu0 %v10293
      %11282 = vmatpush1.bf16.msra.mxu0 %v10292
      %11283 = vmatprep.subr.bf16.mxu0 %v10297
      %11284 = vmatpush1.bf16.msra.mxu0 %v10296
      %11285 = vmatprep.subr.bf16.mxu0 %v10301
      %11286 = vmatpush1.bf16.msra.mxu0 %v10300
      %11287 = vmatprep.subr.bf16.mxu0 %v10305
      %11288 = vmatpush1.bf16.msra.mxu0 %v10304
      %11289 = vmatprep.subr.bf16.mxu0 %v10309
      %11290 = vmatpush1.bf16.msra.mxu0 %v10308
      %11291 = vmatprep.subr.bf16.mxu0 %v10313
      %11292 = vmatpush1.bf16.msra.mxu0 %v10312
      %11293 = vmatprep.subr.bf16.mxu0 %v10317
      %11294 = vmatpush1.bf16.msra.mxu0 %v10316
      %11295 = vmatprep.subr.bf16.mxu0 %v10321
      %11296 = vmatpush1.bf16.msra.mxu0 %v10320
      %11297 = vmatprep.subr.bf16.mxu0 %v10325
      %11298 = vmatpush1.bf16.msra.mxu0 %v10324
      %11299 = vmatprep.subr.bf16.mxu0 %v10329
      %11300 = vmatpush1.bf16.msra.mxu0 %v10328
      %11301 = vmatprep.mubr.bf16.mxu0 %v8121
      %11302 = vmatmul.mubr.bf16.gmra.mrb[0].mxu0 %v8120
      %v11303 = vpop.f32.mrb[0].mxu0
      %v11304 = vadd.f32 %v11263, %v11303
      %v11305 = vpop.f32.mrb[0].mxu0
      %v11306 = vadd.f32 %v11265, %v11305
      %v11307 = vpop.f32.mrb[0].mxu0
      %v11308 = vpop.f32.mrb[0].mxu0
      %11309 = vdwg.mxu0
      %11310 = vmatprep.subr.bf16.mxu0 %v10333
      %11311 = vmatpush1.bf16.msra.mxu0 %v10332
      %11312 = vmatprep.subr.bf16.mxu0 %v10337
      %11313 = vmatpush1.bf16.msra.mxu0 %v10336
      %11314 = vmatprep.subr.bf16.mxu0 %v10341
      %11315 = vmatpush1.bf16.msra.mxu0 %v10340
      %11316 = vmatprep.subr.bf16.mxu0 %v10345
      %11317 = vmatpush1.bf16.msra.mxu0 %v10344
      %11318 = vmatprep.subr.bf16.mxu0 %v10349
      %11319 = vmatpush1.bf16.msra.mxu0 %v10348
      %11320 = vmatprep.subr.bf16.mxu0 %v10353
      %11321 = vmatpush1.bf16.msra.mxu0 %v10352
      %11322 = vmatprep.subr.bf16.mxu0 %v10357
      %11323 = vmatpush1.bf16.msra.mxu0 %v10356
      %11324 = vmatprep.subr.bf16.mxu0 %v10361
      %11325 = vmatpush1.bf16.msra.mxu0 %v10360
      %11326 = vmatprep.subr.bf16.mxu0 %v10365
      %11327 = vmatpush1.bf16.msra.mxu0 %v10364
      %11328 = vmatprep.subr.bf16.mxu0 %v10369
      %11329 = vmatpush1.bf16.msra.mxu0 %v10368
      %11330 = vmatprep.subr.bf16.mxu0 %v10373
      %11331 = vmatpush1.bf16.msra.mxu0 %v10372
      %11332 = vmatprep.subr.bf16.mxu0 %v10377
      %11333 = vmatpush1.bf16.msra.mxu0 %v10376
      %11334 = vmatprep.subr.bf16.mxu0 %v10381
      %11335 = vmatpush1.bf16.msra.mxu0 %v10380
      %11336 = vmatprep.subr.bf16.mxu0 %v10385
      %11337 = vmatpush1.bf16.msra.mxu0 %v10384
      %11338 = vmatprep.subr.bf16.mxu0 %v10389
      %11339 = vmatpush1.bf16.msra.mxu0 %v10388
      %11340 = vmatprep.subr.bf16.mxu0 %v10393
      %11341 = vmatpush1.bf16.msra.mxu0 %v10392
      %11342 = vmatprep.mubr.bf16.mxu0 %v8123
      %11343 = vmatmul.mubr.bf16.gmra.mrb[0].mxu0 %v8122
      %v11344 = vpop.f32.mrb[0].mxu0
      %v11345 = vadd.f32 %v11304, %v11344
      %v11346 = vpop.f32.mrb[0].mxu0
      %v11347 = vadd.f32 %v11306, %v11346
      %v11348 = vpop.f32.mrb[0].mxu0
      %v11349 = vpop.f32.mrb[0].mxu0
      %11350 = vdwg.mxu0
      %11351 = vmatprep.subr.bf16.mxu0 %v10397
      %11352 = vmatpush1.bf16.msra.mxu0 %v10396
      %11353 = vmatprep.subr.bf16.mxu0 %v10401
      %11354 = vmatpush1.bf16.msra.mxu0 %v10400
      %11355 = vmatprep.subr.bf16.mxu0 %v10405
      %11356 = vmatpush1.bf16.msra.mxu0 %v10404
      %11357 = vmatprep.subr.bf16.mxu0 %v10409
      %11358 = vmatpush1.bf16.msra.mxu0 %v10408
      %11359 = vmatprep.subr.bf16.mxu0 %v10413
      %11360 = vmatpush1.bf16.msra.mxu0 %v10412
      %11361 = vmatprep.subr.bf16.mxu0 %v10417
      %11362 = vmatpush1.bf16.msra.mxu0 %v10416
      %11363 = vmatprep.subr.bf16.mxu0 %v10421
      %11364 = vmatpush1.bf16.msra.mxu0 %v10420
      %11365 = vmatprep.subr.bf16.mxu0 %v10425
      %11366 = vmatpush1.bf16.msra.mxu0 %v10424
      %11367 = vmatprep.subr.bf16.mxu0 %v10429
      %11368 = vmatpush1.bf16.msra.mxu0 %v10428
      %11369 = vmatprep.subr.bf16.mxu0 %v10433
      %11370 = vmatpush1.bf16.msra.mxu0 %v10432
      %11371 = vmatprep.subr.bf16.mxu0 %v10437
      %11372 = vmatpush1.bf16.msra.mxu0 %v10436
      %11373 = vmatprep.subr.bf16.mxu0 %v10441
      %11374 = vmatpush1.bf16.msra.mxu0 %v10440
      %11375 = vmatprep.subr.bf16.mxu0 %v10445
      %11376 = vmatpush1.bf16.msra.mxu0 %v10444
      %11377 = vmatprep.subr.bf16.mxu0 %v10449
      %11378 = vmatpush1.bf16.msra.mxu0 %v10448
      %11379 = vmatprep.subr.bf16.mxu0 %v10453
      %11380 = vmatpush1.bf16.msra.mxu0 %v10452
      %11381 = vmatprep.subr.bf16.mxu0 %v10457
      %11382 = vmatpush1.bf16.msra.mxu0 %v10456
      %11383 = vmatprep.mubr.bf16.mxu0 %v8125
      %11384 = vmatmul.mubr.bf16.gmra.mrb[0].mxu0 %v8124
      %v11385 = vpop.f32.mrb[0].mxu0
      %v11386 = vadd.f32 %v11345, %v11385
      %v11387 = vpop.f32.mrb[0].mxu0
      %v11388 = vadd.f32 %v11347, %v11387
      %v11389 = vpop.f32.mrb[0].mxu0
      %v11390 = vpop.f32.mrb[0].mxu0
      %11391 = vdwg.mxu0
      %11392 = vmatprep.subr.bf16.mxu0 %v10461
      %11393 = vmatpush1.bf16.msra.mxu0 %v10460
      %11394 = vmatprep.subr.bf16.mxu0 %v10465
      %11395 = vmatpush1.bf16.msra.mxu0 %v10464
      %11396 = vmatprep.subr.bf16.mxu0 %v10469
      %11397 = vmatpush1.bf16.msra.mxu0 %v10468
      %11398 = vmatprep.subr.bf16.mxu0 %v10473
      %11399 = vmatpush1.bf16.msra.mxu0 %v10472
      %11400 = vmatprep.subr.bf16.mxu0 %v10477
      %11401 = vmatpush1.bf16.msra.mxu0 %v10476
      %11402 = vmatprep.subr.bf16.mxu0 %v10481
      %11403 = vmatpush1.bf16.msra.mxu0 %v10480
      %11404 = vmatprep.subr.bf16.mxu0 %v10485
      %11405 = vmatpush1.bf16.msra.mxu0 %v10484
      %11406 = vmatprep.subr.bf16.mxu0 %v10489
      %11407 = vmatpush1.bf16.msra.mxu0 %v10488
      %11408 = vmatprep.subr.bf16.mxu0 %v10493
      %11409 = vmatpush1.bf16.msra.mxu0 %v10492
      %11410 = vmatprep.subr.bf16.mxu0 %v10497
      %11411 = vmatpush1.bf16.msra.mxu0 %v10496
      %11412 = vmatprep.subr.bf16.mxu0 %v10501
      %11413 = vmatpush1.bf16.msra.mxu0 %v10500
      %11414 = vmatprep.subr.bf16.mxu0 %v10505
      %11415 = vmatpush1.bf16.msra.mxu0 %v10504
      %11416 = vmatprep.subr.bf16.mxu0 %v10509
      %11417 = vmatpush1.bf16.msra.mxu0 %v10508
      %11418 = vmatprep.subr.bf16.mxu0 %v10513
      %11419 = vmatpush1.bf16.msra.mxu0 %v10512
      %11420 = vmatprep.subr.bf16.mxu0 %v10517
      %11421 = vmatpush1.bf16.msra.mxu0 %v10516
      %11422 = vmatprep.subr.bf16.mxu0 %v10521
      %11423 = vmatpush1.bf16.msra.mxu0 %v10520
      %11424 = vmatprep.mubr.bf16.mxu0 %v8127
      %11425 = vmatmul.mubr.bf16.gmra.mrb[0].mxu0 %v8126
      %v11426 = vpop.f32.mrb[0].mxu0
      %v11427 = vadd.f32 %v11386, %v11426
      %v11428 = vpop.f32.mrb[0].mxu0
      %v11429 = vadd.f32 %v11388, %v11428
      %v11430 = vpop.f32.mrb[0].mxu0
      %v11431 = vpop.f32.mrb[0].mxu0
      %11432 = vdwg.mxu0
      %11433 = vmatprep.subr.bf16.mxu0 %v10525
      %11434 = vmatpush1.bf16.msra.mxu0 %v10524
      %11435 = vmatprep.subr.bf16.mxu0 %v10529
      %11436 = vmatpush1.bf16.msra.mxu0 %v10528
      %11437 = vmatprep.subr.bf16.mxu0 %v10533
      %11438 = vmatpush1.bf16.msra.mxu0 %v10532
      %11439 = vmatprep.subr.bf16.mxu0 %v10537
      %11440 = vmatpush1.bf16.msra.mxu0 %v10536
      %11441 = vmatprep.subr.bf16.mxu0 %v10541
      %11442 = vmatpush1.bf16.msra.mxu0 %v10540
      %11443 = vmatprep.subr.bf16.mxu0 %v10545
      %11444 = vmatpush1.bf16.msra.mxu0 %v10544
      %11445 = vmatprep.subr.bf16.mxu0 %v10549
      %11446 = vmatpush1.bf16.msra.mxu0 %v10548
      %11447 = vmatprep.subr.bf16.mxu0 %v10553
      %11448 = vmatpush1.bf16.msra.mxu0 %v10552
      %11449 = vmatprep.subr.bf16.mxu0 %v10557
      %11450 = vmatpush1.bf16.msra.mxu0 %v10556
      %11451 = vmatprep.subr.bf16.mxu0 %v10561
      %11452 = vmatpush1.bf16.msra.mxu0 %v10560
      %11453 = vmatprep.subr.bf16.mxu0 %v10565
      %11454 = vmatpush1.bf16.msra.mxu0 %v10564
      %11455 = vmatprep.subr.bf16.mxu0 %v10569
      %11456 = vmatpush1.bf16.msra.mxu0 %v10568
      %11457 = vmatprep.subr.bf16.mxu0 %v10573
      %11458 = vmatpush1.bf16.msra.mxu0 %v10572
      %11459 = vmatprep.subr.bf16.mxu0 %v10577
      %11460 = vmatpush1.bf16.msra.mxu0 %v10576
      %11461 = vmatprep.subr.bf16.mxu0 %v10581
      %11462 = vmatpush1.bf16.msra.mxu0 %v10580
      %11463 = vmatprep.subr.bf16.mxu0 %v10585
      %11464 = vmatpush1.bf16.msra.mxu0 %v10584
      %11465 = vmatprep.mubr.bf16.mxu0 %v8129
      %11466 = vmatmul.mubr.bf16.gmra.mrb[0].mxu0 %v8128
      %v11467 = vpop.f32.mrb[0].mxu0
      %v11468 = vadd.f32 %v11427, %v11467
      %v11469 = vpop.f32.mrb[0].mxu0
      %v11470 = vadd.f32 %v11429, %v11469
      %v11471 = vpop.f32.mrb[0].mxu0
      %v11472 = vpop.f32.mrb[0].mxu0
      %11473 = vdwg.mxu0
      %11474 = vmatprep.subr.bf16.mxu0 %v10589
      %11475 = vmatpush1.bf16.msra.mxu0 %v10588
      %11476 = vmatprep.subr.bf16.mxu0 %v10593
      %11477 = vmatpush1.bf16.msra.mxu0 %v10592
      %11478 = vmatprep.subr.bf16.mxu0 %v10597
      %11479 = vmatpush1.bf16.msra.mxu0 %v10596
      %11480 = vmatprep.subr.bf16.mxu0 %v10601
      %11481 = vmatpush1.bf16.msra.mxu0 %v10600
      %11482 = vmatprep.subr.bf16.mxu0 %v10605
      %11483 = vmatpush1.bf16.msra.mxu0 %v10604
      %11484 = vmatprep.subr.bf16.mxu0 %v10609
      %11485 = vmatpush1.bf16.msra.mxu0 %v10608
      %11486 = vmatprep.subr.bf16.mxu0 %v10613
      %11487 = vmatpush1.bf16.msra.mxu0 %v10612
      %11488 = vmatprep.subr.bf16.mxu0 %v10617
      %11489 = vmatpush1.bf16.msra.mxu0 %v10616
      %11490 = vmatprep.subr.bf16.mxu0 %v10621
      %11491 = vmatpush1.bf16.msra.mxu0 %v10620
      %11492 = vmatprep.subr.bf16.mxu0 %v10625
      %11493 = vmatpush1.bf16.msra.mxu0 %v10624
      %11494 = vmatprep.subr.bf16.mxu0 %v10629
      %11495 = vmatpush1.bf16.msra.mxu0 %v10628
      %11496 = vmatprep.subr.bf16.mxu0 %v10633
      %11497 = vmatpush1.bf16.msra.mxu0 %v10632
      %11498 = vmatprep.subr.bf16.mxu0 %v10637
      %11499 = vmatpush1.bf16.msra.mxu0 %v10636
      %11500 = vmatprep.subr.bf16.mxu0 %v10641
      %11501 = vmatpush1.bf16.msra.mxu0 %v10640
      %11502 = vmatprep.subr.bf16.mxu0 %v10645
      %11503 = vmatpush1.bf16.msra.mxu0 %v10644
      %11504 = vmatprep.subr.bf16.mxu0 %v10649
      %11505 = vmatpush1.bf16.msra.mxu0 %v10648
      %11506 = vmatprep.mubr.bf16.mxu0 %v8131
      %11507 = vmatmul.mubr.bf16.gmra.mrb[0].mxu0 %v8130
      %v11508 = vpop.f32.mrb[0].mxu0
      %v11509 = vadd.f32 %v11468, %v11508
      %v11510 = vpop.f32.mrb[0].mxu0
      %v11511 = vadd.f32 %v11470, %v11510
      %v11512 = vpop.f32.mrb[0].mxu0
      %v11513 = vpop.f32.mrb[0].mxu0
      %11514 = vdwg.mxu0
      %11515 = vmatprep.subr.bf16.mxu0 %v10653
      %11516 = vmatpush1.bf16.msra.mxu0 %v10652
      %11517 = vmatprep.subr.bf16.mxu0 %v10657
      %11518 = vmatpush1.bf16.msra.mxu0 %v10656
      %11519 = vmatprep.subr.bf16.mxu0 %v10661
      %11520 = vmatpush1.bf16.msra.mxu0 %v10660
      %11521 = vmatprep.subr.bf16.mxu0 %v10665
      %11522 = vmatpush1.bf16.msra.mxu0 %v10664
      %11523 = vmatprep.subr.bf16.mxu0 %v10669
      %11524 = vmatpush1.bf16.msra.mxu0 %v10668
      %11525 = vmatprep.subr.bf16.mxu0 %v10673
      %11526 = vmatpush1.bf16.msra.mxu0 %v10672
      %11527 = vmatprep.subr.bf16.mxu0 %v10677
      %11528 = vmatpush1.bf16.msra.mxu0 %v10676
      %11529 = vmatprep.subr.bf16.mxu0 %v10681
      %11530 = vmatpush1.bf16.msra.mxu0 %v10680
      %11531 = vmatprep.subr.bf16.mxu0 %v10685
      %11532 = vmatpush1.bf16.msra.mxu0 %v10684
      %11533 = vmatprep.subr.bf16.mxu0 %v10689
      %11534 = vmatpush1.bf16.msra.mxu0 %v10688
      %11535 = vmatprep.subr.bf16.mxu0 %v10693
      %11536 = vmatpush1.bf16.msra.mxu0 %v10692
      %11537 = vmatprep.subr.bf16.mxu0 %v10697
      %11538 = vmatpush1.bf16.msra.mxu0 %v10696
      %11539 = vmatprep.subr.bf16.mxu0 %v10701
      %11540 = vmatpush1.bf16.msra.mxu0 %v10700
      %11541 = vmatprep.subr.bf16.mxu0 %v10705
      %11542 = vmatpush1.bf16.msra.mxu0 %v10704
      %11543 = vmatprep.subr.bf16.mxu0 %v10709
      %11544 = vmatpush1.bf16.msra.mxu0 %v10708
      %11545 = vmatprep.subr.bf16.mxu0 %v10713
      %11546 = vmatpush1.bf16.msra.mxu0 %v10712
      %11547 = vmatprep.mubr.bf16.mxu0 %v8133
      %11548 = vmatmul.mubr.bf16.gmra.mrb[0].mxu0 %v8132
      %v11549 = vpop.f32.mrb[0].mxu0
      %v11550 = vadd.f32 %v11509, %v11549
      %v11551 = vpop.f32.mrb[0].mxu0
      %v11552 = vadd.f32 %v11511, %v11551
      %v11553 = vpop.f32.mrb[0].mxu0
      %v11554 = vpop.f32.mrb[0].mxu0
      %11555 = vdwg.mxu0
      %11556 = vmatprep.subr.bf16.mxu0 %v10207
      %11557 = vmatpush1.bf16.msra.mxu0 %v10206
      %11558 = vmatprep.subr.bf16.mxu0 %v10211
      %11559 = vmatpush1.bf16.msra.mxu0 %v10210
      %11560 = vmatprep.subr.bf16.mxu0 %v10215
      %11561 = vmatpush1.bf16.msra.mxu0 %v10214
      %11562 = vmatprep.subr.bf16.mxu0 %v10219
      %11563 = vmatpush1.bf16.msra.mxu0 %v10218
      %11564 = vmatprep.subr.bf16.mxu0 %v10223
      %11565 = vmatpush1.bf16.msra.mxu0 %v10222
      %11566 = vmatprep.subr.bf16.mxu0 %v10227
      %11567 = vmatpush1.bf16.msra.mxu0 %v10226
      %11568 = vmatprep.subr.bf16.mxu0 %v10231
      %11569 = vmatpush1.bf16.msra.mxu0 %v10230
      %11570 = vmatprep.subr.bf16.mxu0 %v10235
      %11571 = vmatpush1.bf16.msra.mxu0 %v10234
      %11572 = vmatprep.subr.bf16.mxu0 %v10239
      %11573 = vmatpush1.bf16.msra.mxu0 %v10238
      %11574 = vmatprep.subr.bf16.mxu0 %v10243
      %11575 = vmatpush1.bf16.msra.mxu0 %v10242
      %11576 = vmatprep.subr.bf16.mxu0 %v10247
      %11577 = vmatpush1.bf16.msra.mxu0 %v10246
      %11578 = vmatprep.subr.bf16.mxu0 %v10251
      %11579 = vmatpush1.bf16.msra.mxu0 %v10250
      %11580 = vmatprep.subr.bf16.mxu0 %v10255
      %11581 = vmatpush1.bf16.msra.mxu0 %v10254
      %11582 = vmatprep.subr.bf16.mxu0 %v10259
      %11583 = vmatpush1.bf16.msra.mxu0 %v10258
      %11584 = vmatprep.subr.bf16.mxu0 %v10263
      %11585 = vmatpush1.bf16.msra.mxu0 %v10262
      %11586 = vmatprep.subr.bf16.mxu0 %v10267
      %11587 = vmatpush1.bf16.msra.mxu0 %v10266
      %11588 = vmatprep.mubr.bf16.mxu0 %v8119
      %11589 = vmatmul.mubr.bf16.gmra.mrb[0].mxu0 %v8118
      %v11590 = vpop.f32.mrb[0].mxu0
      %v11591 = vadd.f32 %v8659, %v11590
      %v11592 = vpop.f32.mrb[0].mxu0
      %v11593 = vadd.f32 %v8663, %v11592
      %v11594 = vpop.f32.mrb[0].mxu0
      %v11595 = vpop.f32.mrb[0].mxu0
      %11596 = vdwg.mxu0
      %11597 = vmatprep.subr.bf16.mxu0 %v10271
      %11598 = vmatpush1.bf16.msra.mxu0 %v10270
      %11599 = vmatprep.subr.bf16.mxu0 %v10275
      %11600 = vmatpush1.bf16.msra.mxu0 %v10274
      %11601 = vmatprep.subr.bf16.mxu0 %v10279
      %11602 = vmatpush1.bf16.msra.mxu0 %v10278
      %11603 = vmatprep.subr.bf16.mxu0 %v10283
      %11604 = vmatpush1.bf16.msra.mxu0 %v10282
      %11605 = vmatprep.subr.bf16.mxu0 %v10287
      %11606 = vmatpush1.bf16.msra.mxu0 %v10286
      %11607 = vmatprep.subr.bf16.mxu0 %v10291
      %11608 = vmatpush1.bf16.msra.mxu0 %v10290
      %11609 = vmatprep.subr.bf16.mxu0 %v10295
      %11610 = vmatpush1.bf16.msra.mxu0 %v10294
      %11611 = vmatprep.subr.bf16.mxu0 %v10299
      %11612 = vmatpush1.bf16.msra.mxu0 %v10298
      %11613 = vmatprep.subr.bf16.mxu0 %v10303
      %11614 = vmatpush1.bf16.msra.mxu0 %v10302
      %11615 = vmatprep.subr.bf16.mxu0 %v10307
      %11616 = vmatpush1.bf16.msra.mxu0 %v10306
      %11617 = vmatprep.subr.bf16.mxu0 %v10311
      %11618 = vmatpush1.bf16.msra.mxu0 %v10310
      %11619 = vmatprep.subr.bf16.mxu0 %v10315
      %11620 = vmatpush1.bf16.msra.mxu0 %v10314
      %11621 = vmatprep.subr.bf16.mxu0 %v10319
      %11622 = vmatpush1.bf16.msra.mxu0 %v10318
      %11623 = vmatprep.subr.bf16.mxu0 %v10323
      %11624 = vmatpush1.bf16.msra.mxu0 %v10322
      %11625 = vmatprep.subr.bf16.mxu0 %v10327
      %11626 = vmatpush1.bf16.msra.mxu0 %v10326
      %11627 = vmatprep.subr.bf16.mxu0 %v10331
      %11628 = vmatpush1.bf16.msra.mxu0 %v10330
      %11629 = vmatprep.mubr.bf16.mxu0 %v8121
      %11630 = vmatmul.mubr.bf16.gmra.mrb[0].mxu0 %v8120
      %v11631 = vpop.f32.mrb[0].mxu0
      %v11632 = vadd.f32 %v11591, %v11631
      %v11633 = vpop.f32.mrb[0].mxu0
      %v11634 = vadd.f32 %v11593, %v11633
      %v11635 = vpop.f32.mrb[0].mxu0
      %v11636 = vpop.f32.mrb[0].mxu0
      %11637 = vdwg.mxu0
      %11638 = vmatprep.subr.bf16.mxu0 %v10335
      %11639 = vmatpush1.bf16.msra.mxu0 %v10334
      %11640 = vmatprep.subr.bf16.mxu0 %v10339
      %11641 = vmatpush1.bf16.msra.mxu0 %v10338
      %11642 = vmatprep.subr.bf16.mxu0 %v10343
      %11643 = vmatpush1.bf16.msra.mxu0 %v10342
      %11644 = vmatprep.subr.bf16.mxu0 %v10347
      %11645 = vmatpush1.bf16.msra.mxu0 %v10346
      %11646 = vmatprep.subr.bf16.mxu0 %v10351
      %11647 = vmatpush1.bf16.msra.mxu0 %v10350
      %11648 = vmatprep.subr.bf16.mxu0 %v10355
      %11649 = vmatpush1.bf16.msra.mxu0 %v10354
      %11650 = vmatprep.subr.bf16.mxu0 %v10359
      %11651 = vmatpush1.bf16.msra.mxu0 %v10358
      %11652 = vmatprep.subr.bf16.mxu0 %v10363
      %11653 = vmatpush1.bf16.msra.mxu0 %v10362
      %11654 = vmatprep.subr.bf16.mxu0 %v10367
      %11655 = vmatpush1.bf16.msra.mxu0 %v10366
      %11656 = vmatprep.subr.bf16.mxu0 %v10371
      %11657 = vmatpush1.bf16.msra.mxu0 %v10370
      %11658 = vmatprep.subr.bf16.mxu0 %v10375
      %11659 = vmatpush1.bf16.msra.mxu0 %v10374
      %11660 = vmatprep.subr.bf16.mxu0 %v10379
      %11661 = vmatpush1.bf16.msra.mxu0 %v10378
      %11662 = vmatprep.subr.bf16.mxu0 %v10383
      %11663 = vmatpush1.bf16.msra.mxu0 %v10382
      %11664 = vmatprep.subr.bf16.mxu0 %v10387
      %11665 = vmatpush1.bf16.msra.mxu0 %v10386
      %11666 = vmatprep.subr.bf16.mxu0 %v10391
      %11667 = vmatpush1.bf16.msra.mxu0 %v10390
      %11668 = vmatprep.subr.bf16.mxu0 %v10395
      %11669 = vmatpush1.bf16.msra.mxu0 %v10394
      %11670 = vmatprep.mubr.bf16.mxu0 %v8123
      %11671 = vmatmul.mubr.bf16.gmra.mrb[0].mxu0 %v8122
      %v11672 = vpop.f32.mrb[0].mxu0
      %v11673 = vadd.f32 %v11632, %v11672
      %v11674 = vpop.f32.mrb[0].mxu0
      %v11675 = vadd.f32 %v11634, %v11674
      %v11676 = vpop.f32.mrb[0].mxu0
      %v11677 = vpop.f32.mrb[0].mxu0
      %11678 = vdwg.mxu0
      %11679 = vmatprep.subr.bf16.mxu0 %v10399
      %11680 = vmatpush1.bf16.msra.mxu0 %v10398
      %11681 = vmatprep.subr.bf16.mxu0 %v10403
      %11682 = vmatpush1.bf16.msra.mxu0 %v10402
      %11683 = vmatprep.subr.bf16.mxu0 %v10407
      %11684 = vmatpush1.bf16.msra.mxu0 %v10406
      %11685 = vmatprep.subr.bf16.mxu0 %v10411
      %11686 = vmatpush1.bf16.msra.mxu0 %v10410
      %11687 = vmatprep.subr.bf16.mxu0 %v10415
      %11688 = vmatpush1.bf16.msra.mxu0 %v10414
      %11689 = vmatprep.subr.bf16.mxu0 %v10419
      %11690 = vmatpush1.bf16.msra.mxu0 %v10418
      %11691 = vmatprep.subr.bf16.mxu0 %v10423
      %11692 = vmatpush1.bf16.msra.mxu0 %v10422
      %11693 = vmatprep.subr.bf16.mxu0 %v10427
      %11694 = vmatpush1.bf16.msra.mxu0 %v10426
      %11695 = vmatprep.subr.bf16.mxu0 %v10431
      %11696 = vmatpush1.bf16.msra.mxu0 %v10430
      %11697 = vmatprep.subr.bf16.mxu0 %v10435
      %11698 = vmatpush1.bf16.msra.mxu0 %v10434
      %11699 = vmatprep.subr.bf16.mxu0 %v10439
      %11700 = vmatpush1.bf16.msra.mxu0 %v10438
      %11701 = vmatprep.subr.bf16.mxu0 %v10443
      %11702 = vmatpush1.bf16.msra.mxu0 %v10442
      %11703 = vmatprep.subr.bf16.mxu0 %v10447
      %11704 = vmatpush1.bf16.msra.mxu0 %v10446
      %11705 = vmatprep.subr.bf16.mxu0 %v10451
      %11706 = vmatpush1.bf16.msra.mxu0 %v10450
      %11707 = vmatprep.subr.bf16.mxu0 %v10455
      %11708 = vmatpush1.bf16.msra.mxu0 %v10454
      %11709 = vmatprep.subr.bf16.mxu0 %v10459
      %11710 = vmatpush1.bf16.msra.mxu0 %v10458
      %11711 = vmatprep.mubr.bf16.mxu0 %v8125
      %11712 = vmatmul.mubr.bf16.gmra.mrb[0].mxu0 %v8124
      %v11713 = vpop.f32.mrb[0].mxu0
      %v11714 = vadd.f32 %v11673, %v11713
      %v11715 = vpop.f32.mrb[0].mxu0
      %v11716 = vadd.f32 %v11675, %v11715
      %v11717 = vpop.f32.mrb[0].mxu0
      %v11718 = vpop.f32.mrb[0].mxu0
      %11719 = vdwg.mxu0
      %11720 = vmatprep.subr.bf16.mxu0 %v10463
      %11721 = vmatpush1.bf16.msra.mxu0 %v10462
      %11722 = vmatprep.subr.bf16.mxu0 %v10467
      %11723 = vmatpush1.bf16.msra.mxu0 %v10466
      %11724 = vmatprep.subr.bf16.mxu0 %v10471
      %11725 = vmatpush1.bf16.msra.mxu0 %v10470
      %11726 = vmatprep.subr.bf16.mxu0 %v10475
      %11727 = vmatpush1.bf16.msra.mxu0 %v10474
      %11728 = vmatprep.subr.bf16.mxu0 %v10479
      %11729 = vmatpush1.bf16.msra.mxu0 %v10478
      %11730 = vmatprep.subr.bf16.mxu0 %v10483
      %11731 = vmatpush1.bf16.msra.mxu0 %v10482
      %11732 = vmatprep.subr.bf16.mxu0 %v10487
      %11733 = vmatpush1.bf16.msra.mxu0 %v10486
      %11734 = vmatprep.subr.bf16.mxu0 %v10491
      %11735 = vmatpush1.bf16.msra.mxu0 %v10490
      %11736 = vmatprep.subr.bf16.mxu0 %v10495
      %11737 = vmatpush1.bf16.msra.mxu0 %v10494
      %11738 = vmatprep.subr.bf16.mxu0 %v10499
      %11739 = vmatpush1.bf16.msra.mxu0 %v10498
      %11740 = vmatprep.subr.bf16.mxu0 %v10503
      %11741 = vmatpush1.bf16.msra.mxu0 %v10502
      %11742 = vmatprep.subr.bf16.mxu0 %v10507
      %11743 = vmatpush1.bf16.msra.mxu0 %v10506
      %11744 = vmatprep.subr.bf16.mxu0 %v10511
      %11745 = vmatpush1.bf16.msra.mxu0 %v10510
      %11746 = vmatprep.subr.bf16.mxu0 %v10515
      %11747 = vmatpush1.bf16.msra.mxu0 %v10514
      %11748 = vmatprep.subr.bf16.mxu0 %v10519
      %11749 = vmatpush1.bf16.msra.mxu0 %v10518
      %11750 = vmatprep.subr.bf16.mxu0 %v10523
      %11751 = vmatpush1.bf16.msra.mxu0 %v10522
      %11752 = vmatprep.mubr.bf16.mxu0 %v8127
      %11753 = vmatmul.mubr.bf16.gmra.mrb[0].mxu0 %v8126
      %v11754 = vpop.f32.mrb[0].mxu0
      %v11755 = vadd.f32 %v11714, %v11754
      %v11756 = vpop.f32.mrb[0].mxu0
      %v11757 = vadd.f32 %v11716, %v11756
      %v11758 = vpop.f32.mrb[0].mxu0
      %v11759 = vpop.f32.mrb[0].mxu0
      %11760 = vdwg.mxu0
      %11761 = vmatprep.subr.bf16.mxu0 %v10527
      %11762 = vmatpush1.bf16.msra.mxu0 %v10526
      %11763 = vmatprep.subr.bf16.mxu0 %v10531
      %11764 = vmatpush1.bf16.msra.mxu0 %v10530
      %11765 = vmatprep.subr.bf16.mxu0 %v10535
      %11766 = vmatpush1.bf16.msra.mxu0 %v10534
      %11767 = vmatprep.subr.bf16.mxu0 %v10539
      %11768 = vmatpush1.bf16.msra.mxu0 %v10538
      %11769 = vmatprep.subr.bf16.mxu0 %v10543
      %11770 = vmatpush1.bf16.msra.mxu0 %v10542
      %11771 = vmatprep.subr.bf16.mxu0 %v10547
      %11772 = vmatpush1.bf16.msra.mxu0 %v10546
      %11773 = vmatprep.subr.bf16.mxu0 %v10551
      %11774 = vmatpush1.bf16.msra.mxu0 %v10550
      %11775 = vmatprep.subr.bf16.mxu0 %v10555
      %11776 = vmatpush1.bf16.msra.mxu0 %v10554
      %11777 = vmatprep.subr.bf16.mxu0 %v10559
      %11778 = vmatpush1.bf16.msra.mxu0 %v10558
      %11779 = vmatprep.subr.bf16.mxu0 %v10563
      %11780 = vmatpush1.bf16.msra.mxu0 %v10562
      %11781 = vmatprep.subr.bf16.mxu0 %v10567
      %11782 = vmatpush1.bf16.msra.mxu0 %v10566
      %11783 = vmatprep.subr.bf16.mxu0 %v10571
      %11784 = vmatpush1.bf16.msra.mxu0 %v10570
      %11785 = vmatprep.subr.bf16.mxu0 %v10575
      %11786 = vmatpush1.bf16.msra.mxu0 %v10574
      %11787 = vmatprep.subr.bf16.mxu0 %v10579
      %11788 = vmatpush1.bf16.msra.mxu0 %v10578
      %11789 = vmatprep.subr.bf16.mxu0 %v10583
      %11790 = vmatpush1.bf16.msra.mxu0 %v10582
      %11791 = vmatprep.subr.bf16.mxu0 %v10587
      %11792 = vmatpush1.bf16.msra.mxu0 %v10586
      %11793 = vmatprep.mubr.bf16.mxu0 %v8129
      %11794 = vmatmul.mubr.bf16.gmra.mrb[0].mxu0 %v8128
      %v11795 = vpop.f32.mrb[0].mxu0
      %v11796 = vadd.f32 %v11755, %v11795
      %v11797 = vpop.f32.mrb[0].mxu0
      %v11798 = vadd.f32 %v11757, %v11797
      %v11799 = vpop.f32.mrb[0].mxu0
      %v11800 = vpop.f32.mrb[0].mxu0
      %11801 = vdwg.mxu0
      %11802 = vmatprep.subr.bf16.mxu0 %v10591
      %11803 = vmatpush1.bf16.msra.mxu0 %v10590
      %11804 = vmatprep.subr.bf16.mxu0 %v10595
      %11805 = vmatpush1.bf16.msra.mxu0 %v10594
      %11806 = vmatprep.subr.bf16.mxu0 %v10599
      %11807 = vmatpush1.bf16.msra.mxu0 %v10598
      %11808 = vmatprep.subr.bf16.mxu0 %v10603
      %11809 = vmatpush1.bf16.msra.mxu0 %v10602
      %11810 = vmatprep.subr.bf16.mxu0 %v10607
      %11811 = vmatpush1.bf16.msra.mxu0 %v10606
      %11812 = vmatprep.subr.bf16.mxu0 %v10611
      %11813 = vmatpush1.bf16.msra.mxu0 %v10610
      %11814 = vmatprep.subr.bf16.mxu0 %v10615
      %11815 = vmatpush1.bf16.msra.mxu0 %v10614
      %11816 = vmatprep.subr.bf16.mxu0 %v10619
      %11817 = vmatpush1.bf16.msra.mxu0 %v10618
      %11818 = vmatprep.subr.bf16.mxu0 %v10623
      %11819 = vmatpush1.bf16.msra.mxu0 %v10622
      %11820 = vmatprep.subr.bf16.mxu0 %v10627
      %11821 = vmatpush1.bf16.msra.mxu0 %v10626
      %11822 = vmatprep.subr.bf16.mxu0 %v10631
      %11823 = vmatpush1.bf16.msra.mxu0 %v10630
      %11824 = vmatprep.subr.bf16.mxu0 %v10635
      %11825 = vmatpush1.bf16.msra.mxu0 %v10634
      %11826 = vmatprep.subr.bf16.mxu0 %v10639
      %11827 = vmatpush1.bf16.msra.mxu0 %v10638
      %11828 = vmatprep.subr.bf16.mxu0 %v10643
      %11829 = vmatpush1.bf16.msra.mxu0 %v10642
      %11830 = vmatprep.subr.bf16.mxu0 %v10647
      %11831 = vmatpush1.bf16.msra.mxu0 %v10646
      %11832 = vmatprep.subr.bf16.mxu0 %v10651
      %11833 = vmatpush1.bf16.msra.mxu0 %v10650
      %11834 = vmatprep.mubr.bf16.mxu0 %v8131
      %11835 = vmatmul.mubr.bf16.gmra.mrb[0].mxu0 %v8130
      %v11836 = vpop.f32.mrb[0].mxu0
      %v11837 = vadd.f32 %v11796, %v11836
      %v11838 = vpop.f32.mrb[0].mxu0
      %v11839 = vadd.f32 %v11798, %v11838
      %v11840 = vpop.f32.mrb[0].mxu0
      %v11841 = vpop.f32.mrb[0].mxu0
      %11842 = vdwg.mxu0
      %11843 = vmatprep.subr.bf16.mxu0 %v10655
      %11844 = vmatpush1.bf16.msra.mxu0 %v10654
      %11845 = vmatprep.subr.bf16.mxu0 %v10659
      %11846 = vmatpush1.bf16.msra.mxu0 %v10658
      %11847 = vmatprep.subr.bf16.mxu0 %v10663
      %11848 = vmatpush1.bf16.msra.mxu0 %v10662
      %11849 = vmatprep.subr.bf16.mxu0 %v10667
      %11850 = vmatpush1.bf16.msra.mxu0 %v10666
      %11851 = vmatprep.subr.bf16.mxu0 %v10671
      %11852 = vmatpush1.bf16.msra.mxu0 %v10670
      %11853 = vmatprep.subr.bf16.mxu0 %v10675
      %11854 = vmatpush1.bf16.msra.mxu0 %v10674
      %11855 = vmatprep.subr.bf16.mxu0 %v10679
      %11856 = vmatpush1.bf16.msra.mxu0 %v10678
      %11857 = vmatprep.subr.bf16.mxu0 %v10683
      %11858 = vmatpush1.bf16.msra.mxu0 %v10682
      %11859 = vmatprep.subr.bf16.mxu0 %v10687
      %11860 = vmatpush1.bf16.msra.mxu0 %v10686
      %11861 = vmatprep.subr.bf16.mxu0 %v10691
      %11862 = vmatpush1.bf16.msra.mxu0 %v10690
      %11863 = vmatprep.subr.bf16.mxu0 %v10695
      %11864 = vmatpush1.bf16.msra.mxu0 %v10694
      %11865 = vmatprep.subr.bf16.mxu0 %v10699
      %11866 = vmatpush1.bf16.msra.mxu0 %v10698
      %11867 = vmatprep.subr.bf16.mxu0 %v10703
      %11868 = vmatpush1.bf16.msra.mxu0 %v10702
      %11869 = vmatprep.subr.bf16.mxu0 %v10707
      %11870 = vmatpush1.bf16.msra.mxu0 %v10706
      %11871 = vmatprep.subr.bf16.mxu0 %v10711
      %11872 = vmatpush1.bf16.msra.mxu0 %v10710
      %11873 = vmatprep.subr.bf16.mxu0 %v10715
      %11874 = vmatpush1.bf16.msra.mxu0 %v10714
      %11875 = vmatprep.mubr.bf16.mxu0 %v8133
      %11876 = vmatmul.mubr.bf16.gmra.mrb[0].mxu0 %v8132
      %v11877 = vpop.f32.mrb[0].mxu0
      %v11878 = vadd.f32 %v11837, %v11877
      %v11879 = vpop.f32.mrb[0].mxu0
      %v11880 = vadd.f32 %v11839, %v11879
      %v11881 = vpop.f32.mrb[0].mxu0
      %v11882 = vpop.f32.mrb[0].mxu0
      %11883 = vdwg.mxu0
      %v11884 = vmax.f32 %v11550, 0.0
      %v11885 = vmax.f32 %v11552, 0.0
      %v11886 = vmax.f32 %v11878, 0.0
      %v11887 = vmax.f32 %v11880, 0.0
      %v11888 = vpack.c.bf16 %v11884, %v11884
      %v11889 = vpack.c.bf16 %v11885, %v11885
      %v11890 = vpack.c.bf16 %v11886, %v11886
      %v11891 = vpack.c.bf16 %v11887, %v11887
      %v11892 = vld [vmem:[#allocation15] sm:$0xff]
      %v11893 = vld [vmem:[#allocation15 + $0x8] sm:$0xff]
      %v11894 = vld [vmem:[#allocation15 + $0x10] sm:$0xff]
      %v11895 = vld [vmem:[#allocation15 + $0x18] sm:$0xff]
      %v11896 = vld [vmem:[#allocation15 + $0x20] sm:$0xff]
      %v11897 = vld [vmem:[#allocation15 + $0x28] sm:$0xff]
      %v11898 = vld [vmem:[#allocation15 + $0x30] sm:$0xff]
      %v11899 = vld [vmem:[#allocation15 + $0x38] sm:$0xff]
      %v11900 = vld [vmem:[#allocation15 + $0x40] sm:$0xff]
      %v11901 = vld [vmem:[#allocation15 + $0x48] sm:$0xff]
      %v11902 = vld [vmem:[#allocation15 + $0x50] sm:$0xff]
      %v11903 = vld [vmem:[#allocation15 + $0x58] sm:$0xff]
      %v11904 = vld [vmem:[#allocation15 + $0x60] sm:$0xff]
      %v11905 = vld [vmem:[#allocation15 + $0x68] sm:$0xff]
      %v11906 = vld [vmem:[#allocation15 + $0x70] sm:$0xff]
      %v11907 = vld [vmem:[#allocation15 + $0x78] sm:$0xff]
      %v11908 = vld [vmem:[#allocation15 + $0x80] sm:$0xff]
      %v11909 = vld [vmem:[#allocation15 + $0x88] sm:$0xff]
      %v11910 = vld [vmem:[#allocation15 + $0x90] sm:$0xff]
      %v11911 = vld [vmem:[#allocation15 + $0x98] sm:$0xff]
      %v11912 = vld [vmem:[#allocation15 + $0xa0] sm:$0xff]
      %v11913 = vld [vmem:[#allocation15 + $0xa8] sm:$0xff]
      %v11914 = vld [vmem:[#allocation15 + $0xb0] sm:$0xff]
      %v11915 = vld [vmem:[#allocation15 + $0xb8] sm:$0xff]
      %v11916 = vld [vmem:[#allocation15 + $0xc0] sm:$0xff]
      %v11917 = vld [vmem:[#allocation15 + $0xc8] sm:$0xff]
      %v11918 = vld [vmem:[#allocation15 + $0xd0] sm:$0xff]
      %v11919 = vld [vmem:[#allocation15 + $0xd8] sm:$0xff]
      %v11920 = vld [vmem:[#allocation15 + $0xe0] sm:$0xff]
      %v11921 = vld [vmem:[#allocation15 + $0xe8] sm:$0xff]
      %v11922 = vld [vmem:[#allocation15 + $0xf0] sm:$0xff]
      %v11923 = vld [vmem:[#allocation15 + $0xf8] sm:$0xff]
      %v11924 = vld [vmem:[#allocation15 + $0x100] sm:$0xff]
      %v11925 = vld [vmem:[#allocation15 + $0x108] sm:$0xff]
      %v11926 = vld [vmem:[#allocation15 + $0x110] sm:$0xff]
      %v11927 = vld [vmem:[#allocation15 + $0x118] sm:$0xff]
      %v11928 = vld [vmem:[#allocation15 + $0x120] sm:$0xff]
      %v11929 = vld [vmem:[#allocation15 + $0x128] sm:$0xff]
      %v11930 = vld [vmem:[#allocation15 + $0x130] sm:$0xff]
      %v11931 = vld [vmem:[#allocation15 + $0x138] sm:$0xff]
      %v11932 = vld [vmem:[#allocation15 + $0x140] sm:$0xff]
      %v11933 = vld [vmem:[#allocation15 + $0x148] sm:$0xff]
      %v11934 = vld [vmem:[#allocation15 + $0x150] sm:$0xff]
      %v11935 = vld [vmem:[#allocation15 + $0x158] sm:$0xff]
      %v11936 = vld [vmem:[#allocation15 + $0x160] sm:$0xff]
      %v11937 = vld [vmem:[#allocation15 + $0x168] sm:$0xff]
      %v11938 = vld [vmem:[#allocation15 + $0x170] sm:$0xff]
      %v11939 = vld [vmem:[#allocation15 + $0x178] sm:$0xff]
      %v11940 = vld [vmem:[#allocation15 + $0x180] sm:$0xff]
      %v11941 = vld [vmem:[#allocation15 + $0x188] sm:$0xff]
      %v11942 = vld [vmem:[#allocation15 + $0x190] sm:$0xff]
      %v11943 = vld [vmem:[#allocation15 + $0x198] sm:$0xff]
      %v11944 = vld [vmem:[#allocation15 + $0x1a0] sm:$0xff]
      %v11945 = vld [vmem:[#allocation15 + $0x1a8] sm:$0xff]
      %v11946 = vld [vmem:[#allocation15 + $0x1b0] sm:$0xff]
      %v11947 = vld [vmem:[#allocation15 + $0x1b8] sm:$0xff]
      %v11948 = vld [vmem:[#allocation15 + $0x1c0] sm:$0xff]
      %v11949 = vld [vmem:[#allocation15 + $0x1c8] sm:$0xff]
      %v11950 = vld [vmem:[#allocation15 + $0x1d0] sm:$0xff]
      %v11951 = vld [vmem:[#allocation15 + $0x1d8] sm:$0xff]
      %v11952 = vld [vmem:[#allocation15 + $0x1e0] sm:$0xff]
      %v11953 = vld [vmem:[#allocation15 + $0x1e8] sm:$0xff]
      %v11954 = vld [vmem:[#allocation15 + $0x1f0] sm:$0xff]
      %v11955 = vld [vmem:[#allocation15 + $0x1f8] sm:$0xff]
      %v11956 = vld [vmem:[#allocation18] sm:$0x3]
      %v11958 = vlaneseq
      %v11959 = vshrl.u32 %v11958, 7
      %v11960 = vsub.s32 0, %v11959
      %v11961 = vrot.slane %v11956, %v11960
      %v11962 = vlaneseq
      %v11963 = vshrl.u32 %v11962, 7
      %v11964 = vsub.s32 1, %v11963
      %v11965 = vrot.slane %v11956, %v11964
      %v12032 = vunpack.c.l.b16 %v11892
      %v12033 = vunpack.c.h.b16 %v11892
      %v12034 = vunpack.c.l.b16 %v11893
      %v12035 = vunpack.c.h.b16 %v11893
      %v12036 = vunpack.c.l.b16 %v11894
      %v12037 = vunpack.c.h.b16 %v11894
      %v12038 = vunpack.c.l.b16 %v11895
      %v12039 = vunpack.c.h.b16 %v11895
      %v12040 = vunpack.c.l.b16 %v11896
      %v12041 = vunpack.c.h.b16 %v11896
      %v12042 = vunpack.c.l.b16 %v11897
      %v12043 = vunpack.c.h.b16 %v11897
      %v12044 = vunpack.c.l.b16 %v11898
      %v12045 = vunpack.c.h.b16 %v11898
      %v12046 = vunpack.c.l.b16 %v11899
      %v12047 = vunpack.c.h.b16 %v11899
      %v12048 = vunpack.c.l.b16 %v11900
      %v12049 = vunpack.c.h.b16 %v11900
      %v12050 = vunpack.c.l.b16 %v11901
      %v12051 = vunpack.c.h.b16 %v11901
      %v12052 = vunpack.c.l.b16 %v11902
      %v12053 = vunpack.c.h.b16 %v11902
      %v12054 = vunpack.c.l.b16 %v11903
      %v12055 = vunpack.c.h.b16 %v11903
      %v12056 = vunpack.c.l.b16 %v11904
      %v12057 = vunpack.c.h.b16 %v11904
      %v12058 = vunpack.c.l.b16 %v11905
      %v12059 = vunpack.c.h.b16 %v11905
      %v12060 = vunpack.c.l.b16 %v11906
      %v12061 = vunpack.c.h.b16 %v11906
      %v12062 = vunpack.c.l.b16 %v11907
      %v12063 = vunpack.c.h.b16 %v11907
      %v12064 = vunpack.c.l.b16 %v11908
      %v12065 = vunpack.c.h.b16 %v11908
      %v12066 = vunpack.c.l.b16 %v11909
      %v12067 = vunpack.c.h.b16 %v11909
      %v12068 = vunpack.c.l.b16 %v11910
      %v12069 = vunpack.c.h.b16 %v11910
      %v12070 = vunpack.c.l.b16 %v11911
      %v12071 = vunpack.c.h.b16 %v11911
      %v12072 = vunpack.c.l.b16 %v11912
      %v12073 = vunpack.c.h.b16 %v11912
      %v12074 = vunpack.c.l.b16 %v11913
      %v12075 = vunpack.c.h.b16 %v11913
      %v12076 = vunpack.c.l.b16 %v11914
      %v12077 = vunpack.c.h.b16 %v11914
      %v12078 = vunpack.c.l.b16 %v11915
      %v12079 = vunpack.c.h.b16 %v11915
      %v12080 = vunpack.c.l.b16 %v11916
      %v12081 = vunpack.c.h.b16 %v11916
      %v12082 = vunpack.c.l.b16 %v11917
      %v12083 = vunpack.c.h.b16 %v11917
      %v12084 = vunpack.c.l.b16 %v11918
      %v12085 = vunpack.c.h.b16 %v11918
      %v12086 = vunpack.c.l.b16 %v11919
      %v12087 = vunpack.c.h.b16 %v11919
      %v12088 = vunpack.c.l.b16 %v11920
      %v12089 = vunpack.c.h.b16 %v11920
      %v12090 = vunpack.c.l.b16 %v11921
      %v12091 = vunpack.c.h.b16 %v11921
      %v12092 = vunpack.c.l.b16 %v11922
      %v12093 = vunpack.c.h.b16 %v11922
      %v12094 = vunpack.c.l.b16 %v11923
      %v12095 = vunpack.c.h.b16 %v11923
      %v12096 = vunpack.c.l.b16 %v11924
      %v12097 = vunpack.c.h.b16 %v11924
      %v12098 = vunpack.c.l.b16 %v11925
      %v12099 = vunpack.c.h.b16 %v11925
      %v12100 = vunpack.c.l.b16 %v11926
      %v12101 = vunpack.c.h.b16 %v11926
      %v12102 = vunpack.c.l.b16 %v11927
      %v12103 = vunpack.c.h.b16 %v11927
      %v12104 = vunpack.c.l.b16 %v11928
      %v12105 = vunpack.c.h.b16 %v11928
      %v12106 = vunpack.c.l.b16 %v11929
      %v12107 = vunpack.c.h.b16 %v11929
      %v12108 = vunpack.c.l.b16 %v11930
      %v12109 = vunpack.c.h.b16 %v11930
      %v12110 = vunpack.c.l.b16 %v11931
      %v12111 = vunpack.c.h.b16 %v11931
      %v12112 = vunpack.c.l.b16 %v11932
      %v12113 = vunpack.c.h.b16 %v11932
      %v12114 = vunpack.c.l.b16 %v11933
      %v12115 = vunpack.c.h.b16 %v11933
      %v12116 = vunpack.c.l.b16 %v11934
      %v12117 = vunpack.c.h.b16 %v11934
      %v12118 = vunpack.c.l.b16 %v11935
      %v12119 = vunpack.c.h.b16 %v11935
      %v12120 = vunpack.c.l.b16 %v11936
      %v12121 = vunpack.c.h.b16 %v11936
      %v12122 = vunpack.c.l.b16 %v11937
      %v12123 = vunpack.c.h.b16 %v11937
      %v12124 = vunpack.c.l.b16 %v11938
      %v12125 = vunpack.c.h.b16 %v11938
      %v12126 = vunpack.c.l.b16 %v11939
      %v12127 = vunpack.c.h.b16 %v11939
      %v12128 = vunpack.c.l.b16 %v11940
      %v12129 = vunpack.c.h.b16 %v11940
      %v12130 = vunpack.c.l.b16 %v11941
      %v12131 = vunpack.c.h.b16 %v11941
      %v12132 = vunpack.c.l.b16 %v11942
      %v12133 = vunpack.c.h.b16 %v11942
      %v12134 = vunpack.c.l.b16 %v11943
      %v12135 = vunpack.c.h.b16 %v11943
      %v12136 = vunpack.c.l.b16 %v11944
      %v12137 = vunpack.c.h.b16 %v11944
      %v12138 = vunpack.c.l.b16 %v11945
      %v12139 = vunpack.c.h.b16 %v11945
      %v12140 = vunpack.c.l.b16 %v11946
      %v12141 = vunpack.c.h.b16 %v11946
      %v12142 = vunpack.c.l.b16 %v11947
      %v12143 = vunpack.c.h.b16 %v11947
      %v12144 = vunpack.c.l.b16 %v11948
      %v12145 = vunpack.c.h.b16 %v11948
      %v12146 = vunpack.c.l.b16 %v11949
      %v12147 = vunpack.c.h.b16 %v11949
      %v12148 = vunpack.c.l.b16 %v11950
      %v12149 = vunpack.c.h.b16 %v11950
      %v12150 = vunpack.c.l.b16 %v11951
      %v12151 = vunpack.c.h.b16 %v11951
      %v12152 = vunpack.c.l.b16 %v11952
      %v12153 = vunpack.c.h.b16 %v11952
      %v12154 = vunpack.c.l.b16 %v11953
      %v12155 = vunpack.c.h.b16 %v11953
      %v12156 = vunpack.c.l.b16 %v11954
      %v12157 = vunpack.c.h.b16 %v11954
      %v12158 = vunpack.c.l.b16 %v11955
      %v12159 = vunpack.c.h.b16 %v11955
      %v12160 = vpack.c.b16 %v12034, %v12032
      %v12161 = vpack.c.b16 %v12035, %v12033
      %v12162 = vpack.c.b16 %v12038, %v12036
      %v12163 = vpack.c.b16 %v12039, %v12037
      %v12164 = vpack.c.b16 %v12042, %v12040
      %v12165 = vpack.c.b16 %v12043, %v12041
      %v12166 = vpack.c.b16 %v12046, %v12044
      %v12167 = vpack.c.b16 %v12047, %v12045
      %v12168 = vpack.c.b16 %v12050, %v12048
      %v12169 = vpack.c.b16 %v12051, %v12049
      %v12170 = vpack.c.b16 %v12054, %v12052
      %v12171 = vpack.c.b16 %v12055, %v12053
      %v12172 = vpack.c.b16 %v12058, %v12056
      %v12173 = vpack.c.b16 %v12059, %v12057
      %v12174 = vpack.c.b16 %v12062, %v12060
      %v12175 = vpack.c.b16 %v12063, %v12061
      %v12176 = vpack.c.b16 %v12066, %v12064
      %v12177 = vpack.c.b16 %v12067, %v12065
      %v12178 = vpack.c.b16 %v12070, %v12068
      %v12179 = vpack.c.b16 %v12071, %v12069
      %v12180 = vpack.c.b16 %v12074, %v12072
      %v12181 = vpack.c.b16 %v12075, %v12073
      %v12182 = vpack.c.b16 %v12078, %v12076
      %v12183 = vpack.c.b16 %v12079, %v12077
      %v12184 = vpack.c.b16 %v12082, %v12080
      %v12185 = vpack.c.b16 %v12083, %v12081
      %v12186 = vpack.c.b16 %v12086, %v12084
      %v12187 = vpack.c.b16 %v12087, %v12085
      %v12188 = vpack.c.b16 %v12090, %v12088
      %v12189 = vpack.c.b16 %v12091, %v12089
      %v12190 = vpack.c.b16 %v12094, %v12092
      %v12191 = vpack.c.b16 %v12095, %v12093
      %v12192 = vpack.c.b16 %v12098, %v12096
      %v12193 = vpack.c.b16 %v12099, %v12097
      %v12194 = vpack.c.b16 %v12102, %v12100
      %v12195 = vpack.c.b16 %v12103, %v12101
      %v12196 = vpack.c.b16 %v12106, %v12104
      %v12197 = vpack.c.b16 %v12107, %v12105
      %v12198 = vpack.c.b16 %v12110, %v12108
      %v12199 = vpack.c.b16 %v12111, %v12109
      %v12200 = vpack.c.b16 %v12114, %v12112
      %v12201 = vpack.c.b16 %v12115, %v12113
      %v12202 = vpack.c.b16 %v12118, %v12116
      %v12203 = vpack.c.b16 %v12119, %v12117
      %v12204 = vpack.c.b16 %v12122, %v12120
      %v12205 = vpack.c.b16 %v12123, %v12121
      %v12206 = vpack.c.b16 %v12126, %v12124
      %v12207 = vpack.c.b16 %v12127, %v12125
      %v12208 = vpack.c.b16 %v12130, %v12128
      %v12209 = vpack.c.b16 %v12131, %v12129
      %v12210 = vpack.c.b16 %v12134, %v12132
      %v12211 = vpack.c.b16 %v12135, %v12133
      %v12212 = vpack.c.b16 %v12138, %v12136
      %v12213 = vpack.c.b16 %v12139, %v12137
      %v12214 = vpack.c.b16 %v12142, %v12140
      %v12215 = vpack.c.b16 %v12143, %v12141
      %v12216 = vpack.c.b16 %v12146, %v12144
      %v12217 = vpack.c.b16 %v12147, %v12145
      %v12218 = vpack.c.b16 %v12150, %v12148
      %v12219 = vpack.c.b16 %v12151, %v12149
      %v12220 = vpack.c.b16 %v12154, %v12152
      %v12221 = vpack.c.b16 %v12155, %v12153
      %v12222 = vpack.c.b16 %v12158, %v12156
      %v12223 = vpack.c.b16 %v12159, %v12157
      %12288 = vmatprep.subr.bf16.mxu0 %v12161
      %12289 = vmatpush1.bf16.msra.mxu0 %v12160
      %12290 = vmatprep.subr.bf16.mxu0 %v12163
      %12291 = vmatpush1.bf16.msra.mxu0 %v12162
      %12292 = vmatprep.subr.bf16.mxu0 %v12165
      %12293 = vmatpush1.bf16.msra.mxu0 %v12164
      %12294 = vmatprep.subr.bf16.mxu0 %v12167
      %12295 = vmatpush1.bf16.msra.mxu0 %v12166
      %12296 = vmatprep.subr.bf16.mxu0 %v12169
      %12297 = vmatpush1.bf16.msra.mxu0 %v12168
      %12298 = vmatprep.subr.bf16.mxu0 %v12171
      %12299 = vmatpush1.bf16.msra.mxu0 %v12170
      %12300 = vmatprep.subr.bf16.mxu0 %v12173
      %12301 = vmatpush1.bf16.msra.mxu0 %v12172
      %12302 = vmatprep.subr.bf16.mxu0 %v12175
      %12303 = vmatpush1.bf16.msra.mxu0 %v12174
      %12304 = vmatprep.subr.bf16.mxu0 %v12177
      %12305 = vmatpush1.bf16.msra.mxu0 %v12176
      %12306 = vmatprep.subr.bf16.mxu0 %v12179
      %12307 = vmatpush1.bf16.msra.mxu0 %v12178
      %12308 = vmatprep.subr.bf16.mxu0 %v12181
      %12309 = vmatpush1.bf16.msra.mxu0 %v12180
      %12310 = vmatprep.subr.bf16.mxu0 %v12183
      %12311 = vmatpush1.bf16.msra.mxu0 %v12182
      %12312 = vmatprep.subr.bf16.mxu0 %v12185
      %12313 = vmatpush1.bf16.msra.mxu0 %v12184
      %12314 = vmatprep.subr.bf16.mxu0 %v12187
      %12315 = vmatpush1.bf16.msra.mxu0 %v12186
      %12316 = vmatprep.subr.bf16.mxu0 %v12189
      %12317 = vmatpush1.bf16.msra.mxu0 %v12188
      %12318 = vmatprep.subr.bf16.mxu0 %v12191
      %12319 = vmatpush1.bf16.msra.mxu0 %v12190
      %12320 = vmatprep.mubr.bf16.mxu0 %v11889
      %12321 = vmatmul.mubr.bf16.gmra.mrb[0].mxu0 %v11888
      %v12322 = vpop.f32.mrb[0].mxu0
      %v12323 = vadd.f32 %v11961, %v12322
      %v12324 = vpop.f32.mrb[0].mxu0
      %v12325 = vadd.f32 %v11965, %v12324
      %v12326 = vpop.f32.mrb[0].mxu0
      %v12327 = vpop.f32.mrb[0].mxu0
      %12328 = vdwg.mxu0
      %12329 = vmatprep.subr.bf16.mxu0 %v12193
      %12330 = vmatpush1.bf16.msra.mxu0 %v12192
      %12331 = vmatprep.subr.bf16.mxu0 %v12195
      %12332 = vmatpush1.bf16.msra.mxu0 %v12194
      %12333 = vmatprep.subr.bf16.mxu0 %v12197
      %12334 = vmatpush1.bf16.msra.mxu0 %v12196
      %12335 = vmatprep.subr.bf16.mxu0 %v12199
      %12336 = vmatpush1.bf16.msra.mxu0 %v12198
      %12337 = vmatprep.subr.bf16.mxu0 %v12201
      %12338 = vmatpush1.bf16.msra.mxu0 %v12200
      %12339 = vmatprep.subr.bf16.mxu0 %v12203
      %12340 = vmatpush1.bf16.msra.mxu0 %v12202
      %12341 = vmatprep.subr.bf16.mxu0 %v12205
      %12342 = vmatpush1.bf16.msra.mxu0 %v12204
      %12343 = vmatprep.subr.bf16.mxu0 %v12207
      %12344 = vmatpush1.bf16.msra.mxu0 %v12206
      %12345 = vmatprep.subr.bf16.mxu0 %v12209
      %12346 = vmatpush1.bf16.msra.mxu0 %v12208
      %12347 = vmatprep.subr.bf16.mxu0 %v12211
      %12348 = vmatpush1.bf16.msra.mxu0 %v12210
      %12349 = vmatprep.subr.bf16.mxu0 %v12213
      %12350 = vmatpush1.bf16.msra.mxu0 %v12212
      %12351 = vmatprep.subr.bf16.mxu0 %v12215
      %12352 = vmatpush1.bf16.msra.mxu0 %v12214
      %12353 = vmatprep.subr.bf16.mxu0 %v12217
      %12354 = vmatpush1.bf16.msra.mxu0 %v12216
      %12355 = vmatprep.subr.bf16.mxu0 %v12219
      %12356 = vmatpush1.bf16.msra.mxu0 %v12218
      %12357 = vmatprep.subr.bf16.mxu0 %v12221
      %12358 = vmatpush1.bf16.msra.mxu0 %v12220
      %12359 = vmatprep.subr.bf16.mxu0 %v12223
      %12360 = vmatpush1.bf16.msra.mxu0 %v12222
      %12361 = vmatprep.mubr.bf16.mxu0 %v11891
      %12362 = vmatmul.mubr.bf16.gmra.mrb[0].mxu0 %v11890
      %v12363 = vpop.f32.mrb[0].mxu0
      %v12364 = vadd.f32 %v12323, %v12363
      %v12365 = vpop.f32.mrb[0].mxu0
      %v12366 = vadd.f32 %v12325, %v12365
      %v12367 = vpop.f32.mrb[0].mxu0
      %v12368 = vpop.f32.mrb[0].mxu0
      %12369 = vdwg.mxu0
      %v12370 = vld [vmem:[#allocation8] sm:$0x3]
      %v12371 = vld [vmem:[#allocation17] sm:$0xf]
      %12373 = vset.pattern.permute.xlu0 0
      %12374 = vperm.xlu0 %12373, %v12370
      %v12375 = vpop.permute.xlu0 %12374
      %v12378 = vlaneseq
      %v12379 = vshrl.u32 %v12378, 7
      %v12380 = vsub.s32 0, %v12379
      %v12381 = vrot.slane %v12371, %v12380
      %v12382 = vlaneseq
      %v12383 = vshrl.u32 %v12382, 7
      %v12384 = vsub.s32 2, %v12383
      %v12385 = vrot.slane %v12371, %v12384
      %v12388 = vlaneseq
      %v12389 = vshrl.u32 %v12388, 7
      %v12390 = vsub.s32 0, %v12389
      %v12391 = vrot.slane %v12381, %v12390
      %v12392 = vlaneseq
      %v12393 = vshrl.u32 %v12392, 7
      %v12394 = vsub.s32 0, %v12393
      %v12395 = vrot.slane %v12385, %v12394
      %v12396 = vmul.f32 %v12375, %v12391
      %v12397 = vmul.f32 %v12375, %v12395
      %v12398 = vadd.f32 %v12364, %v12396
      %v12399 = vadd.f32 %v12366, %v12397
      %12400 = vset.pattern.permute.xlu0 1
      %12401 = vperm.xlu0 %12400, %v12370
      %v12402 = vpop.permute.xlu0 %12401
      %v12404 = vlaneseq
      %v12405 = vshrl.u32 %v12404, 7
      %v12406 = vsub.s32 1, %v12405
      %v12407 = vrot.slane %v12371, %v12406
      %v12408 = vlaneseq
      %v12409 = vshrl.u32 %v12408, 7
      %v12410 = vsub.s32 3, %v12409
      %v12411 = vrot.slane %v12371, %v12410
      %v12414 = vlaneseq
      %v12415 = vshrl.u32 %v12414, 7
      %v12416 = vsub.s32 1, %v12415
      %v12417 = vrot.slane %v12407, %v12416
      %v12418 = vlaneseq
      %v12419 = vshrl.u32 %v12418, 7
      %v12420 = vsub.s32 1, %v12419
      %v12421 = vrot.slane %v12411, %v12420
      %v12422 = vmul.f32 %v12402, %v12417
      %v12423 = vmul.f32 %v12402, %v12421
      %v12424 = vadd.f32 %v12398, %v12422
      %v12425 = vadd.f32 %v12399, %v12423
      %v12426 = vmax.f32 %v12424, 0.0
      %v12427 = vmax.f32 %v12425, 0.0
      %v12428 = vpack.c.bf16 %v12426, %v12426
      %v12429 = vpack.c.bf16 %v12427, %v12427
      %v12430 = vld [vmem:[#allocation20] sm:$0xf]
      %v12431 = vld [vmem:[#allocation20 + $0x4] sm:$0xf]
      %v12432 = vld [vmem:[#allocation20 + $0x8] sm:$0xf]
      %v12433 = vld [vmem:[#allocation20 + $0xc] sm:$0xf]
      %v12434 = vld [vmem:[#allocation20 + $0x10] sm:$0xf]
      %v12435 = vld [vmem:[#allocation20 + $0x14] sm:$0xf]
      %v12436 = vld [vmem:[#allocation20 + $0x18] sm:$0xf]
      %v12437 = vld [vmem:[#allocation20 + $0x1c] sm:$0xf]
      %v12438 = vld [vmem:[#allocation20 + $0x20] sm:$0xf]
      %v12439 = vld [vmem:[#allocation20 + $0x24] sm:$0xf]
      %v12440 = vld [vmem:[#allocation20 + $0x28] sm:$0xf]
      %v12441 = vld [vmem:[#allocation20 + $0x2c] sm:$0xf]
      %v12442 = vld [vmem:[#allocation20 + $0x30] sm:$0xf]
      %v12443 = vld [vmem:[#allocation20 + $0x34] sm:$0xf]
      %v12444 = vld [vmem:[#allocation20 + $0x38] sm:$0xf]
      %v12445 = vld [vmem:[#allocation20 + $0x3c] sm:$0xf]
      %v12446 = vld [vmem:[#allocation20 + $0x40] sm:$0xf]
      %v12447 = vld [vmem:[#allocation20 + $0x44] sm:$0xf]
      %v12448 = vld [vmem:[#allocation20 + $0x48] sm:$0xf]
      %v12449 = vld [vmem:[#allocation20 + $0x4c] sm:$0xf]
      %v12450 = vld [vmem:[#allocation20 + $0x50] sm:$0xf]
      %v12451 = vld [vmem:[#allocation20 + $0x54] sm:$0xf]
      %v12452 = vld [vmem:[#allocation20 + $0x58] sm:$0xf]
      %v12453 = vld [vmem:[#allocation20 + $0x5c] sm:$0xf]
      %v12454 = vld [vmem:[#allocation20 + $0x60] sm:$0xf]
      %v12455 = vld [vmem:[#allocation20 + $0x64] sm:$0xf]
      %v12456 = vld [vmem:[#allocation20 + $0x68] sm:$0xf]
      %v12457 = vld [vmem:[#allocation20 + $0x6c] sm:$0xf]
      %v12458 = vld [vmem:[#allocation20 + $0x70] sm:$0xf]
      %v12459 = vld [vmem:[#allocation20 + $0x74] sm:$0xf]
      %v12460 = vld [vmem:[#allocation20 + $0x78] sm:$0xf]
      %v12461 = vld [vmem:[#allocation20 + $0x7c] sm:$0xf]
      %v12462 = vld [vmem:[#allocation21] sm:$0x1]
      %v12464 = vlaneseq
      %v12465 = vshrl.u32 %v12464, 7
      %v12466 = vsub.s32 0, %v12465
      %v12467 = vrot.slane %v12462, %v12466
      %v12501 = vunpack.c.l.b16 %v12430
      %v12502 = vunpack.c.l.b16 %v12431
      %v12503 = vunpack.c.l.b16 %v12432
      %v12504 = vunpack.c.l.b16 %v12433
      %v12505 = vunpack.c.l.b16 %v12434
      %v12506 = vunpack.c.l.b16 %v12435
      %v12507 = vunpack.c.l.b16 %v12436
      %v12508 = vunpack.c.l.b16 %v12437
      %v12509 = vunpack.c.l.b16 %v12438
      %v12510 = vunpack.c.l.b16 %v12439
      %v12511 = vunpack.c.l.b16 %v12440
      %v12512 = vunpack.c.l.b16 %v12441
      %v12513 = vunpack.c.l.b16 %v12442
      %v12514 = vunpack.c.l.b16 %v12443
      %v12515 = vunpack.c.l.b16 %v12444
      %v12516 = vunpack.c.l.b16 %v12445
      %v12517 = vunpack.c.l.b16 %v12446
      %v12518 = vunpack.c.l.b16 %v12447
      %v12519 = vunpack.c.l.b16 %v12448
      %v12520 = vunpack.c.l.b16 %v12449
      %v12521 = vunpack.c.l.b16 %v12450
      %v12522 = vunpack.c.l.b16 %v12451
      %v12523 = vunpack.c.l.b16 %v12452
      %v12524 = vunpack.c.l.b16 %v12453
      %v12525 = vunpack.c.l.b16 %v12454
      %v12526 = vunpack.c.l.b16 %v12455
      %v12527 = vunpack.c.l.b16 %v12456
      %v12528 = vunpack.c.l.b16 %v12457
      %v12529 = vunpack.c.l.b16 %v12458
      %v12530 = vunpack.c.l.b16 %v12459
      %v12531 = vunpack.c.l.b16 %v12460
      %v12532 = vunpack.c.l.b16 %v12461
      %v12533 = vpack.c.b16 %v12502, %v12501
      %v12534 = vpack.c.b16 %v12504, %v12503
      %v12535 = vpack.c.b16 %v12506, %v12505
      %v12536 = vpack.c.b16 %v12508, %v12507
      %v12537 = vpack.c.b16 %v12510, %v12509
      %v12538 = vpack.c.b16 %v12512, %v12511
      %v12539 = vpack.c.b16 %v12514, %v12513
      %v12540 = vpack.c.b16 %v12516, %v12515
      %v12541 = vpack.c.b16 %v12518, %v12517
      %v12542 = vpack.c.b16 %v12520, %v12519
      %v12543 = vpack.c.b16 %v12522, %v12521
      %v12544 = vpack.c.b16 %v12524, %v12523
      %v12545 = vpack.c.b16 %v12526, %v12525
      %v12546 = vpack.c.b16 %v12528, %v12527
      %v12547 = vpack.c.b16 %v12530, %v12529
      %v12548 = vpack.c.b16 %v12532, %v12531
      %12565 = vmatprep.subr.bf16.mxu0 0
      %12566 = vmatpush1.bf16.msra.mxu0 %v12533
      %12567 = vmatprep.subr.bf16.mxu0 0
      %12568 = vmatpush1.bf16.msra.mxu0 %v12534
      %12569 = vmatprep.subr.bf16.mxu0 0
      %12570 = vmatpush1.bf16.msra.mxu0 %v12535
      %12571 = vmatprep.subr.bf16.mxu0 0
      %12572 = vmatpush1.bf16.msra.mxu0 %v12536
      %12573 = vmatprep.subr.bf16.mxu0 0
      %12574 = vmatpush1.bf16.msra.mxu0 %v12537
      %12575 = vmatprep.subr.bf16.mxu0 0
      %12576 = vmatpush1.bf16.msra.mxu0 %v12538
      %12577 = vmatprep.subr.bf16.mxu0 0
      %12578 = vmatpush1.bf16.msra.mxu0 %v12539
      %12579 = vmatprep.subr.bf16.mxu0 0
      %12580 = vmatpush1.bf16.msra.mxu0 %v12540
      %12581 = vmatprep.subr.bf16.mxu0 0
      %12582 = vmatpush1.bf16.msra.mxu0 %v12541
      %12583 = vmatprep.subr.bf16.mxu0 0
      %12584 = vmatpush1.bf16.msra.mxu0 %v12542
      %12585 = vmatprep.subr.bf16.mxu0 0
      %12586 = vmatpush1.bf16.msra.mxu0 %v12543
      %12587 = vmatprep.subr.bf16.mxu0 0
      %12588 = vmatpush1.bf16.msra.mxu0 %v12544
      %12589 = vmatprep.subr.bf16.mxu0 0
      %12590 = vmatpush1.bf16.msra.mxu0 %v12545
      %12591 = vmatprep.subr.bf16.mxu0 0
      %12592 = vmatpush1.bf16.msra.mxu0 %v12546
      %12593 = vmatprep.subr.bf16.mxu0 0
      %12594 = vmatpush1.bf16.msra.mxu0 %v12547
      %12595 = vmatprep.subr.bf16.mxu0 0
      %12596 = vmatpush1.bf16.msra.mxu0 %v12548
      %12597 = vmatprep.mubr.bf16.mxu0 %v12429
      %12598 = vmatmul.mubr.bf16.gmra.mrb[0].mxu0 %v12428
      %v12599 = vpop.f32.mrb[0].mxu0
      %v12600 = vadd.f32 %v12467, %v12599
      %v12601 = vpop.f32.mrb[0].mxu0
      %v12602 = vpop.f32.mrb[0].mxu0
      %v12603 = vpop.f32.mrb[0].mxu0
      %12604 = vdwg.mxu0
      %12605 = vst [vmem:[#allocation23] sm:$0x3] %v12600
    $region105: #{tpu_custom_call.1} parent=1 // pred_fallthru
      _
    // Predicated region
    $region106: #{tpu_custom_call.1} parent=1 // pred_check
      _
    $region107: #{tpu_custom_call.1} parent=1 // pred_check_branch
      %12607 = sbr.rel (0) target = $region109
    $region108: #{tpu_custom_call.1} parent=1 // pred_region
      %s12609 = ssub.s32 32, 32
      %12610 = vsyncadd [#allocation5], %s12609
      %s12612 = sshll.u32 [#allocation23], 4
      %s12613 = int_to_ptr.vmem [resolvable:$true] %s12612
      %12615 = dma.vmem_to_hbm [thread:$0]  %s12613, 32, %s12, [#allocation5]
    $region109: #{tpu_custom_call.1} parent=1 // pred_fallthru
      _
    // Predicated region
    $region110: #{tpu_custom_call.1} parent=1 // pred_check
      _
    $region111: #{tpu_custom_call.1} parent=1 // pred_check_branch
      %12617 = sbr.rel (0) target = $region113
    $region112: #{tpu_custom_call.1} parent=1 // pred_region
      %12618 = dma.done [#allocation5], 32
    $region113: #{tpu_custom_call.1} parent=1 // pred_fallthru
      _
    %12619 = vsyncpa [#allocation4], 1
    %12620 = vsyncpa [#allocation7], 1
    %12621 = vsyncpa [#allocation10], 1
    %12622 = vsyncpa [#allocation13], 1
    %12623 = vsyncpa [#allocation16], 1
    %12624 = vsyncpa [#allocation19], 1
    %12625 = vsyncpa [#allocation22], 1
    %12626 = vsyncpa [#allocation5], 1

</llo_original>
